<compile_context>
chip_gen: v6e
topology: v6e:2x2x1
jax: 0.10.0
libtpu: 0.0.40
codegen_flags: <defaults>
</compile_context>

<pallas_src>
import functools

import numpy as np
import jax
import jax.numpy as jnp
from jax import lax
from jax.experimental import pallas as pl
from jax.experimental.pallas import tpu as pltpu


# ---------------------------------------------------------------------------
# Kernel 1: fused matmul + folded BatchNorm, transposed (lane-dense) form.
#   out (N, M) = (W (N, K) @ A (K, M)) * scale (N, 1) + bias (N, 1)
#   Used for the 4-dilation branch convs (block-diagonal weight over the
#   concatenated im2col) and for the final 1x1 conv.  M = B*H*W on lanes.
# ---------------------------------------------------------------------------
def _mm_bn_kernel(w_ref, a_ref, s_ref, t_ref, o_ref):
    y = jnp.dot(w_ref[...], a_ref[...], preferred_element_type=jnp.float32)
    o_ref[...] = y * s_ref[...] + t_ref[...]


def matmul_bn_t(w_bf16, a_bf16, scale, bias):
    """w: (N, K) bf16, a: (K, M) bf16 -> (N, M) f32 = (w @ a) * scale + bias."""
    N, K = w_bf16.shape
    K2, M = a_bf16.shape
    assert K == K2
    # 2 lane-tiles of 256 -> both v7x TensorCores; ~free on 1-TC v5e/v6e.
    bm = 256 if (M % 256 == 0 and M // 256 >= 2) else M
    return pl.pallas_call(
        _mm_bn_kernel,
        out_shape=jax.ShapeDtypeStruct((N, M), jnp.float32),
        grid=(M // bm,),
        in_specs=[
            pl.BlockSpec((N, K), lambda i: (0, 0)),      # grid-invariant weight
            pl.BlockSpec((K, bm), lambda i: (0, i)),
            pl.BlockSpec((N, 1), lambda i: (0, 0)),
            pl.BlockSpec((N, 1), lambda i: (0, 0)),
        ],
        out_specs=pl.BlockSpec((N, bm), lambda i: (0, i)),
        compiler_params=pltpu.CompilerParams(dimension_semantics=("parallel",)),
    )(w_bf16, a_bf16, scale.reshape(N, 1), bias.reshape(N, 1))


# ---------------------------------------------------------------------------
# Kernel 2: fully fused Cross-ViT stage (per batch element).
#   embed -> +pos -> depth x [ LN, fused-head QKV, softmax(QK^T)V per head,
#   single out-proj, residual, LN, FFN(gelu), residual ] both directions ->
#   output projection -> return xo + yo (HF only consumes the sum).
# ---------------------------------------------------------------------------
def _cross_vit_kernel(xp_ref, yp_ref, emb_w_ref, emb_b_ref, pos_ref,
                      ln_g_ref, ln_b_ref, wq_ref, wk_ref, wv_ref, wo_ref,
                      bo_ref, w1_ref, b1_ref, w2_ref, b2_ref,
                      out_w_ref, out_b_ref, o_ref, *, depth, heads, dim_head):

    def mm(a, w_bf16):                        # bf16 MXU matmul, f32 accumulate
        return jnp.dot(a.astype(jnp.bfloat16), w_bf16,
                       preferred_element_type=jnp.float32)

    def ln(x, g, b):                          # LayerNorm over last dim, f32
        mu = jnp.mean(x, axis=-1, keepdims=True)
        var = jnp.mean((x - mu) ** 2, axis=-1, keepdims=True)
        return (x - mu) * jax.lax.rsqrt(var + 1e-5) * g + b

    scale = float(dim_head) ** -0.5

    def block(src_q, src_kv, l, d):
        g = ln_g_ref[l, d]                    # (3, dim)
        b = ln_b_ref[l, d]
        q_in = ln(src_q, g[0:1], b[0:1])
        kv_in = ln(src_kv, g[1:2], b[1:2])
        # fused-head projections: one MXU pass each for Q / K / V
        q = mm(q_in, wq_ref[l, d])            # (n, heads*dh)
        k = mm(kv_in, wk_ref[l, d])
        v = mm(kv_in, wv_ref[l, d])
        outs = []
        for h in range(heads):
            lo = h * dim_head
            qh = q[:, lo:lo + dim_head]
            kh = k[:, lo:lo + dim_head]
            vh = v[:, lo:lo + dim_head]
            # q @ k^T without materializing the transpose (NT dot_general)
            s = lax.dot_general(qh.astype(jnp.bfloat16), kh.astype(jnp.bfloat16),
                                (((1,), (1,)), ((), ())),
                                preferred_element_type=jnp.float32) * scale
            s = s - jnp.max(s, axis=-1, keepdims=True)
            p = jnp.exp(s)
            p = p * pl.reciprocal(jnp.sum(p, axis=-1, keepdims=True), approx=True)
            outs.append(jnp.dot(p.astype(jnp.bfloat16), vh.astype(jnp.bfloat16),
                                preferred_element_type=jnp.float32))     # (n, dh)
        o = jnp.concatenate(outs, axis=-1) if heads > 1 else outs[0]     # (n, inner)
        out = src_q + mm(o, wo_ref[l, d]) + bo_ref[l, d]                 # single out-proj
        # FFN
        f_in = ln(out, g[2:3], b[2:3])
        # TODO(synk): jax.nn.gelu uses the tanh approximation; PyTorch nn.GELU
        # default is exact erf (erf has no guaranteed Mosaic lowering).
        hdn = jax.nn.gelu(mm(f_in, w1_ref[l, d]) + b1_ref[l, d])
        out = out + mm(hdn, w2_ref[l, d]) + b2_ref[l, d]
        return out

    x = mm(xp_ref[0], emb_w_ref[0]) + emb_b_ref[0] + pos_ref[0]          # (n, dim)
    y = mm(yp_ref[0], emb_w_ref[1]) + emb_b_ref[1] + pos_ref[1]
    for l in range(depth):
        x = block(x, y, l, 0)     # x attends to y, then x-FFN
        y = block(y, x, l, 1)     # y attends to updated x, then y-FFN
    xo = mm(x, out_w_ref[0]) + out_b_ref[0]                              # (n, pd)
    yo = mm(y, out_w_ref[1]) + out_b_ref[1]
    o_ref[0] = xo + yo


def cross_vit_stage(p, x_img, y_img, cfg):
    B, C, H, W = x_img.shape
    p1, p2 = cfg["p1"], cfg["p2"]
    h, w = H // p1, W // p2
    n = h * w
    pd = C * p1 * p2
    xp = patchify(x_img, p1, p2)
    yp = patchify(y_img, p1, p2)

    names = ["emb_w", "emb_b", "pos", "ln_g", "ln_b", "wq", "wk", "wv", "wo",
             "bo", "w1", "b1", "w2", "b2", "out_w", "out_b"]
    weights = [p[nm] for nm in names]

    def full_spec(arr):
        nd = arr.ndim
        return pl.BlockSpec(arr.shape, lambda i, nd=nd: (0,) * nd)

    kern = functools.partial(_cross_vit_kernel, depth=cfg["depth"],
                             heads=cfg["heads"], dim_head=cfg["dim_head"])
    # TODO(synk): on 1-TC chips (v5e/v6e) folding B into one block would double
    # sublane occupancy; grid=(B,) "parallel" keeps both v7x TensorCores busy.
    out = pl.pallas_call(
        kern,
        out_shape=jax.ShapeDtypeStruct((B, n, pd), jnp.float32),
        grid=(B,),
        in_specs=[pl.BlockSpec((1, n, pd), lambda i: (i, 0, 0)),
                  pl.BlockSpec((1, n, pd), lambda i: (i, 0, 0))]
                 + [full_spec(a) for a in weights],
        out_specs=pl.BlockSpec((1, n, pd), lambda i: (i, 0, 0)),
        compiler_params=pltpu.CompilerParams(dimension_semantics=("parallel",)),
    )(xp, yp, *weights)
    return unpatchify(out, C, p1, p2, h, w)


# ---------------------------------------------------------------------------
# Kernel 3: fully fused CBAM gate (per batch element).
#   out = f + f * SA(f * CA(f))
#   Channel MLP done on the VPU (tiny); the 7x7 spatial conv is one lane-dense
#   bf16 MXU matmul: [avg_s | max_s] (1, 2*HW) @ T (2*HW, HW).
# ---------------------------------------------------------------------------
def _cbam_kernel(f_ref, w1_ref, w2t_ref, tsp_ref, o_ref):
    f = f_ref[0]                                        # (C, HW) f32
    avg_c = jnp.mean(f, axis=-1, keepdims=True)         # (C, 1)
    max_c = jnp.max(f, axis=-1, keepdims=True)
    w1 = w1_ref[...]                                    # (C, hidden)
    w2t = w2t_ref[...]                                  # (C, hidden)

    def mlp(pool):                                      # (C,1) -> (C,1), pure VPU
        hcol = jnp.maximum(jnp.sum(w1 * pool, axis=0, keepdims=True), 0.0)
        return jnp.sum(w2t * hcol, axis=-1, keepdims=True)

    ca = jax.nn.sigmoid(mlp(avg_c) + mlp(max_c))        # (C, 1)
    g = f * ca                                          # channel gate
    avg_s = jnp.mean(g, axis=0, keepdims=True)          # (1, HW)
    max_s = jnp.max(g, axis=0, keepdims=True)
    sp = jnp.concatenate([avg_s, max_s], axis=-1)       # (1, 2*HW)
    logits = jnp.dot(sp.astype(jnp.bfloat16), tsp_ref[...],
                     preferred_element_type=jnp.float32)   # single MXU pass
    sa = jax.nn.sigmoid(logits)                         # (1, HW)
    o_ref[0] = f + f * sa                               # f + f * SA(...)


def cbam(p, f):
    B, C, H, W = f.shape
    HW = H * W
    f3 = f.reshape(B, C, HW)
    out = pl.pallas_call(
        _cbam_kernel,
        out_shape=jax.ShapeDtypeStruct((B, C, HW), jnp.float32),
        grid=(B,),
        in_specs=[pl.BlockSpec((1, C, HW), lambda i: (i, 0, 0)),
                  pl.BlockSpec(p["w1"].shape, lambda i: (0, 0)),
                  pl.BlockSpec(p["w2t"].shape, lambda i: (0, 0)),
                  pl.BlockSpec(p["tsp"].shape, lambda i: (0, 0))],
        out_specs=pl.BlockSpec((1, C, HW), lambda i: (i, 0, 0)),
        compiler_params=pltpu.CompilerParams(dimension_semantics=("parallel",)),
    )(f3, p["w1"], p["w2t"], p["tsp"])
    return out.reshape(B, C, H, W)


# ---------------------------------------------------------------------------
# wrapper-side glue (XLA): im2col via conv_general_dilated_patches, patchify
# TODO(synk): patchify/unpatchify stay as XLA reshape/transpose glue (in-kernel
# versions need sublane<->lane reshuffles Mosaic may reject at these layouts).
# ---------------------------------------------------------------------------
def dilated_patches(x, d):
    """x: (B, C, H, W) -> (C*9, B*H*W) im2col for a 3x3 conv, dilation d, 'same'.

    Feature ordering is (c, ky, kx) with c slowest, matching
    w.reshape(cout, cin*3*3)."""
    patches = lax.conv_general_dilated_patches(
        x, filter_shape=(3, 3), window_strides=(1, 1),
        padding=((d, d), (d, d)), rhs_dilation=(d, d))   # (B, C*9, H, W)
    B, F, H, W = patches.shape
    return patches.transpose(1, 0, 2, 3).reshape(F, B * H * W)


def patchify(x, p1, p2):
    B, C, H, W = x.shape
    h, w = H // p1, W // p2
    x = x.reshape(B, C, h, p1, w, p2).transpose(0, 2, 4, 3, 5, 1)
    return x.reshape(B, h * w, p1 * p2 * C)


def unpatchify(x, C, p1, p2, h, w):
    B = x.shape[0]
    x = x.reshape(B, h, w, p1, p2, C).transpose(0, 5, 1, 3, 2, 4)
    return x.reshape(B, C, h * p1, w * p2)


# ---------------------------------------------------------------------------
# HF forward
# ---------------------------------------------------------------------------
def hf_forward(params, rgb, depth, cfg):
    B, Cin, H, W = rgb.shape
    C4 = Cin // 4
    dil = (1, 3, 5, 7)

    def branches(img, gp):
        # all 4 dilated convs of one input in a single lane-dense fused matmul
        cols = jnp.concatenate([dilated_patches(img, d) for d in dil], axis=0)
        y = matmul_bn_t(gp["w"], cols.astype(jnp.bfloat16),
                        gp["scale"], gp["bias"])          # (4*C4, B*H*W)
        y = y.reshape(4, C4, B, H, W)
        return [y[i].transpose(1, 0, 2, 3) for i in range(4)]   # 4 x (B, C4, H, W)

    rb = branches(rgb, params["rgb_branches"])
    db = branches(depth, params["d_branches"])

    f1 = cbam(params["cbam1"], cross_vit_stage(params["cv1"], rb[0], db[0], cfg))
    f2 = cbam(params["cbam2"], cross_vit_stage(params["cv2"], rb[1] + f1, db[1], cfg))
    f3 = cbam(params["cbam3"], cross_vit_stage(params["cv3"], rb[2] + f2, db[2], cfg))
    # NOTE: the original PyTorch forward reuses self.d_b2(depth) for branch 4.
    f4 = cbam(params["cbam4"], cross_vit_stage(params["cv4"], rb[3] + f3, db[1], cfg))

    f = jnp.concatenate([f1, f2, f3, f4], axis=1)                 # (B, Cin, H, W)
    a = f.transpose(1, 0, 2, 3).reshape(Cin, B * H * W).astype(jnp.bfloat16)
    y = matmul_bn_t(params["conv"]["w"], a, params["conv"]["scale"],
                    params["conv"]["bias"])                       # (4*Cin, B*H*W)
    return y.reshape(Cin * 4, B, H, W).transpose(1, 0, 2, 3)


# ---------------------------------------------------------------------------
# deterministic parameter initialization
# ---------------------------------------------------------------------------
def init_linear(key, din, dout, bias=True):
    kw, kb = jax.random.split(key)
    w = jax.random.normal(kw, (din, dout), jnp.float32) / np.sqrt(din)
    b = 0.02 * jax.random.normal(kb, (dout,), jnp.float32) if bias else None
    return w, b


def init_basic_conv(key, cin, cout, k):
    k1, k2, k3 = jax.random.split(key, 3)
    w = jax.random.normal(k1, (cout, cin, k, k), jnp.float32) / np.sqrt(cin * k * k)
    gamma = 1.0 + 0.1 * jax.random.normal(k2, (cout,), jnp.float32)
    beta = 0.1 * jax.random.normal(k3, (cout,), jnp.float32)
    # TODO(synk): BN fold assumes running_mean=0 / running_var=1 (synthetic init);
    #             real checkpoints must fold the actual running stats.
    scale = gamma / jnp.sqrt(1.0 + 1e-5)
    bias = beta
    return {"w": w.reshape(cout, cin * k * k), "scale": scale, "bias": bias}


def init_branch_group(keys, cin, cout, k=3, n_branch=4):
    """Block-diagonal (N, K) weight fusing the 4 dilated convs into one matmul."""
    convs = [init_basic_conv(keys[i], cin, cout, k) for i in range(n_branch)]
    kk = cin * k * k
    w_big = np.zeros((n_branch * cout, n_branch * kk), np.float32)
    for i, c in enumerate(convs):
        w_big[i * cout:(i + 1) * cout, i * kk:(i + 1) * kk] = np.asarray(c["w"])
    scale = jnp.concatenate([c["scale"] for c in convs])
    bias = jnp.concatenate([c["bias"] for c in convs])
    return {"w": jnp.asarray(w_big).astype(jnp.bfloat16), "scale": scale, "bias": bias}


def init_cross_vit(key, C, dim, depth, heads, mlp_dim, num, dim_head, p1, p2):
    patch_dim = C * p1 * p2
    inner = heads * dim_head
    keys = jax.random.split(key, 8 + depth)

    emb_x_w, emb_x_b = init_linear(keys[0], patch_dim, dim)
    emb_y_w, emb_y_b = init_linear(keys[1], patch_dim, dim)
    pos_x = 0.02 * jax.random.normal(keys[2], (num, dim), jnp.float32)
    pos_y = 0.02 * jax.random.normal(keys[3], (num, dim), jnp.float32)
    out_x_w, out_x_b = init_linear(keys[4], dim, patch_dim)
    out_y_w, out_y_b = init_linear(keys[5], dim, patch_dim)

    wq, wk, wv, wo, bo, w1, b1, w2, b2 = ([] for _ in range(9))
    for dth in range(depth):
        lk = jax.random.split(keys[8 + dth], 12)
        q_d, k_d, v_d, o_d, bo_d = [], [], [], [], []
        w1_d, b1_d, w2_d, b2_d = [], [], [], []
        for s in range(2):            # 0: x attends y, 1: y attends x
            base = 6 * s
            wq_s, _ = init_linear(lk[base + 0], dim, inner, bias=False)
            wk_s, _ = init_linear(lk[base + 1], dim, inner, bias=False)
            wv_s, _ = init_linear(lk[base + 2], dim, inner, bias=False)
            wo_s, bo_s = init_linear(lk[base + 3], inner, dim)
            w1_s, b1_s = init_linear(lk[base + 4], dim, mlp_dim)
            w2_s, b2_s = init_linear(lk[base + 5], mlp_dim, dim)
            q_d.append(wq_s); k_d.append(wk_s); v_d.append(wv_s)
            o_d.append(wo_s); bo_d.append(bo_s.reshape(1, dim))
            w1_d.append(w1_s); b1_d.append(b1_s.reshape(1, mlp_dim))
            w2_d.append(w2_s); b2_d.append(b2_s.reshape(1, dim))
        wq.append(jnp.stack(q_d)); wk.append(jnp.stack(k_d)); wv.append(jnp.stack(v_d))
        wo.append(jnp.stack(o_d)); bo.append(jnp.stack(bo_d))
        w1.append(jnp.stack(w1_d)); b1.append(jnp.stack(b1_d))
        w2.append(jnp.stack(w2_d)); b2.append(jnp.stack(b2_d))

    bf = lambda xs: jnp.stack(xs).astype(jnp.bfloat16)
    f32 = lambda xs: jnp.stack(xs)
    return {
        "emb_w": jnp.stack([emb_x_w, emb_y_w]).astype(jnp.bfloat16),      # (2,pd,dim)
        "emb_b": jnp.stack([emb_x_b.reshape(1, dim), emb_y_b.reshape(1, dim)]),
        "pos":   jnp.stack([pos_x, pos_y]),                               # (2,n,dim)
        "out_w": jnp.stack([out_x_w, out_y_w]).astype(jnp.bfloat16),      # (2,dim,pd)
        "out_b": jnp.stack([out_x_b.reshape(1, patch_dim),
                            out_y_b.reshape(1, patch_dim)]),
        "ln_g": jnp.ones((depth, 2, 3, dim), jnp.float32),
        "ln_b": jnp.zeros((depth, 2, 3, dim), jnp.float32),
        # fused-head layouts: (depth, 2, dim, heads*dim_head) etc.
        "wq": bf(wq), "wk": bf(wk), "wv": bf(wv), "wo": bf(wo), "bo": f32(bo),
        "w1": bf(w1), "b1": f32(b1), "w2": bf(w2), "b2": f32(b2),
    }


def init_cbam(key, C, H, W, ratio=4):
    hidden = max(C // ratio, 1)
    k1, k2, k3 = jax.random.split(key, 3)
    w1 = jax.random.normal(k1, (C, hidden), jnp.float32) / np.sqrt(C)
    w2 = jax.random.normal(k2, (hidden, C), jnp.float32) / np.sqrt(hidden)
    w7 = np.asarray(jax.random.normal(k3, (1, 2, 7, 7), jnp.float32)) / np.sqrt(2 * 49)
    # Precompute the zero-padded 7x7 conv as a stacked band matrix so the whole
    # spatial attention is one MXU pass: logits = [avg_s | max_s] @ T.
    # TODO(synk): T is O(HW^2); at larger spatial sizes tile it (or use a direct
    # 7x7 conv) -- 64x64 would already be 64 MiB = all of v7x VMEM.
    HW = H * W
    T = np.zeros((2, HW, HW), np.float32)
    for c in range(2):
        for dy in range(7):
            for dx in range(7):
                wv = w7[0, c, dy, dx]
                for oy in range(H):
                    iy = oy + dy - 3
                    if not (0 <= iy < H):
                        continue
                    for ox in range(W):
                        ix = ox + dx - 3
                        if 0 <= ix < W:
                            T[c, iy * W + ix, oy * W + ox] += wv
    return {"w1": w1, "w2t": jnp.asarray(np.asarray(w2).T),
            "tsp": jnp.asarray(T.reshape(2 * HW, HW)).astype(jnp.bfloat16)}


def init_hf_params(key, cfg, H, W):
    Cin = cfg["in_channel"]
    C4 = Cin // 4
    ks = jax.random.split(key, 16)
    p = {}
    p["rgb_branches"] = init_branch_group(jax.random.split(ks[0], 4), Cin, C4)
    p["d_branches"] = init_branch_group(jax.random.split(ks[1], 4), Cin, C4)
    for i in range(4):
        p[f"cv{i+1}"] = init_cross_vit(ks[2 + i], C4, cfg["dim"], cfg["depth"],
                                       cfg["heads"], cfg["mlp_dim"], cfg["num"],
                                       cfg["dim_head"], cfg["p1"], cfg["p2"])
        p[f"cbam{i+1}"] = init_cbam(ks[6 + i], C4, H, W, ratio=4)
    cfin = init_basic_conv(ks[10], Cin, Cin * 4, 1)
    p["conv"] = {"w": cfin["w"].astype(jnp.bfloat16),     # (4*Cin, Cin)
                 "scale": cfin["scale"], "bias": cfin["bias"]}
    return p


# ---------------------------------------------------------------------------
# main
# ---------------------------------------------------------------------------
if __name__ == "__main__":
    cfg = dict(in_channel=16, dim=32, depth=1, heads=2, mlp_dim=64, num=16,
               dim_head=16, dropout=0.0, emb_dropout=0.0, p1=4, p2=4, h=4, w=4)
    B = 2
    H = cfg["h"] * cfg["p1"]
    W = cfg["w"] * cfg["p2"]
    assert cfg["num"] == cfg["h"] * cfg["w"]

    key = jax.random.PRNGKey(0)
    kp, kr, kd = jax.random.split(key, 3)
    params = init_hf_params(kp, cfg, H, W)
    rgb = jax.random.normal(kr, (B, cfg["in_channel"], H, W), jnp.float32)
    dep = jax.random.normal(kd, (B, cfg["in_channel"], H, W), jnp.float32)

    fwd = jax.jit(lambda p, r, d: hf_forward(p, r, d, cfg))
    out = jax.block_until_ready(fwd(params, rgb, dep))

    assert out.shape == (B, cfg["in_channel"] * 4, H, W), out.shape
    assert bool(jnp.all(jnp.isfinite(out)))
    print("KERNEL_OK")
</pallas_src>

<mosaic_0001>
module attributes {stable_mosaic.version = 11 : i64} {
  func.func @_mm_bn_kernel(%arg0: i32, %arg1: memref<16x576xbf16, #tpu.memory_space<vmem>>, %arg2: memref<576x256xbf16, #tpu.memory_space<vmem>>, %arg3: memref<16x1xf32, #tpu.memory_space<vmem>>, %arg4: memref<16x1xf32, #tpu.memory_space<vmem>>, %arg5: memref<16x256xf32, #tpu.memory_space<vmem>>) attributes {dimension_semantics = [#tpu.dimension_semantics<parallel>], iteration_bounds = array<i64: 2>, scalar_prefetch = 0 : i64, scratch_operands = 0 : i64, tpu.core_type = #tpu.core_type<tc>, window_params = [{pipeline_mode = #tpu.pipeline_mode<synchronous>, transform_indices = @transform_0, window_bounds = array<i64: 16, 576>}, {transform_indices = @transform_1, window_bounds = array<i64: 576, 256>}, {pipeline_mode = #tpu.pipeline_mode<synchronous>, transform_indices = @transform_2, window_bounds = array<i64: 16, 1>}, {pipeline_mode = #tpu.pipeline_mode<synchronous>, transform_indices = @transform_3, window_bounds = array<i64: 16, 1>}, {transform_indices = @transform_4, window_bounds = array<i64: 16, 256>}]} {
    %c0 = arith.constant 0 : index
    %c0_0 = arith.constant 0 : index
    %0 = vector.load %arg1[%c0, %c0_0] : memref<16x576xbf16, #tpu.memory_space<vmem>>, vector<16x576xbf16>
    %c0_1 = arith.constant 0 : index
    %c0_2 = arith.constant 0 : index
    %1 = vector.load %arg2[%c0_1, %c0_2] : memref<576x256xbf16, #tpu.memory_space<vmem>>, vector<576x256xbf16>
    %cst = arith.constant dense<0.000000e+00> : vector<16x256xf32>
    %2 = tpu.matmul %0, %1, %cst {dimension_numbers = #tpu.dot_dimension_numbers<[1], [0], [0], [1], [0, 0, 1, 1], [], []>} : vector<16x576xbf16>, vector<576x256xbf16>, vector<16x256xf32> -> vector<16x256xf32>
    %c0_3 = arith.constant 0 : index
    %c0_4 = arith.constant 0 : index
    %3 = vector.load %arg3[%c0_3, %c0_4] : memref<16x1xf32, #tpu.memory_space<vmem>>, vector<16x1xf32>
    %4 = vector.broadcast %3 : vector<16x1xf32> to vector<16x256xf32>
    %5 = arith.mulf %2, %4 : vector<16x256xf32>
    %c0_5 = arith.constant 0 : index
    %c0_6 = arith.constant 0 : index
    %6 = vector.load %arg4[%c0_5, %c0_6] : memref<16x1xf32, #tpu.memory_space<vmem>>, vector<16x1xf32>
    %7 = vector.broadcast %6 : vector<16x1xf32> to vector<16x256xf32>
    %8 = arith.addf %5, %7 : vector<16x256xf32>
    %c0_7 = arith.constant 0 : index
    %c0_8 = arith.constant 0 : index
    %9 = vector.load %arg5[%c0_7, %c0_8] : memref<16x256xf32, #tpu.memory_space<vmem>>, vector<16x256xf32>
    tpu.vector_store %arg5[%c0_7, %c0_8], %8 {strides = array<i32>} : memref<16x256xf32, #tpu.memory_space<vmem>>, vector<16x256xf32>,
    return
  }
  func.func @transform_0(%arg0: i32) -> (i32, i32) {
    %c0_i32 = arith.constant 0 : i32
    %c0_i32_0 = arith.constant 0 : i32
    %c0_i32_1 = arith.constant 0 : i32
    return %c0_i32, %c0_i32_0 : i32, i32
  }
  func.func @transform_1(%arg0: i32) -> (i32, i32) {
    %c0_i32 = arith.constant 0 : i32
    %c0_i32_0 = arith.constant 0 : i32
    return %c0_i32, %arg0 : i32, i32
  }
  func.func @transform_2(%arg0: i32) -> (i32, i32) {
    %c0_i32 = arith.constant 0 : i32
    %c0_i32_0 = arith.constant 0 : i32
    %c0_i32_1 = arith.constant 0 : i32
    return %c0_i32, %c0_i32_0 : i32, i32
  }
  func.func @transform_3(%arg0: i32) -> (i32, i32) {
    %c0_i32 = arith.constant 0 : i32
    %c0_i32_0 = arith.constant 0 : i32
    %c0_i32_1 = arith.constant 0 : i32
    return %c0_i32, %c0_i32_0 : i32, i32
  }
  func.func @transform_4(%arg0: i32) -> (i32, i32) {
    %c0_i32 = arith.constant 0 : i32
    %c0_i32_0 = arith.constant 0 : i32
    return %c0_i32, %arg0 : i32, i32
  }
}

module attributes {stable_mosaic.version = 11 : i64} {
  func.func @_cross_vit_kernel(%arg0: i32, %arg1: memref<1x16x64xf32, #tpu.memory_space<vmem>>, %arg2: memref<1x16x64xf32, #tpu.memory_space<vmem>>, %arg3: memref<2x64x32xbf16, #tpu.memory_space<vmem>>, %arg4: memref<2x1x32xf32, #tpu.memory_space<vmem>>, %arg5: memref<2x16x32xf32, #tpu.memory_space<vmem>>, %arg6: memref<1x2x3x32xf32, #tpu.memory_space<vmem>>, %arg7: memref<1x2x3x32xf32, #tpu.memory_space<vmem>>, %arg8: memref<1x2x32x32xbf16, #tpu.memory_space<vmem>>, %arg9: memref<1x2x32x32xbf16, #tpu.memory_space<vmem>>, %arg10: memref<1x2x32x32xbf16, #tpu.memory_space<vmem>>, %arg11: memref<1x2x32x32xbf16, #tpu.memory_space<vmem>>, %arg12: memref<1x2x1x32xf32, #tpu.memory_space<vmem>>, %arg13: memref<1x2x32x64xbf16, #tpu.memory_space<vmem>>, %arg14: memref<1x2x1x64xf32, #tpu.memory_space<vmem>>, %arg15: memref<1x2x64x32xbf16, #tpu.memory_space<vmem>>, %arg16: memref<1x2x1x32xf32, #tpu.memory_space<vmem>>, %arg17: memref<2x32x64xbf16, #tpu.memory_space<vmem>>, %arg18: memref<2x1x64xf32, #tpu.memory_space<vmem>>, %arg19: memref<1x16x64xf32, #tpu.memory_space<vmem>>) attributes {dimension_semantics = [#tpu.dimension_semantics<parallel>], iteration_bounds = array<i64: 2>, scalar_prefetch = 0 : i64, scratch_operands = 0 : i64, tpu.core_type = #tpu.core_type<tc>, window_params = [{transform_indices = @transform_0, window_bounds = array<i64: 1, 16, 64>}, {transform_indices = @transform_1, window_bounds = array<i64: 1, 16, 64>}, {pipeline_mode = #tpu.pipeline_mode<synchronous>, transform_indices = @transform_2, window_bounds = array<i64: 2, 64, 32>}, {pipeline_mode = #tpu.pipeline_mode<synchronous>, transform_indices = @transform_3, window_bounds = array<i64: 2, 1, 32>}, {pipeline_mode = #tpu.pipeline_mode<synchronous>, transform_indices = @transform_4, window_bounds = array<i64: 2, 16, 32>}, {pipeline_mode = #tpu.pipeline_mode<synchronous>, transform_indices = @transform_5, window_bounds = array<i64: 1, 2, 3, 32>}, {pipeline_mode = #tpu.pipeline_mode<synchronous>, transform_indices = @transform_6, window_bounds = array<i64: 1, 2, 3, 32>}, {pipeline_mode = #tpu.pipeline_mode<synchronous>, transform_indices = @transform_7, window_bounds = array<i64: 1, 2, 32, 32>}, {pipeline_mode = #tpu.pipeline_mode<synchronous>, transform_indices = @transform_8, window_bounds = array<i64: 1, 2, 32, 32>}, {pipeline_mode = #tpu.pipeline_mode<synchronous>, transform_indices = @transform_9, window_bounds = array<i64: 1, 2, 32, 32>}, {pipeline_mode = #tpu.pipeline_mode<synchronous>, transform_indices = @transform_10, window_bounds = array<i64: 1, 2, 32, 32>}, {pipeline_mode = #tpu.pipeline_mode<synchronous>, transform_indices = @transform_11, window_bounds = array<i64: 1, 2, 1, 32>}, {pipeline_mode = #tpu.pipeline_mode<synchronous>, transform_indices = @transform_12, window_bounds = array<i64: 1, 2, 32, 64>}, {pipeline_mode = #tpu.pipeline_mode<synchronous>, transform_indices = @transform_13, window_bounds = array<i64: 1, 2, 1, 64>}, {pipeline_mode = #tpu.pipeline_mode<synchronous>, transform_indices = @transform_14, window_bounds = array<i64: 1, 2, 64, 32>}, {pipeline_mode = #tpu.pipeline_mode<synchronous>, transform_indices = @transform_15, window_bounds = array<i64: 1, 2, 1, 32>}, {pipeline_mode = #tpu.pipeline_mode<synchronous>, transform_indices = @transform_16, window_bounds = array<i64: 2, 32, 64>}, {pipeline_mode = #tpu.pipeline_mode<synchronous>, transform_indices = @transform_17, window_bounds = array<i64: 2, 1, 64>}, {transform_indices = @transform_18, window_bounds = array<i64: 1, 16, 64>}]} {
    %c0 = arith.constant 0 : index
    %c0_0 = arith.constant 0 : index
    %c0_1 = arith.constant 0 : index
    %0 = vector.load %arg1[%c0, %c0_0, %c0_1] : memref<1x16x64xf32, #tpu.memory_space<vmem>>, vector<1x16x64xf32>
    %1 = vector.shape_cast %0 : vector<1x16x64xf32> to vector<16x64xf32>
    %c0_2 = arith.constant 0 : index
    %c0_3 = arith.constant 0 : index
    %c0_4 = arith.constant 0 : index
    %2 = vector.load %arg3[%c0_2, %c0_3, %c0_4] : memref<2x64x32xbf16, #tpu.memory_space<vmem>>, vector<1x64x32xbf16>
    %3 = vector.shape_cast %2 : vector<1x64x32xbf16> to vector<64x32xbf16>
    %4 = arith.truncf %1 : vector<16x64xf32> to vector<16x64xbf16>
    %cst = arith.constant dense<0.000000e+00> : vector<16x32xf32>
    %5 = tpu.matmul %4, %3, %cst {dimension_numbers = #tpu.dot_dimension_numbers<[1], [0], [0], [1], [0, 0, 1, 1], [], []>} : vector<16x64xbf16>, vector<64x32xbf16>, vector<16x32xf32> -> vector<16x32xf32>
    %c0_5 = arith.constant 0 : index
    %c0_6 = arith.constant 0 : index
    %c0_7 = arith.constant 0 : index
    %6 = vector.load %arg4[%c0_5, %c0_6, %c0_7] : memref<2x1x32xf32, #tpu.memory_space<vmem>>, vector<1x1x32xf32>
    %7 = vector.shape_cast %6 : vector<1x1x32xf32> to vector<1x32xf32>
    %8 = vector.broadcast %7 : vector<1x32xf32> to vector<16x32xf32>
    %9 = arith.addf %5, %8 : vector<16x32xf32>
    %c0_8 = arith.constant 0 : index
    %c0_9 = arith.constant 0 : index
    %c0_10 = arith.constant 0 : index
    %10 = vector.load %arg5[%c0_8, %c0_9, %c0_10] : memref<2x16x32xf32, #tpu.memory_space<vmem>>, vector<1x16x32xf32>
    %11 = vector.shape_cast %10 : vector<1x16x32xf32> to vector<16x32xf32>
    %12 = arith.addf %9, %11 : vector<16x32xf32>
    %c0_11 = arith.constant 0 : index
    %c0_12 = arith.constant 0 : index
    %c0_13 = arith.constant 0 : index
    %13 = vector.load %arg2[%c0_11, %c0_12, %c0_13] : memref<1x16x64xf32, #tpu.memory_space<vmem>>, vector<1x16x64xf32>
    %14 = vector.shape_cast %13 : vector<1x16x64xf32> to vector<16x64xf32>
    %c1 = arith.constant 1 : index
    %c0_14 = arith.constant 0 : index
    %c0_15 = arith.constant 0 : index
    %15 = vector.load %arg3[%c1, %c0_14, %c0_15] : memref<2x64x32xbf16, #tpu.memory_space<vmem>>, vector<1x64x32xbf16>
    %16 = vector.shape_cast %15 : vector<1x64x32xbf16> to vector<64x32xbf16>
    %17 = arith.truncf %14 : vector<16x64xf32> to vector<16x64xbf16>
    %cst_16 = arith.constant dense<0.000000e+00> : vector<16x32xf32>
    %18 = tpu.matmul %17, %16, %cst_16 {dimension_numbers = #tpu.dot_dimension_numbers<[1], [0], [0], [1], [0, 0, 1, 1], [], []>} : vector<16x64xbf16>, vector<64x32xbf16>, vector<16x32xf32> -> vector<16x32xf32>
    %c1_17 = arith.constant 1 : index
    %c0_18 = arith.constant 0 : index
    %c0_19 = arith.constant 0 : index
    %19 = vector.load %arg4[%c1_17, %c0_18, %c0_19] : memref<2x1x32xf32, #tpu.memory_space<vmem>>, vector<1x1x32xf32>
    %20 = vector.shape_cast %19 : vector<1x1x32xf32> to vector<1x32xf32>
    %21 = vector.broadcast %20 : vector<1x32xf32> to vector<16x32xf32>
    %22 = arith.addf %18, %21 : vector<16x32xf32>
    %c1_20 = arith.constant 1 : index
    %c0_21 = arith.constant 0 : index
    %c0_22 = arith.constant 0 : index
    %23 = vector.load %arg5[%c1_20, %c0_21, %c0_22] : memref<2x16x32xf32, #tpu.memory_space<vmem>>, vector<1x16x32xf32>
    %24 = vector.shape_cast %23 : vector<1x16x32xf32> to vector<16x32xf32>
    %25 = arith.addf %22, %24 : vector<16x32xf32>
    %c0_23 = arith.constant 0 : index
    %c0_24 = arith.constant 0 : index
    %c0_25 = arith.constant 0 : index
    %c0_26 = arith.constant 0 : index
    %26 = vector.load %arg6[%c0_23, %c0_24, %c0_25, %c0_26] : memref<1x2x3x32xf32, #tpu.memory_space<vmem>>, vector<1x1x3x32xf32>
    %27 = vector.shape_cast %26 : vector<1x1x3x32xf32> to vector<3x32xf32>
    %c0_27 = arith.constant 0 : index
    %c0_28 = arith.constant 0 : index
    %c0_29 = arith.constant 0 : index
    %c0_30 = arith.constant 0 : index
    %28 = vector.load %arg7[%c0_27, %c0_28, %c0_29, %c0_30] : memref<1x2x3x32xf32, #tpu.memory_space<vmem>>, vector<1x1x3x32xf32>
    %29 = vector.shape_cast %28 : vector<1x1x3x32xf32> to vector<3x32xf32>
    %30 = vector.extract_strided_slice %27 {offsets = [0, 0], sizes = [1, 32], strides = [1, 1]} : vector<3x32xf32> to vector<1x32xf32>
    %31 = vector.extract_strided_slice %29 {offsets = [0, 0], sizes = [1, 32], strides = [1, 1]} : vector<3x32xf32> to vector<1x32xf32>
    %cst_31 = arith.constant dense<0.000000e+00> : vector<16xf32>
    %32 = vector.multi_reduction <add>, %12, %cst_31 [1] : vector<16x32xf32> to vector<16xf32>
    %33 = vector.shape_cast %32 : vector<16xf32> to vector<16x1xf32>
    %cst_32 = arith.constant 3.200000e+01 : f32
    %34 = vector.broadcast %cst_32 : f32 to vector<16x1xf32>
    %35 = arith.divf %33, %34 : vector<16x1xf32>
    %36 = vector.broadcast %35 : vector<16x1xf32> to vector<16x32xf32>
    %37 = arith.subf %12, %36 : vector<16x32xf32>
    %38 = arith.mulf %37, %37 : vector<16x32xf32>
    %cst_33 = arith.constant dense<0.000000e+00> : vector<16xf32>
    %39 = vector.multi_reduction <add>, %38, %cst_33 [1] : vector<16x32xf32> to vector<16xf32>
    %40 = vector.shape_cast %39 : vector<16xf32> to vector<16x1xf32>
    %cst_34 = arith.constant 3.200000e+01 : f32
    %41 = vector.broadcast %cst_34 : f32 to vector<16x1xf32>
    %42 = arith.divf %40, %41 : vector<16x1xf32>
    %43 = vector.broadcast %35 : vector<16x1xf32> to vector<16x32xf32>
    %44 = arith.subf %12, %43 : vector<16x32xf32>
    %cst_35 = arith.constant 9.99999974E-6 : f32
    %45 = vector.broadcast %cst_35 : f32 to vector<16x1xf32>
    %46 = arith.addf %42, %45 : vector<16x1xf32>
    %47 = math.rsqrt %46 : vector<16x1xf32>
    %48 = vector.broadcast %47 : vector<16x1xf32> to vector<16x32xf32>
    %49 = arith.mulf %44, %48 : vector<16x32xf32>
    %50 = vector.broadcast %30 : vector<1x32xf32> to vector<16x32xf32>
    %51 = arith.mulf %49, %50 : vector<16x32xf32>
    %52 = vector.broadcast %31 : vector<1x32xf32> to vector<16x32xf32>
    %53 = arith.addf %51, %52 : vector<16x32xf32>
    %54 = vector.extract_strided_slice %27 {offsets = [1, 0], sizes = [1, 32], strides = [1, 1]} : vector<3x32xf32> to vector<1x32xf32>
    %55 = vector.extract_strided_slice %29 {offsets = [1, 0], sizes = [1, 32], strides = [1, 1]} : vector<3x32xf32> to vector<1x32xf32>
    %cst_36 = arith.constant dense<0.000000e+00> : vector<16xf32>
    %56 = vector.multi_reduction <add>, %25, %cst_36 [1] : vector<16x32xf32> to vector<16xf32>
    %57 = vector.shape_cast %56 : vector<16xf32> to vector<16x1xf32>
    %cst_37 = arith.constant 3.200000e+01 : f32
    %58 = vector.broadcast %cst_37 : f32 to vector<16x1xf32>
    %59 = arith.divf %57, %58 : vector<16x1xf32>
    %60 = vector.broadcast %59 : vector<16x1xf32> to vector<16x32xf32>
    %61 = arith.subf %25, %60 : vector<16x32xf32>
    %62 = arith.mulf %61, %61 : vector<16x32xf32>
    %cst_38 = arith.constant dense<0.000000e+00> : vector<16xf32>
    %63 = vector.multi_reduction <add>, %62, %cst_38 [1] : vector<16x32xf32> to vector<16xf32>
    %64 = vector.shape_cast %63 : vector<16xf32> to vector<16x1xf32>
    %cst_39 = arith.constant 3.200000e+01 : f32
    %65 = vector.broadcast %cst_39 : f32 to vector<16x1xf32>
    %66 = arith.divf %64, %65 : vector<16x1xf32>
    %67 = vector.broadcast %59 : vector<16x1xf32> to vector<16x32xf32>
    %68 = arith.subf %25, %67 : vector<16x32xf32>
    %cst_40 = arith.constant 9.99999974E-6 : f32
    %69 = vector.broadcast %cst_40 : f32 to vector<16x1xf32>
    %70 = arith.addf %66, %69 : vector<16x1xf32>
    %71 = math.rsqrt %70 : vector<16x1xf32>
    %72 = vector.broadcast %71 : vector<16x1xf32> to vector<16x32xf32>
    %73 = arith.mulf %68, %72 : vector<16x32xf32>
    %74 = vector.broadcast %54 : vector<1x32xf32> to vector<16x32xf32>
    %75 = arith.mulf %73, %74 : vector<16x32xf32>
    %76 = vector.broadcast %55 : vector<1x32xf32> to vector<16x32xf32>
    %77 = arith.addf %75, %76 : vector<16x32xf32>
    %c0_41 = arith.constant 0 : index
    %c0_42 = arith.constant 0 : index
    %c0_43 = arith.constant 0 : index
    %c0_44 = arith.constant 0 : index
    %78 = vector.load %arg8[%c0_41, %c0_42, %c0_43, %c0_44] : memref<1x2x32x32xbf16, #tpu.memory_space<vmem>>, vector<1x1x32x32xbf16>
    %79 = vector.shape_cast %78 : vector<1x1x32x32xbf16> to vector<32x32xbf16>
    %80 = arith.truncf %53 : vector<16x32xf32> to vector<16x32xbf16>
    %cst_45 = arith.constant dense<0.000000e+00> : vector<16x32xf32>
    %81 = tpu.matmul %80, %79, %cst_45 {dimension_numbers = #tpu.dot_dimension_numbers<[1], [0], [0], [1], [0, 0, 1, 1], [], []>} : vector<16x32xbf16>, vector<32x32xbf16>, vector<16x32xf32> -> vector<16x32xf32>
    %c0_46 = arith.constant 0 : index
    %c0_47 = arith.constant 0 : index
    %c0_48 = arith.constant 0 : index
    %c0_49 = arith.constant 0 : index
    %82 = vector.load %arg9[%c0_46, %c0_47, %c0_48, %c0_49] : memref<1x2x32x32xbf16, #tpu.memory_space<vmem>>, vector<1x1x32x32xbf16>
    %83 = vector.shape_cast %82 : vector<1x1x32x32xbf16> to vector<32x32xbf16>
    %84 = arith.truncf %77 : vector<16x32xf32> to vector<16x32xbf16>
    %cst_50 = arith.constant dense<0.000000e+00> : vector<16x32xf32>
    %85 = tpu.matmul %84, %83, %cst_50 {dimension_numbers = #tpu.dot_dimension_numbers<[1], [0], [0], [1], [0, 0, 1, 1], [], []>} : vector<16x32xbf16>, vector<32x32xbf16>, vector<16x32xf32> -> vector<16x32xf32>
    %c0_51 = arith.constant 0 : index
    %c0_52 = arith.constant 0 : index
    %c0_53 = arith.constant 0 : index
    %c0_54 = arith.constant 0 : index
    %86 = vector.load %arg10[%c0_51, %c0_52, %c0_53, %c0_54] : memref<1x2x32x32xbf16, #tpu.memory_space<vmem>>, vector<1x1x32x32xbf16>
    %87 = vector.shape_cast %86 : vector<1x1x32x32xbf16> to vector<32x32xbf16>
    %88 = arith.truncf %77 : vector<16x32xf32> to vector<16x32xbf16>
    %cst_55 = arith.constant dense<0.000000e+00> : vector<16x32xf32>
    %89 = tpu.matmul %88, %87, %cst_55 {dimension_numbers = #tpu.dot_dimension_numbers<[1], [0], [0], [1], [0, 0, 1, 1], [], []>} : vector<16x32xbf16>, vector<32x32xbf16>, vector<16x32xf32> -> vector<16x32xf32>
    %90 = vector.extract_strided_slice %81 {offsets = [0, 0], sizes = [16, 16], strides = [1, 1]} : vector<16x32xf32> to vector<16x16xf32>
    %91 = vector.extract_strided_slice %85 {offsets = [0, 0], sizes = [16, 16], strides = [1, 1]} : vector<16x32xf32> to vector<16x16xf32>
    %92 = vector.extract_strided_slice %89 {offsets = [0, 0], sizes = [16, 16], strides = [1, 1]} : vector<16x32xf32> to vector<16x16xf32>
    %93 = arith.truncf %90 : vector<16x16xf32> to vector<16x16xbf16>
    %94 = arith.truncf %91 : vector<16x16xf32> to vector<16x16xbf16>
    %cst_56 = arith.constant dense<0.000000e+00> : vector<16x16xf32>
    %95 = tpu.matmul %93, %94, %cst_56 {dimension_numbers = #tpu.dot_dimension_numbers<[1], [1], [0], [0], [0, 0, 1, 0], [], []>} : vector<16x16xbf16>, vector<16x16xbf16>, vector<16x16xf32> -> vector<16x16xf32>
    %cst_57 = arith.constant 2.500000e-01 : f32
    %96 = vector.broadcast %cst_57 : f32 to vector<16x16xf32>
    %97 = arith.mulf %95, %96 : vector<16x16xf32>
    %cst_58 = arith.constant dense<0xFF800000> : vector<16xf32>
    %98 = vector.multi_reduction <maximumf>, %97, %cst_58 [1] : vector<16x16xf32> to vector<16xf32>
    %99 = vector.shape_cast %98 : vector<16xf32> to vector<16x1xf32>
    %100 = vector.broadcast %99 : vector<16x1xf32> to vector<16x16xf32>
    %101 = arith.subf %97, %100 : vector<16x16xf32>
    %102 = math.exp %101 : vector<16x16xf32>
    %cst_59 = arith.constant dense<0.000000e+00> : vector<16xf32>
    %103 = vector.multi_reduction <add>, %102, %cst_59 [1] : vector<16x16xf32> to vector<16xf32>
    %104 = vector.shape_cast %103 : vector<16xf32> to vector<16x1xf32>
    %105 = tpu.reciprocal %104 {approx = true} : vector<16x1xf32> -> vector<16x1xf32>
    %106 = vector.broadcast %105 : vector<16x1xf32> to vector<16x16xf32>
    %107 = arith.mulf %102, %106 : vector<16x16xf32>
    %108 = arith.truncf %107 : vector<16x16xf32> to vector<16x16xbf16>
    %109 = arith.truncf %92 : vector<16x16xf32> to vector<16x16xbf16>
    %cst_60 = arith.constant dense<0.000000e+00> : vector<16x16xf32>
    %110 = tpu.matmul %108, %109, %cst_60 {dimension_numbers = #tpu.dot_dimension_numbers<[1], [0], [0], [1], [0, 0, 1, 1], [], []>} : vector<16x16xbf16>, vector<16x16xbf16>, vector<16x16xf32> -> vector<16x16xf32>
    %111 = vector.extract_strided_slice %81 {offsets = [0, 16], sizes = [16, 16], strides = [1, 1]} : vector<16x32xf32> to vector<16x16xf32>
    %112 = vector.extract_strided_slice %85 {offsets = [0, 16], sizes = [16, 16], strides = [1, 1]} : vector<16x32xf32> to vector<16x16xf32>
    %113 = vector.extract_strided_slice %89 {offsets = [0, 16], sizes = [16, 16], strides = [1, 1]} : vector<16x32xf32> to vector<16x16xf32>
    %114 = arith.truncf %111 : vector<16x16xf32> to vector<16x16xbf16>
    %115 = arith.truncf %112 : vector<16x16xf32> to vector<16x16xbf16>
    %cst_61 = arith.constant dense<0.000000e+00> : vector<16x16xf32>
    %116 = tpu.matmul %114, %115, %cst_61 {dimension_numbers = #tpu.dot_dimension_numbers<[1], [1], [0], [0], [0, 0, 1, 0], [], []>} : vector<16x16xbf16>, vector<16x16xbf16>, vector<16x16xf32> -> vector<16x16xf32>
    %cst_62 = arith.constant 2.500000e-01 : f32
    %117 = vector.broadcast %cst_62 : f32 to vector<16x16xf32>
    %118 = arith.mulf %116, %117 : vector<16x16xf32>
    %cst_63 = arith.constant dense<0xFF800000> : vector<16xf32>
    %119 = vector.multi_reduction <maximumf>, %118, %cst_63 [1] : vector<16x16xf32> to vector<16xf32>
    %120 = vector.shape_cast %119 : vector<16xf32> to vector<16x1xf32>
    %121 = vector.broadcast %120 : vector<16x1xf32> to vector<16x16xf32>
    %122 = arith.subf %118, %121 : vector<16x16xf32>
    %123 = math.exp %122 : vector<16x16xf32>
    %cst_64 = arith.constant dense<0.000000e+00> : vector<16xf32>
    %124 = vector.multi_reduction <add>, %123, %cst_64 [1] : vector<16x16xf32> to vector<16xf32>
    %125 = vector.shape_cast %124 : vector<16xf32> to vector<16x1xf32>
    %126 = tpu.reciprocal %125 {approx = true} : vector<16x1xf32> -> vector<16x1xf32>
    %127 = vector.broadcast %126 : vector<16x1xf32> to vector<16x16xf32>
    %128 = arith.mulf %123, %127 : vector<16x16xf32>
    %129 = arith.truncf %128 : vector<16x16xf32> to vector<16x16xbf16>
    %130 = arith.truncf %113 : vector<16x16xf32> to vector<16x16xbf16>
    %cst_65 = arith.constant dense<0.000000e+00> : vector<16x16xf32>
    %131 = tpu.matmul %129, %130, %cst_65 {dimension_numbers = #tpu.dot_dimension_numbers<[1], [0], [0], [1], [0, 0, 1, 1], [], []>} : vector<16x16xbf16>, vector<16x16xbf16>, vector<16x16xf32> -> vector<16x16xf32>
    %132 = tpu.concatenate %110, %131 in 1 : vector<16x16xf32>, vector<16x16xf32> -> vector<16x32xf32>
    %c0_66 = arith.constant 0 : index
    %c0_67 = arith.constant 0 : index
    %c0_68 = arith.constant 0 : index
    %c0_69 = arith.constant 0 : index
    %133 = vector.load %arg11[%c0_66, %c0_67, %c0_68, %c0_69] : memref<1x2x32x32xbf16, #tpu.memory_space<vmem>>, vector<1x1x32x32xbf16>
    %134 = vector.shape_cast %133 : vector<1x1x32x32xbf16> to vector<32x32xbf16>
    %135 = arith.truncf %132 : vector<16x32xf32> to vector<16x32xbf16>
    %cst_70 = arith.constant dense<0.000000e+00> : vector<16x32xf32>
    %136 = tpu.matmul %135, %134, %cst_70 {dimension_numbers = #tpu.dot_dimension_numbers<[1], [0], [0], [1], [0, 0, 1, 1], [], []>} : vector<16x32xbf16>, vector<32x32xbf16>, vector<16x32xf32> -> vector<16x32xf32>
    %137 = arith.addf %12, %136 : vector<16x32xf32>
    %c0_71 = arith.constant 0 : index
    %c0_72 = arith.constant 0 : index
    %c0_73 = arith.constant 0 : index
    %c0_74 = arith.constant 0 : index
    %138 = vector.load %arg12[%c0_71, %c0_72, %c0_73, %c0_74] : memref<1x2x1x32xf32, #tpu.memory_space<vmem>>, vector<1x1x1x32xf32>
    %139 = vector.shape_cast %138 : vector<1x1x1x32xf32> to vector<1x32xf32>
    %140 = vector.broadcast %139 : vector<1x32xf32> to vector<16x32xf32>
    %141 = arith.addf %137, %140 : vector<16x32xf32>
    %142 = vector.extract_strided_slice %27 {offsets = [2, 0], sizes = [1, 32], strides = [1, 1]} : vector<3x32xf32> to vector<1x32xf32>
    %143 = vector.extract_strided_slice %29 {offsets = [2, 0], sizes = [1, 32], strides = [1, 1]} : vector<3x32xf32> to vector<1x32xf32>
    %cst_75 = arith.constant dense<0.000000e+00> : vector<16xf32>
    %144 = vector.multi_reduction <add>, %141, %cst_75 [1] : vector<16x32xf32> to vector<16xf32>
    %145 = vector.shape_cast %144 : vector<16xf32> to vector<16x1xf32>
    %cst_76 = arith.constant 3.200000e+01 : f32
    %146 = vector.broadcast %cst_76 : f32 to vector<16x1xf32>
    %147 = arith.divf %145, %146 : vector<16x1xf32>
    %148 = vector.broadcast %147 : vector<16x1xf32> to vector<16x32xf32>
    %149 = arith.subf %141, %148 : vector<16x32xf32>
    %150 = arith.mulf %149, %149 : vector<16x32xf32>
    %cst_77 = arith.constant dense<0.000000e+00> : vector<16xf32>
    %151 = vector.multi_reduction <add>, %150, %cst_77 [1] : vector<16x32xf32> to vector<16xf32>
    %152 = vector.shape_cast %151 : vector<16xf32> to vector<16x1xf32>
    %cst_78 = arith.constant 3.200000e+01 : f32
    %153 = vector.broadcast %cst_78 : f32 to vector<16x1xf32>
    %154 = arith.divf %152, %153 : vector<16x1xf32>
    %155 = vector.broadcast %147 : vector<16x1xf32> to vector<16x32xf32>
    %156 = arith.subf %141, %155 : vector<16x32xf32>
    %cst_79 = arith.constant 9.99999974E-6 : f32
    %157 = vector.broadcast %cst_79 : f32 to vector<16x1xf32>
    %158 = arith.addf %154, %157 : vector<16x1xf32>
    %159 = math.rsqrt %158 : vector<16x1xf32>
    %160 = vector.broadcast %159 : vector<16x1xf32> to vector<16x32xf32>
    %161 = arith.mulf %156, %160 : vector<16x32xf32>
    %162 = vector.broadcast %142 : vector<1x32xf32> to vector<16x32xf32>
    %163 = arith.mulf %161, %162 : vector<16x32xf32>
    %164 = vector.broadcast %143 : vector<1x32xf32> to vector<16x32xf32>
    %165 = arith.addf %163, %164 : vector<16x32xf32>
    %c0_80 = arith.constant 0 : index
    %c0_81 = arith.constant 0 : index
    %c0_82 = arith.constant 0 : index
    %c0_83 = arith.constant 0 : index
    %166 = vector.load %arg13[%c0_80, %c0_81, %c0_82, %c0_83] : memref<1x2x32x64xbf16, #tpu.memory_space<vmem>>, vector<1x1x32x64xbf16>
    %167 = vector.shape_cast %166 : vector<1x1x32x64xbf16> to vector<32x64xbf16>
    %168 = arith.truncf %165 : vector<16x32xf32> to vector<16x32xbf16>
    %cst_84 = arith.constant dense<0.000000e+00> : vector<16x64xf32>
    %169 = tpu.matmul %168, %167, %cst_84 {dimension_numbers = #tpu.dot_dimension_numbers<[1], [0], [0], [1], [0, 0, 1, 1], [], []>} : vector<16x32xbf16>, vector<32x64xbf16>, vector<16x64xf32> -> vector<16x64xf32>
    %c0_85 = arith.constant 0 : index
    %c0_86 = arith.constant 0 : index
    %c0_87 = arith.constant 0 : index
    %c0_88 = arith.constant 0 : index
    %170 = vector.load %arg14[%c0_85, %c0_86, %c0_87, %c0_88] : memref<1x2x1x64xf32, #tpu.memory_space<vmem>>, vector<1x1x1x64xf32>
    %171 = vector.shape_cast %170 : vector<1x1x1x64xf32> to vector<1x64xf32>
    %172 = vector.broadcast %171 : vector<1x64xf32> to vector<16x64xf32>
    %173 = arith.addf %169, %172 : vector<16x64xf32>
    %174 = arith.mulf %173, %173 : vector<16x64xf32>
    %175 = arith.mulf %173, %174 : vector<16x64xf32>
    %cst_89 = arith.constant 4.471500e-02 : f32
    %176 = vector.broadcast %cst_89 : f32 to vector<16x64xf32>
    %177 = arith.mulf %176, %175 : vector<16x64xf32>
    %178 = arith.addf %173, %177 : vector<16x64xf32>
    %cst_90 = arith.constant 0.797884583 : f32
    %179 = vector.broadcast %cst_90 : f32 to vector<16x64xf32>
    %180 = arith.mulf %179, %178 : vector<16x64xf32>
    %181 = math.tanh %180 : vector<16x64xf32>
    %cst_91 = arith.constant 1.000000e+00 : f32
    %182 = vector.broadcast %cst_91 : f32 to vector<16x64xf32>
    %183 = arith.addf %182, %181 : vector<16x64xf32>
    %cst_92 = arith.constant 5.000000e-01 : f32
    %184 = vector.broadcast %cst_92 : f32 to vector<16x64xf32>
    %185 = arith.mulf %184, %183 : vector<16x64xf32>
    %186 = arith.mulf %173, %185 : vector<16x64xf32>
    %c0_93 = arith.constant 0 : index
    %c0_94 = arith.constant 0 : index
    %c0_95 = arith.constant 0 : index
    %c0_96 = arith.constant 0 : index
    %187 = vector.load %arg15[%c0_93, %c0_94, %c0_95, %c0_96] : memref<1x2x64x32xbf16, #tpu.memory_space<vmem>>, vector<1x1x64x32xbf16>
    %188 = vector.shape_cast %187 : vector<1x1x64x32xbf16> to vector<64x32xbf16>
    %189 = arith.truncf %186 : vector<16x64xf32> to vector<16x64xbf16>
    %cst_97 = arith.constant dense<0.000000e+00> : vector<16x32xf32>
    %190 = tpu.matmul %189, %188, %cst_97 {dimension_numbers = #tpu.dot_dimension_numbers<[1], [0], [0], [1], [0, 0, 1, 1], [], []>} : vector<16x64xbf16>, vector<64x32xbf16>, vector<16x32xf32> -> vector<16x32xf32>
    %191 = arith.addf %141, %190 : vector<16x32xf32>
    %c0_98 = arith.constant 0 : index
    %c0_99 = arith.constant 0 : index
    %c0_100 = arith.constant 0 : index
    %c0_101 = arith.constant 0 : index
    %192 = vector.load %arg16[%c0_98, %c0_99, %c0_100, %c0_101] : memref<1x2x1x32xf32, #tpu.memory_space<vmem>>, vector<1x1x1x32xf32>
    %193 = vector.shape_cast %192 : vector<1x1x1x32xf32> to vector<1x32xf32>
    %194 = vector.broadcast %193 : vector<1x32xf32> to vector<16x32xf32>
    %195 = arith.addf %191, %194 : vector<16x32xf32>
    %c0_102 = arith.constant 0 : index
    %c1_103 = arith.constant 1 : index
    %c0_104 = arith.constant 0 : index
    %c0_105 = arith.constant 0 : index
    %196 = vector.load %arg6[%c0_102, %c1_103, %c0_104, %c0_105] : memref<1x2x3x32xf32, #tpu.memory_space<vmem>>, vector<1x1x3x32xf32>
    %197 = vector.shape_cast %196 : vector<1x1x3x32xf32> to vector<3x32xf32>
    %c0_106 = arith.constant 0 : index
    %c1_107 = arith.constant 1 : index
    %c0_108 = arith.constant 0 : index
    %c0_109 = arith.constant 0 : index
    %198 = vector.load %arg7[%c0_106, %c1_107, %c0_108, %c0_109] : memref<1x2x3x32xf32, #tpu.memory_space<vmem>>, vector<1x1x3x32xf32>
    %199 = vector.shape_cast %198 : vector<1x1x3x32xf32> to vector<3x32xf32>
    %200 = vector.extract_strided_slice %197 {offsets = [0, 0], sizes = [1, 32], strides = [1, 1]} : vector<3x32xf32> to vector<1x32xf32>
    %201 = vector.extract_strided_slice %199 {offsets = [0, 0], sizes = [1, 32], strides = [1, 1]} : vector<3x32xf32> to vector<1x32xf32>
    %cst_110 = arith.constant dense<0.000000e+00> : vector<16xf32>
    %202 = vector.multi_reduction <add>, %25, %cst_110 [1] : vector<16x32xf32> to vector<16xf32>
    %203 = vector.shape_cast %202 : vector<16xf32> to vector<16x1xf32>
    %cst_111 = arith.constant 3.200000e+01 : f32
    %204 = vector.broadcast %cst_111 : f32 to vector<16x1xf32>
    %205 = arith.divf %203, %204 : vector<16x1xf32>
    %206 = vector.broadcast %205 : vector<16x1xf32> to vector<16x32xf32>
    %207 = arith.subf %25, %206 : vector<16x32xf32>
    %208 = arith.mulf %207, %207 : vector<16x32xf32>
    %cst_112 = arith.constant dense<0.000000e+00> : vector<16xf32>
    %209 = vector.multi_reduction <add>, %208, %cst_112 [1] : vector<16x32xf32> to vector<16xf32>
    %210 = vector.shape_cast %209 : vector<16xf32> to vector<16x1xf32>
    %cst_113 = arith.constant 3.200000e+01 : f32
    %211 = vector.broadcast %cst_113 : f32 to vector<16x1xf32>
    %212 = arith.divf %210, %211 : vector<16x1xf32>
    %213 = vector.broadcast %205 : vector<16x1xf32> to vector<16x32xf32>
    %214 = arith.subf %25, %213 : vector<16x32xf32>
    %cst_114 = arith.constant 9.99999974E-6 : f32
    %215 = vector.broadcast %cst_114 : f32 to vector<16x1xf32>
    %216 = arith.addf %212, %215 : vector<16x1xf32>
    %217 = math.rsqrt %216 : vector<16x1xf32>
    %218 = vector.broadcast %217 : vector<16x1xf32> to vector<16x32xf32>
    %219 = arith.mulf %214, %218 : vector<16x32xf32>
    %220 = vector.broadcast %200 : vector<1x32xf32> to vector<16x32xf32>
    %221 = arith.mulf %219, %220 : vector<16x32xf32>
    %222 = vector.broadcast %201 : vector<1x32xf32> to vector<16x32xf32>
    %223 = arith.addf %221, %222 : vector<16x32xf32>
    %224 = vector.extract_strided_slice %197 {offsets = [1, 0], sizes = [1, 32], strides = [1, 1]} : vector<3x32xf32> to vector<1x32xf32>
    %225 = vector.extract_strided_slice %199 {offsets = [1, 0], sizes = [1, 32], strides = [1, 1]} : vector<3x32xf32> to vector<1x32xf32>
    %cst_115 = arith.constant dense<0.000000e+00> : vector<16xf32>
    %226 = vector.multi_reduction <add>, %195, %cst_115 [1] : vector<16x32xf32> to vector<16xf32>
    %227 = vector.shape_cast %226 : vector<16xf32> to vector<16x1xf32>
    %cst_116 = arith.constant 3.200000e+01 : f32
    %228 = vector.broadcast %cst_116 : f32 to vector<16x1xf32>
    %229 = arith.divf %227, %228 : vector<16x1xf32>
    %230 = vector.broadcast %229 : vector<16x1xf32> to vector<16x32xf32>
    %231 = arith.subf %195, %230 : vector<16x32xf32>
    %232 = arith.mulf %231, %231 : vector<16x32xf32>
    %cst_117 = arith.constant dense<0.000000e+00> : vector<16xf32>
    %233 = vector.multi_reduction <add>, %232, %cst_117 [1] : vector<16x32xf32> to vector<16xf32>
    %234 = vector.shape_cast %233 : vector<16xf32> to vector<16x1xf32>
    %cst_118 = arith.constant 3.200000e+01 : f32
    %235 = vector.broadcast %cst_118 : f32 to vector<16x1xf32>
    %236 = arith.divf %234, %235 : vector<16x1xf32>
    %237 = vector.broadcast %229 : vector<16x1xf32> to vector<16x32xf32>
    %238 = arith.subf %195, %237 : vector<16x32xf32>
    %cst_119 = arith.constant 9.99999974E-6 : f32
    %239 = vector.broadcast %cst_119 : f32 to vector<16x1xf32>
    %240 = arith.addf %236, %239 : vector<16x1xf32>
    %241 = math.rsqrt %240 : vector<16x1xf32>
    %242 = vector.broadcast %241 : vector<16x1xf32> to vector<16x32xf32>
    %243 = arith.mulf %238, %242 : vector<16x32xf32>
    %244 = vector.broadcast %224 : vector<1x32xf32> to vector<16x32xf32>
    %245 = arith.mulf %243, %244 : vector<16x32xf32>
    %246 = vector.broadcast %225 : vector<1x32xf32> to vector<16x32xf32>
    %247 = arith.addf %245, %246 : vector<16x32xf32>
    %c0_120 = arith.constant 0 : index
    %c1_121 = arith.constant 1 : index
    %c0_122 = arith.constant 0 : index
    %c0_123 = arith.constant 0 : index
    %248 = vector.load %arg8[%c0_120, %c1_121, %c0_122, %c0_123] : memref<1x2x32x32xbf16, #tpu.memory_space<vmem>>, vector<1x1x32x32xbf16>
    %249 = vector.shape_cast %248 : vector<1x1x32x32xbf16> to vector<32x32xbf16>
    %250 = arith.truncf %223 : vector<16x32xf32> to vector<16x32xbf16>
    %cst_124 = arith.constant dense<0.000000e+00> : vector<16x32xf32>
    %251 = tpu.matmul %250, %249, %cst_124 {dimension_numbers = #tpu.dot_dimension_numbers<[1], [0], [0], [1], [0, 0, 1, 1], [], []>} : vector<16x32xbf16>, vector<32x32xbf16>, vector<16x32xf32> -> vector<16x32xf32>
    %c0_125 = arith.constant 0 : index
    %c1_126 = arith.constant 1 : index
    %c0_127 = arith.constant 0 : index
    %c0_128 = arith.constant 0 : index
    %252 = vector.load %arg9[%c0_125, %c1_126, %c0_127, %c0_128] : memref<1x2x32x32xbf16, #tpu.memory_space<vmem>>, vector<1x1x32x32xbf16>
    %253 = vector.shape_cast %252 : vector<1x1x32x32xbf16> to vector<32x32xbf16>
    %254 = arith.truncf %247 : vector<16x32xf32> to vector<16x32xbf16>
    %cst_129 = arith.constant dense<0.000000e+00> : vector<16x32xf32>
    %255 = tpu.matmul %254, %253, %cst_129 {dimension_numbers = #tpu.dot_dimension_numbers<[1], [0], [0], [1], [0, 0, 1, 1], [], []>} : vector<16x32xbf16>, vector<32x32xbf16>, vector<16x32xf32> -> vector<16x32xf32>
    %c0_130 = arith.constant 0 : index
    %c1_131 = arith.constant 1 : index
    %c0_132 = arith.constant 0 : index
    %c0_133 = arith.constant 0 : index
    %256 = vector.load %arg10[%c0_130, %c1_131, %c0_132, %c0_133] : memref<1x2x32x32xbf16, #tpu.memory_space<vmem>>, vector<1x1x32x32xbf16>
    %257 = vector.shape_cast %256 : vector<1x1x32x32xbf16> to vector<32x32xbf16>
    %258 = arith.truncf %247 : vector<16x32xf32> to vector<16x32xbf16>
    %cst_134 = arith.constant dense<0.000000e+00> : vector<16x32xf32>
    %259 = tpu.matmul %258, %257, %cst_134 {dimension_numbers = #tpu.dot_dimension_numbers<[1], [0], [0], [1], [0, 0, 1, 1], [], []>} : vector<16x32xbf16>, vector<32x32xbf16>, vector<16x32xf32> -> vector<16x32xf32>
    %260 = vector.extract_strided_slice %251 {offsets = [0, 0], sizes = [16, 16], strides = [1, 1]} : vector<16x32xf32> to vector<16x16xf32>
    %261 = vector.extract_strided_slice %255 {offsets = [0, 0], sizes = [16, 16], strides = [1, 1]} : vector<16x32xf32> to vector<16x16xf32>
    %262 = vector.extract_strided_slice %259 {offsets = [0, 0], sizes = [16, 16], strides = [1, 1]} : vector<16x32xf32> to vector<16x16xf32>
    %263 = arith.truncf %260 : vector<16x16xf32> to vector<16x16xbf16>
    %264 = arith.truncf %261 : vector<16x16xf32> to vector<16x16xbf16>
    %cst_135 = arith.constant dense<0.000000e+00> : vector<16x16xf32>
    %265 = tpu.matmul %263, %264, %cst_135 {dimension_numbers = #tpu.dot_dimension_numbers<[1], [1], [0], [0], [0, 0, 1, 0], [], []>} : vector<16x16xbf16>, vector<16x16xbf16>, vector<16x16xf32> -> vector<16x16xf32>
    %cst_136 = arith.constant 2.500000e-01 : f32
    %266 = vector.broadcast %cst_136 : f32 to vector<16x16xf32>
    %267 = arith.mulf %265, %266 : vector<16x16xf32>
    %cst_137 = arith.constant dense<0xFF800000> : vector<16xf32>
    %268 = vector.multi_reduction <maximumf>, %267, %cst_137 [1] : vector<16x16xf32> to vector<16xf32>
    %269 = vector.shape_cast %268 : vector<16xf32> to vector<16x1xf32>
    %270 = vector.broadcast %269 : vector<16x1xf32> to vector<16x16xf32>
    %271 = arith.subf %267, %270 : vector<16x16xf32>
    %272 = math.exp %271 : vector<16x16xf32>
    %cst_138 = arith.constant dense<0.000000e+00> : vector<16xf32>
    %273 = vector.multi_reduction <add>, %272, %cst_138 [1] : vector<16x16xf32> to vector<16xf32>
    %274 = vector.shape_cast %273 : vector<16xf32> to vector<16x1xf32>
    %275 = tpu.reciprocal %274 {approx = true} : vector<16x1xf32> -> vector<16x1xf32>
    %276 = vector.broadcast %275 : vector<16x1xf32> to vector<16x16xf32>
    %277 = arith.mulf %272, %276 : vector<16x16xf32>
    %278 = arith.truncf %277 : vector<16x16xf32> to vector<16x16xbf16>
    %279 = arith.truncf %262 : vector<16x16xf32> to vector<16x16xbf16>
    %cst_139 = arith.constant dense<0.000000e+00> : vector<16x16xf32>
    %280 = tpu.matmul %278, %279, %cst_139 {dimension_numbers = #tpu.dot_dimension_numbers<[1], [0], [0], [1], [0, 0, 1, 1], [], []>} : vector<16x16xbf16>, vector<16x16xbf16>, vector<16x16xf32> -> vector<16x16xf32>
    %281 = vector.extract_strided_slice %251 {offsets = [0, 16], sizes = [16, 16], strides = [1, 1]} : vector<16x32xf32> to vector<16x16xf32>
    %282 = vector.extract_strided_slice %255 {offsets = [0, 16], sizes = [16, 16], strides = [1, 1]} : vector<16x32xf32> to vector<16x16xf32>
    %283 = vector.extract_strided_slice %259 {offsets = [0, 16], sizes = [16, 16], strides = [1, 1]} : vector<16x32xf32> to vector<16x16xf32>
    %284 = arith.truncf %281 : vector<16x16xf32> to vector<16x16xbf16>
    %285 = arith.truncf %282 : vector<16x16xf32> to vector<16x16xbf16>
    %cst_140 = arith.constant dense<0.000000e+00> : vector<16x16xf32>
    %286 = tpu.matmul %284, %285, %cst_140 {dimension_numbers = #tpu.dot_dimension_numbers<[1], [1], [0], [0], [0, 0, 1, 0], [], []>} : vector<16x16xbf16>, vector<16x16xbf16>, vector<16x16xf32> -> vector<16x16xf32>
    %cst_141 = arith.constant 2.500000e-01 : f32
    %287 = vector.broadcast %cst_141 : f32 to vector<16x16xf32>
    %288 = arith.mulf %286, %287 : vector<16x16xf32>
    %cst_142 = arith.constant dense<0xFF800000> : vector<16xf32>
    %289 = vector.multi_reduction <maximumf>, %288, %cst_142 [1] : vector<16x16xf32> to vector<16xf32>
    %290 = vector.shape_cast %289 : vector<16xf32> to vector<16x1xf32>
    %291 = vector.broadcast %290 : vector<16x1xf32> to vector<16x16xf32>
    %292 = arith.subf %288, %291 : vector<16x16xf32>
    %293 = math.exp %292 : vector<16x16xf32>
    %cst_143 = arith.constant dense<0.000000e+00> : vector<16xf32>
    %294 = vector.multi_reduction <add>, %293, %cst_143 [1] : vector<16x16xf32> to vector<16xf32>
    %295 = vector.shape_cast %294 : vector<16xf32> to vector<16x1xf32>
    %296 = tpu.reciprocal %295 {approx = true} : vector<16x1xf32> -> vector<16x1xf32>
    %297 = vector.broadcast %296 : vector<16x1xf32> to vector<16x16xf32>
    %298 = arith.mulf %293, %297 : vector<16x16xf32>
    %299 = arith.truncf %298 : vector<16x16xf32> to vector<16x16xbf16>
    %300 = arith.truncf %283 : vector<16x16xf32> to vector<16x16xbf16>
    %cst_144 = arith.constant dense<0.000000e+00> : vector<16x16xf32>
    %301 = tpu.matmul %299, %300, %cst_144 {dimension_numbers = #tpu.dot_dimension_numbers<[1], [0], [0], [1], [0, 0, 1, 1], [], []>} : vector<16x16xbf16>, vector<16x16xbf16>, vector<16x16xf32> -> vector<16x16xf32>
    %302 = tpu.concatenate %280, %301 in 1 : vector<16x16xf32>, vector<16x16xf32> -> vector<16x32xf32>
    %c0_145 = arith.constant 0 : index
    %c1_146 = arith.constant 1 : index
    %c0_147 = arith.constant 0 : index
    %c0_148 = arith.constant 0 : index
    %303 = vector.load %arg11[%c0_145, %c1_146, %c0_147, %c0_148] : memref<1x2x32x32xbf16, #tpu.memory_space<vmem>>, vector<1x1x32x32xbf16>
    %304 = vector.shape_cast %303 : vector<1x1x32x32xbf16> to vector<32x32xbf16>
    %305 = arith.truncf %302 : vector<16x32xf32> to vector<16x32xbf16>
    %cst_149 = arith.constant dense<0.000000e+00> : vector<16x32xf32>
    %306 = tpu.matmul %305, %304, %cst_149 {dimension_numbers = #tpu.dot_dimension_numbers<[1], [0], [0], [1], [0, 0, 1, 1], [], []>} : vector<16x32xbf16>, vector<32x32xbf16>, vector<16x32xf32> -> vector<16x32xf32>
    %307 = arith.addf %25, %306 : vector<16x32xf32>
    %c0_150 = arith.constant 0 : index
    %c1_151 = arith.constant 1 : index
    %c0_152 = arith.constant 0 : index
    %c0_153 = arith.constant 0 : index
    %308 = vector.load %arg12[%c0_150, %c1_151, %c0_152, %c0_153] : memref<1x2x1x32xf32, #tpu.memory_space<vmem>>, vector<1x1x1x32xf32>
    %309 = vector.shape_cast %308 : vector<1x1x1x32xf32> to vector<1x32xf32>
    %310 = vector.broadcast %309 : vector<1x32xf32> to vector<16x32xf32>
    %311 = arith.addf %307, %310 : vector<16x32xf32>
    %312 = vector.extract_strided_slice %197 {offsets = [2, 0], sizes = [1, 32], strides = [1, 1]} : vector<3x32xf32> to vector<1x32xf32>
    %313 = vector.extract_strided_slice %199 {offsets = [2, 0], sizes = [1, 32], strides = [1, 1]} : vector<3x32xf32> to vector<1x32xf32>
    %cst_154 = arith.constant dense<0.000000e+00> : vector<16xf32>
    %314 = vector.multi_reduction <add>, %311, %cst_154 [1] : vector<16x32xf32> to vector<16xf32>
    %315 = vector.shape_cast %314 : vector<16xf32> to vector<16x1xf32>
    %cst_155 = arith.constant 3.200000e+01 : f32
    %316 = vector.broadcast %cst_155 : f32 to vector<16x1xf32>
    %317 = arith.divf %315, %316 : vector<16x1xf32>
    %318 = vector.broadcast %317 : vector<16x1xf32> to vector<16x32xf32>
    %319 = arith.subf %311, %318 : vector<16x32xf32>
    %320 = arith.mulf %319, %319 : vector<16x32xf32>
    %cst_156 = arith.constant dense<0.000000e+00> : vector<16xf32>
    %321 = vector.multi_reduction <add>, %320, %cst_156 [1] : vector<16x32xf32> to vector<16xf32>
    %322 = vector.shape_cast %321 : vector<16xf32> to vector<16x1xf32>
    %cst_157 = arith.constant 3.200000e+01 : f32
    %323 = vector.broadcast %cst_157 : f32 to vector<16x1xf32>
    %324 = arith.divf %322, %323 : vector<16x1xf32>
    %325 = vector.broadcast %317 : vector<16x1xf32> to vector<16x32xf32>
    %326 = arith.subf %311, %325 : vector<16x32xf32>
    %cst_158 = arith.constant 9.99999974E-6 : f32
    %327 = vector.broadcast %cst_158 : f32 to vector<16x1xf32>
    %328 = arith.addf %324, %327 : vector<16x1xf32>
    %329 = math.rsqrt %328 : vector<16x1xf32>
    %330 = vector.broadcast %329 : vector<16x1xf32> to vector<16x32xf32>
    %331 = arith.mulf %326, %330 : vector<16x32xf32>
    %332 = vector.broadcast %312 : vector<1x32xf32> to vector<16x32xf32>
    %333 = arith.mulf %331, %332 : vector<16x32xf32>
    %334 = vector.broadcast %313 : vector<1x32xf32> to vector<16x32xf32>
    %335 = arith.addf %333, %334 : vector<16x32xf32>
    %c0_159 = arith.constant 0 : index
    %c1_160 = arith.constant 1 : index
    %c0_161 = arith.constant 0 : index
    %c0_162 = arith.constant 0 : index
    %336 = vector.load %arg13[%c0_159, %c1_160, %c0_161, %c0_162] : memref<1x2x32x64xbf16, #tpu.memory_space<vmem>>, vector<1x1x32x64xbf16>
    %337 = vector.shape_cast %336 : vector<1x1x32x64xbf16> to vector<32x64xbf16>
    %338 = arith.truncf %335 : vector<16x32xf32> to vector<16x32xbf16>
    %cst_163 = arith.constant dense<0.000000e+00> : vector<16x64xf32>
    %339 = tpu.matmul %338, %337, %cst_163 {dimension_numbers = #tpu.dot_dimension_numbers<[1], [0], [0], [1], [0, 0, 1, 1], [], []>} : vector<16x32xbf16>, vector<32x64xbf16>, vector<16x64xf32> -> vector<16x64xf32>
    %c0_164 = arith.constant 0 : index
    %c1_165 = arith.constant 1 : index
    %c0_166 = arith.constant 0 : index
    %c0_167 = arith.constant 0 : index
    %340 = vector.load %arg14[%c0_164, %c1_165, %c0_166, %c0_167] : memref<1x2x1x64xf32, #tpu.memory_space<vmem>>, vector<1x1x1x64xf32>
    %341 = vector.shape_cast %340 : vector<1x1x1x64xf32> to vector<1x64xf32>
    %342 = vector.broadcast %341 : vector<1x64xf32> to vector<16x64xf32>
    %343 = arith.addf %339, %342 : vector<16x64xf32>
    %344 = arith.mulf %343, %343 : vector<16x64xf32>
    %345 = arith.mulf %343, %344 : vector<16x64xf32>
    %cst_168 = arith.constant 4.471500e-02 : f32
    %346 = vector.broadcast %cst_168 : f32 to vector<16x64xf32>
    %347 = arith.mulf %346, %345 : vector<16x64xf32>
    %348 = arith.addf %343, %347 : vector<16x64xf32>
    %cst_169 = arith.constant 0.797884583 : f32
    %349 = vector.broadcast %cst_169 : f32 to vector<16x64xf32>
    %350 = arith.mulf %349, %348 : vector<16x64xf32>
    %351 = math.tanh %350 : vector<16x64xf32>
    %cst_170 = arith.constant 1.000000e+00 : f32
    %352 = vector.broadcast %cst_170 : f32 to vector<16x64xf32>
    %353 = arith.addf %352, %351 : vector<16x64xf32>
    %cst_171 = arith.constant 5.000000e-01 : f32
    %354 = vector.broadcast %cst_171 : f32 to vector<16x64xf32>
    %355 = arith.mulf %354, %353 : vector<16x64xf32>
    %356 = arith.mulf %343, %355 : vector<16x64xf32>
    %c0_172 = arith.constant 0 : index
    %c1_173 = arith.constant 1 : index
    %c0_174 = arith.constant 0 : index
    %c0_175 = arith.constant 0 : index
    %357 = vector.load %arg15[%c0_172, %c1_173, %c0_174, %c0_175] : memref<1x2x64x32xbf16, #tpu.memory_space<vmem>>, vector<1x1x64x32xbf16>
    %358 = vector.shape_cast %357 : vector<1x1x64x32xbf16> to vector<64x32xbf16>
    %359 = arith.truncf %356 : vector<16x64xf32> to vector<16x64xbf16>
    %cst_176 = arith.constant dense<0.000000e+00> : vector<16x32xf32>
    %360 = tpu.matmul %359, %358, %cst_176 {dimension_numbers = #tpu.dot_dimension_numbers<[1], [0], [0], [1], [0, 0, 1, 1], [], []>} : vector<16x64xbf16>, vector<64x32xbf16>, vector<16x32xf32> -> vector<16x32xf32>
    %361 = arith.addf %311, %360 : vector<16x32xf32>
    %c0_177 = arith.constant 0 : index
    %c1_178 = arith.constant 1 : index
    %c0_179 = arith.constant 0 : index
    %c0_180 = arith.constant 0 : index
    %362 = vector.load %arg16[%c0_177, %c1_178, %c0_179, %c0_180] : memref<1x2x1x32xf32, #tpu.memory_space<vmem>>, vector<1x1x1x32xf32>
    %363 = vector.shape_cast %362 : vector<1x1x1x32xf32> to vector<1x32xf32>
    %364 = vector.broadcast %363 : vector<1x32xf32> to vector<16x32xf32>
    %365 = arith.addf %361, %364 : vector<16x32xf32>
    %c0_181 = arith.constant 0 : index
    %c0_182 = arith.constant 0 : index
    %c0_183 = arith.constant 0 : index
    %366 = vector.load %arg17[%c0_181, %c0_182, %c0_183] : memref<2x32x64xbf16, #tpu.memory_space<vmem>>, vector<1x32x64xbf16>
    %367 = vector.shape_cast %366 : vector<1x32x64xbf16> to vector<32x64xbf16>
    %368 = arith.truncf %195 : vector<16x32xf32> to vector<16x32xbf16>
    %cst_184 = arith.constant dense<0.000000e+00> : vector<16x64xf32>
    %369 = tpu.matmul %368, %367, %cst_184 {dimension_numbers = #tpu.dot_dimension_numbers<[1], [0], [0], [1], [0, 0, 1, 1], [], []>} : vector<16x32xbf16>, vector<32x64xbf16>, vector<16x64xf32> -> vector<16x64xf32>
    %c0_185 = arith.constant 0 : index
    %c0_186 = arith.constant 0 : index
    %c0_187 = arith.constant 0 : index
    %370 = vector.load %arg18[%c0_185, %c0_186, %c0_187] : memref<2x1x64xf32, #tpu.memory_space<vmem>>, vector<1x1x64xf32>
    %371 = vector.shape_cast %370 : vector<1x1x64xf32> to vector<1x64xf32>
    %372 = vector.broadcast %371 : vector<1x64xf32> to vector<16x64xf32>
    %373 = arith.addf %369, %372 : vector<16x64xf32>
    %c1_188 = arith.constant 1 : index
    %c0_189 = arith.constant 0 : index
    %c0_190 = arith.constant 0 : index
    %374 = vector.load %arg17[%c1_188, %c0_189, %c0_190] : memref<2x32x64xbf16, #tpu.memory_space<vmem>>, vector<1x32x64xbf16>
    %375 = vector.shape_cast %374 : vector<1x32x64xbf16> to vector<32x64xbf16>
    %376 = arith.truncf %365 : vector<16x32xf32> to vector<16x32xbf16>
    %cst_191 = arith.constant dense<0.000000e+00> : vector<16x64xf32>
    %377 = tpu.matmul %376, %375, %cst_191 {dimension_numbers = #tpu.dot_dimension_numbers<[1], [0], [0], [1], [0, 0, 1, 1], [], []>} : vector<16x32xbf16>, vector<32x64xbf16>, vector<16x64xf32> -> vector<16x64xf32>
    %c1_192 = arith.constant 1 : index
    %c0_193 = arith.constant 0 : index
    %c0_194 = arith.constant 0 : index
    %378 = vector.load %arg18[%c1_192, %c0_193, %c0_194] : memref<2x1x64xf32, #tpu.memory_space<vmem>>, vector<1x1x64xf32>
    %379 = vector.shape_cast %378 : vector<1x1x64xf32> to vector<1x64xf32>
    %380 = vector.broadcast %379 : vector<1x64xf32> to vector<16x64xf32>
    %381 = arith.addf %377, %380 : vector<16x64xf32>
    %382 = arith.addf %373, %381 : vector<16x64xf32>
    %c0_195 = arith.constant 0 : index
    %c0_196 = arith.constant 0 : index
    %c0_197 = arith.constant 0 : index
    %383 = vector.load %arg19[%c0_195, %c0_196, %c0_197] : memref<1x16x64xf32, #tpu.memory_space<vmem>>, vector<1x16x64xf32>
    %384 = vector.shape_cast %383 : vector<1x16x64xf32> to vector<16x64xf32>
    %385 = vector.shape_cast %382 : vector<16x64xf32> to vector<1x16x64xf32>
    tpu.vector_store %arg19[%c0_195, %c0_196, %c0_197], %385 {strides = array<i32>} : memref<1x16x64xf32, #tpu.memory_space<vmem>>, vector<1x16x64xf32>,
    return
  }
  func.func @transform_0(%arg0: i32) -> (i32, i32, i32) {
    %c0_i32 = arith.constant 0 : i32
    %c0_i32_0 = arith.constant 0 : i32
    %c0_i32_1 = arith.constant 0 : i32
    return %arg0, %c0_i32, %c0_i32_0 : i32, i32, i32
  }
  func.func @transform_1(%arg0: i32) -> (i32, i32, i32) {
    %c0_i32 = arith.constant 0 : i32
    %c0_i32_0 = arith.constant 0 : i32
    %c0_i32_1 = arith.constant 0 : i32
    return %arg0, %c0_i32, %c0_i32_0 : i32, i32, i32
  }
  func.func @transform_2(%arg0: i32) -> (i32, i32, i32) {
    %c0_i32 = arith.constant 0 : i32
    %c0_i32_0 = arith.constant 0 : i32
    %c0_i32_1 = arith.constant 0 : i32
    %c0_i32_2 = arith.constant 0 : i32
    return %c0_i32, %c0_i32_0, %c0_i32_1 : i32, i32, i32
  }
  func.func @transform_3(%arg0: i32) -> (i32, i32, i32) {
    %c0_i32 = arith.constant 0 : i32
    %c0_i32_0 = arith.constant 0 : i32
    %c0_i32_1 = arith.constant 0 : i32
    %c0_i32_2 = arith.constant 0 : i32
    return %c0_i32, %c0_i32_0, %c0_i32_1 : i32, i32, i32
  }
  func.func @transform_4(%arg0: i32) -> (i32, i32, i32) {
    %c0_i32 = arith.constant 0 : i32
    %c0_i32_0 = arith.constant 0 : i32
    %c0_i32_1 = arith.constant 0 : i32
    %c0_i32_2 = arith.constant 0 : i32
    return %c0_i32, %c0_i32_0, %c0_i32_1 : i32, i32, i32
  }
  func.func @transform_5(%arg0: i32) -> (i32, i32, i32, i32) {
    %c0_i32 = arith.constant 0 : i32
    %c0_i32_0 = arith.constant 0 : i32
    %c0_i32_1 = arith.constant 0 : i32
    %c0_i32_2 = arith.constant 0 : i32
    %c0_i32_3 = arith.constant 0 : i32
    return %c0_i32, %c0_i32_0, %c0_i32_1, %c0_i32_2 : i32, i32, i32, i32
  }
  func.func @transform_6(%arg0: i32) -> (i32, i32, i32, i32) {
    %c0_i32 = arith.constant 0 : i32
    %c0_i32_0 = arith.constant 0 : i32
    %c0_i32_1 = arith.constant 0 : i32
    %c0_i32_2 = arith.constant 0 : i32
    %c0_i32_3 = arith.constant 0 : i32
    return %c0_i32, %c0_i32_0, %c0_i32_1, %c0_i32_2 : i32, i32, i32, i32
  }
  func.func @transform_7(%arg0: i32) -> (i32, i32, i32, i32) {
    %c0_i32 = arith.constant 0 : i32
    %c0_i32_0 = arith.constant 0 : i32
    %c0_i32_1 = arith.constant 0 : i32
    %c0_i32_2 = arith.constant 0 : i32
    %c0_i32_3 = arith.constant 0 : i32
    return %c0_i32, %c0_i32_0, %c0_i32_1, %c0_i32_2 : i32, i32, i32, i32
  }
  func.func @transform_8(%arg0: i32) -> (i32, i32, i32, i32) {
    %c0_i32 = arith.constant 0 : i32
    %c0_i32_0 = arith.constant 0 : i32
    %c0_i32_1 = arith.constant 0 : i32
    %c0_i32_2 = arith.constant 0 : i32
    %c0_i32_3 = arith.constant 0 : i32
    return %c0_i32, %c0_i32_0, %c0_i32_1, %c0_i32_2 : i32, i32, i32, i32
  }
  func.func @transform_9(%arg0: i32) -> (i32, i32, i32, i32) {
    %c0_i32 = arith.constant 0 : i32
    %c0_i32_0 = arith.constant 0 : i32
    %c0_i32_1 = arith.constant 0 : i32
    %c0_i32_2 = arith.constant 0 : i32
    %c0_i32_3 = arith.constant 0 : i32
    return %c0_i32, %c0_i32_0, %c0_i32_1, %c0_i32_2 : i32, i32, i32, i32
  }
  func.func @transform_10(%arg0: i32) -> (i32, i32, i32, i32) {
    %c0_i32 = arith.constant 0 : i32
    %c0_i32_0 = arith.constant 0 : i32
    %c0_i32_1 = arith.constant 0 : i32
    %c0_i32_2 = arith.constant 0 : i32
    %c0_i32_3 = arith.constant 0 : i32
    return %c0_i32, %c0_i32_0, %c0_i32_1, %c0_i32_2 : i32, i32, i32, i32
  }
  func.func @transform_11(%arg0: i32) -> (i32, i32, i32, i32) {
    %c0_i32 = arith.constant 0 : i32
    %c0_i32_0 = arith.constant 0 : i32
    %c0_i32_1 = arith.constant 0 : i32
    %c0_i32_2 = arith.constant 0 : i32
    %c0_i32_3 = arith.constant 0 : i32
    return %c0_i32, %c0_i32_0, %c0_i32_1, %c0_i32_2 : i32, i32, i32, i32
  }
  func.func @transform_12(%arg0: i32) -> (i32, i32, i32, i32) {
    %c0_i32 = arith.constant 0 : i32
    %c0_i32_0 = arith.constant 0 : i32
    %c0_i32_1 = arith.constant 0 : i32
    %c0_i32_2 = arith.constant 0 : i32
    %c0_i32_3 = arith.constant 0 : i32
    return %c0_i32, %c0_i32_0, %c0_i32_1, %c0_i32_2 : i32, i32, i32, i32
  }
  func.func @transform_13(%arg0: i32) -> (i32, i32, i32, i32) {
    %c0_i32 = arith.constant 0 : i32
    %c0_i32_0 = arith.constant 0 : i32
    %c0_i32_1 = arith.constant 0 : i32
    %c0_i32_2 = arith.constant 0 : i32
    %c0_i32_3 = arith.constant 0 : i32
    return %c0_i32, %c0_i32_0, %c0_i32_1, %c0_i32_2 : i32, i32, i32, i32
  }
  func.func @transform_14(%arg0: i32) -> (i32, i32, i32, i32) {
    %c0_i32 = arith.constant 0 : i32
    %c0_i32_0 = arith.constant 0 : i32
    %c0_i32_1 = arith.constant 0 : i32
    %c0_i32_2 = arith.constant 0 : i32
    %c0_i32_3 = arith.constant 0 : i32
    return %c0_i32, %c0_i32_0, %c0_i32_1, %c0_i32_2 : i32, i32, i32, i32
  }
  func.func @transform_15(%arg0: i32) -> (i32, i32, i32, i32) {
    %c0_i32 = arith.constant 0 : i32
    %c0_i32_0 = arith.constant 0 : i32
    %c0_i32_1 = arith.constant 0 : i32
    %c0_i32_2 = arith.constant 0 : i32
    %c0_i32_3 = arith.constant 0 : i32
    return %c0_i32, %c0_i32_0, %c0_i32_1, %c0_i32_2 : i32, i32, i32, i32
  }
  func.func @transform_16(%arg0: i32) -> (i32, i32, i32) {
    %c0_i32 = arith.constant 0 : i32
    %c0_i32_0 = arith.constant 0 : i32
    %c0_i32_1 = arith.constant 0 : i32
    %c0_i32_2 = arith.constant 0 : i32
    return %c0_i32, %c0_i32_0, %c0_i32_1 : i32, i32, i32
  }
  func.func @transform_17(%arg0: i32) -> (i32, i32, i32) {
    %c0_i32 = arith.constant 0 : i32
    %c0_i32_0 = arith.constant 0 : i32
    %c0_i32_1 = arith.constant 0 : i32
    %c0_i32_2 = arith.constant 0 : i32
    return %c0_i32, %c0_i32_0, %c0_i32_1 : i32, i32, i32
  }
  func.func @transform_18(%arg0: i32) -> (i32, i32, i32) {
    %c0_i32 = arith.constant 0 : i32
    %c0_i32_0 = arith.constant 0 : i32
    %c0_i32_1 = arith.constant 0 : i32
    return %arg0, %c0_i32, %c0_i32_0 : i32, i32, i32
  }
}

module attributes {stable_mosaic.version = 11 : i64} {
  func.func @_cbam_kernel(%arg0: i32, %arg1: memref<1x4x256xf32, #tpu.memory_space<vmem>>, %arg2: memref<4x1xf32, #tpu.memory_space<vmem>>, %arg3: memref<4x1xf32, #tpu.memory_space<vmem>>, %arg4: memref<512x256xbf16, #tpu.memory_space<vmem>>, %arg5: memref<1x4x256xf32, #tpu.memory_space<vmem>>) attributes {dimension_semantics = [#tpu.dimension_semantics<parallel>], iteration_bounds = array<i64: 2>, scalar_prefetch = 0 : i64, scratch_operands = 0 : i64, tpu.core_type = #tpu.core_type<tc>, window_params = [{transform_indices = @transform_0, window_bounds = array<i64: 1, 4, 256>}, {pipeline_mode = #tpu.pipeline_mode<synchronous>, transform_indices = @transform_1, window_bounds = array<i64: 4, 1>}, {pipeline_mode = #tpu.pipeline_mode<synchronous>, transform_indices = @transform_2, window_bounds = array<i64: 4, 1>}, {pipeline_mode = #tpu.pipeline_mode<synchronous>, transform_indices = @transform_3, window_bounds = array<i64: 512, 256>}, {transform_indices = @transform_4, window_bounds = array<i64: 1, 4, 256>}]} {
    %c0 = arith.constant 0 : index
    %c0_0 = arith.constant 0 : index
    %c0_1 = arith.constant 0 : index
    %0 = vector.load %arg1[%c0, %c0_0, %c0_1] : memref<1x4x256xf32, #tpu.memory_space<vmem>>, vector<1x4x256xf32>
    %1 = vector.shape_cast %0 : vector<1x4x256xf32> to vector<4x256xf32>
    %cst = arith.constant dense<0.000000e+00> : vector<4xf32>
    %2 = vector.multi_reduction <add>, %1, %cst [1] : vector<4x256xf32> to vector<4xf32>
    %3 = vector.shape_cast %2 : vector<4xf32> to vector<4x1xf32>
    %cst_2 = arith.constant 2.560000e+02 : f32
    %4 = vector.broadcast %cst_2 : f32 to vector<4x1xf32>
    %5 = arith.divf %3, %4 : vector<4x1xf32>
    %cst_3 = arith.constant dense<0xFF800000> : vector<4xf32>
    %6 = vector.multi_reduction <maximumf>, %1, %cst_3 [1] : vector<4x256xf32> to vector<4xf32>
    %7 = vector.shape_cast %6 : vector<4xf32> to vector<4x1xf32>
    %c0_4 = arith.constant 0 : index
    %c0_5 = arith.constant 0 : index
    %8 = vector.load %arg2[%c0_4, %c0_5] : memref<4x1xf32, #tpu.memory_space<vmem>>, vector<4x1xf32>
    %c0_6 = arith.constant 0 : index
    %c0_7 = arith.constant 0 : index
    %9 = vector.load %arg3[%c0_6, %c0_7] : memref<4x1xf32, #tpu.memory_space<vmem>>, vector<4x1xf32>
    %10 = arith.mulf %8, %5 : vector<4x1xf32>
    %cst_8 = arith.constant dense<0.000000e+00> : vector<1xf32>
    %11 = vector.multi_reduction <add>, %10, %cst_8 [0] : vector<4x1xf32> to vector<1xf32>
    %12 = vector.shape_cast %11 : vector<1xf32> to vector<1x1xf32>
    %cst_9 = arith.constant 0.000000e+00 : f32
    %13 = vector.broadcast %cst_9 : f32 to vector<1x1xf32>
    %14 = arith.maximumf %12, %13 : vector<1x1xf32>
    %15 = vector.broadcast %14 : vector<1x1xf32> to vector<4x1xf32>
    %16 = arith.mulf %9, %15 : vector<4x1xf32>
    %cst_10 = arith.constant dense<0.000000e+00> : vector<4xf32>
    %17 = vector.multi_reduction <add>, %16, %cst_10 [1] : vector<4x1xf32> to vector<4xf32>
    %18 = vector.shape_cast %17 : vector<4xf32> to vector<4x1xf32>
    %19 = arith.mulf %8, %7 : vector<4x1xf32>
    %cst_11 = arith.constant dense<0.000000e+00> : vector<1xf32>
    %20 = vector.multi_reduction <add>, %19, %cst_11 [0] : vector<4x1xf32> to vector<1xf32>
    %21 = vector.shape_cast %20 : vector<1xf32> to vector<1x1xf32>
    %cst_12 = arith.constant 0.000000e+00 : f32
    %22 = vector.broadcast %cst_12 : f32 to vector<1x1xf32>
    %23 = arith.maximumf %21, %22 : vector<1x1xf32>
    %24 = vector.broadcast %23 : vector<1x1xf32> to vector<4x1xf32>
    %25 = arith.mulf %9, %24 : vector<4x1xf32>
    %cst_13 = arith.constant dense<0.000000e+00> : vector<4xf32>
    %26 = vector.multi_reduction <add>, %25, %cst_13 [1] : vector<4x1xf32> to vector<4xf32>
    %27 = vector.shape_cast %26 : vector<4xf32> to vector<4x1xf32>
    %28 = arith.addf %18, %27 : vector<4x1xf32>
    %29 = arith.negf %28 : vector<4x1xf32>
    %30 = math.exp %29 : vector<4x1xf32>
    %cst_14 = arith.constant 1.000000e+00 : f32
    %31 = vector.broadcast %cst_14 : f32 to vector<4x1xf32>
    %32 = arith.addf %31, %30 : vector<4x1xf32>
    %33 = arith.divf %31, %32 : vector<4x1xf32>
    %34 = vector.broadcast %33 : vector<4x1xf32> to vector<4x256xf32>
    %35 = arith.mulf %1, %34 : vector<4x256xf32>
    %cst_15 = arith.constant dense<0.000000e+00> : vector<256xf32>
    %36 = vector.multi_reduction <add>, %35, %cst_15 [0] : vector<4x256xf32> to vector<256xf32>
    %37 = vector.shape_cast %36 : vector<256xf32> to vector<1x256xf32>
    %cst_16 = arith.constant 4.000000e+00 : f32
    %38 = vector.broadcast %cst_16 : f32 to vector<1x256xf32>
    %39 = arith.divf %37, %38 : vector<1x256xf32>
    %cst_17 = arith.constant dense<0xFF800000> : vector<256xf32>
    %40 = vector.multi_reduction <maximumf>, %35, %cst_17 [0] : vector<4x256xf32> to vector<256xf32>
    %41 = vector.shape_cast %40 : vector<256xf32> to vector<1x256xf32>
    %42 = tpu.concatenate %39, %41 in 1 : vector<1x256xf32>, vector<1x256xf32> -> vector<1x512xf32>
    %43 = arith.truncf %42 : vector<1x512xf32> to vector<1x512xbf16>
    %c0_18 = arith.constant 0 : index
    %c0_19 = arith.constant 0 : index
    %44 = vector.load %arg4[%c0_18, %c0_19] : memref<512x256xbf16, #tpu.memory_space<vmem>>, vector<512x256xbf16>
    %cst_20 = arith.constant dense<0.000000e+00> : vector<1x256xf32>
    %45 = tpu.matmul %43, %44, %cst_20 {dimension_numbers = #tpu.dot_dimension_numbers<[1], [0], [0], [1], [0, 0, 1, 1], [], []>} : vector<1x512xbf16>, vector<512x256xbf16>, vector<1x256xf32> -> vector<1x256xf32>
    %46 = arith.negf %45 : vector<1x256xf32>
    %47 = math.exp %46 : vector<1x256xf32>
    %cst_21 = arith.constant 1.000000e+00 : f32
    %48 = vector.broadcast %cst_21 : f32 to vector<1x256xf32>
    %49 = arith.addf %48, %47 : vector<1x256xf32>
    %50 = arith.divf %48, %49 : vector<1x256xf32>
    %51 = vector.broadcast %50 : vector<1x256xf32> to vector<4x256xf32>
    %52 = arith.mulf %1, %51 : vector<4x256xf32>
    %53 = arith.addf %1, %52 : vector<4x256xf32>
    %c0_22 = arith.constant 0 : index
    %c0_23 = arith.constant 0 : index
    %c0_24 = arith.constant 0 : index
    %54 = vector.load %arg5[%c0_22, %c0_23, %c0_24] : memref<1x4x256xf32, #tpu.memory_space<vmem>>, vector<1x4x256xf32>
    %55 = vector.shape_cast %54 : vector<1x4x256xf32> to vector<4x256xf32>
    %56 = vector.shape_cast %53 : vector<4x256xf32> to vector<1x4x256xf32>
    tpu.vector_store %arg5[%c0_22, %c0_23, %c0_24], %56 {strides = array<i32>} : memref<1x4x256xf32, #tpu.memory_space<vmem>>, vector<1x4x256xf32>,
    return
  }
  func.func @transform_0(%arg0: i32) -> (i32, i32, i32) {
    %c0_i32 = arith.constant 0 : i32
    %c0_i32_0 = arith.constant 0 : i32
    %c0_i32_1 = arith.constant 0 : i32
    return %arg0, %c0_i32, %c0_i32_0 : i32, i32, i32
  }
  func.func @transform_1(%arg0: i32) -> (i32, i32) {
    %c0_i32 = arith.constant 0 : i32
    %c0_i32_0 = arith.constant 0 : i32
    %c0_i32_1 = arith.constant 0 : i32
    return %c0_i32, %c0_i32_0 : i32, i32
  }
  func.func @transform_2(%arg0: i32) -> (i32, i32) {
    %c0_i32 = arith.constant 0 : i32
    %c0_i32_0 = arith.constant 0 : i32
    %c0_i32_1 = arith.constant 0 : i32
    return %c0_i32, %c0_i32_0 : i32, i32
  }
  func.func @transform_3(%arg0: i32) -> (i32, i32) {
    %c0_i32 = arith.constant 0 : i32
    %c0_i32_0 = arith.constant 0 : i32
    %c0_i32_1 = arith.constant 0 : i32
    return %c0_i32, %c0_i32_0 : i32, i32
  }
  func.func @transform_4(%arg0: i32) -> (i32, i32, i32) {
    %c0_i32 = arith.constant 0 : i32
    %c0_i32_0 = arith.constant 0 : i32
    %c0_i32_1 = arith.constant 0 : i32
    return %arg0, %c0_i32, %c0_i32_0 : i32, i32, i32
  }
}

module attributes {stable_mosaic.version = 11 : i64} {
  func.func @_mm_bn_kernel(%arg0: i32, %arg1: memref<64x16xbf16, #tpu.memory_space<vmem>>, %arg2: memref<16x256xbf16, #tpu.memory_space<vmem>>, %arg3: memref<64x1xf32, #tpu.memory_space<vmem>>, %arg4: memref<64x1xf32, #tpu.memory_space<vmem>>, %arg5: memref<64x256xf32, #tpu.memory_space<vmem>>) attributes {dimension_semantics = [#tpu.dimension_semantics<parallel>], iteration_bounds = array<i64: 2>, scalar_prefetch = 0 : i64, scratch_operands = 0 : i64, tpu.core_type = #tpu.core_type<tc>, window_params = [{pipeline_mode = #tpu.pipeline_mode<synchronous>, transform_indices = @transform_0, window_bounds = array<i64: 64, 16>}, {transform_indices = @transform_1, window_bounds = array<i64: 16, 256>}, {pipeline_mode = #tpu.pipeline_mode<synchronous>, transform_indices = @transform_2, window_bounds = array<i64: 64, 1>}, {pipeline_mode = #tpu.pipeline_mode<synchronous>, transform_indices = @transform_3, window_bounds = array<i64: 64, 1>}, {transform_indices = @transform_4, window_bounds = array<i64: 64, 256>}]} {
    %c0 = arith.constant 0 : index
    %c0_0 = arith.constant 0 : index
    %0 = vector.load %arg1[%c0, %c0_0] : memref<64x16xbf16, #tpu.memory_space<vmem>>, vector<64x16xbf16>
    %c0_1 = arith.constant 0 : index
    %c0_2 = arith.constant 0 : index
    %1 = vector.load %arg2[%c0_1, %c0_2] : memref<16x256xbf16, #tpu.memory_space<vmem>>, vector<16x256xbf16>
    %cst = arith.constant dense<0.000000e+00> : vector<64x256xf32>
    %2 = tpu.matmul %0, %1, %cst {dimension_numbers = #tpu.dot_dimension_numbers<[1], [0], [0], [1], [0, 0, 1, 1], [], []>} : vector<64x16xbf16>, vector<16x256xbf16>, vector<64x256xf32> -> vector<64x256xf32>
    %c0_3 = arith.constant 0 : index
    %c0_4 = arith.constant 0 : index
    %3 = vector.load %arg3[%c0_3, %c0_4] : memref<64x1xf32, #tpu.memory_space<vmem>>, vector<64x1xf32>
    %4 = vector.broadcast %3 : vector<64x1xf32> to vector<64x256xf32>
    %5 = arith.mulf %2, %4 : vector<64x256xf32>
    %c0_5 = arith.constant 0 : index
    %c0_6 = arith.constant 0 : index
    %6 = vector.load %arg4[%c0_5, %c0_6] : memref<64x1xf32, #tpu.memory_space<vmem>>, vector<64x1xf32>
    %7 = vector.broadcast %6 : vector<64x1xf32> to vector<64x256xf32>
    %8 = arith.addf %5, %7 : vector<64x256xf32>
    %c0_7 = arith.constant 0 : index
    %c0_8 = arith.constant 0 : index
    %9 = vector.load %arg5[%c0_7, %c0_8] : memref<64x256xf32, #tpu.memory_space<vmem>>, vector<64x256xf32>
    tpu.vector_store %arg5[%c0_7, %c0_8], %8 {strides = array<i32>} : memref<64x256xf32, #tpu.memory_space<vmem>>, vector<64x256xf32>,
    return
  }
  func.func @transform_0(%arg0: i32) -> (i32, i32) {
    %c0_i32 = arith.constant 0 : i32
    %c0_i32_0 = arith.constant 0 : i32
    %c0_i32_1 = arith.constant 0 : i32
    return %c0_i32, %c0_i32_0 : i32, i32
  }
  func.func @transform_1(%arg0: i32) -> (i32, i32) {
    %c0_i32 = arith.constant 0 : i32
    %c0_i32_0 = arith.constant 0 : i32
    return %c0_i32, %arg0 : i32, i32
  }
  func.func @transform_2(%arg0: i32) -> (i32, i32) {
    %c0_i32 = arith.constant 0 : i32
    %c0_i32_0 = arith.constant 0 : i32
    %c0_i32_1 = arith.constant 0 : i32
    return %c0_i32, %c0_i32_0 : i32, i32
  }
  func.func @transform_3(%arg0: i32) -> (i32, i32) {
    %c0_i32 = arith.constant 0 : i32
    %c0_i32_0 = arith.constant 0 : i32
    %c0_i32_1 = arith.constant 0 : i32
    return %c0_i32, %c0_i32_0 : i32, i32
  }
  func.func @transform_4(%arg0: i32) -> (i32, i32) {
    %c0_i32 = arith.constant 0 : i32
    %c0_i32_0 = arith.constant 0 : i32
    return %c0_i32, %arg0 : i32, i32
  }
}

</mosaic_0001>

<llo_original>
// kernel: squeeze.11
$region0: #{squeeze.11}
  %s0 = inlined_call_operand.vmem [shape: f32[4,512], index: 0, kind: input, shape index: {}]
  %s1 = inlined_call_operand.vmem [shape: f32[4,2,16,16], index: 1, kind: output, shape index: {}]
  $region1: #{squeeze.11} parent=0
    #allocation0 [shape = 'u8[16384]{0}', space=vmem, size = 0x4000, scoped, tag = 'scoped mem for input reshape']
    %s3 = sshll.u32 1, 4
    %s4 = ssub.s32 %s3, 1
    %s5 = smul.addr 4, 3
    %s6 = scalar_lea.vmem %s0, %s5
    %v7 = vld [vmem:[%s6] sm:%s4]
    %s8 = scalar_lea.vmem [#allocation0], 24
    %9 = vst [vmem:[%s8] sm:%s4] %v7
    %s10 = smul.addr 4, 2
    %s11 = scalar_lea.vmem %s0, %s10
    %v12 = vld [vmem:[%s11] sm:%s4]
    %s13 = scalar_lea.vmem [#allocation0], 16
    %14 = vst [vmem:[%s13] sm:%s4] %v12
    %s15 = scalar_lea.vmem %s0, 4
    %v16 = vld [vmem:[%s15] sm:%s4]
    %s17 = scalar_lea.vmem [#allocation0], 8
    %18 = vst [vmem:[%s17] sm:%s4] %v16
    %v19 = vld [vmem:[%s0] sm:%s4]
    %20 = vst [vmem:[#allocation0] sm:%s4] %v19
    %v21 = vld [vmem:[#allocation0] sm:$0xf]
    %vm22 = vcmask 130048
    %23 = vst.msk [vmem:[%s1] sm:$0x1] %vm22, %v21
    %s24 = scalar_lea.vmem %s1, 31
    %25 = vst.msk [vmem:[%s24] sm:$0x2] %vm22, %v21
    %s26 = scalar_lea.vmem %s1, 62
    %27 = vst.msk [vmem:[%s26] sm:$0x4] %vm22, %v21
    %s28 = scalar_lea.vmem %s1, 93
    %29 = vst.msk [vmem:[%s28] sm:$0x8] %vm22, %v21
    %s30 = scalar_lea.vmem [#allocation0], 8
    %v31 = vld [vmem:[%s30] sm:$0xf]
    %vm32 = vcmask 130048
    %s33 = scalar_lea.vmem %s1, 8
    %34 = vst.msk [vmem:[%s33] sm:$0x1] %vm32, %v31
    %s35 = scalar_lea.vmem %s1, 39
    %36 = vst.msk [vmem:[%s35] sm:$0x2] %vm32, %v31
    %s37 = scalar_lea.vmem %s1, 70
    %38 = vst.msk [vmem:[%s37] sm:$0x4] %vm32, %v31
    %s39 = scalar_lea.vmem %s1, 101
    %40 = vst.msk [vmem:[%s39] sm:$0x8] %vm32, %v31
    %s41 = scalar_lea.vmem [#allocation0], 16
    %v42 = vld [vmem:[%s41] sm:$0xf]
    %vm43 = vcmask 130048
    %s44 = scalar_lea.vmem %s1, 16
    %45 = vst.msk [vmem:[%s44] sm:$0x1] %vm43, %v42
    %s46 = scalar_lea.vmem %s1, 47
    %47 = vst.msk [vmem:[%s46] sm:$0x2] %vm43, %v42
    %s48 = scalar_lea.vmem %s1, 78
    %49 = vst.msk [vmem:[%s48] sm:$0x4] %vm43, %v42
    %s50 = scalar_lea.vmem %s1, 109
    %51 = vst.msk [vmem:[%s50] sm:$0x8] %vm43, %v42
    %s52 = scalar_lea.vmem [#allocation0], 24
    %v53 = vld [vmem:[%s52] sm:$0xf]
    %vm54 = vcmask 130048
    %s55 = scalar_lea.vmem %s1, 24
    %56 = vst.msk [vmem:[%s55] sm:$0x1] %vm54, %v53
    %s57 = scalar_lea.vmem %s1, 55
    %58 = vst.msk [vmem:[%s57] sm:$0x2] %vm54, %v53
    %s59 = scalar_lea.vmem %s1, 86
    %60 = vst.msk [vmem:[%s59] sm:$0x4] %vm54, %v53
    %s61 = scalar_lea.vmem %s1, 117
    %62 = vst.msk [vmem:[%s61] sm:$0x8] %vm54, %v53
    %v63 = vld [vmem:[#allocation0] ss:$8 sm:$0xf]
    %s64 = scalar_lea.vmem [#allocation0], 4294967265
    %v65 = vld [vmem:[%s64] ss:$8 sm:$0xf0]
    %vm66 = vcmask 1047556
    %v67 = vsel %vm66, %v65, %v63
    %68 = vrot.lane.b32.xlu0 %v67, 112
    %v69 = vpop.permute.xlu0 %68
    %vm70 = vcmask 130048
    %s71 = scalar_lea.vmem %s1, 1
    %72 = vst.msk [vmem:[%s71] ss:$8 sm:$0xf] %vm70, %v69
    %s73 = scalar_lea.vmem %s1, 1
    %74 = vst.msk [vmem:[%s73] ss:$8 sm:$0xf0] %vm70, %v69
    %s75 = scalar_lea.vmem [#allocation0], 2
    %v76 = vld [vmem:[%s75] ss:$8 sm:$0xf]
    %s77 = scalar_lea.vmem [#allocation0], 4294967267
    %v78 = vld [vmem:[%s77] ss:$8 sm:$0xf0]
    %vm79 = vcmask 1047556
    %v80 = vsel %vm79, %v78, %v76
    %81 = vrot.lane.b32.xlu0 %v80, 112
    %v82 = vpop.permute.xlu0 %81
    %vm83 = vcmask 130048
    %s84 = scalar_lea.vmem %s1, 65
    %85 = vst.msk [vmem:[%s84] ss:$8 sm:$0xf] %vm83, %v82
    %s86 = scalar_lea.vmem %s1, 65
    %87 = vst.msk [vmem:[%s86] ss:$8 sm:$0xf0] %vm83, %v82
    %v88 = vld [vmem:[#allocation0] ss:$8 sm:$0xf]
    %s89 = scalar_lea.vmem [#allocation0], 4294967265
    %v90 = vld [vmem:[%s89] ss:$8 sm:$0xf0]
    %vm91 = vcmask 1047556
    %v92 = vsel %vm91, %v90, %v88
    %93 = vrot.lane.b32.xlu0 %v92, 96
    %v94 = vpop.permute.xlu0 %93
    %vm95 = vcmask 130048
    %s96 = scalar_lea.vmem %s1, 2
    %97 = vst.msk [vmem:[%s96] ss:$8 sm:$0xf] %vm95, %v94
    %s98 = scalar_lea.vmem %s1, 2
    %99 = vst.msk [vmem:[%s98] ss:$8 sm:$0xf0] %vm95, %v94
    %s100 = scalar_lea.vmem [#allocation0], 2
    %v101 = vld [vmem:[%s100] ss:$8 sm:$0xf]
    %s102 = scalar_lea.vmem [#allocation0], 4294967267
    %v103 = vld [vmem:[%s102] ss:$8 sm:$0xf0]
    %vm104 = vcmask 1047556
    %v105 = vsel %vm104, %v103, %v101
    %106 = vrot.lane.b32.xlu0 %v105, 96
    %v107 = vpop.permute.xlu0 %106
    %vm108 = vcmask 130048
    %s109 = scalar_lea.vmem %s1, 66
    %110 = vst.msk [vmem:[%s109] ss:$8 sm:$0xf] %vm108, %v107
    %s111 = scalar_lea.vmem %s1, 66
    %112 = vst.msk [vmem:[%s111] ss:$8 sm:$0xf0] %vm108, %v107
    %v113 = vld [vmem:[#allocation0] ss:$8 sm:$0xf]
    %s114 = scalar_lea.vmem [#allocation0], 4294967265
    %v115 = vld [vmem:[%s114] ss:$8 sm:$0xf0]
    %vm116 = vcmask 1047556
    %v117 = vsel %vm116, %v115, %v113
    %118 = vrot.lane.b32.xlu0 %v117, 80
    %v119 = vpop.permute.xlu0 %118
    %vm120 = vcmask 130048
    %s121 = scalar_lea.vmem %s1, 3
    %122 = vst.msk [vmem:[%s121] ss:$8 sm:$0xf] %vm120, %v119
    %s123 = scalar_lea.vmem %s1, 3
    %124 = vst.msk [vmem:[%s123] ss:$8 sm:$0xf0] %vm120, %v119
    %s125 = scalar_lea.vmem [#allocation0], 2
    %v126 = vld [vmem:[%s125] ss:$8 sm:$0xf]
    %s127 = scalar_lea.vmem [#allocation0], 4294967267
    %v128 = vld [vmem:[%s127] ss:$8 sm:$0xf0]
    %vm129 = vcmask 1047556
    %v130 = vsel %vm129, %v128, %v126
    %131 = vrot.lane.b32.xlu0 %v130, 80
    %v132 = vpop.permute.xlu0 %131
    %vm133 = vcmask 130048
    %s134 = scalar_lea.vmem %s1, 67
    %135 = vst.msk [vmem:[%s134] ss:$8 sm:$0xf] %vm133, %v132
    %s136 = scalar_lea.vmem %s1, 67
    %137 = vst.msk [vmem:[%s136] ss:$8 sm:$0xf0] %vm133, %v132
    %v138 = vld [vmem:[#allocation0] ss:$8 sm:$0xf]
    %s139 = scalar_lea.vmem [#allocation0], 4294967265
    %v140 = vld [vmem:[%s139] ss:$8 sm:$0xf0]
    %vm141 = vcmask 1047556
    %v142 = vsel %vm141, %v140, %v138
    %143 = vrot.lane.b32.xlu0 %v142, 64
    %v144 = vpop.permute.xlu0 %143
    %vm145 = vcmask 130048
    %s146 = scalar_lea.vmem %s1, 4
    %147 = vst.msk [vmem:[%s146] ss:$8 sm:$0xf] %vm145, %v144
    %s148 = scalar_lea.vmem %s1, 4
    %149 = vst.msk [vmem:[%s148] ss:$8 sm:$0xf0] %vm145, %v144
    %s150 = scalar_lea.vmem [#allocation0], 2
    %v151 = vld [vmem:[%s150] ss:$8 sm:$0xf]
    %s152 = scalar_lea.vmem [#allocation0], 4294967267
    %v153 = vld [vmem:[%s152] ss:$8 sm:$0xf0]
    %vm154 = vcmask 1047556
    %v155 = vsel %vm154, %v153, %v151
    %156 = vrot.lane.b32.xlu0 %v155, 64
    %v157 = vpop.permute.xlu0 %156
    %vm158 = vcmask 130048
    %s159 = scalar_lea.vmem %s1, 68
    %160 = vst.msk [vmem:[%s159] ss:$8 sm:$0xf] %vm158, %v157
    %s161 = scalar_lea.vmem %s1, 68
    %162 = vst.msk [vmem:[%s161] ss:$8 sm:$0xf0] %vm158, %v157
    %v163 = vld [vmem:[#allocation0] ss:$8 sm:$0xf]
    %s164 = scalar_lea.vmem [#allocation0], 4294967265
    %v165 = vld [vmem:[%s164] ss:$8 sm:$0xf0]
    %vm166 = vcmask 1047556
    %v167 = vsel %vm166, %v165, %v163
    %168 = vrot.lane.b32.xlu0 %v167, 48
    %v169 = vpop.permute.xlu0 %168
    %vm170 = vcmask 130048
    %s171 = scalar_lea.vmem %s1, 5
    %172 = vst.msk [vmem:[%s171] ss:$8 sm:$0xf] %vm170, %v169
    %s173 = scalar_lea.vmem %s1, 5
    %174 = vst.msk [vmem:[%s173] ss:$8 sm:$0xf0] %vm170, %v169
    %s175 = scalar_lea.vmem [#allocation0], 2
    %v176 = vld [vmem:[%s175] ss:$8 sm:$0xf]
    %s177 = scalar_lea.vmem [#allocation0], 4294967267
    %v178 = vld [vmem:[%s177] ss:$8 sm:$0xf0]
    %vm179 = vcmask 1047556
    %v180 = vsel %vm179, %v178, %v176
    %181 = vrot.lane.b32.xlu0 %v180, 48
    %v182 = vpop.permute.xlu0 %181
    %vm183 = vcmask 130048
    %s184 = scalar_lea.vmem %s1, 69
    %185 = vst.msk [vmem:[%s184] ss:$8 sm:$0xf] %vm183, %v182
    %s186 = scalar_lea.vmem %s1, 69
    %187 = vst.msk [vmem:[%s186] ss:$8 sm:$0xf0] %vm183, %v182
    %v188 = vld [vmem:[#allocation0] ss:$8 sm:$0xf]
    %s189 = scalar_lea.vmem [#allocation0], 4294967265
    %v190 = vld [vmem:[%s189] ss:$8 sm:$0xf0]
    %vm191 = vcmask 1047556
    %v192 = vsel %vm191, %v190, %v188
    %193 = vrot.lane.b32.xlu0 %v192, 32
    %v194 = vpop.permute.xlu0 %193
    %vm195 = vcmask 130048
    %s196 = scalar_lea.vmem %s1, 6
    %197 = vst.msk [vmem:[%s196] ss:$8 sm:$0xf] %vm195, %v194
    %s198 = scalar_lea.vmem %s1, 6
    %199 = vst.msk [vmem:[%s198] ss:$8 sm:$0xf0] %vm195, %v194
    %s200 = scalar_lea.vmem [#allocation0], 2
    %v201 = vld [vmem:[%s200] ss:$8 sm:$0xf]
    %s202 = scalar_lea.vmem [#allocation0], 4294967267
    %v203 = vld [vmem:[%s202] ss:$8 sm:$0xf0]
    %vm204 = vcmask 1047556
    %v205 = vsel %vm204, %v203, %v201
    %206 = vrot.lane.b32.xlu0 %v205, 32
    %v207 = vpop.permute.xlu0 %206
    %vm208 = vcmask 130048
    %s209 = scalar_lea.vmem %s1, 70
    %210 = vst.msk [vmem:[%s209] ss:$8 sm:$0xf] %vm208, %v207
    %s211 = scalar_lea.vmem %s1, 70
    %212 = vst.msk [vmem:[%s211] ss:$8 sm:$0xf0] %vm208, %v207
    %v213 = vld [vmem:[#allocation0] ss:$8 sm:$0xf]
    %s214 = scalar_lea.vmem [#allocation0], 4294967265
    %v215 = vld [vmem:[%s214] ss:$8 sm:$0xf0]
    %vm216 = vcmask 1047556
    %v217 = vsel %vm216, %v215, %v213
    %218 = vrot.lane.b32.xlu0 %v217, 16
    %v219 = vpop.permute.xlu0 %218
    %vm220 = vcmask 130048
    %s221 = scalar_lea.vmem %s1, 7
    %222 = vst.msk [vmem:[%s221] ss:$8 sm:$0xf] %vm220, %v219
    %s223 = scalar_lea.vmem %s1, 7
    %224 = vst.msk [vmem:[%s223] ss:$8 sm:$0xf0] %vm220, %v219
    %s225 = scalar_lea.vmem [#allocation0], 2
    %v226 = vld [vmem:[%s225] ss:$8 sm:$0xf]
    %s227 = scalar_lea.vmem [#allocation0], 4294967267
    %v228 = vld [vmem:[%s227] ss:$8 sm:$0xf0]
    %vm229 = vcmask 1047556
    %v230 = vsel %vm229, %v228, %v226
    %231 = vrot.lane.b32.xlu0 %v230, 16
    %v232 = vpop.permute.xlu0 %231
    %vm233 = vcmask 130048
    %s234 = scalar_lea.vmem %s1, 71
    %235 = vst.msk [vmem:[%s234] ss:$8 sm:$0xf] %vm233, %v232
    %s236 = scalar_lea.vmem %s1, 71
    %237 = vst.msk [vmem:[%s236] ss:$8 sm:$0xf0] %vm233, %v232

// kernel: _lambda_.12
$region0: #{_lambda_.12}
  #allocation0 [shape = 'u32[]', space=smem, size = 0x4, offset = 0x4, fixed_abs, tag = 'smem constant byte address 0x4 - core index']
  #allocation1 [shape = 'u32[144,128]{1,0:T(1,128)}', space=vmem, size = 0x12000, scoped, tag = 'internal scratch']
  %s0 = inlined_call_operand.vmem [shape: bf16[16,576], index: 0, kind: input, shape index: {}]
  %s1 = inlined_call_operand.vmem [shape: bf16[576,512], index: 1, kind: input, shape index: {}]
  %s2 = inlined_call_operand.vmem [shape: f32[16,1], index: 2, kind: input, shape index: {}]
  %s3 = inlined_call_operand.vmem [shape: f32[16,1], index: 3, kind: input, shape index: {}]
  %s4 = inlined_call_operand.vmem [shape: f32[16,512], index: 4, kind: output, shape index: {}]
  %s5 = sld [smem:[#allocation0]]
  $region106: #{_lambda_.12} parent=0
    _
  %s7 = ssub.s32 1, %s5
  %s8 = scalar_select 0, %s7, %s5
  $region1: #{_lambda_.12} parent=0
    #allocation2 [shape = 'u8[589824]{0}', space=vmem, size = 0x90000, scoped, tag = 'input window, operand 1']
    #allocation3 [shape = 'u8[32768]{0}', space=vmem, size = 0x8000, scoped, tag = 'output window, operand 0']
    loop: start=0, step=1, limit=4
    $region2: #{_lambda_.12} parent=1 // loop_pre_header
      _
    $region3: #{_lambda_.12} parent=1 // loop_header
      %s10 = sphi 0, %s14
      %p11 = scmp.ge.s32.totalorder %s10, 4
      %s18 = sphi 0, %s18
      %s20 = sphi 0, %s18
      %s21 = sphi 0, %s20
      %s35 = sphi 0, %s21
      %s41 = sphi 0, %s43
      %s44 = sphi 0, %s41
      %s45 = sphi 0, %s44
      %s61 = sphi 0, %s45
      %s65 = sphi 0, %s65
      %s67 = sphi 0, %s65
      %s68 = sphi 0, %s67
      %s82 = sphi 0, %s68
      %s86 = sphi 0, %s86
      %s88 = sphi 0, %s86
      %s89 = sphi 0, %s88
      %s103 = sphi 0, %s89
      %s109 = sphi 0, %s111
      %s112 = sphi 0, %s109
      %s113 = sphi 0, %s112
      %s129 = sphi 0, %s113
    $region4: #{_lambda_.12} parent=1 // loop_header_branch
      %13 = sbr.rel (%p11) target = $region8
    $region5: #{_lambda_.12} parent=1 // loop_body
      %s15 = ssub.s32 %s10, 1
      %s16 = ssub.s32 %s10, 2
      %s17 = sadd.s32 %s10, 1
      %s19 = sadd.s32 %s18, 1
      %p22 = scmp.eq.s32.totalorder %s10, 1
      %p23 = scmp.ne.s32.totalorder %s18, %s20
      %p24 = scmp.eq.s32.totalorder %s10, 0
      %p25 = por %p23, %p24
      %p26 = scmp.ne.s32.totalorder %s18, %s20
      %p27 = scmp.eq.s32.totalorder %s15, 1
      %p28 = por %p26, %p27
      %p29 = scmp.ne.s32.totalorder %s20, %s21
      %p30 = scmp.eq.s32.totalorder %s15, 0
      %p31 = por %p29, %p30
      %p32 = scmp.ne.s32.totalorder %s20, %s21
      %p33 = scmp.eq.s32.totalorder %s16, 1
      %p34 = por %p32, %p33
      %p36 = scmp.ne.s32.totalorder %s21, %s35
      %p37 = scmp.eq.s32.totalorder %s16, 0
      %p38 = por %p36, %p37
      %s39 = ssub.s32 %s10, %s17
      %p40 = scmp.eq.s32.totalorder %s39, 0
      %s42 = sadd.s32 %s41, 1
      %s43 = scalar_select %p40, %s41, %s42
      %p46 = pneg %p40
      %p47 = scmp.eq.s32.totalorder %s10, 1
      %p48 = por %p46, %p47
      %p49 = scmp.ne.s32.totalorder %s41, %s44
      %p50 = scmp.eq.s32.totalorder %s10, 0
      %p51 = por %p49, %p50
      %p52 = scmp.ne.s32.totalorder %s41, %s44
      %p53 = scmp.eq.s32.totalorder %s15, 1
      %p54 = por %p52, %p53
      %p55 = scmp.ne.s32.totalorder %s44, %s45
      %p56 = scmp.eq.s32.totalorder %s15, 0
      %p57 = por %p55, %p56
      %p58 = scmp.ne.s32.totalorder %s44, %s45
      %p59 = scmp.eq.s32.totalorder %s16, 1
      %p60 = por %p58, %p59
      %p62 = scmp.ne.s32.totalorder %s45, %s61
      %p63 = scmp.eq.s32.totalorder %s16, 0
      %p64 = por %p62, %p63
      %s66 = sadd.s32 %s65, 1
      %p69 = scmp.eq.s32.totalorder %s10, 1
      %p70 = scmp.ne.s32.totalorder %s65, %s67
      %p71 = scmp.eq.s32.totalorder %s10, 0
      %p72 = por %p70, %p71
      %p73 = scmp.ne.s32.totalorder %s65, %s67
      %p74 = scmp.eq.s32.totalorder %s15, 1
      %p75 = por %p73, %p74
      %p76 = scmp.ne.s32.totalorder %s67, %s68
      %p77 = scmp.eq.s32.totalorder %s15, 0
      %p78 = por %p76, %p77
      %p79 = scmp.ne.s32.totalorder %s67, %s68
      %p80 = scmp.eq.s32.totalorder %s16, 1
      %p81 = por %p79, %p80
      %p83 = scmp.ne.s32.totalorder %s68, %s82
      %p84 = scmp.eq.s32.totalorder %s16, 0
      %p85 = por %p83, %p84
      %s87 = sadd.s32 %s86, 1
      %p90 = scmp.eq.s32.totalorder %s10, 1
      %p91 = scmp.ne.s32.totalorder %s86, %s88
      %p92 = scmp.eq.s32.totalorder %s10, 0
      %p93 = por %p91, %p92
      %p94 = scmp.ne.s32.totalorder %s86, %s88
      %p95 = scmp.eq.s32.totalorder %s15, 1
      %p96 = por %p94, %p95
      %p97 = scmp.ne.s32.totalorder %s88, %s89
      %p98 = scmp.eq.s32.totalorder %s15, 0
      %p99 = por %p97, %p98
      %p100 = scmp.ne.s32.totalorder %s88, %s89
      %p101 = scmp.eq.s32.totalorder %s16, 1
      %p102 = por %p100, %p101
      %p104 = scmp.ne.s32.totalorder %s89, %s103
      %p105 = scmp.eq.s32.totalorder %s16, 0
      %p106 = por %p104, %p105
      %s107 = ssub.s32 %s10, %s17
      %p108 = scmp.eq.s32.totalorder %s107, 0
      %s110 = sadd.s32 %s109, 1
      %s111 = scalar_select %p108, %s109, %s110
      %p114 = pneg %p108
      %p115 = scmp.eq.s32.totalorder %s10, 1
      %p116 = por %p114, %p115
      %p117 = scmp.ne.s32.totalorder %s109, %s112
      %p118 = scmp.eq.s32.totalorder %s10, 0
      %p119 = por %p117, %p118
      %p120 = scmp.ne.s32.totalorder %s109, %s112
      %p121 = scmp.eq.s32.totalorder %s15, 1
      %p122 = por %p120, %p121
      %p123 = scmp.ne.s32.totalorder %s112, %s113
      %p124 = scmp.eq.s32.totalorder %s15, 0
      %p125 = por %p123, %p124
      %p126 = scmp.ne.s32.totalorder %s112, %s113
      %p127 = scmp.eq.s32.totalorder %s16, 1
      %p128 = por %p126, %p127
      %p130 = scmp.ne.s32.totalorder %s113, %s129
      %p131 = scmp.eq.s32.totalorder %s16, 0
      %p132 = por %p130, %p131
      %p133 = scmp.le.s32.totalorder 1, %s10
      %p134 = scmp.lt.s32.totalorder %s10, 3
      %p135 = pnand %p133, %p134
      %p136 = pneg %p135
      // Predicated region
      $region9: #{_lambda_.12} parent=5 // pred_check
        _
      $region10: #{_lambda_.12} parent=5 // pred_check_branch
        %138 = sbr.rel (%p135) target = $region12
      $region11: #{_lambda_.12} parent=5 // pred_region
        %s139 = ssub.s32 %s10, 1
        // Predicated region
        $region13: #{_lambda_.12} parent=11 // pred_check
          %p140 = pneg %p31
        $region14: #{_lambda_.12} parent=11 // pred_check_branch
          %142 = sbr.rel (%p140) target = $region16
        $region15: #{_lambda_.12} parent=11 // pred_region
          _
        $region16: #{_lambda_.12} parent=11 // pred_fallthru
          _
        // Predicated region
        $region17: #{_lambda_.12} parent=11 // pred_check
          %p143 = pneg %p78
        $region18: #{_lambda_.12} parent=11 // pred_check_branch
          %145 = sbr.rel (%p143) target = $region20
        $region19: #{_lambda_.12} parent=11 // pred_region
          _
        $region20: #{_lambda_.12} parent=11 // pred_fallthru
          _
        // Predicated region
        $region21: #{_lambda_.12} parent=11 // pred_check
          %p146 = pneg %p99
        $region22: #{_lambda_.12} parent=11 // pred_check_branch
          %148 = sbr.rel (%p146) target = $region24
        $region23: #{_lambda_.12} parent=11 // pred_region
          _
        $region24: #{_lambda_.12} parent=11 // pred_fallthru
          _
      $region12: #{_lambda_.12} parent=5 // pred_fallthru
        _
      %p149 = scmp.lt.s32.totalorder %s10, 2
      // Predicated region
      $region25: #{_lambda_.12} parent=5 // pred_check
        %p150 = pneg %p149
      $region26: #{_lambda_.12} parent=5 // pred_check_branch
        %152 = sbr.rel (%p150) target = $region28
      $region27: #{_lambda_.12} parent=5 // pred_region
        // Predicated region
        $region29: #{_lambda_.12} parent=27 // pred_check
          %p153 = pneg %p51
        $region30: #{_lambda_.12} parent=27 // pred_check_branch
          %155 = sbr.rel (%p153) target = $region32
        $region31: #{_lambda_.12} parent=27 // pred_region
          %s156 = sand.u32 %s41, 1
          %s157 = sand.u32 %s41, 1
          %s158 = smul.addr %s157, 576
          %s159 = scalar_lea.vmem [#allocation2], %s158
          %s160 = smul.u32 2, %s10
          %s161 = smul.addr %s160, 4
          %s162 = scalar_lea.vmem %s1, %s161
          // Predicated region
          $region33: #{_lambda_.12} parent=31 // pred_check
            _
          $region34: #{_lambda_.12} parent=31 // pred_check_branch
            %164 = sbr.rel (0) target = $region36
          $region35: #{_lambda_.12} parent=31 // pred_region
            // Predicated region
            $region37: #{_lambda_.12} parent=35 // pred_check
              _
            $region38: #{_lambda_.12} parent=35 // pred_check_branch
              %166 = sbr.rel (0) target = $region40
            $region39: #{_lambda_.12} parent=35 // pred_region
              // Predicated region
              $region52: #{_lambda_.12} parent=39 // pred_check
                _
              $region53: #{_lambda_.12} parent=39 // pred_check_branch
                %324 = sbr.rel (0) target = $region55
              $region54: #{_lambda_.12} parent=39 // pred_region
                loop: start=0, step=1, limit=1
                $region56: #{_lambda_.12} parent=54 // loop_pre_header
                  _
                $region57: #{_lambda_.12} parent=54 // loop_header
                  %s326 = sphi 0, %s330
                  %p327 = scmp.ge.s32.totalorder %s326, 1
                  %s331 = sphi %s162, %s162
                  %s332 = sphi %s159, %s159
                $region58: #{_lambda_.12} parent=54 // loop_header_branch
                  %329 = sbr.rel (%p327) target = $region62
                $region59: #{_lambda_.12} parent=54 // loop_body
                  %v333 = vld [vmem:[%s331] sm:$0xff]
                  %334 = vst [vmem:[%s332] sm:$0xff] %v333
                  %v335 = vld [vmem:[%s331 + $0x10] sm:$0xff]
                  %336 = vst [vmem:[%s332 + $0x8] sm:$0xff] %v335
                  %v337 = vld [vmem:[%s331 + $0x20] sm:$0xff]
                  %338 = vst [vmem:[%s332 + $0x10] sm:$0xff] %v337
                  %v339 = vld [vmem:[%s331 + $0x30] sm:$0xff]
                  %340 = vst [vmem:[%s332 + $0x18] sm:$0xff] %v339
                  %v341 = vld [vmem:[%s331 + $0x40] sm:$0xff]
                  %342 = vst [vmem:[%s332 + $0x20] sm:$0xff] %v341
                  %v343 = vld [vmem:[%s331 + $0x50] sm:$0xff]
                  %344 = vst [vmem:[%s332 + $0x28] sm:$0xff] %v343
                  %v345 = vld [vmem:[%s331 + $0x60] sm:$0xff]
                  %346 = vst [vmem:[%s332 + $0x30] sm:$0xff] %v345
                  %v347 = vld [vmem:[%s331 + $0x70] sm:$0xff]
                  %348 = vst [vmem:[%s332 + $0x38] sm:$0xff] %v347
                  %v349 = vld [vmem:[%s331 + $0x80] sm:$0xff]
                  %350 = vst [vmem:[%s332 + $0x40] sm:$0xff] %v349
                  %v351 = vld [vmem:[%s331 + $0x90] sm:$0xff]
                  %352 = vst [vmem:[%s332 + $0x48] sm:$0xff] %v351
                  %v353 = vld [vmem:[%s331 + $0xa0] sm:$0xff]
                  %354 = vst [vmem:[%s332 + $0x50] sm:$0xff] %v353
                  %v355 = vld [vmem:[%s331 + $0xb0] sm:$0xff]
                  %356 = vst [vmem:[%s332 + $0x58] sm:$0xff] %v355
                  %v357 = vld [vmem:[%s331 + $0xc0] sm:$0xff]
                  %358 = vst [vmem:[%s332 + $0x60] sm:$0xff] %v357
                  %v359 = vld [vmem:[%s331 + $0xd0] sm:$0xff]
                  %360 = vst [vmem:[%s332 + $0x68] sm:$0xff] %v359
                  %v361 = vld [vmem:[%s331 + $0xe0] sm:$0xff]
                  %362 = vst [vmem:[%s332 + $0x70] sm:$0xff] %v361
                  %v363 = vld [vmem:[%s331 + $0xf0] sm:$0xff]
                  %364 = vst [vmem:[%s332 + $0x78] sm:$0xff] %v363
                  %v365 = vld [vmem:[%s331 + $0x100] sm:$0xff]
                  %366 = vst [vmem:[%s332 + $0x80] sm:$0xff] %v365
                  %v367 = vld [vmem:[%s331 + $0x110] sm:$0xff]
                  %368 = vst [vmem:[%s332 + $0x88] sm:$0xff] %v367
                  %v369 = vld [vmem:[%s331 + $0x120] sm:$0xff]
                  %370 = vst [vmem:[%s332 + $0x90] sm:$0xff] %v369
                  %v371 = vld [vmem:[%s331 + $0x130] sm:$0xff]
                  %372 = vst [vmem:[%s332 + $0x98] sm:$0xff] %v371
                  %v373 = vld [vmem:[%s331 + $0x140] sm:$0xff]
                  %374 = vst [vmem:[%s332 + $0xa0] sm:$0xff] %v373
                  %v375 = vld [vmem:[%s331 + $0x150] sm:$0xff]
                  %376 = vst [vmem:[%s332 + $0xa8] sm:$0xff] %v375
                  %v377 = vld [vmem:[%s331 + $0x160] sm:$0xff]
                  %378 = vst [vmem:[%s332 + $0xb0] sm:$0xff] %v377
                  %v379 = vld [vmem:[%s331 + $0x170] sm:$0xff]
                  %380 = vst [vmem:[%s332 + $0xb8] sm:$0xff] %v379
                  %v381 = vld [vmem:[%s331 + $0x180] sm:$0xff]
                  %382 = vst [vmem:[%s332 + $0xc0] sm:$0xff] %v381
                  %v383 = vld [vmem:[%s331 + $0x190] sm:$0xff]
                  %384 = vst [vmem:[%s332 + $0xc8] sm:$0xff] %v383
                  %v385 = vld [vmem:[%s331 + $0x1a0] sm:$0xff]
                  %386 = vst [vmem:[%s332 + $0xd0] sm:$0xff] %v385
                  %v387 = vld [vmem:[%s331 + $0x1b0] sm:$0xff]
                  %388 = vst [vmem:[%s332 + $0xd8] sm:$0xff] %v387
                  %v389 = vld [vmem:[%s331 + $0x1c0] sm:$0xff]
                  %390 = vst [vmem:[%s332 + $0xe0] sm:$0xff] %v389
                  %v391 = vld [vmem:[%s331 + $0x1d0] sm:$0xff]
                  %392 = vst [vmem:[%s332 + $0xe8] sm:$0xff] %v391
                  %v393 = vld [vmem:[%s331 + $0x1e0] sm:$0xff]
                  %394 = vst [vmem:[%s332 + $0xf0] sm:$0xff] %v393
                  %v395 = vld [vmem:[%s331 + $0x1f0] sm:$0xff]
                  %396 = vst [vmem:[%s332 + $0xf8] sm:$0xff] %v395
                  %v397 = vld [vmem:[%s331 + $0x200] sm:$0xff]
                  %398 = vst [vmem:[%s332 + $0x100] sm:$0xff] %v397
                  %v399 = vld [vmem:[%s331 + $0x210] sm:$0xff]
                  %400 = vst [vmem:[%s332 + $0x108] sm:$0xff] %v399
                  %v401 = vld [vmem:[%s331 + $0x220] sm:$0xff]
                  %402 = vst [vmem:[%s332 + $0x110] sm:$0xff] %v401
                  %v403 = vld [vmem:[%s331 + $0x230] sm:$0xff]
                  %404 = vst [vmem:[%s332 + $0x118] sm:$0xff] %v403
                  %v405 = vld [vmem:[%s331 + $0x240] sm:$0xff]
                  %406 = vst [vmem:[%s332 + $0x120] sm:$0xff] %v405
                  %v407 = vld [vmem:[%s331 + $0x250] sm:$0xff]
                  %408 = vst [vmem:[%s332 + $0x128] sm:$0xff] %v407
                  %v409 = vld [vmem:[%s331 + $0x260] sm:$0xff]
                  %410 = vst [vmem:[%s332 + $0x130] sm:$0xff] %v409
                  %v411 = vld [vmem:[%s331 + $0x270] sm:$0xff]
                  %412 = vst [vmem:[%s332 + $0x138] sm:$0xff] %v411
                  %v413 = vld [vmem:[%s331 + $0x280] sm:$0xff]
                  %414 = vst [vmem:[%s332 + $0x140] sm:$0xff] %v413
                  %v415 = vld [vmem:[%s331 + $0x290] sm:$0xff]
                  %416 = vst [vmem:[%s332 + $0x148] sm:$0xff] %v415
                  %v417 = vld [vmem:[%s331 + $0x2a0] sm:$0xff]
                  %418 = vst [vmem:[%s332 + $0x150] sm:$0xff] %v417
                  %v419 = vld [vmem:[%s331 + $0x2b0] sm:$0xff]
                  %420 = vst [vmem:[%s332 + $0x158] sm:$0xff] %v419
                  %v421 = vld [vmem:[%s331 + $0x2c0] sm:$0xff]
                  %422 = vst [vmem:[%s332 + $0x160] sm:$0xff] %v421
                  %v423 = vld [vmem:[%s331 + $0x2d0] sm:$0xff]
                  %424 = vst [vmem:[%s332 + $0x168] sm:$0xff] %v423
                  %v425 = vld [vmem:[%s331 + $0x2e0] sm:$0xff]
                  %426 = vst [vmem:[%s332 + $0x170] sm:$0xff] %v425
                  %v427 = vld [vmem:[%s331 + $0x2f0] sm:$0xff]
                  %428 = vst [vmem:[%s332 + $0x178] sm:$0xff] %v427
                  %v429 = vld [vmem:[%s331 + $0x300] sm:$0xff]
                  %430 = vst [vmem:[%s332 + $0x180] sm:$0xff] %v429
                  %v431 = vld [vmem:[%s331 + $0x310] sm:$0xff]
                  %432 = vst [vmem:[%s332 + $0x188] sm:$0xff] %v431
                  %v433 = vld [vmem:[%s331 + $0x320] sm:$0xff]
                  %434 = vst [vmem:[%s332 + $0x190] sm:$0xff] %v433
                  %v435 = vld [vmem:[%s331 + $0x330] sm:$0xff]
                  %436 = vst [vmem:[%s332 + $0x198] sm:$0xff] %v435
                  %v437 = vld [vmem:[%s331 + $0x340] sm:$0xff]
                  %438 = vst [vmem:[%s332 + $0x1a0] sm:$0xff] %v437
                  %v439 = vld [vmem:[%s331 + $0x350] sm:$0xff]
                  %440 = vst [vmem:[%s332 + $0x1a8] sm:$0xff] %v439
                  %v441 = vld [vmem:[%s331 + $0x360] sm:$0xff]
                  %442 = vst [vmem:[%s332 + $0x1b0] sm:$0xff] %v441
                  %v443 = vld [vmem:[%s331 + $0x370] sm:$0xff]
                  %444 = vst [vmem:[%s332 + $0x1b8] sm:$0xff] %v443
                  %v445 = vld [vmem:[%s331 + $0x380] sm:$0xff]
                  %446 = vst [vmem:[%s332 + $0x1c0] sm:$0xff] %v445
                  %v447 = vld [vmem:[%s331 + $0x390] sm:$0xff]
                  %448 = vst [vmem:[%s332 + $0x1c8] sm:$0xff] %v447
                  %v449 = vld [vmem:[%s331 + $0x3a0] sm:$0xff]
                  %450 = vst [vmem:[%s332 + $0x1d0] sm:$0xff] %v449
                  %v451 = vld [vmem:[%s331 + $0x3b0] sm:$0xff]
                  %452 = vst [vmem:[%s332 + $0x1d8] sm:$0xff] %v451
                  %v453 = vld [vmem:[%s331 + $0x3c0] sm:$0xff]
                  %454 = vst [vmem:[%s332 + $0x1e0] sm:$0xff] %v453
                  %v455 = vld [vmem:[%s331 + $0x3d0] sm:$0xff]
                  %456 = vst [vmem:[%s332 + $0x1e8] sm:$0xff] %v455
                  %v457 = vld [vmem:[%s331 + $0x3e0] sm:$0xff]
                  %458 = vst [vmem:[%s332 + $0x1f0] sm:$0xff] %v457
                  %v459 = vld [vmem:[%s331 + $0x3f0] sm:$0xff]
                  %460 = vst [vmem:[%s332 + $0x1f8] sm:$0xff] %v459
                  %v461 = vld [vmem:[%s331 + $0x400] sm:$0xff]
                  %462 = vst [vmem:[%s332 + $0x200] sm:$0xff] %v461
                  %v463 = vld [vmem:[%s331 + $0x410] sm:$0xff]
                  %464 = vst [vmem:[%s332 + $0x208] sm:$0xff] %v463
                  %v465 = vld [vmem:[%s331 + $0x420] sm:$0xff]
                  %466 = vst [vmem:[%s332 + $0x210] sm:$0xff] %v465
                  %v467 = vld [vmem:[%s331 + $0x430] sm:$0xff]
                  %468 = vst [vmem:[%s332 + $0x218] sm:$0xff] %v467
                  %v469 = vld [vmem:[%s331 + $0x440] sm:$0xff]
                  %470 = vst [vmem:[%s332 + $0x220] sm:$0xff] %v469
                  %v471 = vld [vmem:[%s331 + $0x450] sm:$0xff]
                  %472 = vst [vmem:[%s332 + $0x228] sm:$0xff] %v471
                  %v473 = vld [vmem:[%s331 + $0x460] sm:$0xff]
                  %474 = vst [vmem:[%s332 + $0x230] sm:$0xff] %v473
                  %v475 = vld [vmem:[%s331 + $0x470] sm:$0xff]
                  %476 = vst [vmem:[%s332 + $0x238] sm:$0xff] %v475
                $region60: #{_lambda_.12} parent=54 // loop_footer
                  %s330 = sadd.s32 1, %s326
                $region61: #{_lambda_.12} parent=54 // loop_footer_branch
                  %325 = sbr.rel target = $region57
                $region62: #{_lambda_.12} parent=54 // loop_exit
                  _
              $region55: #{_lambda_.12} parent=39 // pred_fallthru
                _
              // Predicated region
              $region63: #{_lambda_.12} parent=39 // pred_check
                _
              $region64: #{_lambda_.12} parent=39 // pred_check_branch
                %478 = sbr.rel target = $region66
              $region65: #{_lambda_.12} parent=39 // pred_region
                _
              $region66: #{_lambda_.12} parent=39 // pred_fallthru
                _
            $region40: #{_lambda_.12} parent=35 // pred_fallthru
              _
            // Predicated region
            $region41: #{_lambda_.12} parent=35 // pred_check
              _
            $region42: #{_lambda_.12} parent=35 // pred_check_branch
              %168 = sbr.rel target = $region44
            $region43: #{_lambda_.12} parent=35 // pred_region
              %s170 = ssub.s32 256, 1
              loop: start=0, step=1, limit=1
              $region45: #{_lambda_.12} parent=43 // loop_pre_header
                _
              $region46: #{_lambda_.12} parent=43 // loop_header
                %s172 = sphi 0, %s176
                %p173 = scmp.ge.s32.totalorder %s172, 1
                %s177 = sphi %s162, %s162
                %s178 = sphi %s159, %s159
              $region47: #{_lambda_.12} parent=43 // loop_header_branch
                %175 = sbr.rel (%p173) target = $region51
              $region48: #{_lambda_.12} parent=43 // loop_body
                %v179 = vld [vmem:[%s177] sm:%s170]
                %180 = vst [vmem:[%s178] sm:%s170] %v179
                %v181 = vld [vmem:[%s177 + $0x10] sm:%s170]
                %182 = vst [vmem:[%s178 + $0x8] sm:%s170] %v181
                %v183 = vld [vmem:[%s177 + $0x20] sm:%s170]
                %184 = vst [vmem:[%s178 + $0x10] sm:%s170] %v183
                %v185 = vld [vmem:[%s177 + $0x30] sm:%s170]
                %186 = vst [vmem:[%s178 + $0x18] sm:%s170] %v185
                %v187 = vld [vmem:[%s177 + $0x40] sm:%s170]
                %188 = vst [vmem:[%s178 + $0x20] sm:%s170] %v187
                %v189 = vld [vmem:[%s177 + $0x50] sm:%s170]
                %190 = vst [vmem:[%s178 + $0x28] sm:%s170] %v189
                %v191 = vld [vmem:[%s177 + $0x60] sm:%s170]
                %192 = vst [vmem:[%s178 + $0x30] sm:%s170] %v191
                %v193 = vld [vmem:[%s177 + $0x70] sm:%s170]
                %194 = vst [vmem:[%s178 + $0x38] sm:%s170] %v193
                %v195 = vld [vmem:[%s177 + $0x80] sm:%s170]
                %196 = vst [vmem:[%s178 + $0x40] sm:%s170] %v195
                %v197 = vld [vmem:[%s177 + $0x90] sm:%s170]
                %198 = vst [vmem:[%s178 + $0x48] sm:%s170] %v197
                %v199 = vld [vmem:[%s177 + $0xa0] sm:%s170]
                %200 = vst [vmem:[%s178 + $0x50] sm:%s170] %v199
                %v201 = vld [vmem:[%s177 + $0xb0] sm:%s170]
                %202 = vst [vmem:[%s178 + $0x58] sm:%s170] %v201
                %v203 = vld [vmem:[%s177 + $0xc0] sm:%s170]
                %204 = vst [vmem:[%s178 + $0x60] sm:%s170] %v203
                %v205 = vld [vmem:[%s177 + $0xd0] sm:%s170]
                %206 = vst [vmem:[%s178 + $0x68] sm:%s170] %v205
                %v207 = vld [vmem:[%s177 + $0xe0] sm:%s170]
                %208 = vst [vmem:[%s178 + $0x70] sm:%s170] %v207
                %v209 = vld [vmem:[%s177 + $0xf0] sm:%s170]
                %210 = vst [vmem:[%s178 + $0x78] sm:%s170] %v209
                %v211 = vld [vmem:[%s177 + $0x100] sm:%s170]
                %212 = vst [vmem:[%s178 + $0x80] sm:%s170] %v211
                %v213 = vld [vmem:[%s177 + $0x110] sm:%s170]
                %214 = vst [vmem:[%s178 + $0x88] sm:%s170] %v213
                %v215 = vld [vmem:[%s177 + $0x120] sm:%s170]
                %216 = vst [vmem:[%s178 + $0x90] sm:%s170] %v215
                %v217 = vld [vmem:[%s177 + $0x130] sm:%s170]
                %218 = vst [vmem:[%s178 + $0x98] sm:%s170] %v217
                %v219 = vld [vmem:[%s177 + $0x140] sm:%s170]
                %220 = vst [vmem:[%s178 + $0xa0] sm:%s170] %v219
                %v221 = vld [vmem:[%s177 + $0x150] sm:%s170]
                %222 = vst [vmem:[%s178 + $0xa8] sm:%s170] %v221
                %v223 = vld [vmem:[%s177 + $0x160] sm:%s170]
                %224 = vst [vmem:[%s178 + $0xb0] sm:%s170] %v223
                %v225 = vld [vmem:[%s177 + $0x170] sm:%s170]
                %226 = vst [vmem:[%s178 + $0xb8] sm:%s170] %v225
                %v227 = vld [vmem:[%s177 + $0x180] sm:%s170]
                %228 = vst [vmem:[%s178 + $0xc0] sm:%s170] %v227
                %v229 = vld [vmem:[%s177 + $0x190] sm:%s170]
                %230 = vst [vmem:[%s178 + $0xc8] sm:%s170] %v229
                %v231 = vld [vmem:[%s177 + $0x1a0] sm:%s170]
                %232 = vst [vmem:[%s178 + $0xd0] sm:%s170] %v231
                %v233 = vld [vmem:[%s177 + $0x1b0] sm:%s170]
                %234 = vst [vmem:[%s178 + $0xd8] sm:%s170] %v233
                %v235 = vld [vmem:[%s177 + $0x1c0] sm:%s170]
                %236 = vst [vmem:[%s178 + $0xe0] sm:%s170] %v235
                %v237 = vld [vmem:[%s177 + $0x1d0] sm:%s170]
                %238 = vst [vmem:[%s178 + $0xe8] sm:%s170] %v237
                %v239 = vld [vmem:[%s177 + $0x1e0] sm:%s170]
                %240 = vst [vmem:[%s178 + $0xf0] sm:%s170] %v239
                %v241 = vld [vmem:[%s177 + $0x1f0] sm:%s170]
                %242 = vst [vmem:[%s178 + $0xf8] sm:%s170] %v241
                %v243 = vld [vmem:[%s177 + $0x200] sm:%s170]
                %244 = vst [vmem:[%s178 + $0x100] sm:%s170] %v243
                %v245 = vld [vmem:[%s177 + $0x210] sm:%s170]
                %246 = vst [vmem:[%s178 + $0x108] sm:%s170] %v245
                %v247 = vld [vmem:[%s177 + $0x220] sm:%s170]
                %248 = vst [vmem:[%s178 + $0x110] sm:%s170] %v247
                %v249 = vld [vmem:[%s177 + $0x230] sm:%s170]
                %250 = vst [vmem:[%s178 + $0x118] sm:%s170] %v249
                %v251 = vld [vmem:[%s177 + $0x240] sm:%s170]
                %252 = vst [vmem:[%s178 + $0x120] sm:%s170] %v251
                %v253 = vld [vmem:[%s177 + $0x250] sm:%s170]
                %254 = vst [vmem:[%s178 + $0x128] sm:%s170] %v253
                %v255 = vld [vmem:[%s177 + $0x260] sm:%s170]
                %256 = vst [vmem:[%s178 + $0x130] sm:%s170] %v255
                %v257 = vld [vmem:[%s177 + $0x270] sm:%s170]
                %258 = vst [vmem:[%s178 + $0x138] sm:%s170] %v257
                %v259 = vld [vmem:[%s177 + $0x280] sm:%s170]
                %260 = vst [vmem:[%s178 + $0x140] sm:%s170] %v259
                %v261 = vld [vmem:[%s177 + $0x290] sm:%s170]
                %262 = vst [vmem:[%s178 + $0x148] sm:%s170] %v261
                %v263 = vld [vmem:[%s177 + $0x2a0] sm:%s170]
                %264 = vst [vmem:[%s178 + $0x150] sm:%s170] %v263
                %v265 = vld [vmem:[%s177 + $0x2b0] sm:%s170]
                %266 = vst [vmem:[%s178 + $0x158] sm:%s170] %v265
                %v267 = vld [vmem:[%s177 + $0x2c0] sm:%s170]
                %268 = vst [vmem:[%s178 + $0x160] sm:%s170] %v267
                %v269 = vld [vmem:[%s177 + $0x2d0] sm:%s170]
                %270 = vst [vmem:[%s178 + $0x168] sm:%s170] %v269
                %v271 = vld [vmem:[%s177 + $0x2e0] sm:%s170]
                %272 = vst [vmem:[%s178 + $0x170] sm:%s170] %v271
                %v273 = vld [vmem:[%s177 + $0x2f0] sm:%s170]
                %274 = vst [vmem:[%s178 + $0x178] sm:%s170] %v273
                %v275 = vld [vmem:[%s177 + $0x300] sm:%s170]
                %276 = vst [vmem:[%s178 + $0x180] sm:%s170] %v275
                %v277 = vld [vmem:[%s177 + $0x310] sm:%s170]
                %278 = vst [vmem:[%s178 + $0x188] sm:%s170] %v277
                %v279 = vld [vmem:[%s177 + $0x320] sm:%s170]
                %280 = vst [vmem:[%s178 + $0x190] sm:%s170] %v279
                %v281 = vld [vmem:[%s177 + $0x330] sm:%s170]
                %282 = vst [vmem:[%s178 + $0x198] sm:%s170] %v281
                %v283 = vld [vmem:[%s177 + $0x340] sm:%s170]
                %284 = vst [vmem:[%s178 + $0x1a0] sm:%s170] %v283
                %v285 = vld [vmem:[%s177 + $0x350] sm:%s170]
                %286 = vst [vmem:[%s178 + $0x1a8] sm:%s170] %v285
                %v287 = vld [vmem:[%s177 + $0x360] sm:%s170]
                %288 = vst [vmem:[%s178 + $0x1b0] sm:%s170] %v287
                %v289 = vld [vmem:[%s177 + $0x370] sm:%s170]
                %290 = vst [vmem:[%s178 + $0x1b8] sm:%s170] %v289
                %v291 = vld [vmem:[%s177 + $0x380] sm:%s170]
                %292 = vst [vmem:[%s178 + $0x1c0] sm:%s170] %v291
                %v293 = vld [vmem:[%s177 + $0x390] sm:%s170]
                %294 = vst [vmem:[%s178 + $0x1c8] sm:%s170] %v293
                %v295 = vld [vmem:[%s177 + $0x3a0] sm:%s170]
                %296 = vst [vmem:[%s178 + $0x1d0] sm:%s170] %v295
                %v297 = vld [vmem:[%s177 + $0x3b0] sm:%s170]
                %298 = vst [vmem:[%s178 + $0x1d8] sm:%s170] %v297
                %v299 = vld [vmem:[%s177 + $0x3c0] sm:%s170]
                %300 = vst [vmem:[%s178 + $0x1e0] sm:%s170] %v299
                %v301 = vld [vmem:[%s177 + $0x3d0] sm:%s170]
                %302 = vst [vmem:[%s178 + $0x1e8] sm:%s170] %v301
                %v303 = vld [vmem:[%s177 + $0x3e0] sm:%s170]
                %304 = vst [vmem:[%s178 + $0x1f0] sm:%s170] %v303
                %v305 = vld [vmem:[%s177 + $0x3f0] sm:%s170]
                %306 = vst [vmem:[%s178 + $0x1f8] sm:%s170] %v305
                %v307 = vld [vmem:[%s177 + $0x400] sm:%s170]
                %308 = vst [vmem:[%s178 + $0x200] sm:%s170] %v307
                %v309 = vld [vmem:[%s177 + $0x410] sm:%s170]
                %310 = vst [vmem:[%s178 + $0x208] sm:%s170] %v309
                %v311 = vld [vmem:[%s177 + $0x420] sm:%s170]
                %312 = vst [vmem:[%s178 + $0x210] sm:%s170] %v311
                %v313 = vld [vmem:[%s177 + $0x430] sm:%s170]
                %314 = vst [vmem:[%s178 + $0x218] sm:%s170] %v313
                %v315 = vld [vmem:[%s177 + $0x440] sm:%s170]
                %316 = vst [vmem:[%s178 + $0x220] sm:%s170] %v315
                %v317 = vld [vmem:[%s177 + $0x450] sm:%s170]
                %318 = vst [vmem:[%s178 + $0x228] sm:%s170] %v317
                %v319 = vld [vmem:[%s177 + $0x460] sm:%s170]
                %320 = vst [vmem:[%s178 + $0x230] sm:%s170] %v319
                %v321 = vld [vmem:[%s177 + $0x470] sm:%s170]
                %322 = vst [vmem:[%s178 + $0x238] sm:%s170] %v321
              $region49: #{_lambda_.12} parent=43 // loop_footer
                %s176 = sadd.s32 1, %s172
              $region50: #{_lambda_.12} parent=43 // loop_footer_branch
                %171 = sbr.rel target = $region46
              $region51: #{_lambda_.12} parent=43 // loop_exit
                _
            $region44: #{_lambda_.12} parent=35 // pred_fallthru
              _
          $region36: #{_lambda_.12} parent=31 // pred_fallthru
            _
          %479 = vnop
        $region32: #{_lambda_.12} parent=27 // pred_fallthru
          _
      $region28: #{_lambda_.12} parent=5 // pred_fallthru
        _
      %p480 = scmp.le.s32.totalorder 1, %s10
      %p481 = scmp.lt.s32.totalorder %s10, 3
      %p482 = pnand %p480, %p481
      %p483 = pneg %p482
      // Predicated region
      $region67: #{_lambda_.12} parent=5 // pred_check
        _
      $region68: #{_lambda_.12} parent=5 // pred_check_branch
        %485 = sbr.rel (%p482) target = $region70
      $region69: #{_lambda_.12} parent=5 // pred_region
        %s486 = ssub.s32 %s10, 1
        %s487 = sand.u32 %s44, 1
        %s488 = sand.u32 %s44, 1
        %s489 = smul.addr %s488, 576
        %s490 = scalar_lea.vmem [#allocation2], %s489
        // Predicated region
        $region71: #{_lambda_.12} parent=69 // pred_check
          %p491 = pneg %p57
        $region72: #{_lambda_.12} parent=69 // pred_check_branch
          %493 = sbr.rel (%p491) target = $region74
        $region73: #{_lambda_.12} parent=69 // pred_region
          _
        $region74: #{_lambda_.12} parent=69 // pred_fallthru
          _
        %p494 = pneg %p31
        %p495 = pneg %p28
        %s496 = sand.u32 %s44, 1
        %s497 = sand.u32 %s44, 1
        %s498 = smul.addr %s497, 576
        %s499 = scalar_lea.vmem [#allocation2], %s498
        %p500 = pneg %p57
        %p501 = pneg %p54
        %p502 = pneg %p78
        %p503 = pneg %p75
        %p504 = pneg %p99
        %p505 = pneg %p96
        %p506 = pneg %p125
        %p507 = pneg %p122
        %s508 = sand.u32 %s112, 1
        %s509 = sand.u32 %s112, 1
        %s510 = smul.addr %s509, 32
        %s511 = scalar_lea.vmem [#allocation3], %s510
        %s512 = smul.u32 2, %s15
        %s513 = smul.u32 2, %s15
        %v515 = vld [vmem:[%s0] sm:$0xff]
        %v516 = vld [vmem:[%s0 + $0x8] sm:$0xff]
        %v517 = vld [vmem:[%s0 + $0x10] sm:$0xf]
        %v518 = vld [vmem:[%s0 + $0x14] sm:$0xff]
        %v519 = vld [vmem:[%s0 + $0x1c] sm:$0xff]
        %v520 = vld [vmem:[%s0 + $0x24] sm:$0xf]
        %v521 = vld [vmem:[%s490] sm:$0xff]
        %v522 = vld [vmem:[%s490 + $0x8] sm:$0xff]
        %v523 = vld [vmem:[%s490 + $0x10] sm:$0xff]
        %v524 = vld [vmem:[%s490 + $0x18] sm:$0xff]
        %v525 = vld [vmem:[%s490 + $0x20] sm:$0xff]
        %v526 = vld [vmem:[%s490 + $0x28] sm:$0xff]
        %v527 = vld [vmem:[%s490 + $0x30] sm:$0xff]
        %v528 = vld [vmem:[%s490 + $0x38] sm:$0xff]
        %v529 = vld [vmem:[%s490 + $0x40] sm:$0xff]
        %v530 = vld [vmem:[%s490 + $0x48] sm:$0xff]
        %v531 = vld [vmem:[%s490 + $0x50] sm:$0xff]
        %v532 = vld [vmem:[%s490 + $0x58] sm:$0xff]
        %v533 = vld [vmem:[%s490 + $0x60] sm:$0xff]
        %v534 = vld [vmem:[%s490 + $0x68] sm:$0xff]
        %v535 = vld [vmem:[%s490 + $0x70] sm:$0xff]
        %v536 = vld [vmem:[%s490 + $0x78] sm:$0xff]
        %v537 = vld [vmem:[%s490 + $0x80] sm:$0xff]
        %v538 = vld [vmem:[%s490 + $0x88] sm:$0xff]
        %v539 = vld [vmem:[%s490 + $0x90] sm:$0xff]
        %v540 = vld [vmem:[%s490 + $0x98] sm:$0xff]
        %v541 = vld [vmem:[%s490 + $0xa0] sm:$0xff]
        %v542 = vld [vmem:[%s490 + $0xa8] sm:$0xff]
        %v543 = vld [vmem:[%s490 + $0xb0] sm:$0xff]
        %v544 = vld [vmem:[%s490 + $0xb8] sm:$0xff]
        %v545 = vld [vmem:[%s490 + $0xc0] sm:$0xff]
        %v546 = vld [vmem:[%s490 + $0xc8] sm:$0xff]
        %v547 = vld [vmem:[%s490 + $0xd0] sm:$0xff]
        %v548 = vld [vmem:[%s490 + $0xd8] sm:$0xff]
        %v549 = vld [vmem:[%s490 + $0xe0] sm:$0xff]
        %v550 = vld [vmem:[%s490 + $0xe8] sm:$0xff]
        %v551 = vld [vmem:[%s490 + $0xf0] sm:$0xff]
        %v552 = vld [vmem:[%s490 + $0xf8] sm:$0xff]
        %v553 = vld [vmem:[%s490 + $0x100] sm:$0xff]
        %v554 = vld [vmem:[%s490 + $0x108] sm:$0xff]
        %v555 = vld [vmem:[%s490 + $0x110] sm:$0xff]
        %v556 = vld [vmem:[%s490 + $0x118] sm:$0xff]
        %v557 = vld [vmem:[%s490 + $0x120] sm:$0xff]
        %v558 = vld [vmem:[%s490 + $0x128] sm:$0xff]
        %v559 = vld [vmem:[%s490 + $0x130] sm:$0xff]
        %v560 = vld [vmem:[%s490 + $0x138] sm:$0xff]
        %v561 = vld [vmem:[%s490 + $0x140] sm:$0xff]
        %v562 = vld [vmem:[%s490 + $0x148] sm:$0xff]
        %v563 = vld [vmem:[%s490 + $0x150] sm:$0xff]
        %v564 = vld [vmem:[%s490 + $0x158] sm:$0xff]
        %v565 = vld [vmem:[%s490 + $0x160] sm:$0xff]
        %v566 = vld [vmem:[%s490 + $0x168] sm:$0xff]
        %v567 = vld [vmem:[%s490 + $0x170] sm:$0xff]
        %v568 = vld [vmem:[%s490 + $0x178] sm:$0xff]
        %v569 = vld [vmem:[%s490 + $0x180] sm:$0xff]
        %v570 = vld [vmem:[%s490 + $0x188] sm:$0xff]
        %v571 = vld [vmem:[%s490 + $0x190] sm:$0xff]
        %v572 = vld [vmem:[%s490 + $0x198] sm:$0xff]
        %v573 = vld [vmem:[%s490 + $0x1a0] sm:$0xff]
        %v574 = vld [vmem:[%s490 + $0x1a8] sm:$0xff]
        %v575 = vld [vmem:[%s490 + $0x1b0] sm:$0xff]
        %v576 = vld [vmem:[%s490 + $0x1b8] sm:$0xff]
        %v577 = vld [vmem:[%s490 + $0x1c0] sm:$0xff]
        %v578 = vld [vmem:[%s490 + $0x1c8] sm:$0xff]
        %v579 = vld [vmem:[%s490 + $0x1d0] sm:$0xff]
        %v580 = vld [vmem:[%s490 + $0x1d8] sm:$0xff]
        %v581 = vld [vmem:[%s490 + $0x1e0] sm:$0xff]
        %v582 = vld [vmem:[%s490 + $0x1e8] sm:$0xff]
        %v583 = vld [vmem:[%s490 + $0x1f0] sm:$0xff]
        %v584 = vld [vmem:[%s490 + $0x1f8] sm:$0xff]
        %v585 = vld [vmem:[%s490 + $0x200] sm:$0xff]
        %v586 = vld [vmem:[%s490 + $0x208] sm:$0xff]
        %v587 = vld [vmem:[%s490 + $0x210] sm:$0xff]
        %v588 = vld [vmem:[%s490 + $0x218] sm:$0xff]
        %v589 = vld [vmem:[%s490 + $0x220] sm:$0xff]
        %v590 = vld [vmem:[%s490 + $0x228] sm:$0xff]
        %v591 = vld [vmem:[%s490 + $0x230] sm:$0xff]
        %v592 = vld [vmem:[%s490 + $0x238] sm:$0xff]
        %v599 = vunpack.c.l.b16 %v515
        %v600 = vunpack.c.h.b16 %v515
        %v601 = vunpack.c.l.b16 %v516
        %v602 = vunpack.c.h.b16 %v516
        %v603 = vunpack.c.l.b16 %v517
        %v604 = vunpack.c.l.b16 %v518
        %v605 = vunpack.c.h.b16 %v518
        %v606 = vunpack.c.l.b16 %v519
        %v607 = vunpack.c.h.b16 %v519
        %v608 = vunpack.c.l.b16 %v520
        %v609 = vpack.c.b16 %v604, %v599
        %v610 = vpack.c.b16 %v605, %v600
        %v611 = vpack.c.b16 %v606, %v601
        %v612 = vpack.c.b16 %v607, %v602
        %v613 = vpack.c.b16 %v608, %v603
        %v690 = vunpack.c.l.b16 %v521
        %v691 = vunpack.c.h.b16 %v521
        %v692 = vunpack.c.l.b16 %v522
        %v693 = vunpack.c.h.b16 %v522
        %v694 = vunpack.c.l.b16 %v523
        %v695 = vunpack.c.h.b16 %v523
        %v696 = vunpack.c.l.b16 %v524
        %v697 = vunpack.c.h.b16 %v524
        %v698 = vunpack.c.l.b16 %v525
        %v699 = vunpack.c.h.b16 %v525
        %v700 = vunpack.c.l.b16 %v526
        %v701 = vunpack.c.h.b16 %v526
        %v702 = vunpack.c.l.b16 %v527
        %v703 = vunpack.c.h.b16 %v527
        %v704 = vunpack.c.l.b16 %v528
        %v705 = vunpack.c.h.b16 %v528
        %v706 = vunpack.c.l.b16 %v529
        %v707 = vunpack.c.h.b16 %v529
        %v708 = vunpack.c.l.b16 %v530
        %v709 = vunpack.c.h.b16 %v530
        %v710 = vunpack.c.l.b16 %v531
        %v711 = vunpack.c.h.b16 %v531
        %v712 = vunpack.c.l.b16 %v532
        %v713 = vunpack.c.h.b16 %v532
        %v714 = vunpack.c.l.b16 %v533
        %v715 = vunpack.c.h.b16 %v533
        %v716 = vunpack.c.l.b16 %v534
        %v717 = vunpack.c.h.b16 %v534
        %v718 = vunpack.c.l.b16 %v535
        %v719 = vunpack.c.h.b16 %v535
        %v720 = vunpack.c.l.b16 %v536
        %v721 = vunpack.c.h.b16 %v536
        %v722 = vunpack.c.l.b16 %v537
        %v723 = vunpack.c.h.b16 %v537
        %v724 = vunpack.c.l.b16 %v538
        %v725 = vunpack.c.h.b16 %v538
        %v726 = vunpack.c.l.b16 %v539
        %v727 = vunpack.c.h.b16 %v539
        %v728 = vunpack.c.l.b16 %v540
        %v729 = vunpack.c.h.b16 %v540
        %v730 = vunpack.c.l.b16 %v541
        %v731 = vunpack.c.h.b16 %v541
        %v732 = vunpack.c.l.b16 %v542
        %v733 = vunpack.c.h.b16 %v542
        %v734 = vunpack.c.l.b16 %v543
        %v735 = vunpack.c.h.b16 %v543
        %v736 = vunpack.c.l.b16 %v544
        %v737 = vunpack.c.h.b16 %v544
        %v738 = vunpack.c.l.b16 %v545
        %v739 = vunpack.c.h.b16 %v545
        %v740 = vunpack.c.l.b16 %v546
        %v741 = vunpack.c.h.b16 %v546
        %v742 = vunpack.c.l.b16 %v547
        %v743 = vunpack.c.h.b16 %v547
        %v744 = vunpack.c.l.b16 %v548
        %v745 = vunpack.c.h.b16 %v548
        %v746 = vunpack.c.l.b16 %v549
        %v747 = vunpack.c.h.b16 %v549
        %v748 = vunpack.c.l.b16 %v550
        %v749 = vunpack.c.h.b16 %v550
        %v750 = vunpack.c.l.b16 %v551
        %v751 = vunpack.c.h.b16 %v551
        %v752 = vunpack.c.l.b16 %v552
        %v753 = vunpack.c.h.b16 %v552
        %v754 = vunpack.c.l.b16 %v553
        %v755 = vunpack.c.h.b16 %v553
        %v756 = vunpack.c.l.b16 %v554
        %v757 = vunpack.c.h.b16 %v554
        %v758 = vunpack.c.l.b16 %v555
        %v759 = vunpack.c.h.b16 %v555
        %v760 = vunpack.c.l.b16 %v556
        %v761 = vunpack.c.h.b16 %v556
        %v762 = vunpack.c.l.b16 %v557
        %v763 = vunpack.c.h.b16 %v557
        %v764 = vunpack.c.l.b16 %v558
        %v765 = vunpack.c.h.b16 %v558
        %v766 = vunpack.c.l.b16 %v559
        %v767 = vunpack.c.h.b16 %v559
        %v768 = vunpack.c.l.b16 %v560
        %v769 = vunpack.c.h.b16 %v560
        %v770 = vunpack.c.l.b16 %v561
        %v771 = vunpack.c.h.b16 %v561
        %v772 = vunpack.c.l.b16 %v562
        %v773 = vunpack.c.h.b16 %v562
        %v774 = vunpack.c.l.b16 %v563
        %v775 = vunpack.c.h.b16 %v563
        %v776 = vunpack.c.l.b16 %v564
        %v777 = vunpack.c.h.b16 %v564
        %v778 = vunpack.c.l.b16 %v565
        %v779 = vunpack.c.h.b16 %v565
        %v780 = vunpack.c.l.b16 %v566
        %v781 = vunpack.c.h.b16 %v566
        %v782 = vunpack.c.l.b16 %v567
        %v783 = vunpack.c.h.b16 %v567
        %v784 = vunpack.c.l.b16 %v568
        %v785 = vunpack.c.h.b16 %v568
        %v786 = vunpack.c.l.b16 %v569
        %v787 = vunpack.c.h.b16 %v569
        %v788 = vunpack.c.l.b16 %v570
        %v789 = vunpack.c.h.b16 %v570
        %v790 = vunpack.c.l.b16 %v571
        %v791 = vunpack.c.h.b16 %v571
        %v792 = vunpack.c.l.b16 %v572
        %v793 = vunpack.c.h.b16 %v572
        %v794 = vunpack.c.l.b16 %v573
        %v795 = vunpack.c.h.b16 %v573
        %v796 = vunpack.c.l.b16 %v574
        %v797 = vunpack.c.h.b16 %v574
        %v798 = vunpack.c.l.b16 %v575
        %v799 = vunpack.c.h.b16 %v575
        %v800 = vunpack.c.l.b16 %v576
        %v801 = vunpack.c.h.b16 %v576
        %v802 = vunpack.c.l.b16 %v577
        %v803 = vunpack.c.h.b16 %v577
        %v804 = vunpack.c.l.b16 %v578
        %v805 = vunpack.c.h.b16 %v578
        %v806 = vunpack.c.l.b16 %v579
        %v807 = vunpack.c.h.b16 %v579
        %v808 = vunpack.c.l.b16 %v580
        %v809 = vunpack.c.h.b16 %v580
        %v810 = vunpack.c.l.b16 %v581
        %v811 = vunpack.c.h.b16 %v581
        %v812 = vunpack.c.l.b16 %v582
        %v813 = vunpack.c.h.b16 %v582
        %v814 = vunpack.c.l.b16 %v583
        %v815 = vunpack.c.h.b16 %v583
        %v816 = vunpack.c.l.b16 %v584
        %v817 = vunpack.c.h.b16 %v584
        %v818 = vunpack.c.l.b16 %v585
        %v819 = vunpack.c.h.b16 %v585
        %v820 = vunpack.c.l.b16 %v586
        %v821 = vunpack.c.h.b16 %v586
        %v822 = vunpack.c.l.b16 %v587
        %v823 = vunpack.c.h.b16 %v587
        %v824 = vunpack.c.l.b16 %v588
        %v825 = vunpack.c.h.b16 %v588
        %v826 = vunpack.c.l.b16 %v589
        %v827 = vunpack.c.h.b16 %v589
        %v828 = vunpack.c.l.b16 %v590
        %v829 = vunpack.c.h.b16 %v590
        %v830 = vunpack.c.l.b16 %v591
        %v831 = vunpack.c.h.b16 %v591
        %v832 = vunpack.c.l.b16 %v592
        %v833 = vunpack.c.h.b16 %v592
        %v834 = vpack.c.b16 %v692, %v690
        %v835 = vpack.c.b16 %v693, %v691
        %v836 = vpack.c.b16 %v696, %v694
        %v837 = vpack.c.b16 %v697, %v695
        %v838 = vpack.c.b16 %v700, %v698
        %v839 = vpack.c.b16 %v701, %v699
        %v840 = vpack.c.b16 %v704, %v702
        %v841 = vpack.c.b16 %v705, %v703
        %v842 = vpack.c.b16 %v708, %v706
        %v843 = vpack.c.b16 %v709, %v707
        %v844 = vpack.c.b16 %v712, %v710
        %v845 = vpack.c.b16 %v713, %v711
        %v846 = vpack.c.b16 %v716, %v714
        %v847 = vpack.c.b16 %v717, %v715
        %v848 = vpack.c.b16 %v720, %v718
        %v849 = vpack.c.b16 %v721, %v719
        %v850 = vpack.c.b16 %v724, %v722
        %v851 = vpack.c.b16 %v725, %v723
        %v852 = vpack.c.b16 %v728, %v726
        %v853 = vpack.c.b16 %v729, %v727
        %v854 = vpack.c.b16 %v732, %v730
        %v855 = vpack.c.b16 %v733, %v731
        %v856 = vpack.c.b16 %v736, %v734
        %v857 = vpack.c.b16 %v737, %v735
        %v858 = vpack.c.b16 %v740, %v738
        %v859 = vpack.c.b16 %v741, %v739
        %v860 = vpack.c.b16 %v744, %v742
        %v861 = vpack.c.b16 %v745, %v743
        %v862 = vpack.c.b16 %v748, %v746
        %v863 = vpack.c.b16 %v749, %v747
        %v864 = vpack.c.b16 %v752, %v750
        %v865 = vpack.c.b16 %v753, %v751
        %v866 = vpack.c.b16 %v756, %v754
        %v867 = vpack.c.b16 %v757, %v755
        %v868 = vpack.c.b16 %v760, %v758
        %v869 = vpack.c.b16 %v761, %v759
        %v870 = vpack.c.b16 %v764, %v762
        %v871 = vpack.c.b16 %v765, %v763
        %v872 = vpack.c.b16 %v768, %v766
        %v873 = vpack.c.b16 %v769, %v767
        %v874 = vpack.c.b16 %v772, %v770
        %v875 = vpack.c.b16 %v773, %v771
        %v876 = vpack.c.b16 %v776, %v774
        %v877 = vpack.c.b16 %v777, %v775
        %v878 = vpack.c.b16 %v780, %v778
        %v879 = vpack.c.b16 %v781, %v779
        %v880 = vpack.c.b16 %v784, %v782
        %v881 = vpack.c.b16 %v785, %v783
        %v882 = vpack.c.b16 %v788, %v786
        %v883 = vpack.c.b16 %v789, %v787
        %v884 = vpack.c.b16 %v792, %v790
        %v885 = vpack.c.b16 %v793, %v791
        %v886 = vpack.c.b16 %v796, %v794
        %v887 = vpack.c.b16 %v797, %v795
        %v888 = vpack.c.b16 %v800, %v798
        %v889 = vpack.c.b16 %v801, %v799
        %v890 = vpack.c.b16 %v804, %v802
        %v891 = vpack.c.b16 %v805, %v803
        %v892 = vpack.c.b16 %v808, %v806
        %v893 = vpack.c.b16 %v809, %v807
        %v894 = vpack.c.b16 %v812, %v810
        %v895 = vpack.c.b16 %v813, %v811
        %v896 = vpack.c.b16 %v816, %v814
        %v897 = vpack.c.b16 %v817, %v815
        %v898 = vpack.c.b16 %v820, %v818
        %v899 = vpack.c.b16 %v821, %v819
        %v900 = vpack.c.b16 %v824, %v822
        %v901 = vpack.c.b16 %v825, %v823
        %v902 = vpack.c.b16 %v828, %v826
        %v903 = vpack.c.b16 %v829, %v827
        %v904 = vpack.c.b16 %v832, %v830
        %v905 = vpack.c.b16 %v833, %v831
        %vm978 = vcmask 523264
        %v980 = vsel %vm978, %v613, 0
        %982 = vmatprep.subr.bf16.mxu0 %v849
        %983 = vmatpush1.bf16.msra.mxu0 %v848
        %984 = vmatprep.subr.bf16.mxu0 %v847
        %985 = vmatpush1.bf16.msra.mxu0 %v846
        %986 = vmatprep.subr.bf16.mxu0 %v845
        %987 = vmatpush1.bf16.msra.mxu0 %v844
        %988 = vmatprep.subr.bf16.mxu0 %v843
        %989 = vmatpush1.bf16.msra.mxu0 %v842
        %990 = vmatprep.subr.bf16.mxu0 %v841
        %991 = vmatpush1.bf16.msra.mxu0 %v840
        %992 = vmatprep.subr.bf16.mxu0 %v839
        %993 = vmatpush1.bf16.msra.mxu0 %v838
        %994 = vmatprep.subr.bf16.mxu0 %v837
        %995 = vmatpush1.bf16.msra.mxu0 %v836
        %996 = vmatprep.subr.bf16.mxu0 %v835
        %997 = vmatpush1.bf16.msra.mxu0 %v834
        %998 = vmatprep.subr.bf16.mxu0 %v865
        %999 = vmatpush2.bf16.msra.mxu0 %v864
        %1000 = vmatprep.subr.bf16.mxu0 %v863
        %1001 = vmatpush2.bf16.msra.mxu0 %v862
        %1002 = vmatprep.subr.bf16.mxu0 %v861
        %1003 = vmatpush2.bf16.msra.mxu0 %v860
        %1004 = vmatprep.subr.bf16.mxu0 %v859
        %1005 = vmatpush2.bf16.msra.mxu0 %v858
        %1006 = vmatprep.subr.bf16.mxu0 %v857
        %1007 = vmatpush2.bf16.msra.mxu0 %v856
        %1008 = vmatprep.subr.bf16.mxu0 %v855
        %1009 = vmatpush2.bf16.msra.mxu0 %v854
        %1010 = vmatprep.subr.bf16.mxu0 %v853
        %1011 = vmatpush2.bf16.msra.mxu0 %v852
        %1012 = vmatprep.subr.bf16.mxu0 %v851
        %1013 = vmatpush2.bf16.msra.mxu0 %v850
        %1014 = vmatprep.mubr.bf16.mxu0 %v610
        %1015 = vmatmul.mubr.bf16.gmra.mxu0 %v609
        %v1016 = vpop.f32.mrf.mxu0
        %v1017 = vadd.f32 0.0, %v1016
        %v1018 = vpop.f32.mrf.mxu0
        %v1019 = vadd.f32 0.0, %v1018
        %v1020 = vpop.f32.mrf.mxu0
        %v1021 = vadd.f32 0.0, %v1020
        %v1022 = vpop.f32.mrf.mxu0
        %v1023 = vadd.f32 0.0, %v1022
        %1024 = vdwg.mxu0
        %1025 = vmatprep.subr.bf16.mxu0 %v881
        %1026 = vmatpush1.bf16.msra.mxu0 %v880
        %1027 = vmatprep.subr.bf16.mxu0 %v879
        %1028 = vmatpush1.bf16.msra.mxu0 %v878
        %1029 = vmatprep.subr.bf16.mxu0 %v877
        %1030 = vmatpush1.bf16.msra.mxu0 %v876
        %1031 = vmatprep.subr.bf16.mxu0 %v875
        %1032 = vmatpush1.bf16.msra.mxu0 %v874
        %1033 = vmatprep.subr.bf16.mxu0 %v873
        %1034 = vmatpush1.bf16.msra.mxu0 %v872
        %1035 = vmatprep.subr.bf16.mxu0 %v871
        %1036 = vmatpush1.bf16.msra.mxu0 %v870
        %1037 = vmatprep.subr.bf16.mxu0 %v869
        %1038 = vmatpush1.bf16.msra.mxu0 %v868
        %1039 = vmatprep.subr.bf16.mxu0 %v867
        %1040 = vmatpush1.bf16.msra.mxu0 %v866
        %1041 = vmatprep.subr.bf16.mxu0 %v897
        %1042 = vmatpush2.bf16.msra.mxu0 %v896
        %1043 = vmatprep.subr.bf16.mxu0 %v895
        %1044 = vmatpush2.bf16.msra.mxu0 %v894
        %1045 = vmatprep.subr.bf16.mxu0 %v893
        %1046 = vmatpush2.bf16.msra.mxu0 %v892
        %1047 = vmatprep.subr.bf16.mxu0 %v891
        %1048 = vmatpush2.bf16.msra.mxu0 %v890
        %1049 = vmatprep.subr.bf16.mxu0 %v889
        %1050 = vmatpush2.bf16.msra.mxu0 %v888
        %1051 = vmatprep.subr.bf16.mxu0 %v887
        %1052 = vmatpush2.bf16.msra.mxu0 %v886
        %1053 = vmatprep.subr.bf16.mxu0 %v885
        %1054 = vmatpush2.bf16.msra.mxu0 %v884
        %1055 = vmatprep.subr.bf16.mxu0 %v883
        %1056 = vmatpush2.bf16.msra.mxu0 %v882
        %1057 = vmatprep.mubr.bf16.mxu0 %v612
        %1058 = vmatmul.mubr.bf16.gmra.mxu0 %v611
        %v1059 = vpop.f32.mrf.mxu0
        %v1060 = vadd.f32 %v1017, %v1059
        %v1061 = vpop.f32.mrf.mxu0
        %v1062 = vadd.f32 %v1019, %v1061
        %v1063 = vpop.f32.mrf.mxu0
        %v1064 = vadd.f32 %v1021, %v1063
        %v1065 = vpop.f32.mrf.mxu0
        %v1066 = vadd.f32 %v1023, %v1065
        %1067 = vdwg.mxu0
        %1068 = vmatprep.subr.bf16.mxu0 0
        %1069 = vmatpush1.bf16.msra.mxu0 0
        %1070 = vmatprep.subr.bf16.mxu0 0
        %1071 = vmatpush1.bf16.msra.mxu0 0
        %1072 = vmatprep.subr.bf16.mxu0 0
        %1073 = vmatpush1.bf16.msra.mxu0 0
        %1074 = vmatprep.subr.bf16.mxu0 0
        %1075 = vmatpush1.bf16.msra.mxu0 0
        %1076 = vmatprep.subr.bf16.mxu0 %v905
        %1077 = vmatpush1.bf16.msra.mxu0 %v904
        %1078 = vmatprep.subr.bf16.mxu0 %v903
        %1079 = vmatpush1.bf16.msra.mxu0 %v902
        %1080 = vmatprep.subr.bf16.mxu0 %v901
        %1081 = vmatpush1.bf16.msra.mxu0 %v900
        %1082 = vmatprep.subr.bf16.mxu0 %v899
        %1083 = vmatpush1.bf16.msra.mxu0 %v898
        %1084 = vmatprep.subr.bf16.mxu0 0
        %1085 = vmatpush2.bf16.msra.mxu0 0
        %1086 = vmatprep.subr.bf16.mxu0 0
        %1087 = vmatpush2.bf16.msra.mxu0 0
        %1088 = vmatprep.subr.bf16.mxu0 0
        %1089 = vmatpush2.bf16.msra.mxu0 0
        %1090 = vmatprep.subr.bf16.mxu0 0
        %1091 = vmatpush2.bf16.msra.mxu0 0
        %1092 = vmatprep.subr.bf16.mxu0 0
        %1093 = vmatpush2.bf16.msra.mxu0 0
        %1094 = vmatprep.subr.bf16.mxu0 0
        %1095 = vmatpush2.bf16.msra.mxu0 0
        %1096 = vmatprep.subr.bf16.mxu0 0
        %1097 = vmatpush2.bf16.msra.mxu0 0
        %1098 = vmatprep.subr.bf16.mxu0 0
        %1099 = vmatpush2.bf16.msra.mxu0 0
        %1100 = vmatprep.mubr.bf16.mxu0 0
        %1101 = vmatmul.mubr.bf16.gmra.mxu0 %v980
        %v1102 = vpop.f32.mrf.mxu0
        %v1103 = vadd.f32 %v1060, %v1102
        %v1104 = vpop.f32.mrf.mxu0
        %v1105 = vadd.f32 %v1062, %v1104
        %v1106 = vpop.f32.mrf.mxu0
        %v1107 = vadd.f32 %v1064, %v1106
        %v1108 = vpop.f32.mrf.mxu0
        %v1109 = vadd.f32 %v1066, %v1108
        %1110 = vdwg.mxu0
        %v1111 = vld [vmem:[%s2] sm:$0xff]
        %v1112 = vld [vmem:[%s2 + $0x8] sm:$0xff]
        %1114 = vset.pattern.permute.xlu0 0
        %1115 = vperm.xlu0 %1114, %v1111
        %v1116 = vpop.permute.xlu0 %1115
        %1119 = vset.pattern.permute.xlu0 0
        %1120 = vperm.xlu0 %1119, %v1112
        %v1121 = vpop.permute.xlu0 %1120
        %v1123 = vmul.f32 %v1103, %v1116
        %v1124 = vmul.f32 %v1105, %v1116
        %v1125 = vmul.f32 %v1107, %v1121
        %v1126 = vmul.f32 %v1109, %v1121
        %v1127 = vld [vmem:[%s3] sm:$0xff]
        %v1128 = vld [vmem:[%s3 + $0x8] sm:$0xff]
        %1130 = vset.pattern.permute.xlu0 0
        %1131 = vperm.xlu0 %1130, %v1127
        %v1132 = vpop.permute.xlu0 %1131
        %1135 = vset.pattern.permute.xlu0 0
        %1136 = vperm.xlu0 %1135, %v1128
        %v1137 = vpop.permute.xlu0 %1136
        %v1139 = vadd.f32 %v1123, %v1132
        %v1140 = vadd.f32 %v1124, %v1132
        %v1141 = vadd.f32 %v1125, %v1137
        %v1142 = vadd.f32 %v1126, %v1137
        %1143 = vst [vmem:[%s511] sm:$0xff] %v1139
        %1144 = vst [vmem:[%s511 + $0x8] sm:$0xff] %v1140
        %1145 = vst [vmem:[%s511 + $0x10] sm:$0xff] %v1141
        %1146 = vst [vmem:[%s511 + $0x18] sm:$0xff] %v1142
        %s1147 = sand.u32 %s112, 1
        %s1148 = sand.u32 %s112, 1
        %s1149 = smul.addr %s1148, 32
        %s1150 = scalar_lea.vmem [#allocation3], %s1149
        // Predicated region
        $region75: #{_lambda_.12} parent=69 // pred_check
          %p1151 = pneg %p122
        $region76: #{_lambda_.12} parent=69 // pred_check_branch
          %1153 = sbr.rel (%p1151) target = $region78
        $region77: #{_lambda_.12} parent=69 // pred_region
          %s1154 = smul.u32 2, %s15
          %s1155 = smul.addr %s1154, 8
          %s1156 = scalar_lea.vmem %s4, %s1155
          // Predicated region
          $region79: #{_lambda_.12} parent=77 // pred_check
            _
          $region80: #{_lambda_.12} parent=77 // pred_check_branch
            %1158 = sbr.rel (0) target = $region82
          $region81: #{_lambda_.12} parent=77 // pred_region
            // Predicated region
            $region83: #{_lambda_.12} parent=81 // pred_check
              _
            $region84: #{_lambda_.12} parent=81 // pred_check_branch
              %1160 = sbr.rel (0) target = $region86
            $region85: #{_lambda_.12} parent=81 // pred_region
              loop: start=0, step=1, limit=1
              $region87: #{_lambda_.12} parent=85 // loop_pre_header
                _
              $region88: #{_lambda_.12} parent=85 // loop_header
                %s1162 = sphi 0, %s1166
                %p1163 = scmp.ge.s32.totalorder %s1162, 1
                %s1167 = sphi %s1150, %s1150
                %s1168 = sphi %s1156, %s1156
              $region89: #{_lambda_.12} parent=85 // loop_header_branch
                %1165 = sbr.rel (%p1163) target = $region93
              $region90: #{_lambda_.12} parent=85 // loop_body
                %v1169 = vld [vmem:[%s1167] sm:$0xff]
                %1170 = vst [vmem:[%s1168] sm:$0xff] %v1169
                %v1171 = vld [vmem:[%s1167 + $0x8] sm:$0xff]
                %1172 = vst [vmem:[%s1168 + $0x8] sm:$0xff] %v1171
                %v1173 = vld [vmem:[%s1167 + $0x10] sm:$0xff]
                %1174 = vst [vmem:[%s1168 + $0x20] sm:$0xff] %v1173
                %v1175 = vld [vmem:[%s1167 + $0x18] sm:$0xff]
                %1176 = vst [vmem:[%s1168 + $0x28] sm:$0xff] %v1175
              $region91: #{_lambda_.12} parent=85 // loop_footer
                %s1166 = sadd.s32 1, %s1162
              $region92: #{_lambda_.12} parent=85 // loop_footer_branch
                %1161 = sbr.rel target = $region88
              $region93: #{_lambda_.12} parent=85 // loop_exit
                _
            $region86: #{_lambda_.12} parent=81 // pred_fallthru
              _
            // Predicated region
            $region94: #{_lambda_.12} parent=81 // pred_check
              _
            $region95: #{_lambda_.12} parent=81 // pred_check_branch
              %1178 = sbr.rel target = $region97
            $region96: #{_lambda_.12} parent=81 // pred_region
              _
            $region97: #{_lambda_.12} parent=81 // pred_fallthru
              _
          $region82: #{_lambda_.12} parent=77 // pred_fallthru
            _
          %1179 = vnop
        $region78: #{_lambda_.12} parent=69 // pred_fallthru
          _
      $region70: #{_lambda_.12} parent=5 // pred_fallthru
        _
      %p1180 = scmp.le.s32.totalorder 2, %s10
      // Predicated region
      $region98: #{_lambda_.12} parent=5 // pred_check
        %p1181 = pneg %p1180
      $region99: #{_lambda_.12} parent=5 // pred_check_branch
        %1183 = sbr.rel (%p1181) target = $region101
      $region100: #{_lambda_.12} parent=5 // pred_region
        %s1184 = ssub.s32 %s10, 2
        // Predicated region
        $region102: #{_lambda_.12} parent=100 // pred_check
          %p1185 = pneg %p128
        $region103: #{_lambda_.12} parent=100 // pred_check_branch
          %1187 = sbr.rel (%p1185) target = $region105
        $region104: #{_lambda_.12} parent=100 // pred_region
          %s1188 = sand.u32 %s113, 1
          %s1189 = sand.u32 %s113, 1
          %s1190 = smul.addr %s1189, 32
          %s1191 = scalar_lea.vmem [#allocation3], %s1190
        $region105: #{_lambda_.12} parent=100 // pred_fallthru
          _
      $region101: #{_lambda_.12} parent=5 // pred_fallthru
        _
    $region6: #{_lambda_.12} parent=1 // loop_footer
      %s14 = sadd.s32 1, %s10
    $region7: #{_lambda_.12} parent=1 // loop_footer_branch
      %9 = sbr.rel target = $region3
    $region8: #{_lambda_.12} parent=1 // loop_exit
      _

// kernel: _lambda_.14
$region0: #{_lambda_.14}
  #allocation0 [shape = 'u32[]', space=smem, size = 0x4, offset = 0x4, fixed_abs, tag = 'smem constant byte address 0x4 - core index']
  #allocation1 [shape = 'u32[144,128]{1,0:T(1,128)}', space=vmem, size = 0x12000, scoped, tag = 'internal scratch']
  %s0 = inlined_call_operand.vmem [shape: f32[2,4,256], index: 0, kind: input, shape index: {}]
  %s1 = inlined_call_operand.vmem [shape: f32[4,1], index: 1, kind: input, shape index: {}]
  %s2 = inlined_call_operand.vmem [shape: f32[4,1], index: 2, kind: input, shape index: {}]
  %s3 = inlined_call_operand.vmem [shape: bf16[512,256], index: 3, kind: input, shape index: {}]
  %s4 = inlined_call_operand.vmem [shape: f32[2,4,256], index: 4, kind: output, shape index: {}]
  %s5 = sld [smem:[#allocation0]]
  $region49: #{_lambda_.14} parent=0
    _
  %s7 = ssub.s32 1, %s5
  %s8 = scalar_select 0, %s7, %s5
  loop: start=0, step=1, limit=4
  $region2: #{_lambda_.14} parent=0 // loop_pre_header
    _
  $region3: #{_lambda_.14} parent=0 // loop_header
    %s10 = sphi 0, %s14
    %p11 = scmp.ge.s32.totalorder %s10, 4
    %s20 = sphi 0, %s22
    %s23 = sphi 0, %s20
    %s24 = sphi 0, %s23
    %s40 = sphi 0, %s24
    %s44 = sphi 0, %s44
    %s46 = sphi 0, %s44
    %s47 = sphi 0, %s46
    %s61 = sphi 0, %s47
    %s65 = sphi 0, %s65
    %s67 = sphi 0, %s65
    %s68 = sphi 0, %s67
    %s82 = sphi 0, %s68
    %s86 = sphi 0, %s86
    %s88 = sphi 0, %s86
    %s89 = sphi 0, %s88
    %s103 = sphi 0, %s89
    %s109 = sphi 0, %s111
    %s112 = sphi 0, %s109
    %s113 = sphi 0, %s112
    %s129 = sphi 0, %s113
  $region4: #{_lambda_.14} parent=0 // loop_header_branch
    %13 = sbr.rel (%p11) target = $region8
  $region5: #{_lambda_.14} parent=0 // loop_body
    %s15 = ssub.s32 %s10, 1
    %s16 = ssub.s32 %s10, 2
    %s17 = sadd.s32 %s10, 1
    %s18 = ssub.s32 %s10, %s17
    %p19 = scmp.eq.s32.totalorder %s18, 0
    %s21 = sadd.s32 %s20, 1
    %s22 = scalar_select %p19, %s20, %s21
    %p25 = pneg %p19
    %p26 = scmp.eq.s32.totalorder %s10, 1
    %p27 = por %p25, %p26
    %p28 = scmp.ne.s32.totalorder %s20, %s23
    %p29 = scmp.eq.s32.totalorder %s10, 0
    %p30 = por %p28, %p29
    %p31 = scmp.ne.s32.totalorder %s20, %s23
    %p32 = scmp.eq.s32.totalorder %s15, 1
    %p33 = por %p31, %p32
    %p34 = scmp.ne.s32.totalorder %s23, %s24
    %p35 = scmp.eq.s32.totalorder %s15, 0
    %p36 = por %p34, %p35
    %p37 = scmp.ne.s32.totalorder %s23, %s24
    %p38 = scmp.eq.s32.totalorder %s16, 1
    %p39 = por %p37, %p38
    %p41 = scmp.ne.s32.totalorder %s24, %s40
    %p42 = scmp.eq.s32.totalorder %s16, 0
    %p43 = por %p41, %p42
    %s45 = sadd.s32 %s44, 1
    %p48 = scmp.eq.s32.totalorder %s10, 1
    %p49 = scmp.ne.s32.totalorder %s44, %s46
    %p50 = scmp.eq.s32.totalorder %s10, 0
    %p51 = por %p49, %p50
    %p52 = scmp.ne.s32.totalorder %s44, %s46
    %p53 = scmp.eq.s32.totalorder %s15, 1
    %p54 = por %p52, %p53
    %p55 = scmp.ne.s32.totalorder %s46, %s47
    %p56 = scmp.eq.s32.totalorder %s15, 0
    %p57 = por %p55, %p56
    %p58 = scmp.ne.s32.totalorder %s46, %s47
    %p59 = scmp.eq.s32.totalorder %s16, 1
    %p60 = por %p58, %p59
    %p62 = scmp.ne.s32.totalorder %s47, %s61
    %p63 = scmp.eq.s32.totalorder %s16, 0
    %p64 = por %p62, %p63
    %s66 = sadd.s32 %s65, 1
    %p69 = scmp.eq.s32.totalorder %s10, 1
    %p70 = scmp.ne.s32.totalorder %s65, %s67
    %p71 = scmp.eq.s32.totalorder %s10, 0
    %p72 = por %p70, %p71
    %p73 = scmp.ne.s32.totalorder %s65, %s67
    %p74 = scmp.eq.s32.totalorder %s15, 1
    %p75 = por %p73, %p74
    %p76 = scmp.ne.s32.totalorder %s67, %s68
    %p77 = scmp.eq.s32.totalorder %s15, 0
    %p78 = por %p76, %p77
    %p79 = scmp.ne.s32.totalorder %s67, %s68
    %p80 = scmp.eq.s32.totalorder %s16, 1
    %p81 = por %p79, %p80
    %p83 = scmp.ne.s32.totalorder %s68, %s82
    %p84 = scmp.eq.s32.totalorder %s16, 0
    %p85 = por %p83, %p84
    %s87 = sadd.s32 %s86, 1
    %p90 = scmp.eq.s32.totalorder %s10, 1
    %p91 = scmp.ne.s32.totalorder %s86, %s88
    %p92 = scmp.eq.s32.totalorder %s10, 0
    %p93 = por %p91, %p92
    %p94 = scmp.ne.s32.totalorder %s86, %s88
    %p95 = scmp.eq.s32.totalorder %s15, 1
    %p96 = por %p94, %p95
    %p97 = scmp.ne.s32.totalorder %s88, %s89
    %p98 = scmp.eq.s32.totalorder %s15, 0
    %p99 = por %p97, %p98
    %p100 = scmp.ne.s32.totalorder %s88, %s89
    %p101 = scmp.eq.s32.totalorder %s16, 1
    %p102 = por %p100, %p101
    %p104 = scmp.ne.s32.totalorder %s89, %s103
    %p105 = scmp.eq.s32.totalorder %s16, 0
    %p106 = por %p104, %p105
    %s107 = ssub.s32 %s10, %s17
    %p108 = scmp.eq.s32.totalorder %s107, 0
    %s110 = sadd.s32 %s109, 1
    %s111 = scalar_select %p108, %s109, %s110
    %p114 = pneg %p108
    %p115 = scmp.eq.s32.totalorder %s10, 1
    %p116 = por %p114, %p115
    %p117 = scmp.ne.s32.totalorder %s109, %s112
    %p118 = scmp.eq.s32.totalorder %s10, 0
    %p119 = por %p117, %p118
    %p120 = scmp.ne.s32.totalorder %s109, %s112
    %p121 = scmp.eq.s32.totalorder %s15, 1
    %p122 = por %p120, %p121
    %p123 = scmp.ne.s32.totalorder %s112, %s113
    %p124 = scmp.eq.s32.totalorder %s15, 0
    %p125 = por %p123, %p124
    %p126 = scmp.ne.s32.totalorder %s112, %s113
    %p127 = scmp.eq.s32.totalorder %s16, 1
    %p128 = por %p126, %p127
    %p130 = scmp.ne.s32.totalorder %s113, %s129
    %p131 = scmp.eq.s32.totalorder %s16, 0
    %p132 = por %p130, %p131
    %p133 = scmp.le.s32.totalorder 1, %s10
    %p134 = scmp.lt.s32.totalorder %s10, 3
    %p135 = pnand %p133, %p134
    %p136 = pneg %p135
    // Predicated region
    $region9: #{_lambda_.14} parent=5 // pred_check
      _
    $region10: #{_lambda_.14} parent=5 // pred_check_branch
      %138 = sbr.rel (%p135) target = $region12
    $region11: #{_lambda_.14} parent=5 // pred_region
      %s139 = ssub.s32 %s10, 1
      // Predicated region
      $region13: #{_lambda_.14} parent=11 // pred_check
        %p140 = pneg %p57
      $region14: #{_lambda_.14} parent=11 // pred_check_branch
        %142 = sbr.rel (%p140) target = $region16
      $region15: #{_lambda_.14} parent=11 // pred_region
        _
      $region16: #{_lambda_.14} parent=11 // pred_fallthru
        _
      // Predicated region
      $region17: #{_lambda_.14} parent=11 // pred_check
        %p143 = pneg %p78
      $region18: #{_lambda_.14} parent=11 // pred_check_branch
        %145 = sbr.rel (%p143) target = $region20
      $region19: #{_lambda_.14} parent=11 // pred_region
        _
      $region20: #{_lambda_.14} parent=11 // pred_fallthru
        _
      // Predicated region
      $region21: #{_lambda_.14} parent=11 // pred_check
        %p146 = pneg %p99
      $region22: #{_lambda_.14} parent=11 // pred_check_branch
        %148 = sbr.rel (%p146) target = $region24
      $region23: #{_lambda_.14} parent=11 // pred_region
        _
      $region24: #{_lambda_.14} parent=11 // pred_fallthru
        _
    $region12: #{_lambda_.14} parent=5 // pred_fallthru
      _
    %p149 = scmp.lt.s32.totalorder %s10, 2
    // Predicated region
    $region25: #{_lambda_.14} parent=5 // pred_check
      %p150 = pneg %p149
    $region26: #{_lambda_.14} parent=5 // pred_check_branch
      %152 = sbr.rel (%p150) target = $region28
    $region27: #{_lambda_.14} parent=5 // pred_region
      // Predicated region
      $region29: #{_lambda_.14} parent=27 // pred_check
        %p153 = pneg %p30
      $region30: #{_lambda_.14} parent=27 // pred_check_branch
        %155 = sbr.rel (%p153) target = $region32
      $region31: #{_lambda_.14} parent=27 // pred_region
        %p156 = scmp.lt.s32.totalorder %s10, 1
        %s157 = scalar_select %p156, %s10, 1
        %s158 = smul.addr %s157, 2
        %s159 = smul.addr %s158, 4
        %s160 = scalar_lea.vmem %s0, %s159
      $region32: #{_lambda_.14} parent=27 // pred_fallthru
        _
    $region28: #{_lambda_.14} parent=5 // pred_fallthru
      _
    %p161 = scmp.le.s32.totalorder 1, %s10
    %p162 = scmp.lt.s32.totalorder %s10, 3
    %p163 = pnand %p161, %p162
    %p164 = pneg %p163
    // Predicated region
    $region33: #{_lambda_.14} parent=5 // pred_check
      _
    $region34: #{_lambda_.14} parent=5 // pred_check_branch
      %166 = sbr.rel (%p163) target = $region36
    $region35: #{_lambda_.14} parent=5 // pred_region
      %s167 = ssub.s32 %s10, 1
      %p168 = scmp.lt.s32.totalorder %s15, 1
      %s169 = scalar_select %p168, %s15, 1
      %s170 = smul.addr %s169, 2
      %s171 = smul.addr %s170, 4
      %s172 = scalar_lea.vmem %s0, %s171
      %p173 = pneg %p36
      %p174 = pneg %p33
      %p175 = pneg %p57
      %p176 = pneg %p54
      %p177 = pneg %p78
      %p178 = pneg %p75
      %p179 = pneg %p99
      %p180 = pneg %p96
      %p181 = pneg %p125
      %p182 = pneg %p122
      %p183 = scmp.lt.s32.totalorder %s15, 1
      %s184 = scalar_select %p183, %s15, 1
      %s185 = smul.addr %s184, 2
      %s186 = smul.addr %s185, 4
      %s187 = scalar_lea.vmem %s4, %s186
      %p188 = scmp.lt.s32.totalorder %s15, 1
      %s189 = scalar_select %p188, %s15, 1
      %s190 = smul.addr %s189, 2
      %s191 = smul.addr %s190, 4
      %s192 = scalar_lea.vmem %s0, %s191
      %p193 = scmp.lt.s32.totalorder %s15, 1
      %s194 = scalar_select %p193, %s15, 1
      %s195 = smul.addr %s194, 2
      %s196 = smul.addr %s195, 4
      %s197 = scalar_lea.vmem %s4, %s196
      %v198 = vld [vmem:[%s192] sm:$0xff]
      %v200 = vcombine.high %v198, %v198
      %vm202 = vcmask 1043456
      %v203 = vsel %vm202, %v198, 0.0
      %v204 = vsel %vm202, %v200, 0.0
      %v205 = vadd.f32 %v203, %v204
      %206 = vadd.xlane.f32.xlu0 %v205
      %v207 = vpop.xlane.xlu0 %206
      %v208 = vrcp.pop 256.0
      %v209 = vmul.f32 %v207, %v208
      %v210 = vsel %vm202, %v198, -inf
      %v211 = vsel %vm202, %v200, -inf
      %v212 = vmax.f32 %v210, %v211
      %213 = vmax.xlane.f32.xlu0 %v212
      %v214 = vpop.xlane.xlu0 %213
      %v215 = vld [vmem:[%s1] sm:$0xf]
      %v216 = vld [vmem:[%s2] sm:$0xf]
      %v217 = vmul.f32 %v215, %v209
      %vm218 = vcmask 3072
      %v219 = vsel %vm218, %v217, 0.0
      %v220 = vrot.slane %v219, 4
      %v221 = vadd.f32 %v219, %v220
      %v222 = vrot.slane %v221, 2
      %v223 = vadd.f32 %v221, %v222
      %v224 = vrot.slane %v223, 1
      %v225 = vadd.f32 %v223, %v224
      %v226 = vmax.f32 %v225, 0.0
      %v227 = vmul.f32 %v216, %v226
      %v228 = vadd.f32 %v227, 0.0
      %v229 = vmul.f32 %v215, %v214
      %v230 = vsel %vm218, %v229, 0.0
      %v231 = vrot.slane %v230, 4
      %v232 = vadd.f32 %v230, %v231
      %v233 = vrot.slane %v232, 2
      %v234 = vadd.f32 %v232, %v233
      %v235 = vrot.slane %v234, 1
      %v236 = vadd.f32 %v234, %v235
      %v237 = vmax.f32 %v236, 0.0
      %v238 = vmul.f32 %v216, %v237
      %v239 = vadd.f32 %v238, 0.0
      %v240 = vadd.f32 %v228, %v239
      %v241 = vxor.u32 %v240, 2147483648
      %v242 = vmul.f32 %v241, 1.442695
      %v243 = vpow.pop %v242
      %v244 = vadd.f32 %v243, 1.0
      %v245 = vrcp.pop %v244
      %v246 = vmul.f32 1.0, %v245
      %248 = vset.pattern.permute.xlu0 0
      %249 = vperm.xlu0 %248, %v246
      %v250 = vpop.permute.xlu0 %249
      %v252 = vunpack.c.l.s4 839922192
      %v253 = vunpack.c.0.s8 %v252
      %v254 = vlaneseq
      %v255 = vshrl.u32 %v254, 7
      %v256 = vsub.s32 %v253, %v255
      %v257 = vrot.slane %v250, %v256
      %v259 = vmul.f32 %v198, %v257
      %v261 = vcombine.high %v259, %v259
      %v263 = vsel %vm202, %v259, 0.0
      %v264 = vrot.slane %v263, 4
      %v265 = vadd.f32 %v263, %v264
      %v266 = vrot.slane %v265, 2
      %v267 = vadd.f32 %v265, %v266
      %v268 = vrot.slane %v267, 1
      %v269 = vadd.f32 %v267, %v268
      %v270 = vsel %vm202, %v261, 0.0
      %v271 = vrot.slane %v270, 4
      %v272 = vadd.f32 %v270, %v271
      %v273 = vrot.slane %v272, 2
      %v274 = vadd.f32 %v272, %v273
      %v275 = vrot.slane %v274, 1
      %v276 = vadd.f32 %v274, %v275
      %v277 = vrcp.pop 4.0
      %v278 = vmul.f32 %v269, %v277
      %v279 = vmul.f32 %v276, %v277
      %v280 = vsel %vm202, %v259, -inf
      %v281 = vrot.slane %v280, 4
      %v282 = vmax.f32 %v280, %v281
      %v283 = vrot.slane %v282, 2
      %v284 = vmax.f32 %v282, %v283
      %v285 = vrot.slane %v284, 1
      %v286 = vmax.f32 %v284, %v285
      %v287 = vsel %vm202, %v261, -inf
      %v288 = vrot.slane %v287, 4
      %v289 = vmax.f32 %v287, %v288
      %v290 = vrot.slane %v289, 2
      %v291 = vmax.f32 %v289, %v290
      %v292 = vrot.slane %v291, 1
      %v293 = vmax.f32 %v291, %v292
      %v294 = vpack.c.bf16 %v278, %v278
      %v295 = vpack.c.bf16 %v279, %v279
      %v296 = vpack.c.bf16 %v286, %v286
      %v297 = vpack.c.bf16 %v293, %v293
      %v298 = vld [vmem:[%s3] sm:$0xff]
      %v299 = vld [vmem:[%s3 + $0x8] sm:$0xff]
      %v300 = vld [vmem:[%s3 + $0x10] sm:$0xff]
      %v301 = vld [vmem:[%s3 + $0x18] sm:$0xff]
      %v302 = vld [vmem:[%s3 + $0x20] sm:$0xff]
      %v303 = vld [vmem:[%s3 + $0x28] sm:$0xff]
      %v304 = vld [vmem:[%s3 + $0x30] sm:$0xff]
      %v305 = vld [vmem:[%s3 + $0x38] sm:$0xff]
      %v306 = vld [vmem:[%s3 + $0x40] sm:$0xff]
      %v307 = vld [vmem:[%s3 + $0x48] sm:$0xff]
      %v308 = vld [vmem:[%s3 + $0x50] sm:$0xff]
      %v309 = vld [vmem:[%s3 + $0x58] sm:$0xff]
      %v310 = vld [vmem:[%s3 + $0x60] sm:$0xff]
      %v311 = vld [vmem:[%s3 + $0x68] sm:$0xff]
      %v312 = vld [vmem:[%s3 + $0x70] sm:$0xff]
      %v313 = vld [vmem:[%s3 + $0x78] sm:$0xff]
      %v314 = vld [vmem:[%s3 + $0x80] sm:$0xff]
      %v315 = vld [vmem:[%s3 + $0x88] sm:$0xff]
      %v316 = vld [vmem:[%s3 + $0x90] sm:$0xff]
      %v317 = vld [vmem:[%s3 + $0x98] sm:$0xff]
      %v318 = vld [vmem:[%s3 + $0xa0] sm:$0xff]
      %v319 = vld [vmem:[%s3 + $0xa8] sm:$0xff]
      %v320 = vld [vmem:[%s3 + $0xb0] sm:$0xff]
      %v321 = vld [vmem:[%s3 + $0xb8] sm:$0xff]
      %v322 = vld [vmem:[%s3 + $0xc0] sm:$0xff]
      %v323 = vld [vmem:[%s3 + $0xc8] sm:$0xff]
      %v324 = vld [vmem:[%s3 + $0xd0] sm:$0xff]
      %v325 = vld [vmem:[%s3 + $0xd8] sm:$0xff]
      %v326 = vld [vmem:[%s3 + $0xe0] sm:$0xff]
      %v327 = vld [vmem:[%s3 + $0xe8] sm:$0xff]
      %v328 = vld [vmem:[%s3 + $0xf0] sm:$0xff]
      %v329 = vld [vmem:[%s3 + $0xf8] sm:$0xff]
      %v330 = vld [vmem:[%s3 + $0x100] sm:$0xff]
      %v331 = vld [vmem:[%s3 + $0x108] sm:$0xff]
      %v332 = vld [vmem:[%s3 + $0x110] sm:$0xff]
      %v333 = vld [vmem:[%s3 + $0x118] sm:$0xff]
      %v334 = vld [vmem:[%s3 + $0x120] sm:$0xff]
      %v335 = vld [vmem:[%s3 + $0x128] sm:$0xff]
      %v336 = vld [vmem:[%s3 + $0x130] sm:$0xff]
      %v337 = vld [vmem:[%s3 + $0x138] sm:$0xff]
      %v338 = vld [vmem:[%s3 + $0x140] sm:$0xff]
      %v339 = vld [vmem:[%s3 + $0x148] sm:$0xff]
      %v340 = vld [vmem:[%s3 + $0x150] sm:$0xff]
      %v341 = vld [vmem:[%s3 + $0x158] sm:$0xff]
      %v342 = vld [vmem:[%s3 + $0x160] sm:$0xff]
      %v343 = vld [vmem:[%s3 + $0x168] sm:$0xff]
      %v344 = vld [vmem:[%s3 + $0x170] sm:$0xff]
      %v345 = vld [vmem:[%s3 + $0x178] sm:$0xff]
      %v346 = vld [vmem:[%s3 + $0x180] sm:$0xff]
      %v347 = vld [vmem:[%s3 + $0x188] sm:$0xff]
      %v348 = vld [vmem:[%s3 + $0x190] sm:$0xff]
      %v349 = vld [vmem:[%s3 + $0x198] sm:$0xff]
      %v350 = vld [vmem:[%s3 + $0x1a0] sm:$0xff]
      %v351 = vld [vmem:[%s3 + $0x1a8] sm:$0xff]
      %v352 = vld [vmem:[%s3 + $0x1b0] sm:$0xff]
      %v353 = vld [vmem:[%s3 + $0x1b8] sm:$0xff]
      %v354 = vld [vmem:[%s3 + $0x1c0] sm:$0xff]
      %v355 = vld [vmem:[%s3 + $0x1c8] sm:$0xff]
      %v356 = vld [vmem:[%s3 + $0x1d0] sm:$0xff]
      %v357 = vld [vmem:[%s3 + $0x1d8] sm:$0xff]
      %v358 = vld [vmem:[%s3 + $0x1e0] sm:$0xff]
      %v359 = vld [vmem:[%s3 + $0x1e8] sm:$0xff]
      %v360 = vld [vmem:[%s3 + $0x1f0] sm:$0xff]
      %v361 = vld [vmem:[%s3 + $0x1f8] sm:$0xff]
      %v426 = vunpack.c.l.b16 %v298
      %v427 = vunpack.c.h.b16 %v298
      %v428 = vunpack.c.l.b16 %v299
      %v429 = vunpack.c.h.b16 %v299
      %v430 = vunpack.c.l.b16 %v300
      %v431 = vunpack.c.h.b16 %v300
      %v432 = vunpack.c.l.b16 %v301
      %v433 = vunpack.c.h.b16 %v301
      %v434 = vunpack.c.l.b16 %v302
      %v435 = vunpack.c.h.b16 %v302
      %v436 = vunpack.c.l.b16 %v303
      %v437 = vunpack.c.h.b16 %v303
      %v438 = vunpack.c.l.b16 %v304
      %v439 = vunpack.c.h.b16 %v304
      %v440 = vunpack.c.l.b16 %v305
      %v441 = vunpack.c.h.b16 %v305
      %v442 = vunpack.c.l.b16 %v306
      %v443 = vunpack.c.h.b16 %v306
      %v444 = vunpack.c.l.b16 %v307
      %v445 = vunpack.c.h.b16 %v307
      %v446 = vunpack.c.l.b16 %v308
      %v447 = vunpack.c.h.b16 %v308
      %v448 = vunpack.c.l.b16 %v309
      %v449 = vunpack.c.h.b16 %v309
      %v450 = vunpack.c.l.b16 %v310
      %v451 = vunpack.c.h.b16 %v310
      %v452 = vunpack.c.l.b16 %v311
      %v453 = vunpack.c.h.b16 %v311
      %v454 = vunpack.c.l.b16 %v312
      %v455 = vunpack.c.h.b16 %v312
      %v456 = vunpack.c.l.b16 %v313
      %v457 = vunpack.c.h.b16 %v313
      %v458 = vunpack.c.l.b16 %v314
      %v459 = vunpack.c.h.b16 %v314
      %v460 = vunpack.c.l.b16 %v315
      %v461 = vunpack.c.h.b16 %v315
      %v462 = vunpack.c.l.b16 %v316
      %v463 = vunpack.c.h.b16 %v316
      %v464 = vunpack.c.l.b16 %v317
      %v465 = vunpack.c.h.b16 %v317
      %v466 = vunpack.c.l.b16 %v318
      %v467 = vunpack.c.h.b16 %v318
      %v468 = vunpack.c.l.b16 %v319
      %v469 = vunpack.c.h.b16 %v319
      %v470 = vunpack.c.l.b16 %v320
      %v471 = vunpack.c.h.b16 %v320
      %v472 = vunpack.c.l.b16 %v321
      %v473 = vunpack.c.h.b16 %v321
      %v474 = vunpack.c.l.b16 %v322
      %v475 = vunpack.c.h.b16 %v322
      %v476 = vunpack.c.l.b16 %v323
      %v477 = vunpack.c.h.b16 %v323
      %v478 = vunpack.c.l.b16 %v324
      %v479 = vunpack.c.h.b16 %v324
      %v480 = vunpack.c.l.b16 %v325
      %v481 = vunpack.c.h.b16 %v325
      %v482 = vunpack.c.l.b16 %v326
      %v483 = vunpack.c.h.b16 %v326
      %v484 = vunpack.c.l.b16 %v327
      %v485 = vunpack.c.h.b16 %v327
      %v486 = vunpack.c.l.b16 %v328
      %v487 = vunpack.c.h.b16 %v328
      %v488 = vunpack.c.l.b16 %v329
      %v489 = vunpack.c.h.b16 %v329
      %v490 = vunpack.c.l.b16 %v330
      %v491 = vunpack.c.h.b16 %v330
      %v492 = vunpack.c.l.b16 %v331
      %v493 = vunpack.c.h.b16 %v331
      %v494 = vunpack.c.l.b16 %v332
      %v495 = vunpack.c.h.b16 %v332
      %v496 = vunpack.c.l.b16 %v333
      %v497 = vunpack.c.h.b16 %v333
      %v498 = vunpack.c.l.b16 %v334
      %v499 = vunpack.c.h.b16 %v334
      %v500 = vunpack.c.l.b16 %v335
      %v501 = vunpack.c.h.b16 %v335
      %v502 = vunpack.c.l.b16 %v336
      %v503 = vunpack.c.h.b16 %v336
      %v504 = vunpack.c.l.b16 %v337
      %v505 = vunpack.c.h.b16 %v337
      %v506 = vunpack.c.l.b16 %v338
      %v507 = vunpack.c.h.b16 %v338
      %v508 = vunpack.c.l.b16 %v339
      %v509 = vunpack.c.h.b16 %v339
      %v510 = vunpack.c.l.b16 %v340
      %v511 = vunpack.c.h.b16 %v340
      %v512 = vunpack.c.l.b16 %v341
      %v513 = vunpack.c.h.b16 %v341
      %v514 = vunpack.c.l.b16 %v342
      %v515 = vunpack.c.h.b16 %v342
      %v516 = vunpack.c.l.b16 %v343
      %v517 = vunpack.c.h.b16 %v343
      %v518 = vunpack.c.l.b16 %v344
      %v519 = vunpack.c.h.b16 %v344
      %v520 = vunpack.c.l.b16 %v345
      %v521 = vunpack.c.h.b16 %v345
      %v522 = vunpack.c.l.b16 %v346
      %v523 = vunpack.c.h.b16 %v346
      %v524 = vunpack.c.l.b16 %v347
      %v525 = vunpack.c.h.b16 %v347
      %v526 = vunpack.c.l.b16 %v348
      %v527 = vunpack.c.h.b16 %v348
      %v528 = vunpack.c.l.b16 %v349
      %v529 = vunpack.c.h.b16 %v349
      %v530 = vunpack.c.l.b16 %v350
      %v531 = vunpack.c.h.b16 %v350
      %v532 = vunpack.c.l.b16 %v351
      %v533 = vunpack.c.h.b16 %v351
      %v534 = vunpack.c.l.b16 %v352
      %v535 = vunpack.c.h.b16 %v352
      %v536 = vunpack.c.l.b16 %v353
      %v537 = vunpack.c.h.b16 %v353
      %v538 = vunpack.c.l.b16 %v354
      %v539 = vunpack.c.h.b16 %v354
      %v540 = vunpack.c.l.b16 %v355
      %v541 = vunpack.c.h.b16 %v355
      %v542 = vunpack.c.l.b16 %v356
      %v543 = vunpack.c.h.b16 %v356
      %v544 = vunpack.c.l.b16 %v357
      %v545 = vunpack.c.h.b16 %v357
      %v546 = vunpack.c.l.b16 %v358
      %v547 = vunpack.c.h.b16 %v358
      %v548 = vunpack.c.l.b16 %v359
      %v549 = vunpack.c.h.b16 %v359
      %v550 = vunpack.c.l.b16 %v360
      %v551 = vunpack.c.h.b16 %v360
      %v552 = vunpack.c.l.b16 %v361
      %v553 = vunpack.c.h.b16 %v361
      %v554 = vpack.c.b16 %v428, %v426
      %v555 = vpack.c.b16 %v429, %v427
      %v556 = vpack.c.b16 %v432, %v430
      %v557 = vpack.c.b16 %v433, %v431
      %v558 = vpack.c.b16 %v436, %v434
      %v559 = vpack.c.b16 %v437, %v435
      %v560 = vpack.c.b16 %v440, %v438
      %v561 = vpack.c.b16 %v441, %v439
      %v562 = vpack.c.b16 %v444, %v442
      %v563 = vpack.c.b16 %v445, %v443
      %v564 = vpack.c.b16 %v448, %v446
      %v565 = vpack.c.b16 %v449, %v447
      %v566 = vpack.c.b16 %v452, %v450
      %v567 = vpack.c.b16 %v453, %v451
      %v568 = vpack.c.b16 %v456, %v454
      %v569 = vpack.c.b16 %v457, %v455
      %v570 = vpack.c.b16 %v460, %v458
      %v571 = vpack.c.b16 %v461, %v459
      %v572 = vpack.c.b16 %v464, %v462
      %v573 = vpack.c.b16 %v465, %v463
      %v574 = vpack.c.b16 %v468, %v466
      %v575 = vpack.c.b16 %v469, %v467
      %v576 = vpack.c.b16 %v472, %v470
      %v577 = vpack.c.b16 %v473, %v471
      %v578 = vpack.c.b16 %v476, %v474
      %v579 = vpack.c.b16 %v477, %v475
      %v580 = vpack.c.b16 %v480, %v478
      %v581 = vpack.c.b16 %v481, %v479
      %v582 = vpack.c.b16 %v484, %v482
      %v583 = vpack.c.b16 %v485, %v483
      %v584 = vpack.c.b16 %v488, %v486
      %v585 = vpack.c.b16 %v489, %v487
      %v586 = vpack.c.b16 %v492, %v490
      %v587 = vpack.c.b16 %v493, %v491
      %v588 = vpack.c.b16 %v496, %v494
      %v589 = vpack.c.b16 %v497, %v495
      %v590 = vpack.c.b16 %v500, %v498
      %v591 = vpack.c.b16 %v501, %v499
      %v592 = vpack.c.b16 %v504, %v502
      %v593 = vpack.c.b16 %v505, %v503
      %v594 = vpack.c.b16 %v508, %v506
      %v595 = vpack.c.b16 %v509, %v507
      %v596 = vpack.c.b16 %v512, %v510
      %v597 = vpack.c.b16 %v513, %v511
      %v598 = vpack.c.b16 %v516, %v514
      %v599 = vpack.c.b16 %v517, %v515
      %v600 = vpack.c.b16 %v520, %v518
      %v601 = vpack.c.b16 %v521, %v519
      %v602 = vpack.c.b16 %v524, %v522
      %v603 = vpack.c.b16 %v525, %v523
      %v604 = vpack.c.b16 %v528, %v526
      %v605 = vpack.c.b16 %v529, %v527
      %v606 = vpack.c.b16 %v532, %v530
      %v607 = vpack.c.b16 %v533, %v531
      %v608 = vpack.c.b16 %v536, %v534
      %v609 = vpack.c.b16 %v537, %v535
      %v610 = vpack.c.b16 %v540, %v538
      %v611 = vpack.c.b16 %v541, %v539
      %v612 = vpack.c.b16 %v544, %v542
      %v613 = vpack.c.b16 %v545, %v543
      %v614 = vpack.c.b16 %v548, %v546
      %v615 = vpack.c.b16 %v549, %v547
      %v616 = vpack.c.b16 %v552, %v550
      %v617 = vpack.c.b16 %v553, %v551
      %682 = vmatprep.subr.bf16.mxu0 %v569
      %683 = vmatpush1.bf16.msra.mxu0 %v568
      %684 = vmatprep.subr.bf16.mxu0 %v567
      %685 = vmatpush1.bf16.msra.mxu0 %v566
      %686 = vmatprep.subr.bf16.mxu0 %v565
      %687 = vmatpush1.bf16.msra.mxu0 %v564
      %688 = vmatprep.subr.bf16.mxu0 %v563
      %689 = vmatpush1.bf16.msra.mxu0 %v562
      %690 = vmatprep.subr.bf16.mxu0 %v561
      %691 = vmatpush1.bf16.msra.mxu0 %v560
      %692 = vmatprep.subr.bf16.mxu0 %v559
      %693 = vmatpush1.bf16.msra.mxu0 %v558
      %694 = vmatprep.subr.bf16.mxu0 %v557
      %695 = vmatpush1.bf16.msra.mxu0 %v556
      %696 = vmatprep.subr.bf16.mxu0 %v555
      %697 = vmatpush1.bf16.msra.mxu0 %v554
      %698 = vmatprep.subr.bf16.mxu0 %v585
      %699 = vmatpush2.bf16.msra.mxu0 %v584
      %700 = vmatprep.subr.bf16.mxu0 %v583
      %701 = vmatpush2.bf16.msra.mxu0 %v582
      %702 = vmatprep.subr.bf16.mxu0 %v581
      %703 = vmatpush2.bf16.msra.mxu0 %v580
      %704 = vmatprep.subr.bf16.mxu0 %v579
      %705 = vmatpush2.bf16.msra.mxu0 %v578
      %706 = vmatprep.subr.bf16.mxu0 %v577
      %707 = vmatpush2.bf16.msra.mxu0 %v576
      %708 = vmatprep.subr.bf16.mxu0 %v575
      %709 = vmatpush2.bf16.msra.mxu0 %v574
      %710 = vmatprep.subr.bf16.mxu0 %v573
      %711 = vmatpush2.bf16.msra.mxu0 %v572
      %712 = vmatprep.subr.bf16.mxu0 %v571
      %713 = vmatpush2.bf16.msra.mxu0 %v570
      %714 = vmatprep.mubr.bf16.mxu0 %v295
      %715 = vmatmul.mubr.bf16.gmra.mxu0 %v294
      %v716 = vpop.f32.mrf.mxu0
      %v717 = vadd.f32 0.0, %v716
      %v718 = vpop.f32.mrf.mxu0
      %v719 = vadd.f32 0.0, %v718
      %v720 = vpop.f32.mrf.mxu0
      %v721 = vpop.f32.mrf.mxu0
      %722 = vdwg.mxu0
      %723 = vmatprep.subr.bf16.mxu0 %v601
      %724 = vmatpush1.bf16.msra.mxu0 %v600
      %725 = vmatprep.subr.bf16.mxu0 %v599
      %726 = vmatpush1.bf16.msra.mxu0 %v598
      %727 = vmatprep.subr.bf16.mxu0 %v597
      %728 = vmatpush1.bf16.msra.mxu0 %v596
      %729 = vmatprep.subr.bf16.mxu0 %v595
      %730 = vmatpush1.bf16.msra.mxu0 %v594
      %731 = vmatprep.subr.bf16.mxu0 %v593
      %732 = vmatpush1.bf16.msra.mxu0 %v592
      %733 = vmatprep.subr.bf16.mxu0 %v591
      %734 = vmatpush1.bf16.msra.mxu0 %v590
      %735 = vmatprep.subr.bf16.mxu0 %v589
      %736 = vmatpush1.bf16.msra.mxu0 %v588
      %737 = vmatprep.subr.bf16.mxu0 %v587
      %738 = vmatpush1.bf16.msra.mxu0 %v586
      %739 = vmatprep.subr.bf16.mxu0 %v617
      %740 = vmatpush2.bf16.msra.mxu0 %v616
      %741 = vmatprep.subr.bf16.mxu0 %v615
      %742 = vmatpush2.bf16.msra.mxu0 %v614
      %743 = vmatprep.subr.bf16.mxu0 %v613
      %744 = vmatpush2.bf16.msra.mxu0 %v612
      %745 = vmatprep.subr.bf16.mxu0 %v611
      %746 = vmatpush2.bf16.msra.mxu0 %v610
      %747 = vmatprep.subr.bf16.mxu0 %v609
      %748 = vmatpush2.bf16.msra.mxu0 %v608
      %749 = vmatprep.subr.bf16.mxu0 %v607
      %750 = vmatpush2.bf16.msra.mxu0 %v606
      %751 = vmatprep.subr.bf16.mxu0 %v605
      %752 = vmatpush2.bf16.msra.mxu0 %v604
      %753 = vmatprep.subr.bf16.mxu0 %v603
      %754 = vmatpush2.bf16.msra.mxu0 %v602
      %755 = vmatprep.mubr.bf16.mxu0 %v297
      %756 = vmatmul.mubr.bf16.gmra.mxu0 %v296
      %v757 = vpop.f32.mrf.mxu0
      %v758 = vadd.f32 %v717, %v757
      %v759 = vpop.f32.mrf.mxu0
      %v760 = vadd.f32 %v719, %v759
      %v761 = vpop.f32.mrf.mxu0
      %v762 = vpop.f32.mrf.mxu0
      %763 = vdwg.mxu0
      %v764 = vxor.u32 %v758, 2147483648
      %v765 = vxor.u32 %v760, 2147483648
      %v766 = vmul.f32 %v764, 1.442695
      %v767 = vpow.pop %v766
      %v768 = vmul.f32 %v765, 1.442695
      %v769 = vpow.pop %v768
      %v770 = vadd.f32 %v767, 1.0
      %v771 = vadd.f32 %v769, 1.0
      %v772 = vrcp.pop %v770
      %v773 = vmul.f32 1.0, %v772
      %v774 = vrcp.pop %v771
      %v775 = vmul.f32 1.0, %v774
      %v776 = vlaneseq
      %v777 = vshrl.u32 %v776, 7
      %v778 = vsub.s32 0, %v777
      %v779 = vrot.slane %v773, %v778
      %v780 = vlaneseq
      %v781 = vshrl.u32 %v780, 7
      %v782 = vsub.s32 0, %v781
      %v783 = vrot.slane %v775, %v782
      %v786 = vcombine.low %v779, %v783
      %v788 = vmul.f32 %v198, %v786
      %v789 = vadd.f32 %v198, %v788
      %790 = vst [vmem:[%s197] sm:$0xff] %v789
      %p791 = scmp.lt.s32.totalorder %s15, 1
      %s792 = scalar_select %p791, %s15, 1
      %s793 = smul.addr %s792, 2
      %s794 = smul.addr %s793, 4
      %s795 = scalar_lea.vmem %s4, %s794
      // Predicated region
      $region37: #{_lambda_.14} parent=35 // pred_check
        %p796 = pneg %p122
      $region38: #{_lambda_.14} parent=35 // pred_check_branch
        %798 = sbr.rel (%p796) target = $region40
      $region39: #{_lambda_.14} parent=35 // pred_region
        _
      $region40: #{_lambda_.14} parent=35 // pred_fallthru
        _
    $region36: #{_lambda_.14} parent=5 // pred_fallthru
      _
    %p799 = scmp.le.s32.totalorder 2, %s10
    // Predicated region
    $region41: #{_lambda_.14} parent=5 // pred_check
      %p800 = pneg %p799
    $region42: #{_lambda_.14} parent=5 // pred_check_branch
      %802 = sbr.rel (%p800) target = $region44
    $region43: #{_lambda_.14} parent=5 // pred_region
      %s803 = ssub.s32 %s10, 2
      // Predicated region
      $region45: #{_lambda_.14} parent=43 // pred_check
        %p804 = pneg %p128
      $region46: #{_lambda_.14} parent=43 // pred_check_branch
        %806 = sbr.rel (%p804) target = $region48
      $region47: #{_lambda_.14} parent=43 // pred_region
        %p807 = scmp.lt.s32.totalorder %s16, 1
        %s808 = scalar_select %p807, %s16, 1
        %s809 = smul.addr %s808, 2
        %s810 = smul.addr %s809, 4
        %s811 = scalar_lea.vmem %s4, %s810
      $region48: #{_lambda_.14} parent=43 // pred_fallthru
        _
    $region44: #{_lambda_.14} parent=5 // pred_fallthru
      _
  $region6: #{_lambda_.14} parent=0 // loop_footer
    %s14 = sadd.s32 1, %s10
  $region7: #{_lambda_.14} parent=0 // loop_footer_branch
    %9 = sbr.rel target = $region3
  $region8: #{_lambda_.14} parent=0 // loop_exit
    _

// kernel: _lambda_.13
$region0: #{_lambda_.13}
  #allocation0 [shape = 'u32[]', space=smem, size = 0x4, offset = 0x4, fixed_abs, tag = 'smem constant byte address 0x4 - core index']
  #allocation1 [shape = 'u32[144,128]{1,0:T(1,128)}', space=vmem, size = 0x12000, scoped, tag = 'internal scratch']
  %s0 = inlined_call_operand.vmem [shape: f32[2,16,64], index: 0, kind: input, shape index: {}]
  %s1 = inlined_call_operand.vmem [shape: f32[2,16,64], index: 1, kind: input, shape index: {}]
  %s2 = inlined_call_operand.vmem [shape: bf16[2,64,32], index: 2, kind: input, shape index: {}]
  %s3 = inlined_call_operand.vmem [shape: f32[2,1,32], index: 3, kind: input, shape index: {}]
  %s4 = inlined_call_operand.vmem [shape: f32[2,16,32], index: 4, kind: input, shape index: {}]
  %s5 = inlined_call_operand.vmem [shape: f32[1,2,3,32], index: 5, kind: input, shape index: {}]
  %s6 = inlined_call_operand.vmem [shape: f32[1,2,3,32], index: 6, kind: input, shape index: {}]
  %s7 = inlined_call_operand.vmem [shape: bf16[1,2,32,32], index: 7, kind: input, shape index: {}]
  %s8 = inlined_call_operand.vmem [shape: bf16[1,2,32,32], index: 8, kind: input, shape index: {}]
  %s9 = inlined_call_operand.vmem [shape: bf16[1,2,32,32], index: 9, kind: input, shape index: {}]
  %s10 = inlined_call_operand.vmem [shape: bf16[1,2,32,32], index: 10, kind: input, shape index: {}]
  %s11 = inlined_call_operand.vmem [shape: f32[1,2,1,32], index: 11, kind: input, shape index: {}]
  %s12 = inlined_call_operand.vmem [shape: bf16[1,2,32,64], index: 12, kind: input, shape index: {}]
  %s13 = inlined_call_operand.vmem [shape: f32[1,2,1,64], index: 13, kind: input, shape index: {}]
  %s14 = inlined_call_operand.vmem [shape: bf16[1,2,64,32], index: 14, kind: input, shape index: {}]
  %s15 = inlined_call_operand.vmem [shape: f32[1,2,1,32], index: 15, kind: input, shape index: {}]
  %s16 = inlined_call_operand.vmem [shape: bf16[2,32,64], index: 16, kind: input, shape index: {}]
  %s17 = inlined_call_operand.vmem [shape: f32[2,1,64], index: 17, kind: input, shape index: {}]
  %s18 = inlined_call_operand.vmem [shape: f32[2,16,64], index: 18, kind: output, shape index: {}]
  %s19 = sld [smem:[#allocation0]]
  $region105: #{_lambda_.13} parent=0
    _
  %s21 = ssub.s32 1, %s19
  %s22 = scalar_select 0, %s21, %s19
  loop: start=0, step=1, limit=4
  $region2: #{_lambda_.13} parent=0 // loop_pre_header
    _
  $region3: #{_lambda_.13} parent=0 // loop_header
    %s24 = sphi 0, %s28
    %p25 = scmp.ge.s32.totalorder %s24, 4
    %s34 = sphi 0, %s36
    %s37 = sphi 0, %s34
    %s38 = sphi 0, %s37
    %s54 = sphi 0, %s38
    %s60 = sphi 0, %s62
    %s63 = sphi 0, %s60
    %s64 = sphi 0, %s63
    %s80 = sphi 0, %s64
    %s84 = sphi 0, %s84
    %s86 = sphi 0, %s84
    %s87 = sphi 0, %s86
    %s101 = sphi 0, %s87
    %s105 = sphi 0, %s105
    %s107 = sphi 0, %s105
    %s108 = sphi 0, %s107
    %s122 = sphi 0, %s108
    %s126 = sphi 0, %s126
    %s128 = sphi 0, %s126
    %s129 = sphi 0, %s128
    %s143 = sphi 0, %s129
    %s147 = sphi 0, %s147
    %s149 = sphi 0, %s147
    %s150 = sphi 0, %s149
    %s164 = sphi 0, %s150
    %s168 = sphi 0, %s168
    %s170 = sphi 0, %s168
    %s171 = sphi 0, %s170
    %s185 = sphi 0, %s171
    %s189 = sphi 0, %s189
    %s191 = sphi 0, %s189
    %s192 = sphi 0, %s191
    %s206 = sphi 0, %s192
    %s210 = sphi 0, %s210
    %s212 = sphi 0, %s210
    %s213 = sphi 0, %s212
    %s227 = sphi 0, %s213
    %s231 = sphi 0, %s231
    %s233 = sphi 0, %s231
    %s234 = sphi 0, %s233
    %s248 = sphi 0, %s234
    %s252 = sphi 0, %s252
    %s254 = sphi 0, %s252
    %s255 = sphi 0, %s254
    %s269 = sphi 0, %s255
    %s273 = sphi 0, %s273
    %s275 = sphi 0, %s273
    %s276 = sphi 0, %s275
    %s290 = sphi 0, %s276
    %s294 = sphi 0, %s294
    %s296 = sphi 0, %s294
    %s297 = sphi 0, %s296
    %s311 = sphi 0, %s297
    %s315 = sphi 0, %s315
    %s317 = sphi 0, %s315
    %s318 = sphi 0, %s317
    %s332 = sphi 0, %s318
    %s336 = sphi 0, %s336
    %s338 = sphi 0, %s336
    %s339 = sphi 0, %s338
    %s353 = sphi 0, %s339
    %s357 = sphi 0, %s357
    %s359 = sphi 0, %s357
    %s360 = sphi 0, %s359
    %s374 = sphi 0, %s360
    %s378 = sphi 0, %s378
    %s380 = sphi 0, %s378
    %s381 = sphi 0, %s380
    %s395 = sphi 0, %s381
    %s399 = sphi 0, %s399
    %s401 = sphi 0, %s399
    %s402 = sphi 0, %s401
    %s416 = sphi 0, %s402
    %s422 = sphi 0, %s424
    %s425 = sphi 0, %s422
    %s426 = sphi 0, %s425
    %s442 = sphi 0, %s426
  $region4: #{_lambda_.13} parent=0 // loop_header_branch
    %27 = sbr.rel (%p25) target = $region8
  $region5: #{_lambda_.13} parent=0 // loop_body
    %s29 = ssub.s32 %s24, 1
    %s30 = ssub.s32 %s24, 2
    %s31 = sadd.s32 %s24, 1
    %s32 = ssub.s32 %s24, %s31
    %p33 = scmp.eq.s32.totalorder %s32, 0
    %s35 = sadd.s32 %s34, 1
    %s36 = scalar_select %p33, %s34, %s35
    %p39 = pneg %p33
    %p40 = scmp.eq.s32.totalorder %s24, 1
    %p41 = por %p39, %p40
    %p42 = scmp.ne.s32.totalorder %s34, %s37
    %p43 = scmp.eq.s32.totalorder %s24, 0
    %p44 = por %p42, %p43
    %p45 = scmp.ne.s32.totalorder %s34, %s37
    %p46 = scmp.eq.s32.totalorder %s29, 1
    %p47 = por %p45, %p46
    %p48 = scmp.ne.s32.totalorder %s37, %s38
    %p49 = scmp.eq.s32.totalorder %s29, 0
    %p50 = por %p48, %p49
    %p51 = scmp.ne.s32.totalorder %s37, %s38
    %p52 = scmp.eq.s32.totalorder %s30, 1
    %p53 = por %p51, %p52
    %p55 = scmp.ne.s32.totalorder %s38, %s54
    %p56 = scmp.eq.s32.totalorder %s30, 0
    %p57 = por %p55, %p56
    %s58 = ssub.s32 %s24, %s31
    %p59 = scmp.eq.s32.totalorder %s58, 0
    %s61 = sadd.s32 %s60, 1
    %s62 = scalar_select %p59, %s60, %s61
    %p65 = pneg %p59
    %p66 = scmp.eq.s32.totalorder %s24, 1
    %p67 = por %p65, %p66
    %p68 = scmp.ne.s32.totalorder %s60, %s63
    %p69 = scmp.eq.s32.totalorder %s24, 0
    %p70 = por %p68, %p69
    %p71 = scmp.ne.s32.totalorder %s60, %s63
    %p72 = scmp.eq.s32.totalorder %s29, 1
    %p73 = por %p71, %p72
    %p74 = scmp.ne.s32.totalorder %s63, %s64
    %p75 = scmp.eq.s32.totalorder %s29, 0
    %p76 = por %p74, %p75
    %p77 = scmp.ne.s32.totalorder %s63, %s64
    %p78 = scmp.eq.s32.totalorder %s30, 1
    %p79 = por %p77, %p78
    %p81 = scmp.ne.s32.totalorder %s64, %s80
    %p82 = scmp.eq.s32.totalorder %s30, 0
    %p83 = por %p81, %p82
    %s85 = sadd.s32 %s84, 1
    %p88 = scmp.eq.s32.totalorder %s24, 1
    %p89 = scmp.ne.s32.totalorder %s84, %s86
    %p90 = scmp.eq.s32.totalorder %s24, 0
    %p91 = por %p89, %p90
    %p92 = scmp.ne.s32.totalorder %s84, %s86
    %p93 = scmp.eq.s32.totalorder %s29, 1
    %p94 = por %p92, %p93
    %p95 = scmp.ne.s32.totalorder %s86, %s87
    %p96 = scmp.eq.s32.totalorder %s29, 0
    %p97 = por %p95, %p96
    %p98 = scmp.ne.s32.totalorder %s86, %s87
    %p99 = scmp.eq.s32.totalorder %s30, 1
    %p100 = por %p98, %p99
    %p102 = scmp.ne.s32.totalorder %s87, %s101
    %p103 = scmp.eq.s32.totalorder %s30, 0
    %p104 = por %p102, %p103
    %s106 = sadd.s32 %s105, 1
    %p109 = scmp.eq.s32.totalorder %s24, 1
    %p110 = scmp.ne.s32.totalorder %s105, %s107
    %p111 = scmp.eq.s32.totalorder %s24, 0
    %p112 = por %p110, %p111
    %p113 = scmp.ne.s32.totalorder %s105, %s107
    %p114 = scmp.eq.s32.totalorder %s29, 1
    %p115 = por %p113, %p114
    %p116 = scmp.ne.s32.totalorder %s107, %s108
    %p117 = scmp.eq.s32.totalorder %s29, 0
    %p118 = por %p116, %p117
    %p119 = scmp.ne.s32.totalorder %s107, %s108
    %p120 = scmp.eq.s32.totalorder %s30, 1
    %p121 = por %p119, %p120
    %p123 = scmp.ne.s32.totalorder %s108, %s122
    %p124 = scmp.eq.s32.totalorder %s30, 0
    %p125 = por %p123, %p124
    %s127 = sadd.s32 %s126, 1
    %p130 = scmp.eq.s32.totalorder %s24, 1
    %p131 = scmp.ne.s32.totalorder %s126, %s128
    %p132 = scmp.eq.s32.totalorder %s24, 0
    %p133 = por %p131, %p132
    %p134 = scmp.ne.s32.totalorder %s126, %s128
    %p135 = scmp.eq.s32.totalorder %s29, 1
    %p136 = por %p134, %p135
    %p137 = scmp.ne.s32.totalorder %s128, %s129
    %p138 = scmp.eq.s32.totalorder %s29, 0
    %p139 = por %p137, %p138
    %p140 = scmp.ne.s32.totalorder %s128, %s129
    %p141 = scmp.eq.s32.totalorder %s30, 1
    %p142 = por %p140, %p141
    %p144 = scmp.ne.s32.totalorder %s129, %s143
    %p145 = scmp.eq.s32.totalorder %s30, 0
    %p146 = por %p144, %p145
    %s148 = sadd.s32 %s147, 1
    %p151 = scmp.eq.s32.totalorder %s24, 1
    %p152 = scmp.ne.s32.totalorder %s147, %s149
    %p153 = scmp.eq.s32.totalorder %s24, 0
    %p154 = por %p152, %p153
    %p155 = scmp.ne.s32.totalorder %s147, %s149
    %p156 = scmp.eq.s32.totalorder %s29, 1
    %p157 = por %p155, %p156
    %p158 = scmp.ne.s32.totalorder %s149, %s150
    %p159 = scmp.eq.s32.totalorder %s29, 0
    %p160 = por %p158, %p159
    %p161 = scmp.ne.s32.totalorder %s149, %s150
    %p162 = scmp.eq.s32.totalorder %s30, 1
    %p163 = por %p161, %p162
    %p165 = scmp.ne.s32.totalorder %s150, %s164
    %p166 = scmp.eq.s32.totalorder %s30, 0
    %p167 = por %p165, %p166
    %s169 = sadd.s32 %s168, 1
    %p172 = scmp.eq.s32.totalorder %s24, 1
    %p173 = scmp.ne.s32.totalorder %s168, %s170
    %p174 = scmp.eq.s32.totalorder %s24, 0
    %p175 = por %p173, %p174
    %p176 = scmp.ne.s32.totalorder %s168, %s170
    %p177 = scmp.eq.s32.totalorder %s29, 1
    %p178 = por %p176, %p177
    %p179 = scmp.ne.s32.totalorder %s170, %s171
    %p180 = scmp.eq.s32.totalorder %s29, 0
    %p181 = por %p179, %p180
    %p182 = scmp.ne.s32.totalorder %s170, %s171
    %p183 = scmp.eq.s32.totalorder %s30, 1
    %p184 = por %p182, %p183
    %p186 = scmp.ne.s32.totalorder %s171, %s185
    %p187 = scmp.eq.s32.totalorder %s30, 0
    %p188 = por %p186, %p187
    %s190 = sadd.s32 %s189, 1
    %p193 = scmp.eq.s32.totalorder %s24, 1
    %p194 = scmp.ne.s32.totalorder %s189, %s191
    %p195 = scmp.eq.s32.totalorder %s24, 0
    %p196 = por %p194, %p195
    %p197 = scmp.ne.s32.totalorder %s189, %s191
    %p198 = scmp.eq.s32.totalorder %s29, 1
    %p199 = por %p197, %p198
    %p200 = scmp.ne.s32.totalorder %s191, %s192
    %p201 = scmp.eq.s32.totalorder %s29, 0
    %p202 = por %p200, %p201
    %p203 = scmp.ne.s32.totalorder %s191, %s192
    %p204 = scmp.eq.s32.totalorder %s30, 1
    %p205 = por %p203, %p204
    %p207 = scmp.ne.s32.totalorder %s192, %s206
    %p208 = scmp.eq.s32.totalorder %s30, 0
    %p209 = por %p207, %p208
    %s211 = sadd.s32 %s210, 1
    %p214 = scmp.eq.s32.totalorder %s24, 1
    %p215 = scmp.ne.s32.totalorder %s210, %s212
    %p216 = scmp.eq.s32.totalorder %s24, 0
    %p217 = por %p215, %p216
    %p218 = scmp.ne.s32.totalorder %s210, %s212
    %p219 = scmp.eq.s32.totalorder %s29, 1
    %p220 = por %p218, %p219
    %p221 = scmp.ne.s32.totalorder %s212, %s213
    %p222 = scmp.eq.s32.totalorder %s29, 0
    %p223 = por %p221, %p222
    %p224 = scmp.ne.s32.totalorder %s212, %s213
    %p225 = scmp.eq.s32.totalorder %s30, 1
    %p226 = por %p224, %p225
    %p228 = scmp.ne.s32.totalorder %s213, %s227
    %p229 = scmp.eq.s32.totalorder %s30, 0
    %p230 = por %p228, %p229
    %s232 = sadd.s32 %s231, 1
    %p235 = scmp.eq.s32.totalorder %s24, 1
    %p236 = scmp.ne.s32.totalorder %s231, %s233
    %p237 = scmp.eq.s32.totalorder %s24, 0
    %p238 = por %p236, %p237
    %p239 = scmp.ne.s32.totalorder %s231, %s233
    %p240 = scmp.eq.s32.totalorder %s29, 1
    %p241 = por %p239, %p240
    %p242 = scmp.ne.s32.totalorder %s233, %s234
    %p243 = scmp.eq.s32.totalorder %s29, 0
    %p244 = por %p242, %p243
    %p245 = scmp.ne.s32.totalorder %s233, %s234
    %p246 = scmp.eq.s32.totalorder %s30, 1
    %p247 = por %p245, %p246
    %p249 = scmp.ne.s32.totalorder %s234, %s248
    %p250 = scmp.eq.s32.totalorder %s30, 0
    %p251 = por %p249, %p250
    %s253 = sadd.s32 %s252, 1
    %p256 = scmp.eq.s32.totalorder %s24, 1
    %p257 = scmp.ne.s32.totalorder %s252, %s254
    %p258 = scmp.eq.s32.totalorder %s24, 0
    %p259 = por %p257, %p258
    %p260 = scmp.ne.s32.totalorder %s252, %s254
    %p261 = scmp.eq.s32.totalorder %s29, 1
    %p262 = por %p260, %p261
    %p263 = scmp.ne.s32.totalorder %s254, %s255
    %p264 = scmp.eq.s32.totalorder %s29, 0
    %p265 = por %p263, %p264
    %p266 = scmp.ne.s32.totalorder %s254, %s255
    %p267 = scmp.eq.s32.totalorder %s30, 1
    %p268 = por %p266, %p267
    %p270 = scmp.ne.s32.totalorder %s255, %s269
    %p271 = scmp.eq.s32.totalorder %s30, 0
    %p272 = por %p270, %p271
    %s274 = sadd.s32 %s273, 1
    %p277 = scmp.eq.s32.totalorder %s24, 1
    %p278 = scmp.ne.s32.totalorder %s273, %s275
    %p279 = scmp.eq.s32.totalorder %s24, 0
    %p280 = por %p278, %p279
    %p281 = scmp.ne.s32.totalorder %s273, %s275
    %p282 = scmp.eq.s32.totalorder %s29, 1
    %p283 = por %p281, %p282
    %p284 = scmp.ne.s32.totalorder %s275, %s276
    %p285 = scmp.eq.s32.totalorder %s29, 0
    %p286 = por %p284, %p285
    %p287 = scmp.ne.s32.totalorder %s275, %s276
    %p288 = scmp.eq.s32.totalorder %s30, 1
    %p289 = por %p287, %p288
    %p291 = scmp.ne.s32.totalorder %s276, %s290
    %p292 = scmp.eq.s32.totalorder %s30, 0
    %p293 = por %p291, %p292
    %s295 = sadd.s32 %s294, 1
    %p298 = scmp.eq.s32.totalorder %s24, 1
    %p299 = scmp.ne.s32.totalorder %s294, %s296
    %p300 = scmp.eq.s32.totalorder %s24, 0
    %p301 = por %p299, %p300
    %p302 = scmp.ne.s32.totalorder %s294, %s296
    %p303 = scmp.eq.s32.totalorder %s29, 1
    %p304 = por %p302, %p303
    %p305 = scmp.ne.s32.totalorder %s296, %s297
    %p306 = scmp.eq.s32.totalorder %s29, 0
    %p307 = por %p305, %p306
    %p308 = scmp.ne.s32.totalorder %s296, %s297
    %p309 = scmp.eq.s32.totalorder %s30, 1
    %p310 = por %p308, %p309
    %p312 = scmp.ne.s32.totalorder %s297, %s311
    %p313 = scmp.eq.s32.totalorder %s30, 0
    %p314 = por %p312, %p313
    %s316 = sadd.s32 %s315, 1
    %p319 = scmp.eq.s32.totalorder %s24, 1
    %p320 = scmp.ne.s32.totalorder %s315, %s317
    %p321 = scmp.eq.s32.totalorder %s24, 0
    %p322 = por %p320, %p321
    %p323 = scmp.ne.s32.totalorder %s315, %s317
    %p324 = scmp.eq.s32.totalorder %s29, 1
    %p325 = por %p323, %p324
    %p326 = scmp.ne.s32.totalorder %s317, %s318
    %p327 = scmp.eq.s32.totalorder %s29, 0
    %p328 = por %p326, %p327
    %p329 = scmp.ne.s32.totalorder %s317, %s318
    %p330 = scmp.eq.s32.totalorder %s30, 1
    %p331 = por %p329, %p330
    %p333 = scmp.ne.s32.totalorder %s318, %s332
    %p334 = scmp.eq.s32.totalorder %s30, 0
    %p335 = por %p333, %p334
    %s337 = sadd.s32 %s336, 1
    %p340 = scmp.eq.s32.totalorder %s24, 1
    %p341 = scmp.ne.s32.totalorder %s336, %s338
    %p342 = scmp.eq.s32.totalorder %s24, 0
    %p343 = por %p341, %p342
    %p344 = scmp.ne.s32.totalorder %s336, %s338
    %p345 = scmp.eq.s32.totalorder %s29, 1
    %p346 = por %p344, %p345
    %p347 = scmp.ne.s32.totalorder %s338, %s339
    %p348 = scmp.eq.s32.totalorder %s29, 0
    %p349 = por %p347, %p348
    %p350 = scmp.ne.s32.totalorder %s338, %s339
    %p351 = scmp.eq.s32.totalorder %s30, 1
    %p352 = por %p350, %p351
    %p354 = scmp.ne.s32.totalorder %s339, %s353
    %p355 = scmp.eq.s32.totalorder %s30, 0
    %p356 = por %p354, %p355
    %s358 = sadd.s32 %s357, 1
    %p361 = scmp.eq.s32.totalorder %s24, 1
    %p362 = scmp.ne.s32.totalorder %s357, %s359
    %p363 = scmp.eq.s32.totalorder %s24, 0
    %p364 = por %p362, %p363
    %p365 = scmp.ne.s32.totalorder %s357, %s359
    %p366 = scmp.eq.s32.totalorder %s29, 1
    %p367 = por %p365, %p366
    %p368 = scmp.ne.s32.totalorder %s359, %s360
    %p369 = scmp.eq.s32.totalorder %s29, 0
    %p370 = por %p368, %p369
    %p371 = scmp.ne.s32.totalorder %s359, %s360
    %p372 = scmp.eq.s32.totalorder %s30, 1
    %p373 = por %p371, %p372
    %p375 = scmp.ne.s32.totalorder %s360, %s374
    %p376 = scmp.eq.s32.totalorder %s30, 0
    %p377 = por %p375, %p376
    %s379 = sadd.s32 %s378, 1
    %p382 = scmp.eq.s32.totalorder %s24, 1
    %p383 = scmp.ne.s32.totalorder %s378, %s380
    %p384 = scmp.eq.s32.totalorder %s24, 0
    %p385 = por %p383, %p384
    %p386 = scmp.ne.s32.totalorder %s378, %s380
    %p387 = scmp.eq.s32.totalorder %s29, 1
    %p388 = por %p386, %p387
    %p389 = scmp.ne.s32.totalorder %s380, %s381
    %p390 = scmp.eq.s32.totalorder %s29, 0
    %p391 = por %p389, %p390
    %p392 = scmp.ne.s32.totalorder %s380, %s381
    %p393 = scmp.eq.s32.totalorder %s30, 1
    %p394 = por %p392, %p393
    %p396 = scmp.ne.s32.totalorder %s381, %s395
    %p397 = scmp.eq.s32.totalorder %s30, 0
    %p398 = por %p396, %p397
    %s400 = sadd.s32 %s399, 1
    %p403 = scmp.eq.s32.totalorder %s24, 1
    %p404 = scmp.ne.s32.totalorder %s399, %s401
    %p405 = scmp.eq.s32.totalorder %s24, 0
    %p406 = por %p404, %p405
    %p407 = scmp.ne.s32.totalorder %s399, %s401
    %p408 = scmp.eq.s32.totalorder %s29, 1
    %p409 = por %p407, %p408
    %p410 = scmp.ne.s32.totalorder %s401, %s402
    %p411 = scmp.eq.s32.totalorder %s29, 0
    %p412 = por %p410, %p411
    %p413 = scmp.ne.s32.totalorder %s401, %s402
    %p414 = scmp.eq.s32.totalorder %s30, 1
    %p415 = por %p413, %p414
    %p417 = scmp.ne.s32.totalorder %s402, %s416
    %p418 = scmp.eq.s32.totalorder %s30, 0
    %p419 = por %p417, %p418
    %s420 = ssub.s32 %s24, %s31
    %p421 = scmp.eq.s32.totalorder %s420, 0
    %s423 = sadd.s32 %s422, 1
    %s424 = scalar_select %p421, %s422, %s423
    %p427 = pneg %p421
    %p428 = scmp.eq.s32.totalorder %s24, 1
    %p429 = por %p427, %p428
    %p430 = scmp.ne.s32.totalorder %s422, %s425
    %p431 = scmp.eq.s32.totalorder %s24, 0
    %p432 = por %p430, %p431
    %p433 = scmp.ne.s32.totalorder %s422, %s425
    %p434 = scmp.eq.s32.totalorder %s29, 1
    %p435 = por %p433, %p434
    %p436 = scmp.ne.s32.totalorder %s425, %s426
    %p437 = scmp.eq.s32.totalorder %s29, 0
    %p438 = por %p436, %p437
    %p439 = scmp.ne.s32.totalorder %s425, %s426
    %p440 = scmp.eq.s32.totalorder %s30, 1
    %p441 = por %p439, %p440
    %p443 = scmp.ne.s32.totalorder %s426, %s442
    %p444 = scmp.eq.s32.totalorder %s30, 0
    %p445 = por %p443, %p444
    %p446 = scmp.le.s32.totalorder 1, %s24
    %p447 = scmp.lt.s32.totalorder %s24, 3
    %p448 = pnand %p446, %p447
    %p449 = pneg %p448
    // Predicated region
    $region9: #{_lambda_.13} parent=5 // pred_check
      _
    $region10: #{_lambda_.13} parent=5 // pred_check_branch
      %451 = sbr.rel (%p448) target = $region12
    $region11: #{_lambda_.13} parent=5 // pred_region
      %s452 = ssub.s32 %s24, 1
      // Predicated region
      $region13: #{_lambda_.13} parent=11 // pred_check
        %p453 = pneg %p97
      $region14: #{_lambda_.13} parent=11 // pred_check_branch
        %455 = sbr.rel (%p453) target = $region16
      $region15: #{_lambda_.13} parent=11 // pred_region
        _
      $region16: #{_lambda_.13} parent=11 // pred_fallthru
        _
      // Predicated region
      $region17: #{_lambda_.13} parent=11 // pred_check
        %p456 = pneg %p118
      $region18: #{_lambda_.13} parent=11 // pred_check_branch
        %458 = sbr.rel (%p456) target = $region20
      $region19: #{_lambda_.13} parent=11 // pred_region
        _
      $region20: #{_lambda_.13} parent=11 // pred_fallthru
        _
      // Predicated region
      $region21: #{_lambda_.13} parent=11 // pred_check
        %p459 = pneg %p139
      $region22: #{_lambda_.13} parent=11 // pred_check_branch
        %461 = sbr.rel (%p459) target = $region24
      $region23: #{_lambda_.13} parent=11 // pred_region
        _
      $region24: #{_lambda_.13} parent=11 // pred_fallthru
        _
      // Predicated region
      $region25: #{_lambda_.13} parent=11 // pred_check
        %p462 = pneg %p160
      $region26: #{_lambda_.13} parent=11 // pred_check_branch
        %464 = sbr.rel (%p462) target = $region28
      $region27: #{_lambda_.13} parent=11 // pred_region
        _
      $region28: #{_lambda_.13} parent=11 // pred_fallthru
        _
      // Predicated region
      $region29: #{_lambda_.13} parent=11 // pred_check
        %p465 = pneg %p181
      $region30: #{_lambda_.13} parent=11 // pred_check_branch
        %467 = sbr.rel (%p465) target = $region32
      $region31: #{_lambda_.13} parent=11 // pred_region
        _
      $region32: #{_lambda_.13} parent=11 // pred_fallthru
        _
      // Predicated region
      $region33: #{_lambda_.13} parent=11 // pred_check
        %p468 = pneg %p202
      $region34: #{_lambda_.13} parent=11 // pred_check_branch
        %470 = sbr.rel (%p468) target = $region36
      $region35: #{_lambda_.13} parent=11 // pred_region
        _
      $region36: #{_lambda_.13} parent=11 // pred_fallthru
        _
      // Predicated region
      $region37: #{_lambda_.13} parent=11 // pred_check
        %p471 = pneg %p223
      $region38: #{_lambda_.13} parent=11 // pred_check_branch
        %473 = sbr.rel (%p471) target = $region40
      $region39: #{_lambda_.13} parent=11 // pred_region
        _
      $region40: #{_lambda_.13} parent=11 // pred_fallthru
        _
      // Predicated region
      $region41: #{_lambda_.13} parent=11 // pred_check
        %p474 = pneg %p244
      $region42: #{_lambda_.13} parent=11 // pred_check_branch
        %476 = sbr.rel (%p474) target = $region44
      $region43: #{_lambda_.13} parent=11 // pred_region
        _
      $region44: #{_lambda_.13} parent=11 // pred_fallthru
        _
      // Predicated region
      $region45: #{_lambda_.13} parent=11 // pred_check
        %p477 = pneg %p265
      $region46: #{_lambda_.13} parent=11 // pred_check_branch
        %479 = sbr.rel (%p477) target = $region48
      $region47: #{_lambda_.13} parent=11 // pred_region
        _
      $region48: #{_lambda_.13} parent=11 // pred_fallthru
        _
      // Predicated region
      $region49: #{_lambda_.13} parent=11 // pred_check
        %p480 = pneg %p286
      $region50: #{_lambda_.13} parent=11 // pred_check_branch
        %482 = sbr.rel (%p480) target = $region52
      $region51: #{_lambda_.13} parent=11 // pred_region
        _
      $region52: #{_lambda_.13} parent=11 // pred_fallthru
        _
      // Predicated region
      $region53: #{_lambda_.13} parent=11 // pred_check
        %p483 = pneg %p307
      $region54: #{_lambda_.13} parent=11 // pred_check_branch
        %485 = sbr.rel (%p483) target = $region56
      $region55: #{_lambda_.13} parent=11 // pred_region
        _
      $region56: #{_lambda_.13} parent=11 // pred_fallthru
        _
      // Predicated region
      $region57: #{_lambda_.13} parent=11 // pred_check
        %p486 = pneg %p328
      $region58: #{_lambda_.13} parent=11 // pred_check_branch
        %488 = sbr.rel (%p486) target = $region60
      $region59: #{_lambda_.13} parent=11 // pred_region
        _
      $region60: #{_lambda_.13} parent=11 // pred_fallthru
        _
      // Predicated region
      $region61: #{_lambda_.13} parent=11 // pred_check
        %p489 = pneg %p349
      $region62: #{_lambda_.13} parent=11 // pred_check_branch
        %491 = sbr.rel (%p489) target = $region64
      $region63: #{_lambda_.13} parent=11 // pred_region
        _
      $region64: #{_lambda_.13} parent=11 // pred_fallthru
        _
      // Predicated region
      $region65: #{_lambda_.13} parent=11 // pred_check
        %p492 = pneg %p370
      $region66: #{_lambda_.13} parent=11 // pred_check_branch
        %494 = sbr.rel (%p492) target = $region68
      $region67: #{_lambda_.13} parent=11 // pred_region
        _
      $region68: #{_lambda_.13} parent=11 // pred_fallthru
        _
      // Predicated region
      $region69: #{_lambda_.13} parent=11 // pred_check
        %p495 = pneg %p391
      $region70: #{_lambda_.13} parent=11 // pred_check_branch
        %497 = sbr.rel (%p495) target = $region72
      $region71: #{_lambda_.13} parent=11 // pred_region
        _
      $region72: #{_lambda_.13} parent=11 // pred_fallthru
        _
      // Predicated region
      $region73: #{_lambda_.13} parent=11 // pred_check
        %p498 = pneg %p412
      $region74: #{_lambda_.13} parent=11 // pred_check_branch
        %500 = sbr.rel (%p498) target = $region76
      $region75: #{_lambda_.13} parent=11 // pred_region
        _
      $region76: #{_lambda_.13} parent=11 // pred_fallthru
        _
    $region12: #{_lambda_.13} parent=5 // pred_fallthru
      _
    %p501 = scmp.lt.s32.totalorder %s24, 2
    // Predicated region
    $region77: #{_lambda_.13} parent=5 // pred_check
      %p502 = pneg %p501
    $region78: #{_lambda_.13} parent=5 // pred_check_branch
      %504 = sbr.rel (%p502) target = $region80
    $region79: #{_lambda_.13} parent=5 // pred_region
      // Predicated region
      $region81: #{_lambda_.13} parent=79 // pred_check
        %p505 = pneg %p44
      $region82: #{_lambda_.13} parent=79 // pred_check_branch
        %507 = sbr.rel (%p505) target = $region84
      $region83: #{_lambda_.13} parent=79 // pred_region
        %p508 = scmp.lt.s32.totalorder %s24, 1
        %s509 = scalar_select %p508, %s24, 1
        %s510 = smul.addr %s509, 2
        %s511 = smul.addr %s510, 8
        %s512 = scalar_lea.vmem %s0, %s511
      $region84: #{_lambda_.13} parent=79 // pred_fallthru
        _
      // Predicated region
      $region85: #{_lambda_.13} parent=79 // pred_check
        %p513 = pneg %p70
      $region86: #{_lambda_.13} parent=79 // pred_check_branch
        %515 = sbr.rel (%p513) target = $region88
      $region87: #{_lambda_.13} parent=79 // pred_region
        %p516 = scmp.lt.s32.totalorder %s24, 1
        %s517 = scalar_select %p516, %s24, 1
        %s518 = smul.addr %s517, 2
        %s519 = smul.addr %s518, 8
        %s520 = scalar_lea.vmem %s1, %s519
      $region88: #{_lambda_.13} parent=79 // pred_fallthru
        _
    $region80: #{_lambda_.13} parent=5 // pred_fallthru
      _
    %p521 = scmp.le.s32.totalorder 1, %s24
    %p522 = scmp.lt.s32.totalorder %s24, 3
    %p523 = pnand %p521, %p522
    %p524 = pneg %p523
    // Predicated region
    $region89: #{_lambda_.13} parent=5 // pred_check
      _
    $region90: #{_lambda_.13} parent=5 // pred_check_branch
      %526 = sbr.rel (%p523) target = $region92
    $region91: #{_lambda_.13} parent=5 // pred_region
      %s527 = ssub.s32 %s24, 1
      %p528 = scmp.lt.s32.totalorder %s29, 1
      %s529 = scalar_select %p528, %s29, 1
      %s530 = smul.addr %s529, 2
      %s531 = smul.addr %s530, 8
      %s532 = scalar_lea.vmem %s0, %s531
      %p533 = pneg %p50
      %p534 = pneg %p47
      %p535 = scmp.lt.s32.totalorder %s29, 1
      %s536 = scalar_select %p535, %s29, 1
      %s537 = smul.addr %s536, 2
      %s538 = smul.addr %s537, 8
      %s539 = scalar_lea.vmem %s1, %s538
      %p540 = pneg %p76
      %p541 = pneg %p73
      %p542 = pneg %p97
      %p543 = pneg %p94
      %p544 = pneg %p118
      %p545 = pneg %p115
      %p546 = pneg %p139
      %p547 = pneg %p136
      %p548 = pneg %p160
      %p549 = pneg %p157
      %p550 = pneg %p181
      %p551 = pneg %p178
      %p552 = pneg %p202
      %p553 = pneg %p199
      %p554 = pneg %p223
      %p555 = pneg %p220
      %p556 = pneg %p244
      %p557 = pneg %p241
      %p558 = pneg %p265
      %p559 = pneg %p262
      %p560 = pneg %p286
      %p561 = pneg %p283
      %p562 = pneg %p307
      %p563 = pneg %p304
      %p564 = pneg %p328
      %p565 = pneg %p325
      %p566 = pneg %p349
      %p567 = pneg %p346
      %p568 = pneg %p370
      %p569 = pneg %p367
      %p570 = pneg %p391
      %p571 = pneg %p388
      %p572 = pneg %p412
      %p573 = pneg %p409
      %p574 = pneg %p438
      %p575 = pneg %p435
      %p576 = scmp.lt.s32.totalorder %s29, 1
      %s577 = scalar_select %p576, %s29, 1
      %s578 = smul.addr %s577, 2
      %s579 = smul.addr %s578, 8
      %s580 = scalar_lea.vmem %s18, %s579
      %p581 = scmp.lt.s32.totalorder %s29, 1
      %s582 = scalar_select %p581, %s29, 1
      %s583 = smul.addr %s582, 2
      %s584 = smul.addr %s583, 8
      %s585 = scalar_lea.vmem %s0, %s584
      %p586 = scmp.lt.s32.totalorder %s29, 1
      %s587 = scalar_select %p586, %s29, 1
      %s588 = smul.addr %s587, 2
      %s589 = smul.addr %s588, 8
      %s590 = scalar_lea.vmem %s1, %s589
      %p591 = scmp.lt.s32.totalorder %s29, 1
      %s592 = scalar_select %p591, %s29, 1
      %s593 = smul.addr %s592, 2
      %s594 = smul.addr %s593, 8
      %s595 = scalar_lea.vmem %s18, %s594
      %v597 = vld [vmem:[%s585] sm:$0xff]
      %v598 = vld [vmem:[%s585 + $0x8] sm:$0xff]
      %v599 = vld [vmem:[%s2] sm:$0xf]
      %v600 = vld [vmem:[%s2 + $0x4] sm:$0xf]
      %v601 = vld [vmem:[%s2 + $0x8] sm:$0xf]
      %v602 = vld [vmem:[%s2 + $0xc] sm:$0xf]
      %v603 = vld [vmem:[%s2 + $0x10] sm:$0xf]
      %v604 = vld [vmem:[%s2 + $0x14] sm:$0xf]
      %v605 = vld [vmem:[%s2 + $0x18] sm:$0xf]
      %v606 = vld [vmem:[%s2 + $0x1c] sm:$0xf]
      %v607 = vpack.c.bf16 %v598, %v597
      %v608 = vld [vmem:[%s3] sm:$0x1]
      %v610 = vlaneseq
      %v611 = vshrl.u32 %v610, 7
      %v612 = vsub.s32 0, %v611
      %v613 = vrot.slane %v608, %v612
      %v623 = vunpack.c.l.b16 %v599
      %v624 = vunpack.c.l.b16 %v600
      %v625 = vunpack.c.l.b16 %v601
      %v626 = vunpack.c.l.b16 %v602
      %v627 = vunpack.c.l.b16 %v603
      %v628 = vunpack.c.l.b16 %v604
      %v629 = vunpack.c.l.b16 %v605
      %v630 = vunpack.c.l.b16 %v606
      %v631 = vpack.c.b16 %v624, %v623
      %v632 = vpack.c.b16 %v626, %v625
      %v633 = vpack.c.b16 %v628, %v627
      %v634 = vpack.c.b16 %v630, %v629
      %vm639 = vcmask 523264
      %v641 = vsel %vm639, %v607, 0
      %643 = vmatprep.subr.bf16.mxu0 0
      %644 = vmatpush1.bf16.msra.mxu0 0
      %645 = vmatprep.subr.bf16.mxu0 0
      %646 = vmatpush1.bf16.msra.mxu0 0
      %647 = vmatprep.subr.bf16.mxu0 0
      %648 = vmatpush1.bf16.msra.mxu0 0
      %649 = vmatprep.subr.bf16.mxu0 0
      %650 = vmatpush1.bf16.msra.mxu0 0
      %651 = vmatprep.subr.bf16.mxu0 0
      %652 = vmatpush1.bf16.msra.mxu0 %v634
      %653 = vmatprep.subr.bf16.mxu0 0
      %654 = vmatpush1.bf16.msra.mxu0 %v633
      %655 = vmatprep.subr.bf16.mxu0 0
      %656 = vmatpush1.bf16.msra.mxu0 %v632
      %657 = vmatprep.subr.bf16.mxu0 0
      %658 = vmatpush1.bf16.msra.mxu0 %v631
      %659 = vmatprep.subr.bf16.mxu0 0
      %660 = vmatpush2.bf16.msra.mxu0 0
      %661 = vmatprep.subr.bf16.mxu0 0
      %662 = vmatpush2.bf16.msra.mxu0 0
      %663 = vmatprep.subr.bf16.mxu0 0
      %664 = vmatpush2.bf16.msra.mxu0 0
      %665 = vmatprep.subr.bf16.mxu0 0
      %666 = vmatpush2.bf16.msra.mxu0 0
      %667 = vmatprep.subr.bf16.mxu0 0
      %668 = vmatpush2.bf16.msra.mxu0 0
      %669 = vmatprep.subr.bf16.mxu0 0
      %670 = vmatpush2.bf16.msra.mxu0 0
      %671 = vmatprep.subr.bf16.mxu0 0
      %672 = vmatpush2.bf16.msra.mxu0 0
      %673 = vmatprep.subr.bf16.mxu0 0
      %674 = vmatpush2.bf16.msra.mxu0 0
      %675 = vmatprep.mubr.bf16.mxu0 0
      %676 = vmatmul.mubr.bf16.gmra.mxu0 %v641
      %v677 = vpop.f32.mrf.mxu0
      %v678 = vadd.f32 %v613, %v677
      %v679 = vpop.f32.mrf.mxu0
      %v680 = vpop.f32.mrf.mxu0
      %v681 = vadd.f32 %v613, %v680
      %v682 = vpop.f32.mrf.mxu0
      %683 = vdwg.mxu0
      %v684 = vld [vmem:[%s4] sm:$0xff]
      %v685 = vld [vmem:[%s4 + $0x8] sm:$0xff]
      %v686 = vadd.f32 %v678, %v684
      %v687 = vadd.f32 %v681, %v685
      %v688 = vld [vmem:[%s590] sm:$0xff]
      %v689 = vld [vmem:[%s590 + $0x8] sm:$0xff]
      %s690 = scalar_lea.vmem %s2, 32
      %v691 = vld [vmem:[%s690] sm:$0xf]
      %v692 = vld [vmem:[%s690 + $0x4] sm:$0xf]
      %v693 = vld [vmem:[%s690 + $0x8] sm:$0xf]
      %v694 = vld [vmem:[%s690 + $0xc] sm:$0xf]
      %v695 = vld [vmem:[%s690 + $0x10] sm:$0xf]
      %v696 = vld [vmem:[%s690 + $0x14] sm:$0xf]
      %v697 = vld [vmem:[%s690 + $0x18] sm:$0xf]
      %v698 = vld [vmem:[%s690 + $0x1c] sm:$0xf]
      %v699 = vpack.c.bf16 %v689, %v688
      %s700 = scalar_lea.vmem %s3, 1
      %v701 = vld [vmem:[%s700] sm:$0x1]
      %v703 = vlaneseq
      %v704 = vshrl.u32 %v703, 7
      %v705 = vsub.s32 0, %v704
      %v706 = vrot.slane %v701, %v705
      %v716 = vunpack.c.l.b16 %v691
      %v717 = vunpack.c.l.b16 %v692
      %v718 = vunpack.c.l.b16 %v693
      %v719 = vunpack.c.l.b16 %v694
      %v720 = vunpack.c.l.b16 %v695
      %v721 = vunpack.c.l.b16 %v696
      %v722 = vunpack.c.l.b16 %v697
      %v723 = vunpack.c.l.b16 %v698
      %v724 = vpack.c.b16 %v717, %v716
      %v725 = vpack.c.b16 %v719, %v718
      %v726 = vpack.c.b16 %v721, %v720
      %v727 = vpack.c.b16 %v723, %v722
      %v733 = vsel %vm639, %v699, 0
      %735 = vmatprep.subr.bf16.mxu0 0
      %736 = vmatpush1.bf16.msra.mxu0 0
      %737 = vmatprep.subr.bf16.mxu0 0
      %738 = vmatpush1.bf16.msra.mxu0 0
      %739 = vmatprep.subr.bf16.mxu0 0
      %740 = vmatpush1.bf16.msra.mxu0 0
      %741 = vmatprep.subr.bf16.mxu0 0
      %742 = vmatpush1.bf16.msra.mxu0 0
      %743 = vmatprep.subr.bf16.mxu0 0
      %744 = vmatpush1.bf16.msra.mxu0 %v727
      %745 = vmatprep.subr.bf16.mxu0 0
      %746 = vmatpush1.bf16.msra.mxu0 %v726
      %747 = vmatprep.subr.bf16.mxu0 0
      %748 = vmatpush1.bf16.msra.mxu0 %v725
      %749 = vmatprep.subr.bf16.mxu0 0
      %750 = vmatpush1.bf16.msra.mxu0 %v724
      %751 = vmatprep.subr.bf16.mxu0 0
      %752 = vmatpush2.bf16.msra.mxu0 0
      %753 = vmatprep.subr.bf16.mxu0 0
      %754 = vmatpush2.bf16.msra.mxu0 0
      %755 = vmatprep.subr.bf16.mxu0 0
      %756 = vmatpush2.bf16.msra.mxu0 0
      %757 = vmatprep.subr.bf16.mxu0 0
      %758 = vmatpush2.bf16.msra.mxu0 0
      %759 = vmatprep.subr.bf16.mxu0 0
      %760 = vmatpush2.bf16.msra.mxu0 0
      %761 = vmatprep.subr.bf16.mxu0 0
      %762 = vmatpush2.bf16.msra.mxu0 0
      %763 = vmatprep.subr.bf16.mxu0 0
      %764 = vmatpush2.bf16.msra.mxu0 0
      %765 = vmatprep.subr.bf16.mxu0 0
      %766 = vmatpush2.bf16.msra.mxu0 0
      %767 = vmatprep.mubr.bf16.mxu0 0
      %768 = vmatmul.mubr.bf16.gmra.mxu0 %v733
      %v769 = vpop.f32.mrf.mxu0
      %v770 = vadd.f32 %v706, %v769
      %v771 = vpop.f32.mrf.mxu0
      %v772 = vpop.f32.mrf.mxu0
      %v773 = vadd.f32 %v706, %v772
      %v774 = vpop.f32.mrf.mxu0
      %775 = vdwg.mxu0
      %s776 = scalar_lea.vmem %s4, 16
      %v777 = vld [vmem:[%s776] sm:$0xff]
      %v778 = vld [vmem:[%s776 + $0x8] sm:$0xff]
      %v779 = vadd.f32 %v770, %v777
      %v780 = vadd.f32 %v773, %v778
      %v781 = vld [vmem:[%s5] sm:$0x7]
      %v782 = vld [vmem:[%s6] sm:$0x7]
      %vm783 = vcmask 261120
      %v784 = vsel %vm783, %v686, 0.0
      %785 = vadd.xlane.f32.xlu0 %v784
      %v786 = vpop.xlane.xlu0 %785
      %v787 = vsel %vm783, %v687, 0.0
      %788 = vadd.xlane.f32.xlu0 %v787
      %v789 = vpop.xlane.xlu0 %788
      %v790 = vrcp.pop 32.0
      %v791 = vmul.f32 %v786, %v790
      %v792 = vmul.f32 %v789, %v790
      %v793 = vsub.f32 %v686, %v791
      %v794 = vsub.f32 %v687, %v792
      %v795 = vmul.f32 %v793, %v793
      %v796 = vmul.f32 %v794, %v794
      %v797 = vsel %vm783, %v795, 0.0
      %798 = vadd.xlane.f32.xlu0 %v797
      %v799 = vpop.xlane.xlu0 %798
      %v800 = vsel %vm783, %v796, 0.0
      %801 = vadd.xlane.f32.xlu0 %v800
      %v802 = vpop.xlane.xlu0 %801
      %v803 = vmul.f32 %v799, %v790
      %v804 = vmul.f32 %v802, %v790
      %v805 = vadd.f32 %v803, 1e-05
      %v806 = vadd.f32 %v804, 1e-05
      %v807 = vrsqrt.pop %v805
      %v808 = vrsqrt.pop %v806
      %v809 = vmul.f32 %v793, %v807
      %v810 = vmul.f32 %v794, %v808
      %v811 = vlaneseq
      %v812 = vshrl.u32 %v811, 7
      %v813 = vsub.s32 0, %v812
      %v814 = vrot.slane %v781, %v813
      %v815 = vmul.f32 %v809, %v814
      %v816 = vmul.f32 %v810, %v814
      %v817 = vlaneseq
      %v818 = vshrl.u32 %v817, 7
      %v819 = vsub.s32 0, %v818
      %v820 = vrot.slane %v782, %v819
      %v821 = vadd.f32 %v815, %v820
      %v822 = vadd.f32 %v816, %v820
      %v823 = vsel %vm783, %v779, 0.0
      %824 = vadd.xlane.f32.xlu0 %v823
      %v825 = vpop.xlane.xlu0 %824
      %v826 = vsel %vm783, %v780, 0.0
      %827 = vadd.xlane.f32.xlu0 %v826
      %v828 = vpop.xlane.xlu0 %827
      %v829 = vmul.f32 %v825, %v790
      %v830 = vmul.f32 %v828, %v790
      %v831 = vsub.f32 %v779, %v829
      %v832 = vsub.f32 %v780, %v830
      %v833 = vmul.f32 %v831, %v831
      %v834 = vmul.f32 %v832, %v832
      %v835 = vsel %vm783, %v833, 0.0
      %836 = vadd.xlane.f32.xlu0 %v835
      %v837 = vpop.xlane.xlu0 %836
      %v838 = vsel %vm783, %v834, 0.0
      %839 = vadd.xlane.f32.xlu0 %v838
      %v840 = vpop.xlane.xlu0 %839
      %v841 = vmul.f32 %v837, %v790
      %v842 = vmul.f32 %v840, %v790
      %v843 = vadd.f32 %v841, 1e-05
      %v844 = vadd.f32 %v842, 1e-05
      %v845 = vrsqrt.pop %v843
      %v846 = vrsqrt.pop %v844
      %v847 = vmul.f32 %v831, %v845
      %v848 = vmul.f32 %v832, %v846
      %v849 = vlaneseq
      %v850 = vshrl.u32 %v849, 7
      %v851 = vsub.s32 1, %v850
      %v852 = vrot.slane %v781, %v851
      %v853 = vmul.f32 %v847, %v852
      %v854 = vmul.f32 %v848, %v852
      %v855 = vlaneseq
      %v856 = vshrl.u32 %v855, 7
      %v857 = vsub.s32 1, %v856
      %v858 = vrot.slane %v782, %v857
      %v859 = vadd.f32 %v853, %v858
      %v860 = vadd.f32 %v854, %v858
      %v861 = vld [vmem:[%s7] sm:$0xf]
      %v862 = vld [vmem:[%s7 + $0x4] sm:$0xf]
      %v863 = vld [vmem:[%s7 + $0x8] sm:$0xf]
      %v864 = vld [vmem:[%s7 + $0xc] sm:$0xf]
      %v865 = vpack.c.bf16 %v822, %v821
      %v870 = vunpack.c.l.b16 %v861
      %v871 = vunpack.c.l.b16 %v862
      %v872 = vunpack.c.l.b16 %v863
      %v873 = vunpack.c.l.b16 %v864
      %v874 = vpack.c.b16 %v871, %v870
      %v875 = vpack.c.b16 %v873, %v872
      %v879 = vsel %vm783, %v865, 0
      %881 = vmatprep.subr.bf16.mxu0 0
      %882 = vmatpush1.bf16.msra.mxu0 0
      %883 = vmatprep.subr.bf16.mxu0 0
      %884 = vmatpush1.bf16.msra.mxu0 0
      %885 = vmatprep.subr.bf16.mxu0 0
      %886 = vmatpush1.bf16.msra.mxu0 0
      %887 = vmatprep.subr.bf16.mxu0 0
      %888 = vmatpush1.bf16.msra.mxu0 0
      %889 = vmatprep.subr.bf16.mxu0 0
      %890 = vmatpush1.bf16.msra.mxu0 0
      %891 = vmatprep.subr.bf16.mxu0 0
      %892 = vmatpush1.bf16.msra.mxu0 0
      %893 = vmatprep.subr.bf16.mxu0 0
      %894 = vmatpush1.bf16.msra.mxu0 %v875
      %895 = vmatprep.subr.bf16.mxu0 0
      %896 = vmatpush1.bf16.msra.mxu0 %v874
      %897 = vmatprep.subr.bf16.mxu0 0
      %898 = vmatpush2.bf16.msra.mxu0 0
      %899 = vmatprep.subr.bf16.mxu0 0
      %900 = vmatpush2.bf16.msra.mxu0 0
      %901 = vmatprep.subr.bf16.mxu0 0
      %902 = vmatpush2.bf16.msra.mxu0 0
      %903 = vmatprep.subr.bf16.mxu0 0
      %904 = vmatpush2.bf16.msra.mxu0 0
      %905 = vmatprep.subr.bf16.mxu0 0
      %906 = vmatpush2.bf16.msra.mxu0 0
      %907 = vmatprep.subr.bf16.mxu0 0
      %908 = vmatpush2.bf16.msra.mxu0 0
      %909 = vmatprep.subr.bf16.mxu0 0
      %910 = vmatpush2.bf16.msra.mxu0 0
      %911 = vmatprep.subr.bf16.mxu0 0
      %912 = vmatpush2.bf16.msra.mxu0 0
      %913 = vmatprep.mubr.bf16.mxu0 0
      %914 = vmatmul.mubr.bf16.gmra.mxu0 %v879
      %v915 = vpop.f32.mrf.mxu0
      %v916 = vadd.f32 0.0, %v915
      %v917 = vpop.f32.mrf.mxu0
      %v918 = vpop.f32.mrf.mxu0
      %v919 = vadd.f32 0.0, %v918
      %v920 = vpop.f32.mrf.mxu0
      %921 = vdwg.mxu0
      %v922 = vld [vmem:[%s8] sm:$0xf]
      %v923 = vld [vmem:[%s8 + $0x4] sm:$0xf]
      %v924 = vld [vmem:[%s8 + $0x8] sm:$0xf]
      %v925 = vld [vmem:[%s8 + $0xc] sm:$0xf]
      %v926 = vpack.c.bf16 %v860, %v859
      %v931 = vunpack.c.l.b16 %v922
      %v932 = vunpack.c.l.b16 %v923
      %v933 = vunpack.c.l.b16 %v924
      %v934 = vunpack.c.l.b16 %v925
      %v935 = vpack.c.b16 %v932, %v931
      %v936 = vpack.c.b16 %v934, %v933
      %v940 = vsel %vm783, %v926, 0
      %942 = vmatprep.subr.bf16.mxu0 0
      %943 = vmatpush1.bf16.msra.mxu0 0
      %944 = vmatprep.subr.bf16.mxu0 0
      %945 = vmatpush1.bf16.msra.mxu0 0
      %946 = vmatprep.subr.bf16.mxu0 0
      %947 = vmatpush1.bf16.msra.mxu0 0
      %948 = vmatprep.subr.bf16.mxu0 0
      %949 = vmatpush1.bf16.msra.mxu0 0
      %950 = vmatprep.subr.bf16.mxu0 0
      %951 = vmatpush1.bf16.msra.mxu0 0
      %952 = vmatprep.subr.bf16.mxu0 0
      %953 = vmatpush1.bf16.msra.mxu0 0
      %954 = vmatprep.subr.bf16.mxu0 0
      %955 = vmatpush1.bf16.msra.mxu0 %v936
      %956 = vmatprep.subr.bf16.mxu0 0
      %957 = vmatpush1.bf16.msra.mxu0 %v935
      %958 = vmatprep.subr.bf16.mxu0 0
      %959 = vmatpush2.bf16.msra.mxu0 0
      %960 = vmatprep.subr.bf16.mxu0 0
      %961 = vmatpush2.bf16.msra.mxu0 0
      %962 = vmatprep.subr.bf16.mxu0 0
      %963 = vmatpush2.bf16.msra.mxu0 0
      %964 = vmatprep.subr.bf16.mxu0 0
      %965 = vmatpush2.bf16.msra.mxu0 0
      %966 = vmatprep.subr.bf16.mxu0 0
      %967 = vmatpush2.bf16.msra.mxu0 0
      %968 = vmatprep.subr.bf16.mxu0 0
      %969 = vmatpush2.bf16.msra.mxu0 0
      %970 = vmatprep.subr.bf16.mxu0 0
      %971 = vmatpush2.bf16.msra.mxu0 0
      %972 = vmatprep.subr.bf16.mxu0 0
      %973 = vmatpush2.bf16.msra.mxu0 0
      %974 = vmatprep.mubr.bf16.mxu0 0
      %975 = vmatmul.mubr.bf16.gmra.mxu0 %v940
      %v976 = vpop.f32.mrf.mxu0
      %v977 = vadd.f32 0.0, %v976
      %v978 = vpop.f32.mrf.mxu0
      %v979 = vpop.f32.mrf.mxu0
      %v980 = vadd.f32 0.0, %v979
      %v981 = vpop.f32.mrf.mxu0
      %982 = vdwg.mxu0
      %v983 = vld [vmem:[%s9] sm:$0xf]
      %v984 = vld [vmem:[%s9 + $0x4] sm:$0xf]
      %v985 = vld [vmem:[%s9 + $0x8] sm:$0xf]
      %v986 = vld [vmem:[%s9 + $0xc] sm:$0xf]
      %v991 = vunpack.c.l.b16 %v983
      %v992 = vunpack.c.l.b16 %v984
      %v993 = vunpack.c.l.b16 %v985
      %v994 = vunpack.c.l.b16 %v986
      %v995 = vpack.c.b16 %v992, %v991
      %v996 = vpack.c.b16 %v994, %v993
      %999 = vmatprep.subr.bf16.mxu0 0
      %1000 = vmatpush1.bf16.msra.mxu0 0
      %1001 = vmatprep.subr.bf16.mxu0 0
      %1002 = vmatpush1.bf16.msra.mxu0 0
      %1003 = vmatprep.subr.bf16.mxu0 0
      %1004 = vmatpush1.bf16.msra.mxu0 0
      %1005 = vmatprep.subr.bf16.mxu0 0
      %1006 = vmatpush1.bf16.msra.mxu0 0
      %1007 = vmatprep.subr.bf16.mxu0 0
      %1008 = vmatpush1.bf16.msra.mxu0 0
      %1009 = vmatprep.subr.bf16.mxu0 0
      %1010 = vmatpush1.bf16.msra.mxu0 0
      %1011 = vmatprep.subr.bf16.mxu0 0
      %1012 = vmatpush1.bf16.msra.mxu0 %v996
      %1013 = vmatprep.subr.bf16.mxu0 0
      %1014 = vmatpush1.bf16.msra.mxu0 %v995
      %1015 = vmatprep.subr.bf16.mxu0 0
      %1016 = vmatpush2.bf16.msra.mxu0 0
      %1017 = vmatprep.subr.bf16.mxu0 0
      %1018 = vmatpush2.bf16.msra.mxu0 0
      %1019 = vmatprep.subr.bf16.mxu0 0
      %1020 = vmatpush2.bf16.msra.mxu0 0
      %1021 = vmatprep.subr.bf16.mxu0 0
      %1022 = vmatpush2.bf16.msra.mxu0 0
      %1023 = vmatprep.subr.bf16.mxu0 0
      %1024 = vmatpush2.bf16.msra.mxu0 0
      %1025 = vmatprep.subr.bf16.mxu0 0
      %1026 = vmatpush2.bf16.msra.mxu0 0
      %1027 = vmatprep.subr.bf16.mxu0 0
      %1028 = vmatpush2.bf16.msra.mxu0 0
      %1029 = vmatprep.subr.bf16.mxu0 0
      %1030 = vmatpush2.bf16.msra.mxu0 0
      %1031 = vmatprep.mubr.bf16.mxu0 0
      %1032 = vmatmul.mubr.bf16.gmra.mxu0 %v940
      %v1033 = vpop.f32.mrf.mxu0
      %v1034 = vadd.f32 0.0, %v1033
      %v1035 = vpop.f32.mrf.mxu0
      %v1036 = vpop.f32.mrf.mxu0
      %v1037 = vadd.f32 0.0, %v1036
      %v1038 = vpop.f32.mrf.mxu0
      %1039 = vdwg.mxu0
      %v1040 = vpack.c.bf16 %v919, %v916
      %v1041 = vpack.c.bf16 %v980, %v977
      %vm1042 = vcmask 130048
      %v1044 = vsel %vm1042, %v1040, 0
      %v1047 = vsel %vm1042, %v1041, 0
      %1049 = vmatprep.subr.bf16.mxu0 0
      %1050 = vmatpush1.bf16.xpose.msra.mxu0 0
      %1051 = vmatprep.subr.bf16.mxu0 0
      %1052 = vmatpush1.bf16.xpose.msra.mxu0 0
      %1053 = vmatprep.subr.bf16.mxu0 0
      %1054 = vmatpush1.bf16.xpose.msra.mxu0 0
      %1055 = vmatprep.subr.bf16.mxu0 0
      %1056 = vmatpush1.bf16.xpose.msra.mxu0 0
      %1057 = vmatprep.subr.bf16.mxu0 0
      %1058 = vmatpush1.bf16.xpose.msra.mxu0 0
      %1059 = vmatprep.subr.bf16.mxu0 0
      %1060 = vmatpush1.bf16.xpose.msra.mxu0 0
      %1061 = vmatprep.subr.bf16.mxu0 0
      %1062 = vmatpush1.bf16.xpose.msra.mxu0 0
      %1063 = vmatprep.subr.bf16.mxu0 0
      %1064 = vmatpush1.bf16.xpose.msra.mxu0 %v1047
      %1065 = vmatprep.subr.bf16.mxu0 0
      %1066 = vmatpush2.bf16.xpose.msra.mxu0 0
      %1067 = vmatprep.subr.bf16.mxu0 0
      %1068 = vmatpush2.bf16.xpose.msra.mxu0 0
      %1069 = vmatprep.subr.bf16.mxu0 0
      %1070 = vmatpush2.bf16.xpose.msra.mxu0 0
      %1071 = vmatprep.subr.bf16.mxu0 0
      %1072 = vmatpush2.bf16.xpose.msra.mxu0 0
      %1073 = vmatprep.subr.bf16.mxu0 0
      %1074 = vmatpush2.bf16.xpose.msra.mxu0 0
      %1075 = vmatprep.subr.bf16.mxu0 0
      %1076 = vmatpush2.bf16.xpose.msra.mxu0 0
      %1077 = vmatprep.subr.bf16.mxu0 0
      %1078 = vmatpush2.bf16.xpose.msra.mxu0 0
      %1079 = vmatprep.subr.bf16.mxu0 0
      %1080 = vmatpush2.bf16.xpose.msra.mxu0 0
      %1081 = vmatprep.mubr.bf16.mxu0 0
      %1082 = vmatmul.mubr.bf16.gmra.mxu0 %v1044
      %v1083 = vpop.f32.mrf.mxu0
      %v1084 = vadd.f32 0.0, %v1083
      %v1085 = vpop.f32.mrf.mxu0
      %v1086 = vpop.f32.mrf.mxu0
      %v1087 = vadd.f32 0.0, %v1086
      %v1088 = vpop.f32.mrf.mxu0
      %1089 = vdwg.mxu0
      %v1090 = vmul.f32 %v1084, 0.25
      %v1091 = vmul.f32 %v1087, 0.25
      %v1092 = vsel %vm1042, %v1090, -inf
      %1093 = vmax.xlane.f32.xlu0 %v1092
      %v1094 = vpop.xlane.xlu0 %1093
      %v1095 = vsel %vm1042, %v1091, -inf
      %1096 = vmax.xlane.f32.xlu0 %v1095
      %v1097 = vpop.xlane.xlu0 %1096
      %v1098 = vsub.f32 %v1090, %v1094
      %v1099 = vsub.f32 %v1091, %v1097
      %v1100 = vmul.f32 %v1098, 1.442695
      %v1101 = vpow.pop %v1100
      %v1102 = vmul.f32 %v1099, 1.442695
      %v1103 = vpow.pop %v1102
      %v1104 = vsel %vm1042, %v1101, 0.0
      %1105 = vadd.xlane.f32.xlu0 %v1104
      %v1106 = vpop.xlane.xlu0 %1105
      %v1107 = vsel %vm1042, %v1103, 0.0
      %1108 = vadd.xlane.f32.xlu0 %v1107
      %v1109 = vpop.xlane.xlu0 %1108
      %v1110 = vrcp.pop %v1106
      %v1111 = vrcp.pop %v1109
      %v1112 = vmul.f32 %v1101, %v1110
      %v1113 = vmul.f32 %v1103, %v1111
      %v1114 = vpack.c.bf16 %v1113, %v1112
      %v1115 = vpack.c.bf16 %v1037, %v1034
      %v1117 = vsel %vm1042, %v1114, 0
      %1119 = vmatprep.subr.bf16.mxu0 0
      %1120 = vmatpush1.bf16.msra.mxu0 0
      %1121 = vmatprep.subr.bf16.mxu0 0
      %1122 = vmatpush1.bf16.msra.mxu0 0
      %1123 = vmatprep.subr.bf16.mxu0 0
      %1124 = vmatpush1.bf16.msra.mxu0 0
      %1125 = vmatprep.subr.bf16.mxu0 0
      %1126 = vmatpush1.bf16.msra.mxu0 0
      %1127 = vmatprep.subr.bf16.mxu0 0
      %1128 = vmatpush1.bf16.msra.mxu0 0
      %1129 = vmatprep.subr.bf16.mxu0 0
      %1130 = vmatpush1.bf16.msra.mxu0 0
      %1131 = vmatprep.subr.bf16.mxu0 0
      %1132 = vmatpush1.bf16.msra.mxu0 0
      %1133 = vmatprep.subr.bf16.mxu0 0
      %1134 = vmatpush1.bf16.msra.mxu0 %v1115
      %1135 = vmatprep.subr.bf16.mxu0 0
      %1136 = vmatpush2.bf16.msra.mxu0 0
      %1137 = vmatprep.subr.bf16.mxu0 0
      %1138 = vmatpush2.bf16.msra.mxu0 0
      %1139 = vmatprep.subr.bf16.mxu0 0
      %1140 = vmatpush2.bf16.msra.mxu0 0
      %1141 = vmatprep.subr.bf16.mxu0 0
      %1142 = vmatpush2.bf16.msra.mxu0 0
      %1143 = vmatprep.subr.bf16.mxu0 0
      %1144 = vmatpush2.bf16.msra.mxu0 0
      %1145 = vmatprep.subr.bf16.mxu0 0
      %1146 = vmatpush2.bf16.msra.mxu0 0
      %1147 = vmatprep.subr.bf16.mxu0 0
      %1148 = vmatpush2.bf16.msra.mxu0 0
      %1149 = vmatprep.subr.bf16.mxu0 0
      %1150 = vmatpush2.bf16.msra.mxu0 0
      %1151 = vmatprep.mubr.bf16.mxu0 0
      %1152 = vmatmul.mubr.bf16.gmra.mxu0 %v1117
      %v1153 = vpop.f32.mrf.mxu0
      %v1154 = vadd.f32 0.0, %v1153
      %v1155 = vpop.f32.mrf.mxu0
      %v1156 = vpop.f32.mrf.mxu0
      %v1157 = vadd.f32 0.0, %v1156
      %v1158 = vpop.f32.mrf.mxu0
      %1159 = vdwg.mxu0
      %1161 = vrot.lane.b32.xlu0 %v1040, 112
      %v1162 = vpop.permute.xlu0 %1161
      %1164 = vrot.lane.b32.xlu0 %v1041, 112
      %v1165 = vpop.permute.xlu0 %1164
      %v1167 = vsel %vm1042, %v1162, 0
      %v1170 = vsel %vm1042, %v1165, 0
      %1172 = vmatprep.subr.bf16.mxu0 0
      %1173 = vmatpush1.bf16.xpose.msra.mxu0 0
      %1174 = vmatprep.subr.bf16.mxu0 0
      %1175 = vmatpush1.bf16.xpose.msra.mxu0 0
      %1176 = vmatprep.subr.bf16.mxu0 0
      %1177 = vmatpush1.bf16.xpose.msra.mxu0 0
      %1178 = vmatprep.subr.bf16.mxu0 0
      %1179 = vmatpush1.bf16.xpose.msra.mxu0 0
      %1180 = vmatprep.subr.bf16.mxu0 0
      %1181 = vmatpush1.bf16.xpose.msra.mxu0 0
      %1182 = vmatprep.subr.bf16.mxu0 0
      %1183 = vmatpush1.bf16.xpose.msra.mxu0 0
      %1184 = vmatprep.subr.bf16.mxu0 0
      %1185 = vmatpush1.bf16.xpose.msra.mxu0 0
      %1186 = vmatprep.subr.bf16.mxu0 0
      %1187 = vmatpush1.bf16.xpose.msra.mxu0 %v1170
      %1188 = vmatprep.subr.bf16.mxu0 0
      %1189 = vmatpush2.bf16.xpose.msra.mxu0 0
      %1190 = vmatprep.subr.bf16.mxu0 0
      %1191 = vmatpush2.bf16.xpose.msra.mxu0 0
      %1192 = vmatprep.subr.bf16.mxu0 0
      %1193 = vmatpush2.bf16.xpose.msra.mxu0 0
      %1194 = vmatprep.subr.bf16.mxu0 0
      %1195 = vmatpush2.bf16.xpose.msra.mxu0 0
      %1196 = vmatprep.subr.bf16.mxu0 0
      %1197 = vmatpush2.bf16.xpose.msra.mxu0 0
      %1198 = vmatprep.subr.bf16.mxu0 0
      %1199 = vmatpush2.bf16.xpose.msra.mxu0 0
      %1200 = vmatprep.subr.bf16.mxu0 0
      %1201 = vmatpush2.bf16.xpose.msra.mxu0 0
      %1202 = vmatprep.subr.bf16.mxu0 0
      %1203 = vmatpush2.bf16.xpose.msra.mxu0 0
      %1204 = vmatprep.mubr.bf16.mxu0 0
      %1205 = vmatmul.mubr.bf16.gmra.mxu0 %v1167
      %v1206 = vpop.f32.mrf.mxu0
      %v1207 = vadd.f32 0.0, %v1206
      %v1208 = vpop.f32.mrf.mxu0
      %v1209 = vpop.f32.mrf.mxu0
      %v1210 = vadd.f32 0.0, %v1209
      %v1211 = vpop.f32.mrf.mxu0
      %1212 = vdwg.mxu0
      %v1213 = vmul.f32 %v1207, 0.25
      %v1214 = vmul.f32 %v1210, 0.25
      %v1215 = vsel %vm1042, %v1213, -inf
      %1216 = vmax.xlane.f32.xlu0 %v1215
      %v1217 = vpop.xlane.xlu0 %1216
      %v1218 = vsel %vm1042, %v1214, -inf
      %1219 = vmax.xlane.f32.xlu0 %v1218
      %v1220 = vpop.xlane.xlu0 %1219
      %v1221 = vsub.f32 %v1213, %v1217
      %v1222 = vsub.f32 %v1214, %v1220
      %v1223 = vmul.f32 %v1221, 1.442695
      %v1224 = vpow.pop %v1223
      %v1225 = vmul.f32 %v1222, 1.442695
      %v1226 = vpow.pop %v1225
      %v1227 = vsel %vm1042, %v1224, 0.0
      %1228 = vadd.xlane.f32.xlu0 %v1227
      %v1229 = vpop.xlane.xlu0 %1228
      %v1230 = vsel %vm1042, %v1226, 0.0
      %1231 = vadd.xlane.f32.xlu0 %v1230
      %v1232 = vpop.xlane.xlu0 %1231
      %v1233 = vrcp.pop %v1229
      %v1234 = vrcp.pop %v1232
      %v1235 = vmul.f32 %v1224, %v1233
      %v1236 = vmul.f32 %v1226, %v1234
      %v1237 = vpack.c.bf16 %v1236, %v1235
      %1239 = vrot.lane.b32.xlu0 %v1115, 112
      %v1240 = vpop.permute.xlu0 %1239
      %v1243 = vsel %vm1042, %v1237, 0
      %1245 = vmatprep.subr.bf16.mxu0 0
      %1246 = vmatpush1.bf16.msra.mxu0 0
      %1247 = vmatprep.subr.bf16.mxu0 0
      %1248 = vmatpush1.bf16.msra.mxu0 0
      %1249 = vmatprep.subr.bf16.mxu0 0
      %1250 = vmatpush1.bf16.msra.mxu0 0
      %1251 = vmatprep.subr.bf16.mxu0 0
      %1252 = vmatpush1.bf16.msra.mxu0 0
      %1253 = vmatprep.subr.bf16.mxu0 0
      %1254 = vmatpush1.bf16.msra.mxu0 0
      %1255 = vmatprep.subr.bf16.mxu0 0
      %1256 = vmatpush1.bf16.msra.mxu0 0
      %1257 = vmatprep.subr.bf16.mxu0 0
      %1258 = vmatpush1.bf16.msra.mxu0 0
      %1259 = vmatprep.subr.bf16.mxu0 0
      %1260 = vmatpush1.bf16.msra.mxu0 %v1240
      %1261 = vmatprep.subr.bf16.mxu0 0
      %1262 = vmatpush2.bf16.msra.mxu0 0
      %1263 = vmatprep.subr.bf16.mxu0 0
      %1264 = vmatpush2.bf16.msra.mxu0 0
      %1265 = vmatprep.subr.bf16.mxu0 0
      %1266 = vmatpush2.bf16.msra.mxu0 0
      %1267 = vmatprep.subr.bf16.mxu0 0
      %1268 = vmatpush2.bf16.msra.mxu0 0
      %1269 = vmatprep.subr.bf16.mxu0 0
      %1270 = vmatpush2.bf16.msra.mxu0 0
      %1271 = vmatprep.subr.bf16.mxu0 0
      %1272 = vmatpush2.bf16.msra.mxu0 0
      %1273 = vmatprep.subr.bf16.mxu0 0
      %1274 = vmatpush2.bf16.msra.mxu0 0
      %1275 = vmatprep.subr.bf16.mxu0 0
      %1276 = vmatpush2.bf16.msra.mxu0 0
      %1277 = vmatprep.mubr.bf16.mxu0 0
      %1278 = vmatmul.mubr.bf16.gmra.mxu0 %v1243
      %v1279 = vpop.f32.mrf.mxu0
      %v1280 = vadd.f32 0.0, %v1279
      %v1281 = vpop.f32.mrf.mxu0
      %v1282 = vpop.f32.mrf.mxu0
      %v1283 = vadd.f32 0.0, %v1282
      %v1284 = vpop.f32.mrf.mxu0
      %1285 = vdwg.mxu0
      %1288 = vrot.lane.b32.xlu0 %v1280, 16
      %v1289 = vpop.permute.xlu0 %1288
      %1290 = vrot.lane.b32.xlu0 %v1283, 16
      %v1291 = vpop.permute.xlu0 %1290
      %v1294 = vsel %vm1042, %v1154, %v1289
      %v1295 = vsel %vm1042, %v1157, %v1291
      %v1296 = vld [vmem:[%s10] sm:$0xf]
      %v1297 = vld [vmem:[%s10 + $0x4] sm:$0xf]
      %v1298 = vld [vmem:[%s10 + $0x8] sm:$0xf]
      %v1299 = vld [vmem:[%s10 + $0xc] sm:$0xf]
      %v1300 = vpack.c.bf16 %v1295, %v1294
      %v1305 = vunpack.c.l.b16 %v1296
      %v1306 = vunpack.c.l.b16 %v1297
      %v1307 = vunpack.c.l.b16 %v1298
      %v1308 = vunpack.c.l.b16 %v1299
      %v1309 = vpack.c.b16 %v1306, %v1305
      %v1310 = vpack.c.b16 %v1308, %v1307
      %v1314 = vsel %vm783, %v1300, 0
      %1316 = vmatprep.subr.bf16.mxu0 0
      %1317 = vmatpush1.bf16.msra.mxu0 0
      %1318 = vmatprep.subr.bf16.mxu0 0
      %1319 = vmatpush1.bf16.msra.mxu0 0
      %1320 = vmatprep.subr.bf16.mxu0 0
      %1321 = vmatpush1.bf16.msra.mxu0 0
      %1322 = vmatprep.subr.bf16.mxu0 0
      %1323 = vmatpush1.bf16.msra.mxu0 0
      %1324 = vmatprep.subr.bf16.mxu0 0
      %1325 = vmatpush1.bf16.msra.mxu0 0
      %1326 = vmatprep.subr.bf16.mxu0 0
      %1327 = vmatpush1.bf16.msra.mxu0 0
      %1328 = vmatprep.subr.bf16.mxu0 0
      %1329 = vmatpush1.bf16.msra.mxu0 %v1310
      %1330 = vmatprep.subr.bf16.mxu0 0
      %1331 = vmatpush1.bf16.msra.mxu0 %v1309
      %1332 = vmatprep.subr.bf16.mxu0 0
      %1333 = vmatpush2.bf16.msra.mxu0 0
      %1334 = vmatprep.subr.bf16.mxu0 0
      %1335 = vmatpush2.bf16.msra.mxu0 0
      %1336 = vmatprep.subr.bf16.mxu0 0
      %1337 = vmatpush2.bf16.msra.mxu0 0
      %1338 = vmatprep.subr.bf16.mxu0 0
      %1339 = vmatpush2.bf16.msra.mxu0 0
      %1340 = vmatprep.subr.bf16.mxu0 0
      %1341 = vmatpush2.bf16.msra.mxu0 0
      %1342 = vmatprep.subr.bf16.mxu0 0
      %1343 = vmatpush2.bf16.msra.mxu0 0
      %1344 = vmatprep.subr.bf16.mxu0 0
      %1345 = vmatpush2.bf16.msra.mxu0 0
      %1346 = vmatprep.subr.bf16.mxu0 0
      %1347 = vmatpush2.bf16.msra.mxu0 0
      %1348 = vmatprep.mubr.bf16.mxu0 0
      %1349 = vmatmul.mubr.bf16.gmra.mxu0 %v1314
      %v1350 = vpop.f32.mrf.mxu0
      %v1351 = vadd.f32 0.0, %v1350
      %v1352 = vpop.f32.mrf.mxu0
      %v1353 = vpop.f32.mrf.mxu0
      %v1354 = vadd.f32 0.0, %v1353
      %v1355 = vpop.f32.mrf.mxu0
      %1356 = vdwg.mxu0
      %v1357 = vadd.f32 %v686, %v1351
      %v1358 = vadd.f32 %v687, %v1354
      %v1359 = vld [vmem:[%s11] sm:$0x1]
      %v1361 = vlaneseq
      %v1362 = vshrl.u32 %v1361, 7
      %v1363 = vsub.s32 0, %v1362
      %v1364 = vrot.slane %v1359, %v1363
      %v1366 = vadd.f32 %v1357, %v1364
      %v1367 = vadd.f32 %v1358, %v1364
      %v1368 = vsel %vm783, %v1366, 0.0
      %1369 = vadd.xlane.f32.xlu0 %v1368
      %v1370 = vpop.xlane.xlu0 %1369
      %v1371 = vsel %vm783, %v1367, 0.0
      %1372 = vadd.xlane.f32.xlu0 %v1371
      %v1373 = vpop.xlane.xlu0 %1372
      %v1374 = vmul.f32 %v1370, %v790
      %v1375 = vmul.f32 %v1373, %v790
      %v1376 = vsub.f32 %v1366, %v1374
      %v1377 = vsub.f32 %v1367, %v1375
      %v1378 = vmul.f32 %v1376, %v1376
      %v1379 = vmul.f32 %v1377, %v1377
      %v1380 = vsel %vm783, %v1378, 0.0
      %1381 = vadd.xlane.f32.xlu0 %v1380
      %v1382 = vpop.xlane.xlu0 %1381
      %v1383 = vsel %vm783, %v1379, 0.0
      %1384 = vadd.xlane.f32.xlu0 %v1383
      %v1385 = vpop.xlane.xlu0 %1384
      %v1386 = vmul.f32 %v1382, %v790
      %v1387 = vmul.f32 %v1385, %v790
      %v1388 = vadd.f32 %v1386, 1e-05
      %v1389 = vadd.f32 %v1387, 1e-05
      %v1390 = vrsqrt.pop %v1388
      %v1391 = vrsqrt.pop %v1389
      %v1392 = vmul.f32 %v1376, %v1390
      %v1393 = vmul.f32 %v1377, %v1391
      %v1394 = vlaneseq
      %v1395 = vshrl.u32 %v1394, 7
      %v1396 = vsub.s32 2, %v1395
      %v1397 = vrot.slane %v781, %v1396
      %v1398 = vmul.f32 %v1392, %v1397
      %v1399 = vmul.f32 %v1393, %v1397
      %v1400 = vlaneseq
      %v1401 = vshrl.u32 %v1400, 7
      %v1402 = vsub.s32 2, %v1401
      %v1403 = vrot.slane %v782, %v1402
      %v1404 = vadd.f32 %v1398, %v1403
      %v1405 = vadd.f32 %v1399, %v1403
      %v1406 = vld [vmem:[%s12] sm:$0xf]
      %v1407 = vld [vmem:[%s12 + $0x4] sm:$0xf]
      %v1408 = vld [vmem:[%s12 + $0x8] sm:$0xf]
      %v1409 = vld [vmem:[%s12 + $0xc] sm:$0xf]
      %v1410 = vpack.c.bf16 %v1405, %v1404
      %v1411 = vld [vmem:[%s13] sm:$0x1]
      %v1413 = vlaneseq
      %v1414 = vshrl.u32 %v1413, 7
      %v1415 = vsub.s32 0, %v1414
      %v1416 = vrot.slane %v1411, %v1415
      %v1422 = vunpack.c.l.b16 %v1406
      %v1423 = vunpack.c.l.b16 %v1407
      %v1424 = vunpack.c.l.b16 %v1408
      %v1425 = vunpack.c.l.b16 %v1409
      %v1426 = vpack.c.b16 %v1423, %v1422
      %v1427 = vpack.c.b16 %v1425, %v1424
      %v1431 = vsel %vm783, %v1410, 0
      %1433 = vmatprep.subr.bf16.mxu0 0
      %1434 = vmatpush1.bf16.msra.mxu0 0
      %1435 = vmatprep.subr.bf16.mxu0 0
      %1436 = vmatpush1.bf16.msra.mxu0 0
      %1437 = vmatprep.subr.bf16.mxu0 0
      %1438 = vmatpush1.bf16.msra.mxu0 0
      %1439 = vmatprep.subr.bf16.mxu0 0
      %1440 = vmatpush1.bf16.msra.mxu0 0
      %1441 = vmatprep.subr.bf16.mxu0 0
      %1442 = vmatpush1.bf16.msra.mxu0 0
      %1443 = vmatprep.subr.bf16.mxu0 0
      %1444 = vmatpush1.bf16.msra.mxu0 0
      %1445 = vmatprep.subr.bf16.mxu0 0
      %1446 = vmatpush1.bf16.msra.mxu0 %v1427
      %1447 = vmatprep.subr.bf16.mxu0 0
      %1448 = vmatpush1.bf16.msra.mxu0 %v1426
      %1449 = vmatprep.subr.bf16.mxu0 0
      %1450 = vmatpush2.bf16.msra.mxu0 0
      %1451 = vmatprep.subr.bf16.mxu0 0
      %1452 = vmatpush2.bf16.msra.mxu0 0
      %1453 = vmatprep.subr.bf16.mxu0 0
      %1454 = vmatpush2.bf16.msra.mxu0 0
      %1455 = vmatprep.subr.bf16.mxu0 0
      %1456 = vmatpush2.bf16.msra.mxu0 0
      %1457 = vmatprep.subr.bf16.mxu0 0
      %1458 = vmatpush2.bf16.msra.mxu0 0
      %1459 = vmatprep.subr.bf16.mxu0 0
      %1460 = vmatpush2.bf16.msra.mxu0 0
      %1461 = vmatprep.subr.bf16.mxu0 0
      %1462 = vmatpush2.bf16.msra.mxu0 0
      %1463 = vmatprep.subr.bf16.mxu0 0
      %1464 = vmatpush2.bf16.msra.mxu0 0
      %1465 = vmatprep.mubr.bf16.mxu0 0
      %1466 = vmatmul.mubr.bf16.gmra.mxu0 %v1431
      %v1467 = vpop.f32.mrf.mxu0
      %v1468 = vadd.f32 %v1416, %v1467
      %v1469 = vpop.f32.mrf.mxu0
      %v1470 = vpop.f32.mrf.mxu0
      %v1471 = vadd.f32 %v1416, %v1470
      %v1472 = vpop.f32.mrf.mxu0
      %1473 = vdwg.mxu0
      %v1474 = vmul.f32 %v1468, %v1468
      %v1475 = vmul.f32 %v1471, %v1471
      %v1476 = vmul.f32 %v1468, %v1474
      %v1477 = vmul.f32 %v1471, %v1475
      %v1478 = vmul.f32 %v1476, 0.044715
      %v1479 = vmul.f32 %v1477, 0.044715
      %v1480 = vadd.f32 %v1468, %v1478
      %v1481 = vadd.f32 %v1471, %v1479
      %v1482 = vmul.f32 %v1480, 0.7978846
      %v1483 = vmul.f32 %v1481, 0.7978846
      %v1484 = vtanh.pop %v1482
      %v1485 = vtanh.pop %v1483
      %v1486 = vadd.f32 %v1484, 1.0
      %v1487 = vadd.f32 %v1485, 1.0
      %v1488 = vmul.f32 %v1486, 0.5
      %v1489 = vmul.f32 %v1487, 0.5
      %v1490 = vmul.f32 %v1468, %v1488
      %v1491 = vmul.f32 %v1471, %v1489
      %v1492 = vld [vmem:[%s14] sm:$0xf]
      %v1493 = vld [vmem:[%s14 + $0x4] sm:$0xf]
      %v1494 = vld [vmem:[%s14 + $0x8] sm:$0xf]
      %v1495 = vld [vmem:[%s14 + $0xc] sm:$0xf]
      %v1496 = vld [vmem:[%s14 + $0x10] sm:$0xf]
      %v1497 = vld [vmem:[%s14 + $0x14] sm:$0xf]
      %v1498 = vld [vmem:[%s14 + $0x18] sm:$0xf]
      %v1499 = vld [vmem:[%s14 + $0x1c] sm:$0xf]
      %v1500 = vpack.c.bf16 %v1491, %v1490
      %v1509 = vunpack.c.l.b16 %v1492
      %v1510 = vunpack.c.l.b16 %v1493
      %v1511 = vunpack.c.l.b16 %v1494
      %v1512 = vunpack.c.l.b16 %v1495
      %v1513 = vunpack.c.l.b16 %v1496
      %v1514 = vunpack.c.l.b16 %v1497
      %v1515 = vunpack.c.l.b16 %v1498
      %v1516 = vunpack.c.l.b16 %v1499
      %v1517 = vpack.c.b16 %v1510, %v1509
      %v1518 = vpack.c.b16 %v1512, %v1511
      %v1519 = vpack.c.b16 %v1514, %v1513
      %v1520 = vpack.c.b16 %v1516, %v1515
      %v1526 = vsel %vm639, %v1500, 0
      %1528 = vmatprep.subr.bf16.mxu0 0
      %1529 = vmatpush1.bf16.msra.mxu0 0
      %1530 = vmatprep.subr.bf16.mxu0 0
      %1531 = vmatpush1.bf16.msra.mxu0 0
      %1532 = vmatprep.subr.bf16.mxu0 0
      %1533 = vmatpush1.bf16.msra.mxu0 0
      %1534 = vmatprep.subr.bf16.mxu0 0
      %1535 = vmatpush1.bf16.msra.mxu0 0
      %1536 = vmatprep.subr.bf16.mxu0 0
      %1537 = vmatpush1.bf16.msra.mxu0 %v1520
      %1538 = vmatprep.subr.bf16.mxu0 0
      %1539 = vmatpush1.bf16.msra.mxu0 %v1519
      %1540 = vmatprep.subr.bf16.mxu0 0
      %1541 = vmatpush1.bf16.msra.mxu0 %v1518
      %1542 = vmatprep.subr.bf16.mxu0 0
      %1543 = vmatpush1.bf16.msra.mxu0 %v1517
      %1544 = vmatprep.subr.bf16.mxu0 0
      %1545 = vmatpush2.bf16.msra.mxu0 0
      %1546 = vmatprep.subr.bf16.mxu0 0
      %1547 = vmatpush2.bf16.msra.mxu0 0
      %1548 = vmatprep.subr.bf16.mxu0 0
      %1549 = vmatpush2.bf16.msra.mxu0 0
      %1550 = vmatprep.subr.bf16.mxu0 0
      %1551 = vmatpush2.bf16.msra.mxu0 0
      %1552 = vmatprep.subr.bf16.mxu0 0
      %1553 = vmatpush2.bf16.msra.mxu0 0
      %1554 = vmatprep.subr.bf16.mxu0 0
      %1555 = vmatpush2.bf16.msra.mxu0 0
      %1556 = vmatprep.subr.bf16.mxu0 0
      %1557 = vmatpush2.bf16.msra.mxu0 0
      %1558 = vmatprep.subr.bf16.mxu0 0
      %1559 = vmatpush2.bf16.msra.mxu0 0
      %1560 = vmatprep.mubr.bf16.mxu0 0
      %1561 = vmatmul.mubr.bf16.gmra.mxu0 %v1526
      %v1562 = vpop.f32.mrf.mxu0
      %v1563 = vadd.f32 0.0, %v1562
      %v1564 = vpop.f32.mrf.mxu0
      %v1565 = vpop.f32.mrf.mxu0
      %v1566 = vadd.f32 0.0, %v1565
      %v1567 = vpop.f32.mrf.mxu0
      %1568 = vdwg.mxu0
      %v1569 = vadd.f32 %v1366, %v1563
      %v1570 = vadd.f32 %v1367, %v1566
      %v1571 = vld [vmem:[%s15] sm:$0x1]
      %v1573 = vlaneseq
      %v1574 = vshrl.u32 %v1573, 7
      %v1575 = vsub.s32 0, %v1574
      %v1576 = vrot.slane %v1571, %v1575
      %v1578 = vadd.f32 %v1569, %v1576
      %v1579 = vadd.f32 %v1570, %v1576
      %s1580 = scalar_lea.vmem %s5, 4
      %v1581 = vld [vmem:[%s1580] sm:$0x7]
      %s1582 = scalar_lea.vmem %s6, 4
      %v1583 = vld [vmem:[%s1582] sm:$0x7]
      %v1584 = vlaneseq
      %v1585 = vshrl.u32 %v1584, 7
      %v1586 = vsub.s32 0, %v1585
      %v1587 = vrot.slane %v1581, %v1586
      %v1588 = vmul.f32 %v847, %v1587
      %v1589 = vmul.f32 %v848, %v1587
      %v1590 = vlaneseq
      %v1591 = vshrl.u32 %v1590, 7
      %v1592 = vsub.s32 0, %v1591
      %v1593 = vrot.slane %v1583, %v1592
      %v1594 = vadd.f32 %v1588, %v1593
      %v1595 = vadd.f32 %v1589, %v1593
      %v1596 = vsel %vm783, %v1578, 0.0
      %1597 = vadd.xlane.f32.xlu0 %v1596
      %v1598 = vpop.xlane.xlu0 %1597
      %v1599 = vsel %vm783, %v1579, 0.0
      %1600 = vadd.xlane.f32.xlu0 %v1599
      %v1601 = vpop.xlane.xlu0 %1600
      %v1602 = vmul.f32 %v1598, %v790
      %v1603 = vmul.f32 %v1601, %v790
      %v1604 = vsub.f32 %v1578, %v1602
      %v1605 = vsub.f32 %v1579, %v1603
      %v1606 = vmul.f32 %v1604, %v1604
      %v1607 = vmul.f32 %v1605, %v1605
      %v1608 = vsel %vm783, %v1606, 0.0
      %1609 = vadd.xlane.f32.xlu0 %v1608
      %v1610 = vpop.xlane.xlu0 %1609
      %v1611 = vsel %vm783, %v1607, 0.0
      %1612 = vadd.xlane.f32.xlu0 %v1611
      %v1613 = vpop.xlane.xlu0 %1612
      %v1614 = vmul.f32 %v1610, %v790
      %v1615 = vmul.f32 %v1613, %v790
      %v1616 = vadd.f32 %v1614, 1e-05
      %v1617 = vadd.f32 %v1615, 1e-05
      %v1618 = vrsqrt.pop %v1616
      %v1619 = vrsqrt.pop %v1617
      %v1620 = vmul.f32 %v1604, %v1618
      %v1621 = vmul.f32 %v1605, %v1619
      %v1622 = vlaneseq
      %v1623 = vshrl.u32 %v1622, 7
      %v1624 = vsub.s32 1, %v1623
      %v1625 = vrot.slane %v1581, %v1624
      %v1626 = vmul.f32 %v1620, %v1625
      %v1627 = vmul.f32 %v1621, %v1625
      %v1628 = vlaneseq
      %v1629 = vshrl.u32 %v1628, 7
      %v1630 = vsub.s32 1, %v1629
      %v1631 = vrot.slane %v1583, %v1630
      %v1632 = vadd.f32 %v1626, %v1631
      %v1633 = vadd.f32 %v1627, %v1631
      %s1634 = scalar_lea.vmem %s7, 16
      %v1635 = vld [vmem:[%s1634] sm:$0xf]
      %v1636 = vld [vmem:[%s1634 + $0x4] sm:$0xf]
      %v1637 = vld [vmem:[%s1634 + $0x8] sm:$0xf]
      %v1638 = vld [vmem:[%s1634 + $0xc] sm:$0xf]
      %v1639 = vpack.c.bf16 %v1595, %v1594
      %v1644 = vunpack.c.l.b16 %v1635
      %v1645 = vunpack.c.l.b16 %v1636
      %v1646 = vunpack.c.l.b16 %v1637
      %v1647 = vunpack.c.l.b16 %v1638
      %v1648 = vpack.c.b16 %v1645, %v1644
      %v1649 = vpack.c.b16 %v1647, %v1646
      %v1653 = vsel %vm783, %v1639, 0
      %1655 = vmatprep.subr.bf16.mxu0 0
      %1656 = vmatpush1.bf16.msra.mxu0 0
      %1657 = vmatprep.subr.bf16.mxu0 0
      %1658 = vmatpush1.bf16.msra.mxu0 0
      %1659 = vmatprep.subr.bf16.mxu0 0
      %1660 = vmatpush1.bf16.msra.mxu0 0
      %1661 = vmatprep.subr.bf16.mxu0 0
      %1662 = vmatpush1.bf16.msra.mxu0 0
      %1663 = vmatprep.subr.bf16.mxu0 0
      %1664 = vmatpush1.bf16.msra.mxu0 0
      %1665 = vmatprep.subr.bf16.mxu0 0
      %1666 = vmatpush1.bf16.msra.mxu0 0
      %1667 = vmatprep.subr.bf16.mxu0 0
      %1668 = vmatpush1.bf16.msra.mxu0 %v1649
      %1669 = vmatprep.subr.bf16.mxu0 0
      %1670 = vmatpush1.bf16.msra.mxu0 %v1648
      %1671 = vmatprep.subr.bf16.mxu0 0
      %1672 = vmatpush2.bf16.msra.mxu0 0
      %1673 = vmatprep.subr.bf16.mxu0 0
      %1674 = vmatpush2.bf16.msra.mxu0 0
      %1675 = vmatprep.subr.bf16.mxu0 0
      %1676 = vmatpush2.bf16.msra.mxu0 0
      %1677 = vmatprep.subr.bf16.mxu0 0
      %1678 = vmatpush2.bf16.msra.mxu0 0
      %1679 = vmatprep.subr.bf16.mxu0 0
      %1680 = vmatpush2.bf16.msra.mxu0 0
      %1681 = vmatprep.subr.bf16.mxu0 0
      %1682 = vmatpush2.bf16.msra.mxu0 0
      %1683 = vmatprep.subr.bf16.mxu0 0
      %1684 = vmatpush2.bf16.msra.mxu0 0
      %1685 = vmatprep.subr.bf16.mxu0 0
      %1686 = vmatpush2.bf16.msra.mxu0 0
      %1687 = vmatprep.mubr.bf16.mxu0 0
      %1688 = vmatmul.mubr.bf16.gmra.mxu0 %v1653
      %v1689 = vpop.f32.mrf.mxu0
      %v1690 = vadd.f32 0.0, %v1689
      %v1691 = vpop.f32.mrf.mxu0
      %v1692 = vpop.f32.mrf.mxu0
      %v1693 = vadd.f32 0.0, %v1692
      %v1694 = vpop.f32.mrf.mxu0
      %1695 = vdwg.mxu0
      %s1696 = scalar_lea.vmem %s8, 16
      %v1697 = vld [vmem:[%s1696] sm:$0xf]
      %v1698 = vld [vmem:[%s1696 + $0x4] sm:$0xf]
      %v1699 = vld [vmem:[%s1696 + $0x8] sm:$0xf]
      %v1700 = vld [vmem:[%s1696 + $0xc] sm:$0xf]
      %v1701 = vpack.c.bf16 %v1633, %v1632
      %v1706 = vunpack.c.l.b16 %v1697
      %v1707 = vunpack.c.l.b16 %v1698
      %v1708 = vunpack.c.l.b16 %v1699
      %v1709 = vunpack.c.l.b16 %v1700
      %v1710 = vpack.c.b16 %v1707, %v1706
      %v1711 = vpack.c.b16 %v1709, %v1708
      %v1715 = vsel %vm783, %v1701, 0
      %1717 = vmatprep.subr.bf16.mxu0 0
      %1718 = vmatpush1.bf16.msra.mxu0 0
      %1719 = vmatprep.subr.bf16.mxu0 0
      %1720 = vmatpush1.bf16.msra.mxu0 0
      %1721 = vmatprep.subr.bf16.mxu0 0
      %1722 = vmatpush1.bf16.msra.mxu0 0
      %1723 = vmatprep.subr.bf16.mxu0 0
      %1724 = vmatpush1.bf16.msra.mxu0 0
      %1725 = vmatprep.subr.bf16.mxu0 0
      %1726 = vmatpush1.bf16.msra.mxu0 0
      %1727 = vmatprep.subr.bf16.mxu0 0
      %1728 = vmatpush1.bf16.msra.mxu0 0
      %1729 = vmatprep.subr.bf16.mxu0 0
      %1730 = vmatpush1.bf16.msra.mxu0 %v1711
      %1731 = vmatprep.subr.bf16.mxu0 0
      %1732 = vmatpush1.bf16.msra.mxu0 %v1710
      %1733 = vmatprep.subr.bf16.mxu0 0
      %1734 = vmatpush2.bf16.msra.mxu0 0
      %1735 = vmatprep.subr.bf16.mxu0 0
      %1736 = vmatpush2.bf16.msra.mxu0 0
      %1737 = vmatprep.subr.bf16.mxu0 0
      %1738 = vmatpush2.bf16.msra.mxu0 0
      %1739 = vmatprep.subr.bf16.mxu0 0
      %1740 = vmatpush2.bf16.msra.mxu0 0
      %1741 = vmatprep.subr.bf16.mxu0 0
      %1742 = vmatpush2.bf16.msra.mxu0 0
      %1743 = vmatprep.subr.bf16.mxu0 0
      %1744 = vmatpush2.bf16.msra.mxu0 0
      %1745 = vmatprep.subr.bf16.mxu0 0
      %1746 = vmatpush2.bf16.msra.mxu0 0
      %1747 = vmatprep.subr.bf16.mxu0 0
      %1748 = vmatpush2.bf16.msra.mxu0 0
      %1749 = vmatprep.mubr.bf16.mxu0 0
      %1750 = vmatmul.mubr.bf16.gmra.mxu0 %v1715
      %v1751 = vpop.f32.mrf.mxu0
      %v1752 = vadd.f32 0.0, %v1751
      %v1753 = vpop.f32.mrf.mxu0
      %v1754 = vpop.f32.mrf.mxu0
      %v1755 = vadd.f32 0.0, %v1754
      %v1756 = vpop.f32.mrf.mxu0
      %1757 = vdwg.mxu0
      %s1758 = scalar_lea.vmem %s9, 16
      %v1759 = vld [vmem:[%s1758] sm:$0xf]
      %v1760 = vld [vmem:[%s1758 + $0x4] sm:$0xf]
      %v1761 = vld [vmem:[%s1758 + $0x8] sm:$0xf]
      %v1762 = vld [vmem:[%s1758 + $0xc] sm:$0xf]
      %v1767 = vunpack.c.l.b16 %v1759
      %v1768 = vunpack.c.l.b16 %v1760
      %v1769 = vunpack.c.l.b16 %v1761
      %v1770 = vunpack.c.l.b16 %v1762
      %v1771 = vpack.c.b16 %v1768, %v1767
      %v1772 = vpack.c.b16 %v1770, %v1769
      %1775 = vmatprep.subr.bf16.mxu0 0
      %1776 = vmatpush1.bf16.msra.mxu0 0
      %1777 = vmatprep.subr.bf16.mxu0 0
      %1778 = vmatpush1.bf16.msra.mxu0 0
      %1779 = vmatprep.subr.bf16.mxu0 0
      %1780 = vmatpush1.bf16.msra.mxu0 0
      %1781 = vmatprep.subr.bf16.mxu0 0
      %1782 = vmatpush1.bf16.msra.mxu0 0
      %1783 = vmatprep.subr.bf16.mxu0 0
      %1784 = vmatpush1.bf16.msra.mxu0 0
      %1785 = vmatprep.subr.bf16.mxu0 0
      %1786 = vmatpush1.bf16.msra.mxu0 0
      %1787 = vmatprep.subr.bf16.mxu0 0
      %1788 = vmatpush1.bf16.msra.mxu0 %v1772
      %1789 = vmatprep.subr.bf16.mxu0 0
      %1790 = vmatpush1.bf16.msra.mxu0 %v1771
      %1791 = vmatprep.subr.bf16.mxu0 0
      %1792 = vmatpush2.bf16.msra.mxu0 0
      %1793 = vmatprep.subr.bf16.mxu0 0
      %1794 = vmatpush2.bf16.msra.mxu0 0
      %1795 = vmatprep.subr.bf16.mxu0 0
      %1796 = vmatpush2.bf16.msra.mxu0 0
      %1797 = vmatprep.subr.bf16.mxu0 0
      %1798 = vmatpush2.bf16.msra.mxu0 0
      %1799 = vmatprep.subr.bf16.mxu0 0
      %1800 = vmatpush2.bf16.msra.mxu0 0
      %1801 = vmatprep.subr.bf16.mxu0 0
      %1802 = vmatpush2.bf16.msra.mxu0 0
      %1803 = vmatprep.subr.bf16.mxu0 0
      %1804 = vmatpush2.bf16.msra.mxu0 0
      %1805 = vmatprep.subr.bf16.mxu0 0
      %1806 = vmatpush2.bf16.msra.mxu0 0
      %1807 = vmatprep.mubr.bf16.mxu0 0
      %1808 = vmatmul.mubr.bf16.gmra.mxu0 %v1715
      %v1809 = vpop.f32.mrf.mxu0
      %v1810 = vadd.f32 0.0, %v1809
      %v1811 = vpop.f32.mrf.mxu0
      %v1812 = vpop.f32.mrf.mxu0
      %v1813 = vadd.f32 0.0, %v1812
      %v1814 = vpop.f32.mrf.mxu0
      %1815 = vdwg.mxu0
      %v1816 = vpack.c.bf16 %v1693, %v1690
      %v1817 = vpack.c.bf16 %v1755, %v1752
      %v1819 = vsel %vm1042, %v1816, 0
      %v1822 = vsel %vm1042, %v1817, 0
      %1824 = vmatprep.subr.bf16.mxu0 0
      %1825 = vmatpush1.bf16.xpose.msra.mxu0 0
      %1826 = vmatprep.subr.bf16.mxu0 0
      %1827 = vmatpush1.bf16.xpose.msra.mxu0 0
      %1828 = vmatprep.subr.bf16.mxu0 0
      %1829 = vmatpush1.bf16.xpose.msra.mxu0 0
      %1830 = vmatprep.subr.bf16.mxu0 0
      %1831 = vmatpush1.bf16.xpose.msra.mxu0 0
      %1832 = vmatprep.subr.bf16.mxu0 0
      %1833 = vmatpush1.bf16.xpose.msra.mxu0 0
      %1834 = vmatprep.subr.bf16.mxu0 0
      %1835 = vmatpush1.bf16.xpose.msra.mxu0 0
      %1836 = vmatprep.subr.bf16.mxu0 0
      %1837 = vmatpush1.bf16.xpose.msra.mxu0 0
      %1838 = vmatprep.subr.bf16.mxu0 0
      %1839 = vmatpush1.bf16.xpose.msra.mxu0 %v1822
      %1840 = vmatprep.subr.bf16.mxu0 0
      %1841 = vmatpush2.bf16.xpose.msra.mxu0 0
      %1842 = vmatprep.subr.bf16.mxu0 0
      %1843 = vmatpush2.bf16.xpose.msra.mxu0 0
      %1844 = vmatprep.subr.bf16.mxu0 0
      %1845 = vmatpush2.bf16.xpose.msra.mxu0 0
      %1846 = vmatprep.subr.bf16.mxu0 0
      %1847 = vmatpush2.bf16.xpose.msra.mxu0 0
      %1848 = vmatprep.subr.bf16.mxu0 0
      %1849 = vmatpush2.bf16.xpose.msra.mxu0 0
      %1850 = vmatprep.subr.bf16.mxu0 0
      %1851 = vmatpush2.bf16.xpose.msra.mxu0 0
      %1852 = vmatprep.subr.bf16.mxu0 0
      %1853 = vmatpush2.bf16.xpose.msra.mxu0 0
      %1854 = vmatprep.subr.bf16.mxu0 0
      %1855 = vmatpush2.bf16.xpose.msra.mxu0 0
      %1856 = vmatprep.mubr.bf16.mxu0 0
      %1857 = vmatmul.mubr.bf16.gmra.mxu0 %v1819
      %v1858 = vpop.f32.mrf.mxu0
      %v1859 = vadd.f32 0.0, %v1858
      %v1860 = vpop.f32.mrf.mxu0
      %v1861 = vpop.f32.mrf.mxu0
      %v1862 = vadd.f32 0.0, %v1861
      %v1863 = vpop.f32.mrf.mxu0
      %1864 = vdwg.mxu0
      %v1865 = vmul.f32 %v1859, 0.25
      %v1866 = vmul.f32 %v1862, 0.25
      %v1867 = vsel %vm1042, %v1865, -inf
      %1868 = vmax.xlane.f32.xlu0 %v1867
      %v1869 = vpop.xlane.xlu0 %1868
      %v1870 = vsel %vm1042, %v1866, -inf
      %1871 = vmax.xlane.f32.xlu0 %v1870
      %v1872 = vpop.xlane.xlu0 %1871
      %v1873 = vsub.f32 %v1865, %v1869
      %v1874 = vsub.f32 %v1866, %v1872
      %v1875 = vmul.f32 %v1873, 1.442695
      %v1876 = vpow.pop %v1875
      %v1877 = vmul.f32 %v1874, 1.442695
      %v1878 = vpow.pop %v1877
      %v1879 = vsel %vm1042, %v1876, 0.0
      %1880 = vadd.xlane.f32.xlu0 %v1879
      %v1881 = vpop.xlane.xlu0 %1880
      %v1882 = vsel %vm1042, %v1878, 0.0
      %1883 = vadd.xlane.f32.xlu0 %v1882
      %v1884 = vpop.xlane.xlu0 %1883
      %v1885 = vrcp.pop %v1881
      %v1886 = vrcp.pop %v1884
      %v1887 = vmul.f32 %v1876, %v1885
      %v1888 = vmul.f32 %v1878, %v1886
      %v1889 = vpack.c.bf16 %v1888, %v1887
      %v1890 = vpack.c.bf16 %v1813, %v1810
      %v1892 = vsel %vm1042, %v1889, 0
      %1894 = vmatprep.subr.bf16.mxu0 0
      %1895 = vmatpush1.bf16.msra.mxu0 0
      %1896 = vmatprep.subr.bf16.mxu0 0
      %1897 = vmatpush1.bf16.msra.mxu0 0
      %1898 = vmatprep.subr.bf16.mxu0 0
      %1899 = vmatpush1.bf16.msra.mxu0 0
      %1900 = vmatprep.subr.bf16.mxu0 0
      %1901 = vmatpush1.bf16.msra.mxu0 0
      %1902 = vmatprep.subr.bf16.mxu0 0
      %1903 = vmatpush1.bf16.msra.mxu0 0
      %1904 = vmatprep.subr.bf16.mxu0 0
      %1905 = vmatpush1.bf16.msra.mxu0 0
      %1906 = vmatprep.subr.bf16.mxu0 0
      %1907 = vmatpush1.bf16.msra.mxu0 0
      %1908 = vmatprep.subr.bf16.mxu0 0
      %1909 = vmatpush1.bf16.msra.mxu0 %v1890
      %1910 = vmatprep.subr.bf16.mxu0 0
      %1911 = vmatpush2.bf16.msra.mxu0 0
      %1912 = vmatprep.subr.bf16.mxu0 0
      %1913 = vmatpush2.bf16.msra.mxu0 0
      %1914 = vmatprep.subr.bf16.mxu0 0
      %1915 = vmatpush2.bf16.msra.mxu0 0
      %1916 = vmatprep.subr.bf16.mxu0 0
      %1917 = vmatpush2.bf16.msra.mxu0 0
      %1918 = vmatprep.subr.bf16.mxu0 0
      %1919 = vmatpush2.bf16.msra.mxu0 0
      %1920 = vmatprep.subr.bf16.mxu0 0
      %1921 = vmatpush2.bf16.msra.mxu0 0
      %1922 = vmatprep.subr.bf16.mxu0 0
      %1923 = vmatpush2.bf16.msra.mxu0 0
      %1924 = vmatprep.subr.bf16.mxu0 0
      %1925 = vmatpush2.bf16.msra.mxu0 0
      %1926 = vmatprep.mubr.bf16.mxu0 0
      %1927 = vmatmul.mubr.bf16.gmra.mxu0 %v1892
      %v1928 = vpop.f32.mrf.mxu0
      %v1929 = vadd.f32 0.0, %v1928
      %v1930 = vpop.f32.mrf.mxu0
      %v1931 = vpop.f32.mrf.mxu0
      %v1932 = vadd.f32 0.0, %v1931
      %v1933 = vpop.f32.mrf.mxu0
      %1934 = vdwg.mxu0
      %1936 = vrot.lane.b32.xlu0 %v1816, 112
      %v1937 = vpop.permute.xlu0 %1936
      %1939 = vrot.lane.b32.xlu0 %v1817, 112
      %v1940 = vpop.permute.xlu0 %1939
      %v1942 = vsel %vm1042, %v1937, 0
      %v1945 = vsel %vm1042, %v1940, 0
      %1947 = vmatprep.subr.bf16.mxu0 0
      %1948 = vmatpush1.bf16.xpose.msra.mxu0 0
      %1949 = vmatprep.subr.bf16.mxu0 0
      %1950 = vmatpush1.bf16.xpose.msra.mxu0 0
      %1951 = vmatprep.subr.bf16.mxu0 0
      %1952 = vmatpush1.bf16.xpose.msra.mxu0 0
      %1953 = vmatprep.subr.bf16.mxu0 0
      %1954 = vmatpush1.bf16.xpose.msra.mxu0 0
      %1955 = vmatprep.subr.bf16.mxu0 0
      %1956 = vmatpush1.bf16.xpose.msra.mxu0 0
      %1957 = vmatprep.subr.bf16.mxu0 0
      %1958 = vmatpush1.bf16.xpose.msra.mxu0 0
      %1959 = vmatprep.subr.bf16.mxu0 0
      %1960 = vmatpush1.bf16.xpose.msra.mxu0 0
      %1961 = vmatprep.subr.bf16.mxu0 0
      %1962 = vmatpush1.bf16.xpose.msra.mxu0 %v1945
      %1963 = vmatprep.subr.bf16.mxu0 0
      %1964 = vmatpush2.bf16.xpose.msra.mxu0 0
      %1965 = vmatprep.subr.bf16.mxu0 0
      %1966 = vmatpush2.bf16.xpose.msra.mxu0 0
      %1967 = vmatprep.subr.bf16.mxu0 0
      %1968 = vmatpush2.bf16.xpose.msra.mxu0 0
      %1969 = vmatprep.subr.bf16.mxu0 0
      %1970 = vmatpush2.bf16.xpose.msra.mxu0 0
      %1971 = vmatprep.subr.bf16.mxu0 0
      %1972 = vmatpush2.bf16.xpose.msra.mxu0 0
      %1973 = vmatprep.subr.bf16.mxu0 0
      %1974 = vmatpush2.bf16.xpose.msra.mxu0 0
      %1975 = vmatprep.subr.bf16.mxu0 0
      %1976 = vmatpush2.bf16.xpose.msra.mxu0 0
      %1977 = vmatprep.subr.bf16.mxu0 0
      %1978 = vmatpush2.bf16.xpose.msra.mxu0 0
      %1979 = vmatprep.mubr.bf16.mxu0 0
      %1980 = vmatmul.mubr.bf16.gmra.mxu0 %v1942
      %v1981 = vpop.f32.mrf.mxu0
      %v1982 = vadd.f32 0.0, %v1981
      %v1983 = vpop.f32.mrf.mxu0
      %v1984 = vpop.f32.mrf.mxu0
      %v1985 = vadd.f32 0.0, %v1984
      %v1986 = vpop.f32.mrf.mxu0
      %1987 = vdwg.mxu0
      %v1988 = vmul.f32 %v1982, 0.25
      %v1989 = vmul.f32 %v1985, 0.25
      %v1990 = vsel %vm1042, %v1988, -inf
      %1991 = vmax.xlane.f32.xlu0 %v1990
      %v1992 = vpop.xlane.xlu0 %1991
      %v1993 = vsel %vm1042, %v1989, -inf
      %1994 = vmax.xlane.f32.xlu0 %v1993
      %v1995 = vpop.xlane.xlu0 %1994
      %v1996 = vsub.f32 %v1988, %v1992
      %v1997 = vsub.f32 %v1989, %v1995
      %v1998 = vmul.f32 %v1996, 1.442695
      %v1999 = vpow.pop %v1998
      %v2000 = vmul.f32 %v1997, 1.442695
      %v2001 = vpow.pop %v2000
      %v2002 = vsel %vm1042, %v1999, 0.0
      %2003 = vadd.xlane.f32.xlu0 %v2002
      %v2004 = vpop.xlane.xlu0 %2003
      %v2005 = vsel %vm1042, %v2001, 0.0
      %2006 = vadd.xlane.f32.xlu0 %v2005
      %v2007 = vpop.xlane.xlu0 %2006
      %v2008 = vrcp.pop %v2004
      %v2009 = vrcp.pop %v2007
      %v2010 = vmul.f32 %v1999, %v2008
      %v2011 = vmul.f32 %v2001, %v2009
      %v2012 = vpack.c.bf16 %v2011, %v2010
      %2014 = vrot.lane.b32.xlu0 %v1890, 112
      %v2015 = vpop.permute.xlu0 %2014
      %v2018 = vsel %vm1042, %v2012, 0
      %2020 = vmatprep.subr.bf16.mxu0 0
      %2021 = vmatpush1.bf16.msra.mxu0 0
      %2022 = vmatprep.subr.bf16.mxu0 0
      %2023 = vmatpush1.bf16.msra.mxu0 0
      %2024 = vmatprep.subr.bf16.mxu0 0
      %2025 = vmatpush1.bf16.msra.mxu0 0
      %2026 = vmatprep.subr.bf16.mxu0 0
      %2027 = vmatpush1.bf16.msra.mxu0 0
      %2028 = vmatprep.subr.bf16.mxu0 0
      %2029 = vmatpush1.bf16.msra.mxu0 0
      %2030 = vmatprep.subr.bf16.mxu0 0
      %2031 = vmatpush1.bf16.msra.mxu0 0
      %2032 = vmatprep.subr.bf16.mxu0 0
      %2033 = vmatpush1.bf16.msra.mxu0 0
      %2034 = vmatprep.subr.bf16.mxu0 0
      %2035 = vmatpush1.bf16.msra.mxu0 %v2015
      %2036 = vmatprep.subr.bf16.mxu0 0
      %2037 = vmatpush2.bf16.msra.mxu0 0
      %2038 = vmatprep.subr.bf16.mxu0 0
      %2039 = vmatpush2.bf16.msra.mxu0 0
      %2040 = vmatprep.subr.bf16.mxu0 0
      %2041 = vmatpush2.bf16.msra.mxu0 0
      %2042 = vmatprep.subr.bf16.mxu0 0
      %2043 = vmatpush2.bf16.msra.mxu0 0
      %2044 = vmatprep.subr.bf16.mxu0 0
      %2045 = vmatpush2.bf16.msra.mxu0 0
      %2046 = vmatprep.subr.bf16.mxu0 0
      %2047 = vmatpush2.bf16.msra.mxu0 0
      %2048 = vmatprep.subr.bf16.mxu0 0
      %2049 = vmatpush2.bf16.msra.mxu0 0
      %2050 = vmatprep.subr.bf16.mxu0 0
      %2051 = vmatpush2.bf16.msra.mxu0 0
      %2052 = vmatprep.mubr.bf16.mxu0 0
      %2053 = vmatmul.mubr.bf16.gmra.mxu0 %v2018
      %v2054 = vpop.f32.mrf.mxu0
      %v2055 = vadd.f32 0.0, %v2054
      %v2056 = vpop.f32.mrf.mxu0
      %v2057 = vpop.f32.mrf.mxu0
      %v2058 = vadd.f32 0.0, %v2057
      %v2059 = vpop.f32.mrf.mxu0
      %2060 = vdwg.mxu0
      %2063 = vrot.lane.b32.xlu0 %v2055, 16
      %v2064 = vpop.permute.xlu0 %2063
      %2065 = vrot.lane.b32.xlu0 %v2058, 16
      %v2066 = vpop.permute.xlu0 %2065
      %v2069 = vsel %vm1042, %v1929, %v2064
      %v2070 = vsel %vm1042, %v1932, %v2066
      %s2071 = scalar_lea.vmem %s10, 16
      %v2072 = vld [vmem:[%s2071] sm:$0xf]
      %v2073 = vld [vmem:[%s2071 + $0x4] sm:$0xf]
      %v2074 = vld [vmem:[%s2071 + $0x8] sm:$0xf]
      %v2075 = vld [vmem:[%s2071 + $0xc] sm:$0xf]
      %v2076 = vpack.c.bf16 %v2070, %v2069
      %v2081 = vunpack.c.l.b16 %v2072
      %v2082 = vunpack.c.l.b16 %v2073
      %v2083 = vunpack.c.l.b16 %v2074
      %v2084 = vunpack.c.l.b16 %v2075
      %v2085 = vpack.c.b16 %v2082, %v2081
      %v2086 = vpack.c.b16 %v2084, %v2083
      %v2090 = vsel %vm783, %v2076, 0
      %2092 = vmatprep.subr.bf16.mxu0 0
      %2093 = vmatpush1.bf16.msra.mxu0 0
      %2094 = vmatprep.subr.bf16.mxu0 0
      %2095 = vmatpush1.bf16.msra.mxu0 0
      %2096 = vmatprep.subr.bf16.mxu0 0
      %2097 = vmatpush1.bf16.msra.mxu0 0
      %2098 = vmatprep.subr.bf16.mxu0 0
      %2099 = vmatpush1.bf16.msra.mxu0 0
      %2100 = vmatprep.subr.bf16.mxu0 0
      %2101 = vmatpush1.bf16.msra.mxu0 0
      %2102 = vmatprep.subr.bf16.mxu0 0
      %2103 = vmatpush1.bf16.msra.mxu0 0
      %2104 = vmatprep.subr.bf16.mxu0 0
      %2105 = vmatpush1.bf16.msra.mxu0 %v2086
      %2106 = vmatprep.subr.bf16.mxu0 0
      %2107 = vmatpush1.bf16.msra.mxu0 %v2085
      %2108 = vmatprep.subr.bf16.mxu0 0
      %2109 = vmatpush2.bf16.msra.mxu0 0
      %2110 = vmatprep.subr.bf16.mxu0 0
      %2111 = vmatpush2.bf16.msra.mxu0 0
      %2112 = vmatprep.subr.bf16.mxu0 0
      %2113 = vmatpush2.bf16.msra.mxu0 0
      %2114 = vmatprep.subr.bf16.mxu0 0
      %2115 = vmatpush2.bf16.msra.mxu0 0
      %2116 = vmatprep.subr.bf16.mxu0 0
      %2117 = vmatpush2.bf16.msra.mxu0 0
      %2118 = vmatprep.subr.bf16.mxu0 0
      %2119 = vmatpush2.bf16.msra.mxu0 0
      %2120 = vmatprep.subr.bf16.mxu0 0
      %2121 = vmatpush2.bf16.msra.mxu0 0
      %2122 = vmatprep.subr.bf16.mxu0 0
      %2123 = vmatpush2.bf16.msra.mxu0 0
      %2124 = vmatprep.mubr.bf16.mxu0 0
      %2125 = vmatmul.mubr.bf16.gmra.mxu0 %v2090
      %v2126 = vpop.f32.mrf.mxu0
      %v2127 = vadd.f32 0.0, %v2126
      %v2128 = vpop.f32.mrf.mxu0
      %v2129 = vpop.f32.mrf.mxu0
      %v2130 = vadd.f32 0.0, %v2129
      %v2131 = vpop.f32.mrf.mxu0
      %2132 = vdwg.mxu0
      %v2133 = vadd.f32 %v779, %v2127
      %v2134 = vadd.f32 %v780, %v2130
      %s2135 = scalar_lea.vmem %s11, 1
      %v2136 = vld [vmem:[%s2135] sm:$0x1]
      %v2138 = vlaneseq
      %v2139 = vshrl.u32 %v2138, 7
      %v2140 = vsub.s32 0, %v2139
      %v2141 = vrot.slane %v2136, %v2140
      %v2143 = vadd.f32 %v2133, %v2141
      %v2144 = vadd.f32 %v2134, %v2141
      %v2145 = vsel %vm783, %v2143, 0.0
      %2146 = vadd.xlane.f32.xlu0 %v2145
      %v2147 = vpop.xlane.xlu0 %2146
      %v2148 = vsel %vm783, %v2144, 0.0
      %2149 = vadd.xlane.f32.xlu0 %v2148
      %v2150 = vpop.xlane.xlu0 %2149
      %v2151 = vmul.f32 %v2147, %v790
      %v2152 = vmul.f32 %v2150, %v790
      %v2153 = vsub.f32 %v2143, %v2151
      %v2154 = vsub.f32 %v2144, %v2152
      %v2155 = vmul.f32 %v2153, %v2153
      %v2156 = vmul.f32 %v2154, %v2154
      %v2157 = vsel %vm783, %v2155, 0.0
      %2158 = vadd.xlane.f32.xlu0 %v2157
      %v2159 = vpop.xlane.xlu0 %2158
      %v2160 = vsel %vm783, %v2156, 0.0
      %2161 = vadd.xlane.f32.xlu0 %v2160
      %v2162 = vpop.xlane.xlu0 %2161
      %v2163 = vmul.f32 %v2159, %v790
      %v2164 = vmul.f32 %v2162, %v790
      %v2165 = vadd.f32 %v2163, 1e-05
      %v2166 = vadd.f32 %v2164, 1e-05
      %v2167 = vrsqrt.pop %v2165
      %v2168 = vrsqrt.pop %v2166
      %v2169 = vmul.f32 %v2153, %v2167
      %v2170 = vmul.f32 %v2154, %v2168
      %v2171 = vlaneseq
      %v2172 = vshrl.u32 %v2171, 7
      %v2173 = vsub.s32 2, %v2172
      %v2174 = vrot.slane %v1581, %v2173
      %v2175 = vmul.f32 %v2169, %v2174
      %v2176 = vmul.f32 %v2170, %v2174
      %v2177 = vlaneseq
      %v2178 = vshrl.u32 %v2177, 7
      %v2179 = vsub.s32 2, %v2178
      %v2180 = vrot.slane %v1583, %v2179
      %v2181 = vadd.f32 %v2175, %v2180
      %v2182 = vadd.f32 %v2176, %v2180
      %s2183 = scalar_lea.vmem %s12, 16
      %v2184 = vld [vmem:[%s2183] sm:$0xf]
      %v2185 = vld [vmem:[%s2183 + $0x4] sm:$0xf]
      %v2186 = vld [vmem:[%s2183 + $0x8] sm:$0xf]
      %v2187 = vld [vmem:[%s2183 + $0xc] sm:$0xf]
      %v2188 = vpack.c.bf16 %v2182, %v2181
      %s2189 = scalar_lea.vmem %s13, 1
      %v2190 = vld [vmem:[%s2189] sm:$0x1]
      %v2192 = vlaneseq
      %v2193 = vshrl.u32 %v2192, 7
      %v2194 = vsub.s32 0, %v2193
      %v2195 = vrot.slane %v2190, %v2194
      %v2201 = vunpack.c.l.b16 %v2184
      %v2202 = vunpack.c.l.b16 %v2185
      %v2203 = vunpack.c.l.b16 %v2186
      %v2204 = vunpack.c.l.b16 %v2187
      %v2205 = vpack.c.b16 %v2202, %v2201
      %v2206 = vpack.c.b16 %v2204, %v2203
      %v2210 = vsel %vm783, %v2188, 0
      %2212 = vmatprep.subr.bf16.mxu0 0
      %2213 = vmatpush1.bf16.msra.mxu0 0
      %2214 = vmatprep.subr.bf16.mxu0 0
      %2215 = vmatpush1.bf16.msra.mxu0 0
      %2216 = vmatprep.subr.bf16.mxu0 0
      %2217 = vmatpush1.bf16.msra.mxu0 0
      %2218 = vmatprep.subr.bf16.mxu0 0
      %2219 = vmatpush1.bf16.msra.mxu0 0
      %2220 = vmatprep.subr.bf16.mxu0 0
      %2221 = vmatpush1.bf16.msra.mxu0 0
      %2222 = vmatprep.subr.bf16.mxu0 0
      %2223 = vmatpush1.bf16.msra.mxu0 0
      %2224 = vmatprep.subr.bf16.mxu0 0
      %2225 = vmatpush1.bf16.msra.mxu0 %v2206
      %2226 = vmatprep.subr.bf16.mxu0 0
      %2227 = vmatpush1.bf16.msra.mxu0 %v2205
      %2228 = vmatprep.subr.bf16.mxu0 0
      %2229 = vmatpush2.bf16.msra.mxu0 0
      %2230 = vmatprep.subr.bf16.mxu0 0
      %2231 = vmatpush2.bf16.msra.mxu0 0
      %2232 = vmatprep.subr.bf16.mxu0 0
      %2233 = vmatpush2.bf16.msra.mxu0 0
      %2234 = vmatprep.subr.bf16.mxu0 0
      %2235 = vmatpush2.bf16.msra.mxu0 0
      %2236 = vmatprep.subr.bf16.mxu0 0
      %2237 = vmatpush2.bf16.msra.mxu0 0
      %2238 = vmatprep.subr.bf16.mxu0 0
      %2239 = vmatpush2.bf16.msra.mxu0 0
      %2240 = vmatprep.subr.bf16.mxu0 0
      %2241 = vmatpush2.bf16.msra.mxu0 0
      %2242 = vmatprep.subr.bf16.mxu0 0
      %2243 = vmatpush2.bf16.msra.mxu0 0
      %2244 = vmatprep.mubr.bf16.mxu0 0
      %2245 = vmatmul.mubr.bf16.gmra.mxu0 %v2210
      %v2246 = vpop.f32.mrf.mxu0
      %v2247 = vadd.f32 %v2195, %v2246
      %v2248 = vpop.f32.mrf.mxu0
      %v2249 = vpop.f32.mrf.mxu0
      %v2250 = vadd.f32 %v2195, %v2249
      %v2251 = vpop.f32.mrf.mxu0
      %2252 = vdwg.mxu0
      %v2253 = vmul.f32 %v2247, %v2247
      %v2254 = vmul.f32 %v2250, %v2250
      %v2255 = vmul.f32 %v2247, %v2253
      %v2256 = vmul.f32 %v2250, %v2254
      %v2257 = vmul.f32 %v2255, 0.044715
      %v2258 = vmul.f32 %v2256, 0.044715
      %v2259 = vadd.f32 %v2247, %v2257
      %v2260 = vadd.f32 %v2250, %v2258
      %v2261 = vmul.f32 %v2259, 0.7978846
      %v2262 = vmul.f32 %v2260, 0.7978846
      %v2263 = vtanh.pop %v2261
      %v2264 = vtanh.pop %v2262
      %v2265 = vadd.f32 %v2263, 1.0
      %v2266 = vadd.f32 %v2264, 1.0
      %v2267 = vmul.f32 %v2265, 0.5
      %v2268 = vmul.f32 %v2266, 0.5
      %v2269 = vmul.f32 %v2247, %v2267
      %v2270 = vmul.f32 %v2250, %v2268
      %s2271 = scalar_lea.vmem %s14, 32
      %v2272 = vld [vmem:[%s2271] sm:$0xf]
      %v2273 = vld [vmem:[%s2271 + $0x4] sm:$0xf]
      %v2274 = vld [vmem:[%s2271 + $0x8] sm:$0xf]
      %v2275 = vld [vmem:[%s2271 + $0xc] sm:$0xf]
      %v2276 = vld [vmem:[%s2271 + $0x10] sm:$0xf]
      %v2277 = vld [vmem:[%s2271 + $0x14] sm:$0xf]
      %v2278 = vld [vmem:[%s2271 + $0x18] sm:$0xf]
      %v2279 = vld [vmem:[%s2271 + $0x1c] sm:$0xf]
      %v2280 = vpack.c.bf16 %v2270, %v2269
      %v2289 = vunpack.c.l.b16 %v2272
      %v2290 = vunpack.c.l.b16 %v2273
      %v2291 = vunpack.c.l.b16 %v2274
      %v2292 = vunpack.c.l.b16 %v2275
      %v2293 = vunpack.c.l.b16 %v2276
      %v2294 = vunpack.c.l.b16 %v2277
      %v2295 = vunpack.c.l.b16 %v2278
      %v2296 = vunpack.c.l.b16 %v2279
      %v2297 = vpack.c.b16 %v2290, %v2289
      %v2298 = vpack.c.b16 %v2292, %v2291
      %v2299 = vpack.c.b16 %v2294, %v2293
      %v2300 = vpack.c.b16 %v2296, %v2295
      %v2306 = vsel %vm639, %v2280, 0
      %2308 = vmatprep.subr.bf16.mxu0 0
      %2309 = vmatpush1.bf16.msra.mxu0 0
      %2310 = vmatprep.subr.bf16.mxu0 0
      %2311 = vmatpush1.bf16.msra.mxu0 0
      %2312 = vmatprep.subr.bf16.mxu0 0
      %2313 = vmatpush1.bf16.msra.mxu0 0
      %2314 = vmatprep.subr.bf16.mxu0 0
      %2315 = vmatpush1.bf16.msra.mxu0 0
      %2316 = vmatprep.subr.bf16.mxu0 0
      %2317 = vmatpush1.bf16.msra.mxu0 %v2300
      %2318 = vmatprep.subr.bf16.mxu0 0
      %2319 = vmatpush1.bf16.msra.mxu0 %v2299
      %2320 = vmatprep.subr.bf16.mxu0 0
      %2321 = vmatpush1.bf16.msra.mxu0 %v2298
      %2322 = vmatprep.subr.bf16.mxu0 0
      %2323 = vmatpush1.bf16.msra.mxu0 %v2297
      %2324 = vmatprep.subr.bf16.mxu0 0
      %2325 = vmatpush2.bf16.msra.mxu0 0
      %2326 = vmatprep.subr.bf16.mxu0 0
      %2327 = vmatpush2.bf16.msra.mxu0 0
      %2328 = vmatprep.subr.bf16.mxu0 0
      %2329 = vmatpush2.bf16.msra.mxu0 0
      %2330 = vmatprep.subr.bf16.mxu0 0
      %2331 = vmatpush2.bf16.msra.mxu0 0
      %2332 = vmatprep.subr.bf16.mxu0 0
      %2333 = vmatpush2.bf16.msra.mxu0 0
      %2334 = vmatprep.subr.bf16.mxu0 0
      %2335 = vmatpush2.bf16.msra.mxu0 0
      %2336 = vmatprep.subr.bf16.mxu0 0
      %2337 = vmatpush2.bf16.msra.mxu0 0
      %2338 = vmatprep.subr.bf16.mxu0 0
      %2339 = vmatpush2.bf16.msra.mxu0 0
      %2340 = vmatprep.mubr.bf16.mxu0 0
      %2341 = vmatmul.mubr.bf16.gmra.mxu0 %v2306
      %v2342 = vpop.f32.mrf.mxu0
      %v2343 = vadd.f32 0.0, %v2342
      %v2344 = vpop.f32.mrf.mxu0
      %v2345 = vpop.f32.mrf.mxu0
      %v2346 = vadd.f32 0.0, %v2345
      %v2347 = vpop.f32.mrf.mxu0
      %2348 = vdwg.mxu0
      %v2349 = vadd.f32 %v2143, %v2343
      %v2350 = vadd.f32 %v2144, %v2346
      %s2351 = scalar_lea.vmem %s15, 1
      %v2352 = vld [vmem:[%s2351] sm:$0x1]
      %v2354 = vlaneseq
      %v2355 = vshrl.u32 %v2354, 7
      %v2356 = vsub.s32 0, %v2355
      %v2357 = vrot.slane %v2352, %v2356
      %v2359 = vadd.f32 %v2349, %v2357
      %v2360 = vadd.f32 %v2350, %v2357
      %v2361 = vld [vmem:[%s16] sm:$0xf]
      %v2362 = vld [vmem:[%s16 + $0x4] sm:$0xf]
      %v2363 = vld [vmem:[%s16 + $0x8] sm:$0xf]
      %v2364 = vld [vmem:[%s16 + $0xc] sm:$0xf]
      %v2365 = vpack.c.bf16 %v1579, %v1578
      %v2366 = vld [vmem:[%s17] sm:$0x1]
      %v2368 = vlaneseq
      %v2369 = vshrl.u32 %v2368, 7
      %v2370 = vsub.s32 0, %v2369
      %v2371 = vrot.slane %v2366, %v2370
      %v2377 = vunpack.c.l.b16 %v2361
      %v2378 = vunpack.c.l.b16 %v2362
      %v2379 = vunpack.c.l.b16 %v2363
      %v2380 = vunpack.c.l.b16 %v2364
      %v2381 = vpack.c.b16 %v2378, %v2377
      %v2382 = vpack.c.b16 %v2380, %v2379
      %v2386 = vsel %vm783, %v2365, 0
      %2388 = vmatprep.subr.bf16.mxu0 0
      %2389 = vmatpush1.bf16.msra.mxu0 0
      %2390 = vmatprep.subr.bf16.mxu0 0
      %2391 = vmatpush1.bf16.msra.mxu0 0
      %2392 = vmatprep.subr.bf16.mxu0 0
      %2393 = vmatpush1.bf16.msra.mxu0 0
      %2394 = vmatprep.subr.bf16.mxu0 0
      %2395 = vmatpush1.bf16.msra.mxu0 0
      %2396 = vmatprep.subr.bf16.mxu0 0
      %2397 = vmatpush1.bf16.msra.mxu0 0
      %2398 = vmatprep.subr.bf16.mxu0 0
      %2399 = vmatpush1.bf16.msra.mxu0 0
      %2400 = vmatprep.subr.bf16.mxu0 0
      %2401 = vmatpush1.bf16.msra.mxu0 %v2382
      %2402 = vmatprep.subr.bf16.mxu0 0
      %2403 = vmatpush1.bf16.msra.mxu0 %v2381
      %2404 = vmatprep.subr.bf16.mxu0 0
      %2405 = vmatpush2.bf16.msra.mxu0 0
      %2406 = vmatprep.subr.bf16.mxu0 0
      %2407 = vmatpush2.bf16.msra.mxu0 0
      %2408 = vmatprep.subr.bf16.mxu0 0
      %2409 = vmatpush2.bf16.msra.mxu0 0
      %2410 = vmatprep.subr.bf16.mxu0 0
      %2411 = vmatpush2.bf16.msra.mxu0 0
      %2412 = vmatprep.subr.bf16.mxu0 0
      %2413 = vmatpush2.bf16.msra.mxu0 0
      %2414 = vmatprep.subr.bf16.mxu0 0
      %2415 = vmatpush2.bf16.msra.mxu0 0
      %2416 = vmatprep.subr.bf16.mxu0 0
      %2417 = vmatpush2.bf16.msra.mxu0 0
      %2418 = vmatprep.subr.bf16.mxu0 0
      %2419 = vmatpush2.bf16.msra.mxu0 0
      %2420 = vmatprep.mubr.bf16.mxu0 0
      %2421 = vmatmul.mubr.bf16.gmra.mxu0 %v2386
      %v2422 = vpop.f32.mrf.mxu0
      %v2423 = vadd.f32 %v2371, %v2422
      %v2424 = vpop.f32.mrf.mxu0
      %v2425 = vpop.f32.mrf.mxu0
      %v2426 = vadd.f32 %v2371, %v2425
      %v2427 = vpop.f32.mrf.mxu0
      %2428 = vdwg.mxu0
      %s2429 = scalar_lea.vmem %s16, 16
      %v2430 = vld [vmem:[%s2429] sm:$0xf]
      %v2431 = vld [vmem:[%s2429 + $0x4] sm:$0xf]
      %v2432 = vld [vmem:[%s2429 + $0x8] sm:$0xf]
      %v2433 = vld [vmem:[%s2429 + $0xc] sm:$0xf]
      %v2434 = vpack.c.bf16 %v2360, %v2359
      %s2435 = scalar_lea.vmem %s17, 1
      %v2436 = vld [vmem:[%s2435] sm:$0x1]
      %v2438 = vlaneseq
      %v2439 = vshrl.u32 %v2438, 7
      %v2440 = vsub.s32 0, %v2439
      %v2441 = vrot.slane %v2436, %v2440
      %v2447 = vunpack.c.l.b16 %v2430
      %v2448 = vunpack.c.l.b16 %v2431
      %v2449 = vunpack.c.l.b16 %v2432
      %v2450 = vunpack.c.l.b16 %v2433
      %v2451 = vpack.c.b16 %v2448, %v2447
      %v2452 = vpack.c.b16 %v2450, %v2449
      %v2456 = vsel %vm783, %v2434, 0
      %2458 = vmatprep.subr.bf16.mxu0 0
      %2459 = vmatpush1.bf16.msra.mxu0 0
      %2460 = vmatprep.subr.bf16.mxu0 0
      %2461 = vmatpush1.bf16.msra.mxu0 0
      %2462 = vmatprep.subr.bf16.mxu0 0
      %2463 = vmatpush1.bf16.msra.mxu0 0
      %2464 = vmatprep.subr.bf16.mxu0 0
      %2465 = vmatpush1.bf16.msra.mxu0 0
      %2466 = vmatprep.subr.bf16.mxu0 0
      %2467 = vmatpush1.bf16.msra.mxu0 0
      %2468 = vmatprep.subr.bf16.mxu0 0
      %2469 = vmatpush1.bf16.msra.mxu0 0
      %2470 = vmatprep.subr.bf16.mxu0 0
      %2471 = vmatpush1.bf16.msra.mxu0 %v2452
      %2472 = vmatprep.subr.bf16.mxu0 0
      %2473 = vmatpush1.bf16.msra.mxu0 %v2451
      %2474 = vmatprep.subr.bf16.mxu0 0
      %2475 = vmatpush2.bf16.msra.mxu0 0
      %2476 = vmatprep.subr.bf16.mxu0 0
      %2477 = vmatpush2.bf16.msra.mxu0 0
      %2478 = vmatprep.subr.bf16.mxu0 0
      %2479 = vmatpush2.bf16.msra.mxu0 0
      %2480 = vmatprep.subr.bf16.mxu0 0
      %2481 = vmatpush2.bf16.msra.mxu0 0
      %2482 = vmatprep.subr.bf16.mxu0 0
      %2483 = vmatpush2.bf16.msra.mxu0 0
      %2484 = vmatprep.subr.bf16.mxu0 0
      %2485 = vmatpush2.bf16.msra.mxu0 0
      %2486 = vmatprep.subr.bf16.mxu0 0
      %2487 = vmatpush2.bf16.msra.mxu0 0
      %2488 = vmatprep.subr.bf16.mxu0 0
      %2489 = vmatpush2.bf16.msra.mxu0 0
      %2490 = vmatprep.mubr.bf16.mxu0 0
      %2491 = vmatmul.mubr.bf16.gmra.mxu0 %v2456
      %v2492 = vpop.f32.mrf.mxu0
      %v2493 = vadd.f32 %v2441, %v2492
      %v2494 = vpop.f32.mrf.mxu0
      %v2495 = vpop.f32.mrf.mxu0
      %v2496 = vadd.f32 %v2441, %v2495
      %v2497 = vpop.f32.mrf.mxu0
      %2498 = vdwg.mxu0
      %v2499 = vadd.f32 %v2423, %v2493
      %v2500 = vadd.f32 %v2426, %v2496
      %2501 = vst.msk [vmem:[%s595] sm:$0xff] %vm639, %v2499
      %2502 = vst.msk [vmem:[%s595 + $0x8] sm:$0xff] %vm639, %v2500
      %p2503 = scmp.lt.s32.totalorder %s29, 1
      %s2504 = scalar_select %p2503, %s29, 1
      %s2505 = smul.addr %s2504, 2
      %s2506 = smul.addr %s2505, 8
      %s2507 = scalar_lea.vmem %s18, %s2506
      // Predicated region
      $region93: #{_lambda_.13} parent=91 // pred_check
        %p2508 = pneg %p435
      $region94: #{_lambda_.13} parent=91 // pred_check_branch
        %2510 = sbr.rel (%p2508) target = $region96
      $region95: #{_lambda_.13} parent=91 // pred_region
        _
      $region96: #{_lambda_.13} parent=91 // pred_fallthru
        _
    $region92: #{_lambda_.13} parent=5 // pred_fallthru
      _
    %p2511 = scmp.le.s32.totalorder 2, %s24
    // Predicated region
    $region97: #{_lambda_.13} parent=5 // pred_check
      %p2512 = pneg %p2511
    $region98: #{_lambda_.13} parent=5 // pred_check_branch
      %2514 = sbr.rel (%p2512) target = $region100
    $region99: #{_lambda_.13} parent=5 // pred_region
      %s2515 = ssub.s32 %s24, 2
      // Predicated region
      $region101: #{_lambda_.13} parent=99 // pred_check
        %p2516 = pneg %p441
      $region102: #{_lambda_.13} parent=99 // pred_check_branch
        %2518 = sbr.rel (%p2516) target = $region104
      $region103: #{_lambda_.13} parent=99 // pred_region
        %p2519 = scmp.lt.s32.totalorder %s30, 1
        %s2520 = scalar_select %p2519, %s30, 1
        %s2521 = smul.addr %s2520, 2
        %s2522 = smul.addr %s2521, 8
        %s2523 = scalar_lea.vmem %s18, %s2522
      $region104: #{_lambda_.13} parent=99 // pred_fallthru
        _
    $region100: #{_lambda_.13} parent=5 // pred_fallthru
      _
  $region6: #{_lambda_.13} parent=0 // loop_footer
    %s28 = sadd.s32 1, %s24
  $region7: #{_lambda_.13} parent=0 // loop_footer_branch
    %23 = sbr.rel target = $region3
  $region8: #{_lambda_.13} parent=0 // loop_exit
    _

// kernel: _lambda_.21
$region0: #{_lambda_.21}
  #allocation0 [shape = 'u32[]', space=smem, size = 0x4, offset = 0x4, fixed_abs, tag = 'smem constant byte address 0x4 - core index']
  #allocation1 [shape = 'u32[144,128]{1,0:T(1,128)}', space=vmem, size = 0x12000, scoped, tag = 'internal scratch']
  %s0 = inlined_call_operand.vmem [shape: bf16[64,16], index: 0, kind: input, shape index: {}]
  %s1 = inlined_call_operand.vmem [shape: bf16[16,512], index: 1, kind: input, shape index: {}]
  %s2 = inlined_call_operand.vmem [shape: f32[64,1], index: 2, kind: input, shape index: {}]
  %s3 = inlined_call_operand.vmem [shape: f32[64,1], index: 3, kind: input, shape index: {}]
  %s4 = inlined_call_operand.vmem [shape: f32[64,512], index: 4, kind: output, shape index: {}]
  %s5 = sld [smem:[#allocation0]]
  $region106: #{_lambda_.21} parent=0
    _
  %s7 = ssub.s32 1, %s5
  %s8 = scalar_select 0, %s7, %s5
  $region1: #{_lambda_.21} parent=0
    #allocation2 [shape = 'u8[16384]{0}', space=vmem, size = 0x4000, scoped, tag = 'input window, operand 1']
    #allocation3 [shape = 'u8[131072]{0}', space=vmem, size = 0x20000, scoped, tag = 'output window, operand 0']
    loop: start=0, step=1, limit=4
    $region2: #{_lambda_.21} parent=1 // loop_pre_header
      _
    $region3: #{_lambda_.21} parent=1 // loop_header
      %s10 = sphi 0, %s14
      %p11 = scmp.ge.s32.totalorder %s10, 4
      %s18 = sphi 0, %s18
      %s20 = sphi 0, %s18
      %s21 = sphi 0, %s20
      %s35 = sphi 0, %s21
      %s41 = sphi 0, %s43
      %s44 = sphi 0, %s41
      %s45 = sphi 0, %s44
      %s61 = sphi 0, %s45
      %s65 = sphi 0, %s65
      %s67 = sphi 0, %s65
      %s68 = sphi 0, %s67
      %s82 = sphi 0, %s68
      %s86 = sphi 0, %s86
      %s88 = sphi 0, %s86
      %s89 = sphi 0, %s88
      %s103 = sphi 0, %s89
      %s109 = sphi 0, %s111
      %s112 = sphi 0, %s109
      %s113 = sphi 0, %s112
      %s129 = sphi 0, %s113
    $region4: #{_lambda_.21} parent=1 // loop_header_branch
      %13 = sbr.rel (%p11) target = $region8
    $region5: #{_lambda_.21} parent=1 // loop_body
      %s15 = ssub.s32 %s10, 1
      %s16 = ssub.s32 %s10, 2
      %s17 = sadd.s32 %s10, 1
      %s19 = sadd.s32 %s18, 1
      %p22 = scmp.eq.s32.totalorder %s10, 1
      %p23 = scmp.ne.s32.totalorder %s18, %s20
      %p24 = scmp.eq.s32.totalorder %s10, 0
      %p25 = por %p23, %p24
      %p26 = scmp.ne.s32.totalorder %s18, %s20
      %p27 = scmp.eq.s32.totalorder %s15, 1
      %p28 = por %p26, %p27
      %p29 = scmp.ne.s32.totalorder %s20, %s21
      %p30 = scmp.eq.s32.totalorder %s15, 0
      %p31 = por %p29, %p30
      %p32 = scmp.ne.s32.totalorder %s20, %s21
      %p33 = scmp.eq.s32.totalorder %s16, 1
      %p34 = por %p32, %p33
      %p36 = scmp.ne.s32.totalorder %s21, %s35
      %p37 = scmp.eq.s32.totalorder %s16, 0
      %p38 = por %p36, %p37
      %s39 = ssub.s32 %s10, %s17
      %p40 = scmp.eq.s32.totalorder %s39, 0
      %s42 = sadd.s32 %s41, 1
      %s43 = scalar_select %p40, %s41, %s42
      %p46 = pneg %p40
      %p47 = scmp.eq.s32.totalorder %s10, 1
      %p48 = por %p46, %p47
      %p49 = scmp.ne.s32.totalorder %s41, %s44
      %p50 = scmp.eq.s32.totalorder %s10, 0
      %p51 = por %p49, %p50
      %p52 = scmp.ne.s32.totalorder %s41, %s44
      %p53 = scmp.eq.s32.totalorder %s15, 1
      %p54 = por %p52, %p53
      %p55 = scmp.ne.s32.totalorder %s44, %s45
      %p56 = scmp.eq.s32.totalorder %s15, 0
      %p57 = por %p55, %p56
      %p58 = scmp.ne.s32.totalorder %s44, %s45
      %p59 = scmp.eq.s32.totalorder %s16, 1
      %p60 = por %p58, %p59
      %p62 = scmp.ne.s32.totalorder %s45, %s61
      %p63 = scmp.eq.s32.totalorder %s16, 0
      %p64 = por %p62, %p63
      %s66 = sadd.s32 %s65, 1
      %p69 = scmp.eq.s32.totalorder %s10, 1
      %p70 = scmp.ne.s32.totalorder %s65, %s67
      %p71 = scmp.eq.s32.totalorder %s10, 0
      %p72 = por %p70, %p71
      %p73 = scmp.ne.s32.totalorder %s65, %s67
      %p74 = scmp.eq.s32.totalorder %s15, 1
      %p75 = por %p73, %p74
      %p76 = scmp.ne.s32.totalorder %s67, %s68
      %p77 = scmp.eq.s32.totalorder %s15, 0
      %p78 = por %p76, %p77
      %p79 = scmp.ne.s32.totalorder %s67, %s68
      %p80 = scmp.eq.s32.totalorder %s16, 1
      %p81 = por %p79, %p80
      %p83 = scmp.ne.s32.totalorder %s68, %s82
      %p84 = scmp.eq.s32.totalorder %s16, 0
      %p85 = por %p83, %p84
      %s87 = sadd.s32 %s86, 1
      %p90 = scmp.eq.s32.totalorder %s10, 1
      %p91 = scmp.ne.s32.totalorder %s86, %s88
      %p92 = scmp.eq.s32.totalorder %s10, 0
      %p93 = por %p91, %p92
      %p94 = scmp.ne.s32.totalorder %s86, %s88
      %p95 = scmp.eq.s32.totalorder %s15, 1
      %p96 = por %p94, %p95
      %p97 = scmp.ne.s32.totalorder %s88, %s89
      %p98 = scmp.eq.s32.totalorder %s15, 0
      %p99 = por %p97, %p98
      %p100 = scmp.ne.s32.totalorder %s88, %s89
      %p101 = scmp.eq.s32.totalorder %s16, 1
      %p102 = por %p100, %p101
      %p104 = scmp.ne.s32.totalorder %s89, %s103
      %p105 = scmp.eq.s32.totalorder %s16, 0
      %p106 = por %p104, %p105
      %s107 = ssub.s32 %s10, %s17
      %p108 = scmp.eq.s32.totalorder %s107, 0
      %s110 = sadd.s32 %s109, 1
      %s111 = scalar_select %p108, %s109, %s110
      %p114 = pneg %p108
      %p115 = scmp.eq.s32.totalorder %s10, 1
      %p116 = por %p114, %p115
      %p117 = scmp.ne.s32.totalorder %s109, %s112
      %p118 = scmp.eq.s32.totalorder %s10, 0
      %p119 = por %p117, %p118
      %p120 = scmp.ne.s32.totalorder %s109, %s112
      %p121 = scmp.eq.s32.totalorder %s15, 1
      %p122 = por %p120, %p121
      %p123 = scmp.ne.s32.totalorder %s112, %s113
      %p124 = scmp.eq.s32.totalorder %s15, 0
      %p125 = por %p123, %p124
      %p126 = scmp.ne.s32.totalorder %s112, %s113
      %p127 = scmp.eq.s32.totalorder %s16, 1
      %p128 = por %p126, %p127
      %p130 = scmp.ne.s32.totalorder %s113, %s129
      %p131 = scmp.eq.s32.totalorder %s16, 0
      %p132 = por %p130, %p131
      %p133 = scmp.le.s32.totalorder 1, %s10
      %p134 = scmp.lt.s32.totalorder %s10, 3
      %p135 = pnand %p133, %p134
      %p136 = pneg %p135
      // Predicated region
      $region9: #{_lambda_.21} parent=5 // pred_check
        _
      $region10: #{_lambda_.21} parent=5 // pred_check_branch
        %138 = sbr.rel (%p135) target = $region12
      $region11: #{_lambda_.21} parent=5 // pred_region
        %s139 = ssub.s32 %s10, 1
        // Predicated region
        $region13: #{_lambda_.21} parent=11 // pred_check
          %p140 = pneg %p31
        $region14: #{_lambda_.21} parent=11 // pred_check_branch
          %142 = sbr.rel (%p140) target = $region16
        $region15: #{_lambda_.21} parent=11 // pred_region
          _
        $region16: #{_lambda_.21} parent=11 // pred_fallthru
          _
        // Predicated region
        $region17: #{_lambda_.21} parent=11 // pred_check
          %p143 = pneg %p78
        $region18: #{_lambda_.21} parent=11 // pred_check_branch
          %145 = sbr.rel (%p143) target = $region20
        $region19: #{_lambda_.21} parent=11 // pred_region
          _
        $region20: #{_lambda_.21} parent=11 // pred_fallthru
          _
        // Predicated region
        $region21: #{_lambda_.21} parent=11 // pred_check
          %p146 = pneg %p99
        $region22: #{_lambda_.21} parent=11 // pred_check_branch
          %148 = sbr.rel (%p146) target = $region24
        $region23: #{_lambda_.21} parent=11 // pred_region
          _
        $region24: #{_lambda_.21} parent=11 // pred_fallthru
          _
      $region12: #{_lambda_.21} parent=5 // pred_fallthru
        _
      %p149 = scmp.lt.s32.totalorder %s10, 2
      // Predicated region
      $region25: #{_lambda_.21} parent=5 // pred_check
        %p150 = pneg %p149
      $region26: #{_lambda_.21} parent=5 // pred_check_branch
        %152 = sbr.rel (%p150) target = $region28
      $region27: #{_lambda_.21} parent=5 // pred_region
        // Predicated region
        $region29: #{_lambda_.21} parent=27 // pred_check
          %p153 = pneg %p51
        $region30: #{_lambda_.21} parent=27 // pred_check_branch
          %155 = sbr.rel (%p153) target = $region32
        $region31: #{_lambda_.21} parent=27 // pred_region
          %s156 = sand.u32 %s41, 1
          %s157 = sand.u32 %s41, 1
          %s158 = smul.addr %s157, 16
          %s159 = scalar_lea.vmem [#allocation2], %s158
          %s160 = smul.u32 2, %s10
          %s161 = smul.addr %s160, 4
          %s162 = scalar_lea.vmem %s1, %s161
          // Predicated region
          $region33: #{_lambda_.21} parent=31 // pred_check
            _
          $region34: #{_lambda_.21} parent=31 // pred_check_branch
            %164 = sbr.rel (0) target = $region36
          $region35: #{_lambda_.21} parent=31 // pred_region
            // Predicated region
            $region37: #{_lambda_.21} parent=35 // pred_check
              _
            $region38: #{_lambda_.21} parent=35 // pred_check_branch
              %166 = sbr.rel (0) target = $region40
            $region39: #{_lambda_.21} parent=35 // pred_region
              // Predicated region
              $region52: #{_lambda_.21} parent=39 // pred_check
                _
              $region53: #{_lambda_.21} parent=39 // pred_check_branch
                %184 = sbr.rel (0) target = $region55
              $region54: #{_lambda_.21} parent=39 // pred_region
                loop: start=0, step=1, limit=1
                $region56: #{_lambda_.21} parent=54 // loop_pre_header
                  _
                $region57: #{_lambda_.21} parent=54 // loop_header
                  %s186 = sphi 0, %s190
                  %p187 = scmp.ge.s32.totalorder %s186, 1
                  %s191 = sphi %s162, %s162
                  %s192 = sphi %s159, %s159
                $region58: #{_lambda_.21} parent=54 // loop_header_branch
                  %189 = sbr.rel (%p187) target = $region62
                $region59: #{_lambda_.21} parent=54 // loop_body
                  %v193 = vld [vmem:[%s191] sm:$0xff]
                  %194 = vst [vmem:[%s192] sm:$0xff] %v193
                  %v195 = vld [vmem:[%s191 + $0x10] sm:$0xff]
                  %196 = vst [vmem:[%s192 + $0x8] sm:$0xff] %v195
                $region60: #{_lambda_.21} parent=54 // loop_footer
                  %s190 = sadd.s32 1, %s186
                $region61: #{_lambda_.21} parent=54 // loop_footer_branch
                  %185 = sbr.rel target = $region57
                $region62: #{_lambda_.21} parent=54 // loop_exit
                  _
              $region55: #{_lambda_.21} parent=39 // pred_fallthru
                _
              // Predicated region
              $region63: #{_lambda_.21} parent=39 // pred_check
                _
              $region64: #{_lambda_.21} parent=39 // pred_check_branch
                %198 = sbr.rel target = $region66
              $region65: #{_lambda_.21} parent=39 // pred_region
                _
              $region66: #{_lambda_.21} parent=39 // pred_fallthru
                _
            $region40: #{_lambda_.21} parent=35 // pred_fallthru
              _
            // Predicated region
            $region41: #{_lambda_.21} parent=35 // pred_check
              _
            $region42: #{_lambda_.21} parent=35 // pred_check_branch
              %168 = sbr.rel target = $region44
            $region43: #{_lambda_.21} parent=35 // pred_region
              %s170 = ssub.s32 256, 1
              loop: start=0, step=1, limit=1
              $region45: #{_lambda_.21} parent=43 // loop_pre_header
                _
              $region46: #{_lambda_.21} parent=43 // loop_header
                %s172 = sphi 0, %s176
                %p173 = scmp.ge.s32.totalorder %s172, 1
                %s177 = sphi %s162, %s162
                %s178 = sphi %s159, %s159
              $region47: #{_lambda_.21} parent=43 // loop_header_branch
                %175 = sbr.rel (%p173) target = $region51
              $region48: #{_lambda_.21} parent=43 // loop_body
                %v179 = vld [vmem:[%s177] sm:%s170]
                %180 = vst [vmem:[%s178] sm:%s170] %v179
                %v181 = vld [vmem:[%s177 + $0x10] sm:%s170]
                %182 = vst [vmem:[%s178 + $0x8] sm:%s170] %v181
              $region49: #{_lambda_.21} parent=43 // loop_footer
                %s176 = sadd.s32 1, %s172
              $region50: #{_lambda_.21} parent=43 // loop_footer_branch
                %171 = sbr.rel target = $region46
              $region51: #{_lambda_.21} parent=43 // loop_exit
                _
            $region44: #{_lambda_.21} parent=35 // pred_fallthru
              _
          $region36: #{_lambda_.21} parent=31 // pred_fallthru
            _
          %199 = vnop
        $region32: #{_lambda_.21} parent=27 // pred_fallthru
          _
      $region28: #{_lambda_.21} parent=5 // pred_fallthru
        _
      %p200 = scmp.le.s32.totalorder 1, %s10
      %p201 = scmp.lt.s32.totalorder %s10, 3
      %p202 = pnand %p200, %p201
      %p203 = pneg %p202
      // Predicated region
      $region67: #{_lambda_.21} parent=5 // pred_check
        _
      $region68: #{_lambda_.21} parent=5 // pred_check_branch
        %205 = sbr.rel (%p202) target = $region70
      $region69: #{_lambda_.21} parent=5 // pred_region
        %s206 = ssub.s32 %s10, 1
        %s207 = sand.u32 %s44, 1
        %s208 = sand.u32 %s44, 1
        %s209 = smul.addr %s208, 16
        %s210 = scalar_lea.vmem [#allocation2], %s209
        // Predicated region
        $region71: #{_lambda_.21} parent=69 // pred_check
          %p211 = pneg %p57
        $region72: #{_lambda_.21} parent=69 // pred_check_branch
          %213 = sbr.rel (%p211) target = $region74
        $region73: #{_lambda_.21} parent=69 // pred_region
          _
        $region74: #{_lambda_.21} parent=69 // pred_fallthru
          _
        %p214 = pneg %p31
        %p215 = pneg %p28
        %s216 = sand.u32 %s44, 1
        %s217 = sand.u32 %s44, 1
        %s218 = smul.addr %s217, 16
        %s219 = scalar_lea.vmem [#allocation2], %s218
        %p220 = pneg %p57
        %p221 = pneg %p54
        %p222 = pneg %p78
        %p223 = pneg %p75
        %p224 = pneg %p99
        %p225 = pneg %p96
        %p226 = pneg %p125
        %p227 = pneg %p122
        %s228 = sand.u32 %s112, 1
        %s229 = sand.u32 %s112, 1
        %s230 = smul.addr %s229, 128
        %s231 = scalar_lea.vmem [#allocation3], %s230
        %s232 = smul.u32 2, %s15
        %s233 = smul.u32 2, %s15
        %v235 = vld [vmem:[%s0] sm:$0xf]
        %v236 = vld [vmem:[%s0 + $0x4] sm:$0xf]
        %v237 = vld [vmem:[%s0 + $0x8] sm:$0xf]
        %v238 = vld [vmem:[%s0 + $0xc] sm:$0xf]
        %v239 = vld [vmem:[%s0 + $0x10] sm:$0xf]
        %v240 = vld [vmem:[%s0 + $0x14] sm:$0xf]
        %v241 = vld [vmem:[%s0 + $0x18] sm:$0xf]
        %v242 = vld [vmem:[%s0 + $0x1c] sm:$0xf]
        %v243 = vld [vmem:[%s210] sm:$0xff]
        %v244 = vld [vmem:[%s210 + $0x8] sm:$0xff]
        %v253 = vunpack.c.l.b16 %v235
        %v254 = vunpack.c.l.b16 %v236
        %v255 = vunpack.c.l.b16 %v237
        %v256 = vunpack.c.l.b16 %v238
        %v257 = vunpack.c.l.b16 %v239
        %v258 = vunpack.c.l.b16 %v240
        %v259 = vunpack.c.l.b16 %v241
        %v260 = vunpack.c.l.b16 %v242
        %v261 = vpack.c.b16 %v254, %v253
        %v262 = vpack.c.b16 %v256, %v255
        %v263 = vpack.c.b16 %v258, %v257
        %v264 = vpack.c.b16 %v260, %v259
        %v267 = vunpack.c.l.b16 %v243
        %v268 = vunpack.c.h.b16 %v243
        %v269 = vunpack.c.l.b16 %v244
        %v270 = vunpack.c.h.b16 %v244
        %v271 = vpack.c.b16 %v269, %v267
        %v272 = vpack.c.b16 %v270, %v268
        %vm275 = vcmask 130048
        %v277 = vsel %vm275, %v261, 0
        %v280 = vsel %vm275, %v262, 0
        %v283 = vsel %vm275, %v263, 0
        %v286 = vsel %vm275, %v264, 0
        %288 = vmatprep.subr.bf16.mxu0 0
        %289 = vmatpush1.bf16.msra.mxu0 0
        %290 = vmatprep.subr.bf16.mxu0 0
        %291 = vmatpush1.bf16.msra.mxu0 0
        %292 = vmatprep.subr.bf16.mxu0 0
        %293 = vmatpush1.bf16.msra.mxu0 0
        %294 = vmatprep.subr.bf16.mxu0 0
        %295 = vmatpush1.bf16.msra.mxu0 0
        %296 = vmatprep.subr.bf16.mxu0 0
        %297 = vmatpush1.bf16.msra.mxu0 0
        %298 = vmatprep.subr.bf16.mxu0 0
        %299 = vmatpush1.bf16.msra.mxu0 0
        %300 = vmatprep.subr.bf16.mxu0 0
        %301 = vmatpush1.bf16.msra.mxu0 0
        %302 = vmatprep.subr.bf16.mxu0 %v272
        %303 = vmatpush1.bf16.msra.mxu0 %v271
        %304 = vmatprep.subr.bf16.mxu0 0
        %305 = vmatpush2.bf16.msra.mxu0 0
        %306 = vmatprep.subr.bf16.mxu0 0
        %307 = vmatpush2.bf16.msra.mxu0 0
        %308 = vmatprep.subr.bf16.mxu0 0
        %309 = vmatpush2.bf16.msra.mxu0 0
        %310 = vmatprep.subr.bf16.mxu0 0
        %311 = vmatpush2.bf16.msra.mxu0 0
        %312 = vmatprep.subr.bf16.mxu0 0
        %313 = vmatpush2.bf16.msra.mxu0 0
        %314 = vmatprep.subr.bf16.mxu0 0
        %315 = vmatpush2.bf16.msra.mxu0 0
        %316 = vmatprep.subr.bf16.mxu0 0
        %317 = vmatpush2.bf16.msra.mxu0 0
        %318 = vmatprep.subr.bf16.mxu0 0
        %319 = vmatpush2.bf16.msra.mxu0 0
        %320 = vmatprep.mubr.bf16.mxu0 0
        %321 = vmatmul.mubr.bf16.gmra.mxu0 %v277
        %v322 = vpop.f32.mrf.mxu0
        %v323 = vadd.f32 0.0, %v322
        %v324 = vpop.f32.mrf.mxu0
        %v325 = vadd.f32 0.0, %v324
        %v326 = vpop.f32.mrf.mxu0
        %v327 = vadd.f32 0.0, %v326
        %v328 = vpop.f32.mrf.mxu0
        %v329 = vadd.f32 0.0, %v328
        %330 = vmatprep.mubr.bf16.mxu0 0
        %331 = vmatmul.mubr.bf16.gmra.mxu0 %v280
        %v332 = vpop.f32.mrf.mxu0
        %v333 = vadd.f32 0.0, %v332
        %v334 = vpop.f32.mrf.mxu0
        %v335 = vadd.f32 0.0, %v334
        %v336 = vpop.f32.mrf.mxu0
        %v337 = vadd.f32 0.0, %v336
        %v338 = vpop.f32.mrf.mxu0
        %v339 = vadd.f32 0.0, %v338
        %340 = vmatprep.mubr.bf16.mxu0 0
        %341 = vmatmul.mubr.bf16.gmra.mxu0 %v283
        %v342 = vpop.f32.mrf.mxu0
        %v343 = vadd.f32 0.0, %v342
        %v344 = vpop.f32.mrf.mxu0
        %v345 = vadd.f32 0.0, %v344
        %v346 = vpop.f32.mrf.mxu0
        %v347 = vadd.f32 0.0, %v346
        %v348 = vpop.f32.mrf.mxu0
        %v349 = vadd.f32 0.0, %v348
        %350 = vmatprep.mubr.bf16.mxu0 0
        %351 = vmatmul.mubr.bf16.gmra.mxu0 %v286
        %v352 = vpop.f32.mrf.mxu0
        %v353 = vadd.f32 0.0, %v352
        %v354 = vpop.f32.mrf.mxu0
        %v355 = vadd.f32 0.0, %v354
        %v356 = vpop.f32.mrf.mxu0
        %v357 = vadd.f32 0.0, %v356
        %v358 = vpop.f32.mrf.mxu0
        %v359 = vadd.f32 0.0, %v358
        %360 = vdwg.mxu0
        %v361 = vld [vmem:[%s2] sm:$0xff]
        %v362 = vld [vmem:[%s2 + $0x8] sm:$0xff]
        %v363 = vld [vmem:[%s2 + $0x10] sm:$0xff]
        %v364 = vld [vmem:[%s2 + $0x18] sm:$0xff]
        %v365 = vld [vmem:[%s2 + $0x20] sm:$0xff]
        %v366 = vld [vmem:[%s2 + $0x28] sm:$0xff]
        %v367 = vld [vmem:[%s2 + $0x30] sm:$0xff]
        %v368 = vld [vmem:[%s2 + $0x38] sm:$0xff]
        %370 = vset.pattern.permute.xlu0 0
        %371 = vperm.xlu0 %370, %v361
        %v372 = vpop.permute.xlu0 %371
        %375 = vset.pattern.permute.xlu0 0
        %376 = vperm.xlu0 %375, %v362
        %v377 = vpop.permute.xlu0 %376
        %380 = vset.pattern.permute.xlu0 0
        %381 = vperm.xlu0 %380, %v363
        %v382 = vpop.permute.xlu0 %381
        %385 = vset.pattern.permute.xlu0 0
        %386 = vperm.xlu0 %385, %v364
        %v387 = vpop.permute.xlu0 %386
        %390 = vset.pattern.permute.xlu0 0
        %391 = vperm.xlu0 %390, %v365
        %v392 = vpop.permute.xlu0 %391
        %395 = vset.pattern.permute.xlu0 0
        %396 = vperm.xlu0 %395, %v366
        %v397 = vpop.permute.xlu0 %396
        %400 = vset.pattern.permute.xlu0 0
        %401 = vperm.xlu0 %400, %v367
        %v402 = vpop.permute.xlu0 %401
        %405 = vset.pattern.permute.xlu0 0
        %406 = vperm.xlu0 %405, %v368
        %v407 = vpop.permute.xlu0 %406
        %v409 = vmul.f32 %v323, %v372
        %v410 = vmul.f32 %v325, %v372
        %v411 = vmul.f32 %v327, %v377
        %v412 = vmul.f32 %v329, %v377
        %v413 = vmul.f32 %v333, %v382
        %v414 = vmul.f32 %v335, %v382
        %v415 = vmul.f32 %v337, %v387
        %v416 = vmul.f32 %v339, %v387
        %v417 = vmul.f32 %v343, %v392
        %v418 = vmul.f32 %v345, %v392
        %v419 = vmul.f32 %v347, %v397
        %v420 = vmul.f32 %v349, %v397
        %v421 = vmul.f32 %v353, %v402
        %v422 = vmul.f32 %v355, %v402
        %v423 = vmul.f32 %v357, %v407
        %v424 = vmul.f32 %v359, %v407
        %v425 = vld [vmem:[%s3] sm:$0xff]
        %v426 = vld [vmem:[%s3 + $0x8] sm:$0xff]
        %v427 = vld [vmem:[%s3 + $0x10] sm:$0xff]
        %v428 = vld [vmem:[%s3 + $0x18] sm:$0xff]
        %v429 = vld [vmem:[%s3 + $0x20] sm:$0xff]
        %v430 = vld [vmem:[%s3 + $0x28] sm:$0xff]
        %v431 = vld [vmem:[%s3 + $0x30] sm:$0xff]
        %v432 = vld [vmem:[%s3 + $0x38] sm:$0xff]
        %434 = vset.pattern.permute.xlu0 0
        %435 = vperm.xlu0 %434, %v425
        %v436 = vpop.permute.xlu0 %435
        %439 = vset.pattern.permute.xlu0 0
        %440 = vperm.xlu0 %439, %v426
        %v441 = vpop.permute.xlu0 %440
        %444 = vset.pattern.permute.xlu0 0
        %445 = vperm.xlu0 %444, %v427
        %v446 = vpop.permute.xlu0 %445
        %449 = vset.pattern.permute.xlu0 0
        %450 = vperm.xlu0 %449, %v428
        %v451 = vpop.permute.xlu0 %450
        %454 = vset.pattern.permute.xlu0 0
        %455 = vperm.xlu0 %454, %v429
        %v456 = vpop.permute.xlu0 %455
        %459 = vset.pattern.permute.xlu0 0
        %460 = vperm.xlu0 %459, %v430
        %v461 = vpop.permute.xlu0 %460
        %464 = vset.pattern.permute.xlu0 0
        %465 = vperm.xlu0 %464, %v431
        %v466 = vpop.permute.xlu0 %465
        %469 = vset.pattern.permute.xlu0 0
        %470 = vperm.xlu0 %469, %v432
        %v471 = vpop.permute.xlu0 %470
        %v473 = vadd.f32 %v409, %v436
        %v474 = vadd.f32 %v410, %v436
        %v475 = vadd.f32 %v411, %v441
        %v476 = vadd.f32 %v412, %v441
        %v477 = vadd.f32 %v413, %v446
        %v478 = vadd.f32 %v414, %v446
        %v479 = vadd.f32 %v415, %v451
        %v480 = vadd.f32 %v416, %v451
        %v481 = vadd.f32 %v417, %v456
        %v482 = vadd.f32 %v418, %v456
        %v483 = vadd.f32 %v419, %v461
        %v484 = vadd.f32 %v420, %v461
        %v485 = vadd.f32 %v421, %v466
        %v486 = vadd.f32 %v422, %v466
        %v487 = vadd.f32 %v423, %v471
        %v488 = vadd.f32 %v424, %v471
        %489 = vst [vmem:[%s231] sm:$0xff] %v473
        %490 = vst [vmem:[%s231 + $0x8] sm:$0xff] %v474
        %491 = vst [vmem:[%s231 + $0x10] sm:$0xff] %v475
        %492 = vst [vmem:[%s231 + $0x18] sm:$0xff] %v476
        %493 = vst [vmem:[%s231 + $0x20] sm:$0xff] %v477
        %494 = vst [vmem:[%s231 + $0x28] sm:$0xff] %v478
        %495 = vst [vmem:[%s231 + $0x30] sm:$0xff] %v479
        %496 = vst [vmem:[%s231 + $0x38] sm:$0xff] %v480
        %497 = vst [vmem:[%s231 + $0x40] sm:$0xff] %v481
        %498 = vst [vmem:[%s231 + $0x48] sm:$0xff] %v482
        %499 = vst [vmem:[%s231 + $0x50] sm:$0xff] %v483
        %500 = vst [vmem:[%s231 + $0x58] sm:$0xff] %v484
        %501 = vst [vmem:[%s231 + $0x60] sm:$0xff] %v485
        %502 = vst [vmem:[%s231 + $0x68] sm:$0xff] %v486
        %503 = vst [vmem:[%s231 + $0x70] sm:$0xff] %v487
        %504 = vst [vmem:[%s231 + $0x78] sm:$0xff] %v488
        %s505 = sand.u32 %s112, 1
        %s506 = sand.u32 %s112, 1
        %s507 = smul.addr %s506, 128
        %s508 = scalar_lea.vmem [#allocation3], %s507
        // Predicated region
        $region75: #{_lambda_.21} parent=69 // pred_check
          %p509 = pneg %p122
        $region76: #{_lambda_.21} parent=69 // pred_check_branch
          %511 = sbr.rel (%p509) target = $region78
        $region77: #{_lambda_.21} parent=69 // pred_region
          %s512 = smul.u32 2, %s15
          %s513 = smul.addr %s512, 8
          %s514 = scalar_lea.vmem %s4, %s513
          // Predicated region
          $region79: #{_lambda_.21} parent=77 // pred_check
            _
          $region80: #{_lambda_.21} parent=77 // pred_check_branch
            %516 = sbr.rel (0) target = $region82
          $region81: #{_lambda_.21} parent=77 // pred_region
            // Predicated region
            $region83: #{_lambda_.21} parent=81 // pred_check
              _
            $region84: #{_lambda_.21} parent=81 // pred_check_branch
              %518 = sbr.rel (0) target = $region86
            $region85: #{_lambda_.21} parent=81 // pred_region
              loop: start=0, step=1, limit=1
              $region87: #{_lambda_.21} parent=85 // loop_pre_header
                _
              $region88: #{_lambda_.21} parent=85 // loop_header
                %s520 = sphi 0, %s524
                %p521 = scmp.ge.s32.totalorder %s520, 1
                %s525 = sphi %s508, %s508
                %s526 = sphi %s514, %s514
              $region89: #{_lambda_.21} parent=85 // loop_header_branch
                %523 = sbr.rel (%p521) target = $region93
              $region90: #{_lambda_.21} parent=85 // loop_body
                %v527 = vld [vmem:[%s525] sm:$0xff]
                %528 = vst [vmem:[%s526] sm:$0xff] %v527
                %v529 = vld [vmem:[%s525 + $0x8] sm:$0xff]
                %530 = vst [vmem:[%s526 + $0x8] sm:$0xff] %v529
                %v531 = vld [vmem:[%s525 + $0x10] sm:$0xff]
                %532 = vst [vmem:[%s526 + $0x20] sm:$0xff] %v531
                %v533 = vld [vmem:[%s525 + $0x18] sm:$0xff]
                %534 = vst [vmem:[%s526 + $0x28] sm:$0xff] %v533
                %v535 = vld [vmem:[%s525 + $0x20] sm:$0xff]
                %536 = vst [vmem:[%s526 + $0x40] sm:$0xff] %v535
                %v537 = vld [vmem:[%s525 + $0x28] sm:$0xff]
                %538 = vst [vmem:[%s526 + $0x48] sm:$0xff] %v537
                %v539 = vld [vmem:[%s525 + $0x30] sm:$0xff]
                %540 = vst [vmem:[%s526 + $0x60] sm:$0xff] %v539
                %v541 = vld [vmem:[%s525 + $0x38] sm:$0xff]
                %542 = vst [vmem:[%s526 + $0x68] sm:$0xff] %v541
                %v543 = vld [vmem:[%s525 + $0x40] sm:$0xff]
                %544 = vst [vmem:[%s526 + $0x80] sm:$0xff] %v543
                %v545 = vld [vmem:[%s525 + $0x48] sm:$0xff]
                %546 = vst [vmem:[%s526 + $0x88] sm:$0xff] %v545
                %v547 = vld [vmem:[%s525 + $0x50] sm:$0xff]
                %548 = vst [vmem:[%s526 + $0xa0] sm:$0xff] %v547
                %v549 = vld [vmem:[%s525 + $0x58] sm:$0xff]
                %550 = vst [vmem:[%s526 + $0xa8] sm:$0xff] %v549
                %v551 = vld [vmem:[%s525 + $0x60] sm:$0xff]
                %552 = vst [vmem:[%s526 + $0xc0] sm:$0xff] %v551
                %v553 = vld [vmem:[%s525 + $0x68] sm:$0xff]
                %554 = vst [vmem:[%s526 + $0xc8] sm:$0xff] %v553
                %v555 = vld [vmem:[%s525 + $0x70] sm:$0xff]
                %556 = vst [vmem:[%s526 + $0xe0] sm:$0xff] %v555
                %v557 = vld [vmem:[%s525 + $0x78] sm:$0xff]
                %558 = vst [vmem:[%s526 + $0xe8] sm:$0xff] %v557
              $region91: #{_lambda_.21} parent=85 // loop_footer
                %s524 = sadd.s32 1, %s520
              $region92: #{_lambda_.21} parent=85 // loop_footer_branch
                %519 = sbr.rel target = $region88
              $region93: #{_lambda_.21} parent=85 // loop_exit
                _
            $region86: #{_lambda_.21} parent=81 // pred_fallthru
              _
            // Predicated region
            $region94: #{_lambda_.21} parent=81 // pred_check
              _
            $region95: #{_lambda_.21} parent=81 // pred_check_branch
              %560 = sbr.rel target = $region97
            $region96: #{_lambda_.21} parent=81 // pred_region
              _
            $region97: #{_lambda_.21} parent=81 // pred_fallthru
              _
          $region82: #{_lambda_.21} parent=77 // pred_fallthru
            _
          %561 = vnop
        $region78: #{_lambda_.21} parent=69 // pred_fallthru
          _
      $region70: #{_lambda_.21} parent=5 // pred_fallthru
        _
      %p562 = scmp.le.s32.totalorder 2, %s10
      // Predicated region
      $region98: #{_lambda_.21} parent=5 // pred_check
        %p563 = pneg %p562
      $region99: #{_lambda_.21} parent=5 // pred_check_branch
        %565 = sbr.rel (%p563) target = $region101
      $region100: #{_lambda_.21} parent=5 // pred_region
        %s566 = ssub.s32 %s10, 2
        // Predicated region
        $region102: #{_lambda_.21} parent=100 // pred_check
          %p567 = pneg %p128
        $region103: #{_lambda_.21} parent=100 // pred_check_branch
          %569 = sbr.rel (%p567) target = $region105
        $region104: #{_lambda_.21} parent=100 // pred_region
          %s570 = sand.u32 %s113, 1
          %s571 = sand.u32 %s113, 1
          %s572 = smul.addr %s571, 128
          %s573 = scalar_lea.vmem [#allocation3], %s572
        $region105: #{_lambda_.21} parent=100 // pred_fallthru
          _
      $region101: #{_lambda_.21} parent=5 // pred_fallthru
        _
    $region6: #{_lambda_.21} parent=1 // loop_footer
      %s14 = sadd.s32 1, %s10
    $region7: #{_lambda_.21} parent=1 // loop_footer_branch
      %9 = sbr.rel target = $region3
    $region8: #{_lambda_.21} parent=1 // loop_exit
      _

</llo_original>
